<compile_context>
chip_gen: v7x
topology: tpu7x:2x2x1
jax: 0.10.0
libtpu: 0.0.40
codegen_flags: <defaults>
</compile_context>

<pallas_src>
import jax
import jax.numpy as jnp
from jax.experimental import pallas as pl
from jax.experimental.pallas import tpu as pltpu

LANE = 128
SUBLANE = 8


def _round_up(x, m):
    return ((x + m - 1) // m) * m


# ------------------------------ fused kernel --------------------------------

def make_cnn2seq_kernel(Bp, n_layers, Hp, Vp, max_len):
    """One kernel: encoder + full decoder time loop, everything VMEM-resident."""

    def kernel(*refs):
        (patches_ref, conv_w_ref, conv_b_ref, pool_ref,
         enc_w_ref, enc_b_ref, emb_ref,
         wih0_emb_ref, wih0_enc_ref, bih0_ref, whh0_ref, bhh0_ref) = refs[:12]
        idx = 12
        extra = []
        for _ in range(1, n_layers):
            extra.append(refs[idx:idx + 4])        # (wih, bih, whh, bhh)
            idx += 4
        fc_w_ref, fc_b_ref = refs[idx], refs[idx + 1]
        out_ref = refs[idx + 2]                    # [max_len, Bp, Vp]

        f32 = jnp.float32

        # ---------------- encoder (runs once, stays in VMEM) ----------------
        conv = jnp.maximum(
            jnp.dot(patches_ref[...], conv_w_ref[...],
                    preferred_element_type=f32) + conv_b_ref[...],
            0.0)                                                   # [B*HW, Cp]
        # spatial mean-pool as a block-diagonal averaging matmul (MXU slack)
        pooled = jnp.dot(pool_ref[...], conv,
                         preferred_element_type=f32)               # [Bp, Cp]
        enc = jnp.tanh(
            jnp.dot(pooled, enc_w_ref[...],
                    preferred_element_type=f32) + enc_b_ref[...])  # [Bp, Hp]

        # ---------------- hoisted decoder constants -------------------------
        # layer-0 input gates are constant across t (reference input bug):
        # x0 = concat(emb, enc) split into two dots (no in-kernel concat).
        gi0 = (jnp.dot(emb_ref[...], wih0_emb_ref[...], preferred_element_type=f32)
               + jnp.dot(enc, wih0_enc_ref[...], preferred_element_type=f32)
               + bih0_ref[...])                                    # [Bp, 3*Hp]

        wih = [None] + [e[0][...] for e in extra]
        whh = [whh0_ref[...]] + [e[2][...] for e in extra]
        # hoisted bias broadcasts (JAX does not CSE broadcast_in_dim in a loop)
        gi_b = [None] + [jnp.broadcast_to(e[1][...], (Bp, 3 * Hp)) for e in extra]
        gh_b = ([jnp.broadcast_to(bhh0_ref[...], (Bp, 3 * Hp))]
                + [jnp.broadcast_to(e[3][...], (Bp, 3 * Hp)) for e in extra])
        fcw = fc_w_ref[...]
        fcb = jnp.broadcast_to(fc_b_ref[...], (Bp, Vp))

        # outputs[0] stays zero (reference never writes it)
        out_ref[0] = jnp.zeros((Bp, Vp), f32)

        # ---------------- decoder time loop (in-kernel, unrolled) -----------
        def step(t, hs):
            new_hs = []
            x = None
            for l in range(n_layers):
                h = hs[l]
                if l == 0:
                    gi = gi0                                        # hoisted
                else:
                    gi = jnp.dot(x, wih[l], preferred_element_type=f32) + gi_b[l]
                gh = jnp.dot(h, whh[l], preferred_element_type=f32) + gh_b[l]
                # PyTorch GRU gate order (r, z, n); 128-aligned lane slices
                r = jax.nn.sigmoid(gi[:, 0:Hp] + gh[:, 0:Hp])
                z = jax.nn.sigmoid(gi[:, Hp:2 * Hp] + gh[:, Hp:2 * Hp])
                n = jnp.tanh(gi[:, 2 * Hp:3 * Hp] + r * gh[:, 2 * Hp:3 * Hp])
                h_new = (1.0 - z) * n + z * h
                new_hs.append(h_new)
                x = h_new
            # lane-dense [Bp, Vp] store into the VMEM-resident output slab
            out_ref[t] = jnp.dot(x, fcw, preferred_element_type=f32) + fcb
            return tuple(new_hs)

        hs0 = tuple(enc for _ in range(n_layers))   # hidden init = enc_output
        jax.lax.fori_loop(1, max_len, step, hs0, unroll=True)

    return kernel


# ------------------------------ forward wrapper ------------------------------

def cnn2seq_forward(src, trg, params, teacher_forcing_ratio=0.5):
    # teacher_forcing_ratio kept for interface fidelity; it is dead code in the
    # reference (`input` vs `_input` bug), so no RNG is needed here.
    del teacher_forcing_ratio
    max_len, batch = trg.shape
    hid, vocab = params["hid"], params["vocab"]
    Hp, Vp = params["Hp"], params["Vp"]
    n_layers = params["n_layers"]
    k = params["ksize"]
    Bp = _round_up(batch, SUBLANE)

    if max_len <= 1:
        return jnp.zeros((max_len, batch, vocab), jnp.float32)

    # --- glue: NCHW -> NHWC, 'same' pad, flattened im2col ---
    x = jnp.transpose(src, (0, 2, 3, 1))
    B, H, W, Cin = x.shape
    p = (k - 1) // 2
    xpad = jnp.pad(x, ((0, 0), (p, p), (p, p), (0, 0)))
    cols = [xpad[:, dh:dh + H, dw:dw + W, :] for dh in range(k) for dw in range(k)]
    patches = jnp.concatenate(cols, axis=-1).reshape(B * H * W, k * k * Cin)
    HW = H * W

    # block-diagonal averaging matrix for the spatial mean-pool (MXU-friendly)
    pool = jnp.repeat(jnp.eye(Bp, B, dtype=jnp.float32), HW, axis=1) / float(HW)

    # decoder input embedding for trg[0] (constant across t), batch-padded
    emb = jnp.take(params["embedding"], trg[0, :], axis=0)          # [B, E]
    emb0 = jnp.zeros((Bp, emb.shape[1]), jnp.float32).at[:B].set(emb)

    args = [patches, params["conv_w"], params["conv_b"], pool,
            params["enc_w"], params["enc_b"], emb0,
            params["wih0_emb"], params["wih0_enc"], params["bih"][0],
            params["whh"][0], params["bhh"][0]]
    for l in range(1, n_layers):
        args += [params["wih"][l], params["bih"][l],
                 params["whh"][l], params["bhh"][l]]
    args += [params["fc_w"], params["fc_b"]]

    vspec = pl.BlockSpec(memory_space=pltpu.MemorySpace.VMEM)
    out_pad = pl.pallas_call(
        make_cnn2seq_kernel(Bp, n_layers, Hp, Vp, max_len),
        out_shape=jax.ShapeDtypeStruct((max_len, Bp, Vp), jnp.float32),
        in_specs=[vspec] * len(args),
        out_specs=vspec,
    )(*args)

    # slice off batch / vocab padding (trivial HBM slice in the wrapper)
    return out_pad[:, :batch, :vocab]


# ------------------------------ parameter init ------------------------------

def _nrm(k, shape, scale=0.1):
    return scale * jax.random.normal(k, shape, jnp.float32)


def _pad2(a, rows, cols):
    out = jnp.zeros((rows, cols), jnp.float32)
    return out.at[:a.shape[0], :a.shape[1]].set(a)


def _gate_slab(key, din, din_pad, hid, Hp):
    """[din, 3, hid] random weights placed into a zero [din_pad, 3*Hp] slab."""
    w = _nrm(key, (din, 3, hid))
    slab = jnp.zeros((din_pad, 3 * Hp), jnp.float32)
    for g in range(3):
        slab = slab.at[:din, g * Hp:g * Hp + hid].set(w[:, g, :])
    return slab


def _gate_bias(key, hid, Hp):
    b = _nrm(key, (3, hid))
    slab = jnp.zeros((1, 3 * Hp), jnp.float32)
    for g in range(3):
        slab = slab.at[0, g * Hp:g * Hp + hid].set(b[g])
    return slab


def init_params(key, *, cin, cout, ksize, hid, emb, vocab, n_layers):
    Hp = _round_up(hid, LANE)
    Vp = _round_up(vocab, LANE)
    Cp = _round_up(cout, LANE)

    n_keys = 7 + 5 + 4 * (n_layers - 1)
    ks = iter(jax.random.split(key, n_keys))

    # PyTorch conv weight [Cout, Cin, kh, kw] -> flattened & lane-padded
    conv_w_pt = _nrm(next(ks), (cout, cin, ksize, ksize))
    conv_w = jnp.transpose(conv_w_pt, (2, 3, 1, 0)).reshape(ksize * ksize * cin, cout)

    params = {
        "ksize": ksize, "n_layers": n_layers,
        "hid": hid, "vocab": vocab, "Hp": Hp, "Vp": Vp, "Cp": Cp,
        "conv_w": _pad2(conv_w, ksize * ksize * cin, Cp),
        "conv_b": _pad2(_nrm(next(ks), (1, cout)), 1, Cp),
        "enc_w": _pad2(_nrm(next(ks), (cout, hid)), Cp, Hp),
        "enc_b": _pad2(_nrm(next(ks), (1, hid)), 1, Hp),
        "embedding": _nrm(next(ks), (vocab, emb)),
        "fc_w": _pad2(_nrm(next(ks), (hid, vocab)), Hp, Vp),
        "fc_b": _pad2(_nrm(next(ks), (1, vocab)), 1, Vp),
    }
    # layer 0: input = concat(emb, enc) -> split into two K slabs (no concat)
    params["wih0_emb"] = _gate_slab(next(ks), emb, emb, hid, Hp)
    params["wih0_enc"] = _gate_slab(next(ks), hid, Hp, hid, Hp)
    wih = [None]
    bih = [_gate_bias(next(ks), hid, Hp)]
    whh = [_gate_slab(next(ks), hid, Hp, hid, Hp)]
    bhh = [_gate_bias(next(ks), hid, Hp)]
    for _ in range(1, n_layers):
        wih.append(_gate_slab(next(ks), hid, Hp, hid, Hp))
        bih.append(_gate_bias(next(ks), hid, Hp))
        whh.append(_gate_slab(next(ks), hid, Hp, hid, Hp))
        bhh.append(_gate_bias(next(ks), hid, Hp))
    params.update({"wih": wih, "bih": bih, "whh": whh, "bhh": bhh})
    return params


# ---------------------------------- main ------------------------------------

if __name__ == "__main__":
    B, CIN, IMG = 2, 4, 16
    COUT, KSIZE = 8, 3
    HID, EMB, VOCAB, NLAYERS, MAXLEN = 32, 16, 20, 2, 8

    root = jax.random.PRNGKey(0)
    k_params, k_src, k_trg = jax.random.split(root, 3)

    params = init_params(k_params, cin=CIN, cout=COUT, ksize=KSIZE,
                         hid=HID, emb=EMB, vocab=VOCAB, n_layers=NLAYERS)

    src = jax.random.normal(k_src, (B, CIN, IMG, IMG), jnp.float32)      # NCHW
    trg = jax.random.randint(k_trg, (MAXLEN, B), 0, VOCAB, jnp.int32)    # [max_len, batch]

    out = cnn2seq_forward(src, trg, params)
    out = jax.block_until_ready(out)

    assert out.shape == (MAXLEN, B, VOCAB)
    assert bool(jnp.all(out[0] == 0.0))           # outputs[0] stays zero
    assert bool(jnp.all(jnp.isfinite(out)))
    print("KERNEL_OK")
</pallas_src>

<mosaic_0001>
module attributes {stable_mosaic.version = 11 : i64} {
  func.func @kernel(%arg0: memref<512x36xf32, #tpu.memory_space<vmem>>, %arg1: memref<36x128xf32, #tpu.memory_space<vmem>>, %arg2: memref<1x128xf32, #tpu.memory_space<vmem>>, %arg3: memref<8x512xf32, #tpu.memory_space<vmem>>, %arg4: memref<128x128xf32, #tpu.memory_space<vmem>>, %arg5: memref<1x128xf32, #tpu.memory_space<vmem>>, %arg6: memref<8x16xf32, #tpu.memory_space<vmem>>, %arg7: memref<16x384xf32, #tpu.memory_space<vmem>>, %arg8: memref<128x384xf32, #tpu.memory_space<vmem>>, %arg9: memref<1x384xf32, #tpu.memory_space<vmem>>, %arg10: memref<128x384xf32, #tpu.memory_space<vmem>>, %arg11: memref<1x384xf32, #tpu.memory_space<vmem>>, %arg12: memref<128x384xf32, #tpu.memory_space<vmem>>, %arg13: memref<1x384xf32, #tpu.memory_space<vmem>>, %arg14: memref<128x384xf32, #tpu.memory_space<vmem>>, %arg15: memref<1x384xf32, #tpu.memory_space<vmem>>, %arg16: memref<128x128xf32, #tpu.memory_space<vmem>>, %arg17: memref<1x128xf32, #tpu.memory_space<vmem>>, %arg18: memref<8x8x128xf32, #tpu.memory_space<vmem>>) attributes {dimension_semantics = [], scalar_prefetch = 0 : i64, scratch_operands = 0 : i64, tpu.core_type = #tpu.core_type<tc>} {
    %c0 = arith.constant 0 : index
    %c0_0 = arith.constant 0 : index
    %0 = vector.load %arg0[%c0, %c0_0] : memref<512x36xf32, #tpu.memory_space<vmem>>, vector<512x36xf32>
    %c0_1 = arith.constant 0 : index
    %c0_2 = arith.constant 0 : index
    %1 = vector.load %arg1[%c0_1, %c0_2] : memref<36x128xf32, #tpu.memory_space<vmem>>, vector<36x128xf32>
    %cst = arith.constant dense<0.000000e+00> : vector<512x128xf32>
    %2 = tpu.matmul %0, %1, %cst {dimension_numbers = #tpu.dot_dimension_numbers<[1], [0], [0], [1], [0, 0, 1, 1], [], []>} : vector<512x36xf32>, vector<36x128xf32>, vector<512x128xf32> -> vector<512x128xf32>
    %c0_3 = arith.constant 0 : index
    %c0_4 = arith.constant 0 : index
    %3 = vector.load %arg2[%c0_3, %c0_4] : memref<1x128xf32, #tpu.memory_space<vmem>>, vector<1x128xf32>
    %4 = vector.broadcast %3 : vector<1x128xf32> to vector<512x128xf32>
    %5 = arith.addf %2, %4 : vector<512x128xf32>
    %cst_5 = arith.constant 0.000000e+00 : f32
    %6 = vector.broadcast %cst_5 : f32 to vector<512x128xf32>
    %7 = arith.maximumf %5, %6 : vector<512x128xf32>
    %c0_6 = arith.constant 0 : index
    %c0_7 = arith.constant 0 : index
    %8 = vector.load %arg3[%c0_6, %c0_7] : memref<8x512xf32, #tpu.memory_space<vmem>>, vector<8x512xf32>
    %cst_8 = arith.constant dense<0.000000e+00> : vector<8x128xf32>
    %9 = tpu.matmul %8, %7, %cst_8 {dimension_numbers = #tpu.dot_dimension_numbers<[1], [0], [0], [1], [0, 0, 1, 1], [], []>} : vector<8x512xf32>, vector<512x128xf32>, vector<8x128xf32> -> vector<8x128xf32>
    %c0_9 = arith.constant 0 : index
    %c0_10 = arith.constant 0 : index
    %10 = vector.load %arg4[%c0_9, %c0_10] : memref<128x128xf32, #tpu.memory_space<vmem>>, vector<128x128xf32>
    %cst_11 = arith.constant dense<0.000000e+00> : vector<8x128xf32>
    %11 = tpu.matmul %9, %10, %cst_11 {dimension_numbers = #tpu.dot_dimension_numbers<[1], [0], [0], [1], [0, 0, 1, 1], [], []>} : vector<8x128xf32>, vector<128x128xf32>, vector<8x128xf32> -> vector<8x128xf32>
    %c0_12 = arith.constant 0 : index
    %c0_13 = arith.constant 0 : index
    %12 = vector.load %arg5[%c0_12, %c0_13] : memref<1x128xf32, #tpu.memory_space<vmem>>, vector<1x128xf32>
    %13 = vector.broadcast %12 : vector<1x128xf32> to vector<8x128xf32>
    %14 = arith.addf %11, %13 : vector<8x128xf32>
    %15 = math.tanh %14 : vector<8x128xf32>
    %c0_14 = arith.constant 0 : index
    %c0_15 = arith.constant 0 : index
    %16 = vector.load %arg6[%c0_14, %c0_15] : memref<8x16xf32, #tpu.memory_space<vmem>>, vector<8x16xf32>
    %c0_16 = arith.constant 0 : index
    %c0_17 = arith.constant 0 : index
    %17 = vector.load %arg7[%c0_16, %c0_17] : memref<16x384xf32, #tpu.memory_space<vmem>>, vector<16x384xf32>
    %cst_18 = arith.constant dense<0.000000e+00> : vector<8x384xf32>
    %18 = tpu.matmul %16, %17, %cst_18 {dimension_numbers = #tpu.dot_dimension_numbers<[1], [0], [0], [1], [0, 0, 1, 1], [], []>} : vector<8x16xf32>, vector<16x384xf32>, vector<8x384xf32> -> vector<8x384xf32>
    %c0_19 = arith.constant 0 : index
    %c0_20 = arith.constant 0 : index
    %19 = vector.load %arg8[%c0_19, %c0_20] : memref<128x384xf32, #tpu.memory_space<vmem>>, vector<128x384xf32>
    %cst_21 = arith.constant dense<0.000000e+00> : vector<8x384xf32>
    %20 = tpu.matmul %15, %19, %cst_21 {dimension_numbers = #tpu.dot_dimension_numbers<[1], [0], [0], [1], [0, 0, 1, 1], [], []>} : vector<8x128xf32>, vector<128x384xf32>, vector<8x384xf32> -> vector<8x384xf32>
    %21 = arith.addf %18, %20 : vector<8x384xf32>
    %c0_22 = arith.constant 0 : index
    %c0_23 = arith.constant 0 : index
    %22 = vector.load %arg9[%c0_22, %c0_23] : memref<1x384xf32, #tpu.memory_space<vmem>>, vector<1x384xf32>
    %23 = vector.broadcast %22 : vector<1x384xf32> to vector<8x384xf32>
    %24 = arith.addf %21, %23 : vector<8x384xf32>
    %c0_24 = arith.constant 0 : index
    %c0_25 = arith.constant 0 : index
    %25 = vector.load %arg12[%c0_24, %c0_25] : memref<128x384xf32, #tpu.memory_space<vmem>>, vector<128x384xf32>
    %c0_26 = arith.constant 0 : index
    %c0_27 = arith.constant 0 : index
    %26 = vector.load %arg10[%c0_26, %c0_27] : memref<128x384xf32, #tpu.memory_space<vmem>>, vector<128x384xf32>
    %c0_28 = arith.constant 0 : index
    %c0_29 = arith.constant 0 : index
    %27 = vector.load %arg14[%c0_28, %c0_29] : memref<128x384xf32, #tpu.memory_space<vmem>>, vector<128x384xf32>
    %c0_30 = arith.constant 0 : index
    %c0_31 = arith.constant 0 : index
    %28 = vector.load %arg13[%c0_30, %c0_31] : memref<1x384xf32, #tpu.memory_space<vmem>>, vector<1x384xf32>
    %29 = vector.shape_cast %28 : vector<1x384xf32> to vector<1x384xf32>
    %30 = vector.broadcast %29 : vector<1x384xf32> to vector<8x384xf32>
    %c0_32 = arith.constant 0 : index
    %c0_33 = arith.constant 0 : index
    %31 = vector.load %arg11[%c0_32, %c0_33] : memref<1x384xf32, #tpu.memory_space<vmem>>, vector<1x384xf32>
    %32 = vector.shape_cast %31 : vector<1x384xf32> to vector<1x384xf32>
    %33 = vector.broadcast %32 : vector<1x384xf32> to vector<8x384xf32>
    %c0_34 = arith.constant 0 : index
    %c0_35 = arith.constant 0 : index
    %34 = vector.load %arg15[%c0_34, %c0_35] : memref<1x384xf32, #tpu.memory_space<vmem>>, vector<1x384xf32>
    %35 = vector.shape_cast %34 : vector<1x384xf32> to vector<1x384xf32>
    %36 = vector.broadcast %35 : vector<1x384xf32> to vector<8x384xf32>
    %c0_36 = arith.constant 0 : index
    %c0_37 = arith.constant 0 : index
    %37 = vector.load %arg16[%c0_36, %c0_37] : memref<128x128xf32, #tpu.memory_space<vmem>>, vector<128x128xf32>
    %c0_38 = arith.constant 0 : index
    %c0_39 = arith.constant 0 : index
    %38 = vector.load %arg17[%c0_38, %c0_39] : memref<1x128xf32, #tpu.memory_space<vmem>>, vector<1x128xf32>
    %39 = vector.shape_cast %38 : vector<1x128xf32> to vector<1x128xf32>
    %40 = vector.broadcast %39 : vector<1x128xf32> to vector<8x128xf32>
    %cst_40 = arith.constant 0.000000e+00 : f32
    %41 = vector.broadcast %cst_40 : f32 to vector<8x128xf32>
    %c0_41 = arith.constant 0 : index
    %c0_42 = arith.constant 0 : index
    %c0_43 = arith.constant 0 : index
    %42 = vector.load %arg18[%c0_41, %c0_42, %c0_43] : memref<8x8x128xf32, #tpu.memory_space<vmem>>, vector<1x8x128xf32>
    %43 = vector.shape_cast %42 : vector<1x8x128xf32> to vector<8x128xf32>
    %44 = vector.shape_cast %41 : vector<8x128xf32> to vector<1x8x128xf32>
    tpu.vector_store %arg18[%c0_41, %c0_42, %c0_43], %44 {strides = array<i32>} : memref<8x8x128xf32, #tpu.memory_space<vmem>>, vector<1x8x128xf32>,
    %c1_i32 = arith.constant 1 : i32
    %cst_44 = arith.constant dense<0.000000e+00> : vector<8x384xf32>
    %45 = tpu.matmul %15, %26, %cst_44 {dimension_numbers = #tpu.dot_dimension_numbers<[1], [0], [0], [1], [0, 0, 1, 1], [], []>} : vector<8x128xf32>, vector<128x384xf32>, vector<8x384xf32> -> vector<8x384xf32>
    %46 = arith.addf %45, %33 : vector<8x384xf32>
    %47 = vector.extract_strided_slice %24 {offsets = [0, 0], sizes = [8, 128], strides = [1, 1]} : vector<8x384xf32> to vector<8x128xf32>
    %48 = vector.extract_strided_slice %46 {offsets = [0, 0], sizes = [8, 128], strides = [1, 1]} : vector<8x384xf32> to vector<8x128xf32>
    %49 = arith.addf %47, %48 : vector<8x128xf32>
    %50 = arith.negf %49 : vector<8x128xf32>
    %51 = math.exp %50 : vector<8x128xf32>
    %cst_45 = arith.constant 1.000000e+00 : f32
    %52 = vector.broadcast %cst_45 : f32 to vector<8x128xf32>
    %53 = arith.addf %52, %51 : vector<8x128xf32>
    %54 = arith.divf %52, %53 : vector<8x128xf32>
    %55 = vector.extract_strided_slice %24 {offsets = [0, 128], sizes = [8, 128], strides = [1, 1]} : vector<8x384xf32> to vector<8x128xf32>
    %56 = vector.extract_strided_slice %46 {offsets = [0, 128], sizes = [8, 128], strides = [1, 1]} : vector<8x384xf32> to vector<8x128xf32>
    %57 = arith.addf %55, %56 : vector<8x128xf32>
    %58 = arith.negf %57 : vector<8x128xf32>
    %59 = math.exp %58 : vector<8x128xf32>
    %cst_46 = arith.constant 1.000000e+00 : f32
    %60 = vector.broadcast %cst_46 : f32 to vector<8x128xf32>
    %61 = arith.addf %60, %59 : vector<8x128xf32>
    %62 = arith.divf %60, %61 : vector<8x128xf32>
    %63 = vector.extract_strided_slice %24 {offsets = [0, 256], sizes = [8, 128], strides = [1, 1]} : vector<8x384xf32> to vector<8x128xf32>
    %64 = vector.extract_strided_slice %46 {offsets = [0, 256], sizes = [8, 128], strides = [1, 1]} : vector<8x384xf32> to vector<8x128xf32>
    %65 = arith.mulf %54, %64 : vector<8x128xf32>
    %66 = arith.addf %63, %65 : vector<8x128xf32>
    %67 = math.tanh %66 : vector<8x128xf32>
    %cst_47 = arith.constant 1.000000e+00 : f32
    %68 = vector.broadcast %cst_47 : f32 to vector<8x128xf32>
    %69 = arith.subf %68, %62 : vector<8x128xf32>
    %70 = arith.mulf %69, %67 : vector<8x128xf32>
    %71 = arith.mulf %62, %15 : vector<8x128xf32>
    %72 = arith.addf %70, %71 : vector<8x128xf32>
    %cst_48 = arith.constant dense<0.000000e+00> : vector<8x384xf32>
    %73 = tpu.matmul %72, %25, %cst_48 {dimension_numbers = #tpu.dot_dimension_numbers<[1], [0], [0], [1], [0, 0, 1, 1], [], []>} : vector<8x128xf32>, vector<128x384xf32>, vector<8x384xf32> -> vector<8x384xf32>
    %74 = arith.addf %73, %30 : vector<8x384xf32>
    %cst_49 = arith.constant dense<0.000000e+00> : vector<8x384xf32>
    %75 = tpu.matmul %15, %27, %cst_49 {dimension_numbers = #tpu.dot_dimension_numbers<[1], [0], [0], [1], [0, 0, 1, 1], [], []>} : vector<8x128xf32>, vector<128x384xf32>, vector<8x384xf32> -> vector<8x384xf32>
    %76 = arith.addf %75, %36 : vector<8x384xf32>
    %77 = vector.extract_strided_slice %74 {offsets = [0, 0], sizes = [8, 128], strides = [1, 1]} : vector<8x384xf32> to vector<8x128xf32>
    %78 = vector.extract_strided_slice %76 {offsets = [0, 0], sizes = [8, 128], strides = [1, 1]} : vector<8x384xf32> to vector<8x128xf32>
    %79 = arith.addf %77, %78 : vector<8x128xf32>
    %80 = arith.negf %79 : vector<8x128xf32>
    %81 = math.exp %80 : vector<8x128xf32>
    %cst_50 = arith.constant 1.000000e+00 : f32
    %82 = vector.broadcast %cst_50 : f32 to vector<8x128xf32>
    %83 = arith.addf %82, %81 : vector<8x128xf32>
    %84 = arith.divf %82, %83 : vector<8x128xf32>
    %85 = vector.extract_strided_slice %74 {offsets = [0, 128], sizes = [8, 128], strides = [1, 1]} : vector<8x384xf32> to vector<8x128xf32>
    %86 = vector.extract_strided_slice %76 {offsets = [0, 128], sizes = [8, 128], strides = [1, 1]} : vector<8x384xf32> to vector<8x128xf32>
    %87 = arith.addf %85, %86 : vector<8x128xf32>
    %88 = arith.negf %87 : vector<8x128xf32>
    %89 = math.exp %88 : vector<8x128xf32>
    %cst_51 = arith.constant 1.000000e+00 : f32
    %90 = vector.broadcast %cst_51 : f32 to vector<8x128xf32>
    %91 = arith.addf %90, %89 : vector<8x128xf32>
    %92 = arith.divf %90, %91 : vector<8x128xf32>
    %93 = vector.extract_strided_slice %74 {offsets = [0, 256], sizes = [8, 128], strides = [1, 1]} : vector<8x384xf32> to vector<8x128xf32>
    %94 = vector.extract_strided_slice %76 {offsets = [0, 256], sizes = [8, 128], strides = [1, 1]} : vector<8x384xf32> to vector<8x128xf32>
    %95 = arith.mulf %84, %94 : vector<8x128xf32>
    %96 = arith.addf %93, %95 : vector<8x128xf32>
    %97 = math.tanh %96 : vector<8x128xf32>
    %cst_52 = arith.constant 1.000000e+00 : f32
    %98 = vector.broadcast %cst_52 : f32 to vector<8x128xf32>
    %99 = arith.subf %98, %92 : vector<8x128xf32>
    %100 = arith.mulf %99, %97 : vector<8x128xf32>
    %101 = arith.mulf %92, %15 : vector<8x128xf32>
    %102 = arith.addf %100, %101 : vector<8x128xf32>
    %cst_53 = arith.constant dense<0.000000e+00> : vector<8x128xf32>
    %103 = tpu.matmul %102, %37, %cst_53 {dimension_numbers = #tpu.dot_dimension_numbers<[1], [0], [0], [1], [0, 0, 1, 1], [], []>} : vector<8x128xf32>, vector<128x128xf32>, vector<8x128xf32> -> vector<8x128xf32>
    %104 = arith.addf %103, %40 : vector<8x128xf32>
    %105 = arith.index_cast %c1_i32 : i32 to index
    %c0_54 = arith.constant 0 : index
    %c0_55 = arith.constant 0 : index
    %106 = vector.load %arg18[%105, %c0_54, %c0_55] : memref<8x8x128xf32, #tpu.memory_space<vmem>>, vector<1x8x128xf32>
    %107 = vector.shape_cast %106 : vector<1x8x128xf32> to vector<8x128xf32>
    %108 = vector.shape_cast %104 : vector<8x128xf32> to vector<1x8x128xf32>
    tpu.vector_store %arg18[%105, %c0_54, %c0_55], %108 {strides = array<i32>} : memref<8x8x128xf32, #tpu.memory_space<vmem>>, vector<1x8x128xf32>,
    %c2_i32 = arith.constant 2 : i32
    %cst_56 = arith.constant dense<0.000000e+00> : vector<8x384xf32>
    %109 = tpu.matmul %72, %26, %cst_56 {dimension_numbers = #tpu.dot_dimension_numbers<[1], [0], [0], [1], [0, 0, 1, 1], [], []>} : vector<8x128xf32>, vector<128x384xf32>, vector<8x384xf32> -> vector<8x384xf32>
    %110 = arith.addf %109, %33 : vector<8x384xf32>
    %111 = vector.extract_strided_slice %24 {offsets = [0, 0], sizes = [8, 128], strides = [1, 1]} : vector<8x384xf32> to vector<8x128xf32>
    %112 = vector.extract_strided_slice %110 {offsets = [0, 0], sizes = [8, 128], strides = [1, 1]} : vector<8x384xf32> to vector<8x128xf32>
    %113 = arith.addf %111, %112 : vector<8x128xf32>
    %114 = arith.negf %113 : vector<8x128xf32>
    %115 = math.exp %114 : vector<8x128xf32>
    %cst_57 = arith.constant 1.000000e+00 : f32
    %116 = vector.broadcast %cst_57 : f32 to vector<8x128xf32>
    %117 = arith.addf %116, %115 : vector<8x128xf32>
    %118 = arith.divf %116, %117 : vector<8x128xf32>
    %119 = vector.extract_strided_slice %24 {offsets = [0, 128], sizes = [8, 128], strides = [1, 1]} : vector<8x384xf32> to vector<8x128xf32>
    %120 = vector.extract_strided_slice %110 {offsets = [0, 128], sizes = [8, 128], strides = [1, 1]} : vector<8x384xf32> to vector<8x128xf32>
    %121 = arith.addf %119, %120 : vector<8x128xf32>
    %122 = arith.negf %121 : vector<8x128xf32>
    %123 = math.exp %122 : vector<8x128xf32>
    %cst_58 = arith.constant 1.000000e+00 : f32
    %124 = vector.broadcast %cst_58 : f32 to vector<8x128xf32>
    %125 = arith.addf %124, %123 : vector<8x128xf32>
    %126 = arith.divf %124, %125 : vector<8x128xf32>
    %127 = vector.extract_strided_slice %24 {offsets = [0, 256], sizes = [8, 128], strides = [1, 1]} : vector<8x384xf32> to vector<8x128xf32>
    %128 = vector.extract_strided_slice %110 {offsets = [0, 256], sizes = [8, 128], strides = [1, 1]} : vector<8x384xf32> to vector<8x128xf32>
    %129 = arith.mulf %118, %128 : vector<8x128xf32>
    %130 = arith.addf %127, %129 : vector<8x128xf32>
    %131 = math.tanh %130 : vector<8x128xf32>
    %cst_59 = arith.constant 1.000000e+00 : f32
    %132 = vector.broadcast %cst_59 : f32 to vector<8x128xf32>
    %133 = arith.subf %132, %126 : vector<8x128xf32>
    %134 = arith.mulf %133, %131 : vector<8x128xf32>
    %135 = arith.mulf %126, %72 : vector<8x128xf32>
    %136 = arith.addf %134, %135 : vector<8x128xf32>
    %cst_60 = arith.constant dense<0.000000e+00> : vector<8x384xf32>
    %137 = tpu.matmul %136, %25, %cst_60 {dimension_numbers = #tpu.dot_dimension_numbers<[1], [0], [0], [1], [0, 0, 1, 1], [], []>} : vector<8x128xf32>, vector<128x384xf32>, vector<8x384xf32> -> vector<8x384xf32>
    %138 = arith.addf %137, %30 : vector<8x384xf32>
    %cst_61 = arith.constant dense<0.000000e+00> : vector<8x384xf32>
    %139 = tpu.matmul %102, %27, %cst_61 {dimension_numbers = #tpu.dot_dimension_numbers<[1], [0], [0], [1], [0, 0, 1, 1], [], []>} : vector<8x128xf32>, vector<128x384xf32>, vector<8x384xf32> -> vector<8x384xf32>
    %140 = arith.addf %139, %36 : vector<8x384xf32>
    %141 = vector.extract_strided_slice %138 {offsets = [0, 0], sizes = [8, 128], strides = [1, 1]} : vector<8x384xf32> to vector<8x128xf32>
    %142 = vector.extract_strided_slice %140 {offsets = [0, 0], sizes = [8, 128], strides = [1, 1]} : vector<8x384xf32> to vector<8x128xf32>
    %143 = arith.addf %141, %142 : vector<8x128xf32>
    %144 = arith.negf %143 : vector<8x128xf32>
    %145 = math.exp %144 : vector<8x128xf32>
    %cst_62 = arith.constant 1.000000e+00 : f32
    %146 = vector.broadcast %cst_62 : f32 to vector<8x128xf32>
    %147 = arith.addf %146, %145 : vector<8x128xf32>
    %148 = arith.divf %146, %147 : vector<8x128xf32>
    %149 = vector.extract_strided_slice %138 {offsets = [0, 128], sizes = [8, 128], strides = [1, 1]} : vector<8x384xf32> to vector<8x128xf32>
    %150 = vector.extract_strided_slice %140 {offsets = [0, 128], sizes = [8, 128], strides = [1, 1]} : vector<8x384xf32> to vector<8x128xf32>
    %151 = arith.addf %149, %150 : vector<8x128xf32>
    %152 = arith.negf %151 : vector<8x128xf32>
    %153 = math.exp %152 : vector<8x128xf32>
    %cst_63 = arith.constant 1.000000e+00 : f32
    %154 = vector.broadcast %cst_63 : f32 to vector<8x128xf32>
    %155 = arith.addf %154, %153 : vector<8x128xf32>
    %156 = arith.divf %154, %155 : vector<8x128xf32>
    %157 = vector.extract_strided_slice %138 {offsets = [0, 256], sizes = [8, 128], strides = [1, 1]} : vector<8x384xf32> to vector<8x128xf32>
    %158 = vector.extract_strided_slice %140 {offsets = [0, 256], sizes = [8, 128], strides = [1, 1]} : vector<8x384xf32> to vector<8x128xf32>
    %159 = arith.mulf %148, %158 : vector<8x128xf32>
    %160 = arith.addf %157, %159 : vector<8x128xf32>
    %161 = math.tanh %160 : vector<8x128xf32>
    %cst_64 = arith.constant 1.000000e+00 : f32
    %162 = vector.broadcast %cst_64 : f32 to vector<8x128xf32>
    %163 = arith.subf %162, %156 : vector<8x128xf32>
    %164 = arith.mulf %163, %161 : vector<8x128xf32>
    %165 = arith.mulf %156, %102 : vector<8x128xf32>
    %166 = arith.addf %164, %165 : vector<8x128xf32>
    %cst_65 = arith.constant dense<0.000000e+00> : vector<8x128xf32>
    %167 = tpu.matmul %166, %37, %cst_65 {dimension_numbers = #tpu.dot_dimension_numbers<[1], [0], [0], [1], [0, 0, 1, 1], [], []>} : vector<8x128xf32>, vector<128x128xf32>, vector<8x128xf32> -> vector<8x128xf32>
    %168 = arith.addf %167, %40 : vector<8x128xf32>
    %169 = arith.index_cast %c2_i32 : i32 to index
    %c0_66 = arith.constant 0 : index
    %c0_67 = arith.constant 0 : index
    %170 = vector.load %arg18[%169, %c0_66, %c0_67] : memref<8x8x128xf32, #tpu.memory_space<vmem>>, vector<1x8x128xf32>
    %171 = vector.shape_cast %170 : vector<1x8x128xf32> to vector<8x128xf32>
    %172 = vector.shape_cast %168 : vector<8x128xf32> to vector<1x8x128xf32>
    tpu.vector_store %arg18[%169, %c0_66, %c0_67], %172 {strides = array<i32>} : memref<8x8x128xf32, #tpu.memory_space<vmem>>, vector<1x8x128xf32>,
    %c3_i32 = arith.constant 3 : i32
    %cst_68 = arith.constant dense<0.000000e+00> : vector<8x384xf32>
    %173 = tpu.matmul %136, %26, %cst_68 {dimension_numbers = #tpu.dot_dimension_numbers<[1], [0], [0], [1], [0, 0, 1, 1], [], []>} : vector<8x128xf32>, vector<128x384xf32>, vector<8x384xf32> -> vector<8x384xf32>
    %174 = arith.addf %173, %33 : vector<8x384xf32>
    %175 = vector.extract_strided_slice %24 {offsets = [0, 0], sizes = [8, 128], strides = [1, 1]} : vector<8x384xf32> to vector<8x128xf32>
    %176 = vector.extract_strided_slice %174 {offsets = [0, 0], sizes = [8, 128], strides = [1, 1]} : vector<8x384xf32> to vector<8x128xf32>
    %177 = arith.addf %175, %176 : vector<8x128xf32>
    %178 = arith.negf %177 : vector<8x128xf32>
    %179 = math.exp %178 : vector<8x128xf32>
    %cst_69 = arith.constant 1.000000e+00 : f32
    %180 = vector.broadcast %cst_69 : f32 to vector<8x128xf32>
    %181 = arith.addf %180, %179 : vector<8x128xf32>
    %182 = arith.divf %180, %181 : vector<8x128xf32>
    %183 = vector.extract_strided_slice %24 {offsets = [0, 128], sizes = [8, 128], strides = [1, 1]} : vector<8x384xf32> to vector<8x128xf32>
    %184 = vector.extract_strided_slice %174 {offsets = [0, 128], sizes = [8, 128], strides = [1, 1]} : vector<8x384xf32> to vector<8x128xf32>
    %185 = arith.addf %183, %184 : vector<8x128xf32>
    %186 = arith.negf %185 : vector<8x128xf32>
    %187 = math.exp %186 : vector<8x128xf32>
    %cst_70 = arith.constant 1.000000e+00 : f32
    %188 = vector.broadcast %cst_70 : f32 to vector<8x128xf32>
    %189 = arith.addf %188, %187 : vector<8x128xf32>
    %190 = arith.divf %188, %189 : vector<8x128xf32>
    %191 = vector.extract_strided_slice %24 {offsets = [0, 256], sizes = [8, 128], strides = [1, 1]} : vector<8x384xf32> to vector<8x128xf32>
    %192 = vector.extract_strided_slice %174 {offsets = [0, 256], sizes = [8, 128], strides = [1, 1]} : vector<8x384xf32> to vector<8x128xf32>
    %193 = arith.mulf %182, %192 : vector<8x128xf32>
    %194 = arith.addf %191, %193 : vector<8x128xf32>
    %195 = math.tanh %194 : vector<8x128xf32>
    %cst_71 = arith.constant 1.000000e+00 : f32
    %196 = vector.broadcast %cst_71 : f32 to vector<8x128xf32>
    %197 = arith.subf %196, %190 : vector<8x128xf32>
    %198 = arith.mulf %197, %195 : vector<8x128xf32>
    %199 = arith.mulf %190, %136 : vector<8x128xf32>
    %200 = arith.addf %198, %199 : vector<8x128xf32>
    %cst_72 = arith.constant dense<0.000000e+00> : vector<8x384xf32>
    %201 = tpu.matmul %200, %25, %cst_72 {dimension_numbers = #tpu.dot_dimension_numbers<[1], [0], [0], [1], [0, 0, 1, 1], [], []>} : vector<8x128xf32>, vector<128x384xf32>, vector<8x384xf32> -> vector<8x384xf32>
    %202 = arith.addf %201, %30 : vector<8x384xf32>
    %cst_73 = arith.constant dense<0.000000e+00> : vector<8x384xf32>
    %203 = tpu.matmul %166, %27, %cst_73 {dimension_numbers = #tpu.dot_dimension_numbers<[1], [0], [0], [1], [0, 0, 1, 1], [], []>} : vector<8x128xf32>, vector<128x384xf32>, vector<8x384xf32> -> vector<8x384xf32>
    %204 = arith.addf %203, %36 : vector<8x384xf32>
    %205 = vector.extract_strided_slice %202 {offsets = [0, 0], sizes = [8, 128], strides = [1, 1]} : vector<8x384xf32> to vector<8x128xf32>
    %206 = vector.extract_strided_slice %204 {offsets = [0, 0], sizes = [8, 128], strides = [1, 1]} : vector<8x384xf32> to vector<8x128xf32>
    %207 = arith.addf %205, %206 : vector<8x128xf32>
    %208 = arith.negf %207 : vector<8x128xf32>
    %209 = math.exp %208 : vector<8x128xf32>
    %cst_74 = arith.constant 1.000000e+00 : f32
    %210 = vector.broadcast %cst_74 : f32 to vector<8x128xf32>
    %211 = arith.addf %210, %209 : vector<8x128xf32>
    %212 = arith.divf %210, %211 : vector<8x128xf32>
    %213 = vector.extract_strided_slice %202 {offsets = [0, 128], sizes = [8, 128], strides = [1, 1]} : vector<8x384xf32> to vector<8x128xf32>
    %214 = vector.extract_strided_slice %204 {offsets = [0, 128], sizes = [8, 128], strides = [1, 1]} : vector<8x384xf32> to vector<8x128xf32>
    %215 = arith.addf %213, %214 : vector<8x128xf32>
    %216 = arith.negf %215 : vector<8x128xf32>
    %217 = math.exp %216 : vector<8x128xf32>
    %cst_75 = arith.constant 1.000000e+00 : f32
    %218 = vector.broadcast %cst_75 : f32 to vector<8x128xf32>
    %219 = arith.addf %218, %217 : vector<8x128xf32>
    %220 = arith.divf %218, %219 : vector<8x128xf32>
    %221 = vector.extract_strided_slice %202 {offsets = [0, 256], sizes = [8, 128], strides = [1, 1]} : vector<8x384xf32> to vector<8x128xf32>
    %222 = vector.extract_strided_slice %204 {offsets = [0, 256], sizes = [8, 128], strides = [1, 1]} : vector<8x384xf32> to vector<8x128xf32>
    %223 = arith.mulf %212, %222 : vector<8x128xf32>
    %224 = arith.addf %221, %223 : vector<8x128xf32>
    %225 = math.tanh %224 : vector<8x128xf32>
    %cst_76 = arith.constant 1.000000e+00 : f32
    %226 = vector.broadcast %cst_76 : f32 to vector<8x128xf32>
    %227 = arith.subf %226, %220 : vector<8x128xf32>
    %228 = arith.mulf %227, %225 : vector<8x128xf32>
    %229 = arith.mulf %220, %166 : vector<8x128xf32>
    %230 = arith.addf %228, %229 : vector<8x128xf32>
    %cst_77 = arith.constant dense<0.000000e+00> : vector<8x128xf32>
    %231 = tpu.matmul %230, %37, %cst_77 {dimension_numbers = #tpu.dot_dimension_numbers<[1], [0], [0], [1], [0, 0, 1, 1], [], []>} : vector<8x128xf32>, vector<128x128xf32>, vector<8x128xf32> -> vector<8x128xf32>
    %232 = arith.addf %231, %40 : vector<8x128xf32>
    %233 = arith.index_cast %c3_i32 : i32 to index
    %c0_78 = arith.constant 0 : index
    %c0_79 = arith.constant 0 : index
    %234 = vector.load %arg18[%233, %c0_78, %c0_79] : memref<8x8x128xf32, #tpu.memory_space<vmem>>, vector<1x8x128xf32>
    %235 = vector.shape_cast %234 : vector<1x8x128xf32> to vector<8x128xf32>
    %236 = vector.shape_cast %232 : vector<8x128xf32> to vector<1x8x128xf32>
    tpu.vector_store %arg18[%233, %c0_78, %c0_79], %236 {strides = array<i32>} : memref<8x8x128xf32, #tpu.memory_space<vmem>>, vector<1x8x128xf32>,
    %c4_i32 = arith.constant 4 : i32
    %cst_80 = arith.constant dense<0.000000e+00> : vector<8x384xf32>
    %237 = tpu.matmul %200, %26, %cst_80 {dimension_numbers = #tpu.dot_dimension_numbers<[1], [0], [0], [1], [0, 0, 1, 1], [], []>} : vector<8x128xf32>, vector<128x384xf32>, vector<8x384xf32> -> vector<8x384xf32>
    %238 = arith.addf %237, %33 : vector<8x384xf32>
    %239 = vector.extract_strided_slice %24 {offsets = [0, 0], sizes = [8, 128], strides = [1, 1]} : vector<8x384xf32> to vector<8x128xf32>
    %240 = vector.extract_strided_slice %238 {offsets = [0, 0], sizes = [8, 128], strides = [1, 1]} : vector<8x384xf32> to vector<8x128xf32>
    %241 = arith.addf %239, %240 : vector<8x128xf32>
    %242 = arith.negf %241 : vector<8x128xf32>
    %243 = math.exp %242 : vector<8x128xf32>
    %cst_81 = arith.constant 1.000000e+00 : f32
    %244 = vector.broadcast %cst_81 : f32 to vector<8x128xf32>
    %245 = arith.addf %244, %243 : vector<8x128xf32>
    %246 = arith.divf %244, %245 : vector<8x128xf32>
    %247 = vector.extract_strided_slice %24 {offsets = [0, 128], sizes = [8, 128], strides = [1, 1]} : vector<8x384xf32> to vector<8x128xf32>
    %248 = vector.extract_strided_slice %238 {offsets = [0, 128], sizes = [8, 128], strides = [1, 1]} : vector<8x384xf32> to vector<8x128xf32>
    %249 = arith.addf %247, %248 : vector<8x128xf32>
    %250 = arith.negf %249 : vector<8x128xf32>
    %251 = math.exp %250 : vector<8x128xf32>
    %cst_82 = arith.constant 1.000000e+00 : f32
    %252 = vector.broadcast %cst_82 : f32 to vector<8x128xf32>
    %253 = arith.addf %252, %251 : vector<8x128xf32>
    %254 = arith.divf %252, %253 : vector<8x128xf32>
    %255 = vector.extract_strided_slice %24 {offsets = [0, 256], sizes = [8, 128], strides = [1, 1]} : vector<8x384xf32> to vector<8x128xf32>
    %256 = vector.extract_strided_slice %238 {offsets = [0, 256], sizes = [8, 128], strides = [1, 1]} : vector<8x384xf32> to vector<8x128xf32>
    %257 = arith.mulf %246, %256 : vector<8x128xf32>
    %258 = arith.addf %255, %257 : vector<8x128xf32>
    %259 = math.tanh %258 : vector<8x128xf32>
    %cst_83 = arith.constant 1.000000e+00 : f32
    %260 = vector.broadcast %cst_83 : f32 to vector<8x128xf32>
    %261 = arith.subf %260, %254 : vector<8x128xf32>
    %262 = arith.mulf %261, %259 : vector<8x128xf32>
    %263 = arith.mulf %254, %200 : vector<8x128xf32>
    %264 = arith.addf %262, %263 : vector<8x128xf32>
    %cst_84 = arith.constant dense<0.000000e+00> : vector<8x384xf32>
    %265 = tpu.matmul %264, %25, %cst_84 {dimension_numbers = #tpu.dot_dimension_numbers<[1], [0], [0], [1], [0, 0, 1, 1], [], []>} : vector<8x128xf32>, vector<128x384xf32>, vector<8x384xf32> -> vector<8x384xf32>
    %266 = arith.addf %265, %30 : vector<8x384xf32>
    %cst_85 = arith.constant dense<0.000000e+00> : vector<8x384xf32>
    %267 = tpu.matmul %230, %27, %cst_85 {dimension_numbers = #tpu.dot_dimension_numbers<[1], [0], [0], [1], [0, 0, 1, 1], [], []>} : vector<8x128xf32>, vector<128x384xf32>, vector<8x384xf32> -> vector<8x384xf32>
    %268 = arith.addf %267, %36 : vector<8x384xf32>
    %269 = vector.extract_strided_slice %266 {offsets = [0, 0], sizes = [8, 128], strides = [1, 1]} : vector<8x384xf32> to vector<8x128xf32>
    %270 = vector.extract_strided_slice %268 {offsets = [0, 0], sizes = [8, 128], strides = [1, 1]} : vector<8x384xf32> to vector<8x128xf32>
    %271 = arith.addf %269, %270 : vector<8x128xf32>
    %272 = arith.negf %271 : vector<8x128xf32>
    %273 = math.exp %272 : vector<8x128xf32>
    %cst_86 = arith.constant 1.000000e+00 : f32
    %274 = vector.broadcast %cst_86 : f32 to vector<8x128xf32>
    %275 = arith.addf %274, %273 : vector<8x128xf32>
    %276 = arith.divf %274, %275 : vector<8x128xf32>
    %277 = vector.extract_strided_slice %266 {offsets = [0, 128], sizes = [8, 128], strides = [1, 1]} : vector<8x384xf32> to vector<8x128xf32>
    %278 = vector.extract_strided_slice %268 {offsets = [0, 128], sizes = [8, 128], strides = [1, 1]} : vector<8x384xf32> to vector<8x128xf32>
    %279 = arith.addf %277, %278 : vector<8x128xf32>
    %280 = arith.negf %279 : vector<8x128xf32>
    %281 = math.exp %280 : vector<8x128xf32>
    %cst_87 = arith.constant 1.000000e+00 : f32
    %282 = vector.broadcast %cst_87 : f32 to vector<8x128xf32>
    %283 = arith.addf %282, %281 : vector<8x128xf32>
    %284 = arith.divf %282, %283 : vector<8x128xf32>
    %285 = vector.extract_strided_slice %266 {offsets = [0, 256], sizes = [8, 128], strides = [1, 1]} : vector<8x384xf32> to vector<8x128xf32>
    %286 = vector.extract_strided_slice %268 {offsets = [0, 256], sizes = [8, 128], strides = [1, 1]} : vector<8x384xf32> to vector<8x128xf32>
    %287 = arith.mulf %276, %286 : vector<8x128xf32>
    %288 = arith.addf %285, %287 : vector<8x128xf32>
    %289 = math.tanh %288 : vector<8x128xf32>
    %cst_88 = arith.constant 1.000000e+00 : f32
    %290 = vector.broadcast %cst_88 : f32 to vector<8x128xf32>
    %291 = arith.subf %290, %284 : vector<8x128xf32>
    %292 = arith.mulf %291, %289 : vector<8x128xf32>
    %293 = arith.mulf %284, %230 : vector<8x128xf32>
    %294 = arith.addf %292, %293 : vector<8x128xf32>
    %cst_89 = arith.constant dense<0.000000e+00> : vector<8x128xf32>
    %295 = tpu.matmul %294, %37, %cst_89 {dimension_numbers = #tpu.dot_dimension_numbers<[1], [0], [0], [1], [0, 0, 1, 1], [], []>} : vector<8x128xf32>, vector<128x128xf32>, vector<8x128xf32> -> vector<8x128xf32>
    %296 = arith.addf %295, %40 : vector<8x128xf32>
    %297 = arith.index_cast %c4_i32 : i32 to index
    %c0_90 = arith.constant 0 : index
    %c0_91 = arith.constant 0 : index
    %298 = vector.load %arg18[%297, %c0_90, %c0_91] : memref<8x8x128xf32, #tpu.memory_space<vmem>>, vector<1x8x128xf32>
    %299 = vector.shape_cast %298 : vector<1x8x128xf32> to vector<8x128xf32>
    %300 = vector.shape_cast %296 : vector<8x128xf32> to vector<1x8x128xf32>
    tpu.vector_store %arg18[%297, %c0_90, %c0_91], %300 {strides = array<i32>} : memref<8x8x128xf32, #tpu.memory_space<vmem>>, vector<1x8x128xf32>,
    %c5_i32 = arith.constant 5 : i32
    %cst_92 = arith.constant dense<0.000000e+00> : vector<8x384xf32>
    %301 = tpu.matmul %264, %26, %cst_92 {dimension_numbers = #tpu.dot_dimension_numbers<[1], [0], [0], [1], [0, 0, 1, 1], [], []>} : vector<8x128xf32>, vector<128x384xf32>, vector<8x384xf32> -> vector<8x384xf32>
    %302 = arith.addf %301, %33 : vector<8x384xf32>
    %303 = vector.extract_strided_slice %24 {offsets = [0, 0], sizes = [8, 128], strides = [1, 1]} : vector<8x384xf32> to vector<8x128xf32>
    %304 = vector.extract_strided_slice %302 {offsets = [0, 0], sizes = [8, 128], strides = [1, 1]} : vector<8x384xf32> to vector<8x128xf32>
    %305 = arith.addf %303, %304 : vector<8x128xf32>
    %306 = arith.negf %305 : vector<8x128xf32>
    %307 = math.exp %306 : vector<8x128xf32>
    %cst_93 = arith.constant 1.000000e+00 : f32
    %308 = vector.broadcast %cst_93 : f32 to vector<8x128xf32>
    %309 = arith.addf %308, %307 : vector<8x128xf32>
    %310 = arith.divf %308, %309 : vector<8x128xf32>
    %311 = vector.extract_strided_slice %24 {offsets = [0, 128], sizes = [8, 128], strides = [1, 1]} : vector<8x384xf32> to vector<8x128xf32>
    %312 = vector.extract_strided_slice %302 {offsets = [0, 128], sizes = [8, 128], strides = [1, 1]} : vector<8x384xf32> to vector<8x128xf32>
    %313 = arith.addf %311, %312 : vector<8x128xf32>
    %314 = arith.negf %313 : vector<8x128xf32>
    %315 = math.exp %314 : vector<8x128xf32>
    %cst_94 = arith.constant 1.000000e+00 : f32
    %316 = vector.broadcast %cst_94 : f32 to vector<8x128xf32>
    %317 = arith.addf %316, %315 : vector<8x128xf32>
    %318 = arith.divf %316, %317 : vector<8x128xf32>
    %319 = vector.extract_strided_slice %24 {offsets = [0, 256], sizes = [8, 128], strides = [1, 1]} : vector<8x384xf32> to vector<8x128xf32>
    %320 = vector.extract_strided_slice %302 {offsets = [0, 256], sizes = [8, 128], strides = [1, 1]} : vector<8x384xf32> to vector<8x128xf32>
    %321 = arith.mulf %310, %320 : vector<8x128xf32>
    %322 = arith.addf %319, %321 : vector<8x128xf32>
    %323 = math.tanh %322 : vector<8x128xf32>
    %cst_95 = arith.constant 1.000000e+00 : f32
    %324 = vector.broadcast %cst_95 : f32 to vector<8x128xf32>
    %325 = arith.subf %324, %318 : vector<8x128xf32>
    %326 = arith.mulf %325, %323 : vector<8x128xf32>
    %327 = arith.mulf %318, %264 : vector<8x128xf32>
    %328 = arith.addf %326, %327 : vector<8x128xf32>
    %cst_96 = arith.constant dense<0.000000e+00> : vector<8x384xf32>
    %329 = tpu.matmul %328, %25, %cst_96 {dimension_numbers = #tpu.dot_dimension_numbers<[1], [0], [0], [1], [0, 0, 1, 1], [], []>} : vector<8x128xf32>, vector<128x384xf32>, vector<8x384xf32> -> vector<8x384xf32>
    %330 = arith.addf %329, %30 : vector<8x384xf32>
    %cst_97 = arith.constant dense<0.000000e+00> : vector<8x384xf32>
    %331 = tpu.matmul %294, %27, %cst_97 {dimension_numbers = #tpu.dot_dimension_numbers<[1], [0], [0], [1], [0, 0, 1, 1], [], []>} : vector<8x128xf32>, vector<128x384xf32>, vector<8x384xf32> -> vector<8x384xf32>
    %332 = arith.addf %331, %36 : vector<8x384xf32>
    %333 = vector.extract_strided_slice %330 {offsets = [0, 0], sizes = [8, 128], strides = [1, 1]} : vector<8x384xf32> to vector<8x128xf32>
    %334 = vector.extract_strided_slice %332 {offsets = [0, 0], sizes = [8, 128], strides = [1, 1]} : vector<8x384xf32> to vector<8x128xf32>
    %335 = arith.addf %333, %334 : vector<8x128xf32>
    %336 = arith.negf %335 : vector<8x128xf32>
    %337 = math.exp %336 : vector<8x128xf32>
    %cst_98 = arith.constant 1.000000e+00 : f32
    %338 = vector.broadcast %cst_98 : f32 to vector<8x128xf32>
    %339 = arith.addf %338, %337 : vector<8x128xf32>
    %340 = arith.divf %338, %339 : vector<8x128xf32>
    %341 = vector.extract_strided_slice %330 {offsets = [0, 128], sizes = [8, 128], strides = [1, 1]} : vector<8x384xf32> to vector<8x128xf32>
    %342 = vector.extract_strided_slice %332 {offsets = [0, 128], sizes = [8, 128], strides = [1, 1]} : vector<8x384xf32> to vector<8x128xf32>
    %343 = arith.addf %341, %342 : vector<8x128xf32>
    %344 = arith.negf %343 : vector<8x128xf32>
    %345 = math.exp %344 : vector<8x128xf32>
    %cst_99 = arith.constant 1.000000e+00 : f32
    %346 = vector.broadcast %cst_99 : f32 to vector<8x128xf32>
    %347 = arith.addf %346, %345 : vector<8x128xf32>
    %348 = arith.divf %346, %347 : vector<8x128xf32>
    %349 = vector.extract_strided_slice %330 {offsets = [0, 256], sizes = [8, 128], strides = [1, 1]} : vector<8x384xf32> to vector<8x128xf32>
    %350 = vector.extract_strided_slice %332 {offsets = [0, 256], sizes = [8, 128], strides = [1, 1]} : vector<8x384xf32> to vector<8x128xf32>
    %351 = arith.mulf %340, %350 : vector<8x128xf32>
    %352 = arith.addf %349, %351 : vector<8x128xf32>
    %353 = math.tanh %352 : vector<8x128xf32>
    %cst_100 = arith.constant 1.000000e+00 : f32
    %354 = vector.broadcast %cst_100 : f32 to vector<8x128xf32>
    %355 = arith.subf %354, %348 : vector<8x128xf32>
    %356 = arith.mulf %355, %353 : vector<8x128xf32>
    %357 = arith.mulf %348, %294 : vector<8x128xf32>
    %358 = arith.addf %356, %357 : vector<8x128xf32>
    %cst_101 = arith.constant dense<0.000000e+00> : vector<8x128xf32>
    %359 = tpu.matmul %358, %37, %cst_101 {dimension_numbers = #tpu.dot_dimension_numbers<[1], [0], [0], [1], [0, 0, 1, 1], [], []>} : vector<8x128xf32>, vector<128x128xf32>, vector<8x128xf32> -> vector<8x128xf32>
    %360 = arith.addf %359, %40 : vector<8x128xf32>
    %361 = arith.index_cast %c5_i32 : i32 to index
    %c0_102 = arith.constant 0 : index
    %c0_103 = arith.constant 0 : index
    %362 = vector.load %arg18[%361, %c0_102, %c0_103] : memref<8x8x128xf32, #tpu.memory_space<vmem>>, vector<1x8x128xf32>
    %363 = vector.shape_cast %362 : vector<1x8x128xf32> to vector<8x128xf32>
    %364 = vector.shape_cast %360 : vector<8x128xf32> to vector<1x8x128xf32>
    tpu.vector_store %arg18[%361, %c0_102, %c0_103], %364 {strides = array<i32>} : memref<8x8x128xf32, #tpu.memory_space<vmem>>, vector<1x8x128xf32>,
    %c6_i32 = arith.constant 6 : i32
    %cst_104 = arith.constant dense<0.000000e+00> : vector<8x384xf32>
    %365 = tpu.matmul %328, %26, %cst_104 {dimension_numbers = #tpu.dot_dimension_numbers<[1], [0], [0], [1], [0, 0, 1, 1], [], []>} : vector<8x128xf32>, vector<128x384xf32>, vector<8x384xf32> -> vector<8x384xf32>
    %366 = arith.addf %365, %33 : vector<8x384xf32>
    %367 = vector.extract_strided_slice %24 {offsets = [0, 0], sizes = [8, 128], strides = [1, 1]} : vector<8x384xf32> to vector<8x128xf32>
    %368 = vector.extract_strided_slice %366 {offsets = [0, 0], sizes = [8, 128], strides = [1, 1]} : vector<8x384xf32> to vector<8x128xf32>
    %369 = arith.addf %367, %368 : vector<8x128xf32>
    %370 = arith.negf %369 : vector<8x128xf32>
    %371 = math.exp %370 : vector<8x128xf32>
    %cst_105 = arith.constant 1.000000e+00 : f32
    %372 = vector.broadcast %cst_105 : f32 to vector<8x128xf32>
    %373 = arith.addf %372, %371 : vector<8x128xf32>
    %374 = arith.divf %372, %373 : vector<8x128xf32>
    %375 = vector.extract_strided_slice %24 {offsets = [0, 128], sizes = [8, 128], strides = [1, 1]} : vector<8x384xf32> to vector<8x128xf32>
    %376 = vector.extract_strided_slice %366 {offsets = [0, 128], sizes = [8, 128], strides = [1, 1]} : vector<8x384xf32> to vector<8x128xf32>
    %377 = arith.addf %375, %376 : vector<8x128xf32>
    %378 = arith.negf %377 : vector<8x128xf32>
    %379 = math.exp %378 : vector<8x128xf32>
    %cst_106 = arith.constant 1.000000e+00 : f32
    %380 = vector.broadcast %cst_106 : f32 to vector<8x128xf32>
    %381 = arith.addf %380, %379 : vector<8x128xf32>
    %382 = arith.divf %380, %381 : vector<8x128xf32>
    %383 = vector.extract_strided_slice %24 {offsets = [0, 256], sizes = [8, 128], strides = [1, 1]} : vector<8x384xf32> to vector<8x128xf32>
    %384 = vector.extract_strided_slice %366 {offsets = [0, 256], sizes = [8, 128], strides = [1, 1]} : vector<8x384xf32> to vector<8x128xf32>
    %385 = arith.mulf %374, %384 : vector<8x128xf32>
    %386 = arith.addf %383, %385 : vector<8x128xf32>
    %387 = math.tanh %386 : vector<8x128xf32>
    %cst_107 = arith.constant 1.000000e+00 : f32
    %388 = vector.broadcast %cst_107 : f32 to vector<8x128xf32>
    %389 = arith.subf %388, %382 : vector<8x128xf32>
    %390 = arith.mulf %389, %387 : vector<8x128xf32>
    %391 = arith.mulf %382, %328 : vector<8x128xf32>
    %392 = arith.addf %390, %391 : vector<8x128xf32>
    %cst_108 = arith.constant dense<0.000000e+00> : vector<8x384xf32>
    %393 = tpu.matmul %392, %25, %cst_108 {dimension_numbers = #tpu.dot_dimension_numbers<[1], [0], [0], [1], [0, 0, 1, 1], [], []>} : vector<8x128xf32>, vector<128x384xf32>, vector<8x384xf32> -> vector<8x384xf32>
    %394 = arith.addf %393, %30 : vector<8x384xf32>
    %cst_109 = arith.constant dense<0.000000e+00> : vector<8x384xf32>
    %395 = tpu.matmul %358, %27, %cst_109 {dimension_numbers = #tpu.dot_dimension_numbers<[1], [0], [0], [1], [0, 0, 1, 1], [], []>} : vector<8x128xf32>, vector<128x384xf32>, vector<8x384xf32> -> vector<8x384xf32>
    %396 = arith.addf %395, %36 : vector<8x384xf32>
    %397 = vector.extract_strided_slice %394 {offsets = [0, 0], sizes = [8, 128], strides = [1, 1]} : vector<8x384xf32> to vector<8x128xf32>
    %398 = vector.extract_strided_slice %396 {offsets = [0, 0], sizes = [8, 128], strides = [1, 1]} : vector<8x384xf32> to vector<8x128xf32>
    %399 = arith.addf %397, %398 : vector<8x128xf32>
    %400 = arith.negf %399 : vector<8x128xf32>
    %401 = math.exp %400 : vector<8x128xf32>
    %cst_110 = arith.constant 1.000000e+00 : f32
    %402 = vector.broadcast %cst_110 : f32 to vector<8x128xf32>
    %403 = arith.addf %402, %401 : vector<8x128xf32>
    %404 = arith.divf %402, %403 : vector<8x128xf32>
    %405 = vector.extract_strided_slice %394 {offsets = [0, 128], sizes = [8, 128], strides = [1, 1]} : vector<8x384xf32> to vector<8x128xf32>
    %406 = vector.extract_strided_slice %396 {offsets = [0, 128], sizes = [8, 128], strides = [1, 1]} : vector<8x384xf32> to vector<8x128xf32>
    %407 = arith.addf %405, %406 : vector<8x128xf32>
    %408 = arith.negf %407 : vector<8x128xf32>
    %409 = math.exp %408 : vector<8x128xf32>
    %cst_111 = arith.constant 1.000000e+00 : f32
    %410 = vector.broadcast %cst_111 : f32 to vector<8x128xf32>
    %411 = arith.addf %410, %409 : vector<8x128xf32>
    %412 = arith.divf %410, %411 : vector<8x128xf32>
    %413 = vector.extract_strided_slice %394 {offsets = [0, 256], sizes = [8, 128], strides = [1, 1]} : vector<8x384xf32> to vector<8x128xf32>
    %414 = vector.extract_strided_slice %396 {offsets = [0, 256], sizes = [8, 128], strides = [1, 1]} : vector<8x384xf32> to vector<8x128xf32>
    %415 = arith.mulf %404, %414 : vector<8x128xf32>
    %416 = arith.addf %413, %415 : vector<8x128xf32>
    %417 = math.tanh %416 : vector<8x128xf32>
    %cst_112 = arith.constant 1.000000e+00 : f32
    %418 = vector.broadcast %cst_112 : f32 to vector<8x128xf32>
    %419 = arith.subf %418, %412 : vector<8x128xf32>
    %420 = arith.mulf %419, %417 : vector<8x128xf32>
    %421 = arith.mulf %412, %358 : vector<8x128xf32>
    %422 = arith.addf %420, %421 : vector<8x128xf32>
    %cst_113 = arith.constant dense<0.000000e+00> : vector<8x128xf32>
    %423 = tpu.matmul %422, %37, %cst_113 {dimension_numbers = #tpu.dot_dimension_numbers<[1], [0], [0], [1], [0, 0, 1, 1], [], []>} : vector<8x128xf32>, vector<128x128xf32>, vector<8x128xf32> -> vector<8x128xf32>
    %424 = arith.addf %423, %40 : vector<8x128xf32>
    %425 = arith.index_cast %c6_i32 : i32 to index
    %c0_114 = arith.constant 0 : index
    %c0_115 = arith.constant 0 : index
    %426 = vector.load %arg18[%425, %c0_114, %c0_115] : memref<8x8x128xf32, #tpu.memory_space<vmem>>, vector<1x8x128xf32>
    %427 = vector.shape_cast %426 : vector<1x8x128xf32> to vector<8x128xf32>
    %428 = vector.shape_cast %424 : vector<8x128xf32> to vector<1x8x128xf32>
    tpu.vector_store %arg18[%425, %c0_114, %c0_115], %428 {strides = array<i32>} : memref<8x8x128xf32, #tpu.memory_space<vmem>>, vector<1x8x128xf32>,
    %c7_i32 = arith.constant 7 : i32
    %cst_116 = arith.constant dense<0.000000e+00> : vector<8x384xf32>
    %429 = tpu.matmul %392, %26, %cst_116 {dimension_numbers = #tpu.dot_dimension_numbers<[1], [0], [0], [1], [0, 0, 1, 1], [], []>} : vector<8x128xf32>, vector<128x384xf32>, vector<8x384xf32> -> vector<8x384xf32>
    %430 = arith.addf %429, %33 : vector<8x384xf32>
    %431 = vector.extract_strided_slice %24 {offsets = [0, 0], sizes = [8, 128], strides = [1, 1]} : vector<8x384xf32> to vector<8x128xf32>
    %432 = vector.extract_strided_slice %430 {offsets = [0, 0], sizes = [8, 128], strides = [1, 1]} : vector<8x384xf32> to vector<8x128xf32>
    %433 = arith.addf %431, %432 : vector<8x128xf32>
    %434 = arith.negf %433 : vector<8x128xf32>
    %435 = math.exp %434 : vector<8x128xf32>
    %cst_117 = arith.constant 1.000000e+00 : f32
    %436 = vector.broadcast %cst_117 : f32 to vector<8x128xf32>
    %437 = arith.addf %436, %435 : vector<8x128xf32>
    %438 = arith.divf %436, %437 : vector<8x128xf32>
    %439 = vector.extract_strided_slice %24 {offsets = [0, 128], sizes = [8, 128], strides = [1, 1]} : vector<8x384xf32> to vector<8x128xf32>
    %440 = vector.extract_strided_slice %430 {offsets = [0, 128], sizes = [8, 128], strides = [1, 1]} : vector<8x384xf32> to vector<8x128xf32>
    %441 = arith.addf %439, %440 : vector<8x128xf32>
    %442 = arith.negf %441 : vector<8x128xf32>
    %443 = math.exp %442 : vector<8x128xf32>
    %cst_118 = arith.constant 1.000000e+00 : f32
    %444 = vector.broadcast %cst_118 : f32 to vector<8x128xf32>
    %445 = arith.addf %444, %443 : vector<8x128xf32>
    %446 = arith.divf %444, %445 : vector<8x128xf32>
    %447 = vector.extract_strided_slice %24 {offsets = [0, 256], sizes = [8, 128], strides = [1, 1]} : vector<8x384xf32> to vector<8x128xf32>
    %448 = vector.extract_strided_slice %430 {offsets = [0, 256], sizes = [8, 128], strides = [1, 1]} : vector<8x384xf32> to vector<8x128xf32>
    %449 = arith.mulf %438, %448 : vector<8x128xf32>
    %450 = arith.addf %447, %449 : vector<8x128xf32>
    %451 = math.tanh %450 : vector<8x128xf32>
    %cst_119 = arith.constant 1.000000e+00 : f32
    %452 = vector.broadcast %cst_119 : f32 to vector<8x128xf32>
    %453 = arith.subf %452, %446 : vector<8x128xf32>
    %454 = arith.mulf %453, %451 : vector<8x128xf32>
    %455 = arith.mulf %446, %392 : vector<8x128xf32>
    %456 = arith.addf %454, %455 : vector<8x128xf32>
    %cst_120 = arith.constant dense<0.000000e+00> : vector<8x384xf32>
    %457 = tpu.matmul %456, %25, %cst_120 {dimension_numbers = #tpu.dot_dimension_numbers<[1], [0], [0], [1], [0, 0, 1, 1], [], []>} : vector<8x128xf32>, vector<128x384xf32>, vector<8x384xf32> -> vector<8x384xf32>
    %458 = arith.addf %457, %30 : vector<8x384xf32>
    %cst_121 = arith.constant dense<0.000000e+00> : vector<8x384xf32>
    %459 = tpu.matmul %422, %27, %cst_121 {dimension_numbers = #tpu.dot_dimension_numbers<[1], [0], [0], [1], [0, 0, 1, 1], [], []>} : vector<8x128xf32>, vector<128x384xf32>, vector<8x384xf32> -> vector<8x384xf32>
    %460 = arith.addf %459, %36 : vector<8x384xf32>
    %461 = vector.extract_strided_slice %458 {offsets = [0, 0], sizes = [8, 128], strides = [1, 1]} : vector<8x384xf32> to vector<8x128xf32>
    %462 = vector.extract_strided_slice %460 {offsets = [0, 0], sizes = [8, 128], strides = [1, 1]} : vector<8x384xf32> to vector<8x128xf32>
    %463 = arith.addf %461, %462 : vector<8x128xf32>
    %464 = arith.negf %463 : vector<8x128xf32>
    %465 = math.exp %464 : vector<8x128xf32>
    %cst_122 = arith.constant 1.000000e+00 : f32
    %466 = vector.broadcast %cst_122 : f32 to vector<8x128xf32>
    %467 = arith.addf %466, %465 : vector<8x128xf32>
    %468 = arith.divf %466, %467 : vector<8x128xf32>
    %469 = vector.extract_strided_slice %458 {offsets = [0, 128], sizes = [8, 128], strides = [1, 1]} : vector<8x384xf32> to vector<8x128xf32>
    %470 = vector.extract_strided_slice %460 {offsets = [0, 128], sizes = [8, 128], strides = [1, 1]} : vector<8x384xf32> to vector<8x128xf32>
    %471 = arith.addf %469, %470 : vector<8x128xf32>
    %472 = arith.negf %471 : vector<8x128xf32>
    %473 = math.exp %472 : vector<8x128xf32>
    %cst_123 = arith.constant 1.000000e+00 : f32
    %474 = vector.broadcast %cst_123 : f32 to vector<8x128xf32>
    %475 = arith.addf %474, %473 : vector<8x128xf32>
    %476 = arith.divf %474, %475 : vector<8x128xf32>
    %477 = vector.extract_strided_slice %458 {offsets = [0, 256], sizes = [8, 128], strides = [1, 1]} : vector<8x384xf32> to vector<8x128xf32>
    %478 = vector.extract_strided_slice %460 {offsets = [0, 256], sizes = [8, 128], strides = [1, 1]} : vector<8x384xf32> to vector<8x128xf32>
    %479 = arith.mulf %468, %478 : vector<8x128xf32>
    %480 = arith.addf %477, %479 : vector<8x128xf32>
    %481 = math.tanh %480 : vector<8x128xf32>
    %cst_124 = arith.constant 1.000000e+00 : f32
    %482 = vector.broadcast %cst_124 : f32 to vector<8x128xf32>
    %483 = arith.subf %482, %476 : vector<8x128xf32>
    %484 = arith.mulf %483, %481 : vector<8x128xf32>
    %485 = arith.mulf %476, %422 : vector<8x128xf32>
    %486 = arith.addf %484, %485 : vector<8x128xf32>
    %cst_125 = arith.constant dense<0.000000e+00> : vector<8x128xf32>
    %487 = tpu.matmul %486, %37, %cst_125 {dimension_numbers = #tpu.dot_dimension_numbers<[1], [0], [0], [1], [0, 0, 1, 1], [], []>} : vector<8x128xf32>, vector<128x128xf32>, vector<8x128xf32> -> vector<8x128xf32>
    %488 = arith.addf %487, %40 : vector<8x128xf32>
    %489 = arith.index_cast %c7_i32 : i32 to index
    %c0_126 = arith.constant 0 : index
    %c0_127 = arith.constant 0 : index
    %490 = vector.load %arg18[%489, %c0_126, %c0_127] : memref<8x8x128xf32, #tpu.memory_space<vmem>>, vector<1x8x128xf32>
    %491 = vector.shape_cast %490 : vector<1x8x128xf32> to vector<8x128xf32>
    %492 = vector.shape_cast %488 : vector<8x128xf32> to vector<1x8x128xf32>
    tpu.vector_store %arg18[%489, %c0_126, %c0_127], %492 {strides = array<i32>} : memref<8x8x128xf32, #tpu.memory_space<vmem>>, vector<1x8x128xf32>,
    %c7_i32_128 = arith.constant 7 : i32
    return
  }
}

</mosaic_0001>

<llo_original>
// kernel: tpu_custom_call.1
$region0: #{tpu_custom_call.1}
  #allocation0 [shape = 'u32[]', space=smem, size = 0x4, offset = 0x4, fixed_abs, tag = 'smem constant byte address 0x4 - core index']
  #allocation1 [shape = 'u32[144,128]{1,0:T(1,128)}', space=vmem, size = 0x12000, scoped, tag = 'internal scratch']
  %s0 = inlined_call_operand.vmem [shape: f32[512,36], index: 0, kind: input, shape index: {}]
  %s1 = inlined_call_operand.hbm [shape: f32[36,128], index: 1, kind: input, shape index: {}]
  %s2 = inlined_call_operand.hbm [shape: f32[1,128], index: 2, kind: input, shape index: {}]
  %s3 = inlined_call_operand.hbm [shape: f32[8,512], index: 3, kind: input, shape index: {}]
  %s4 = inlined_call_operand.vmem [shape: f32[128,128], index: 4, kind: input, shape index: {}]
  %s5 = inlined_call_operand.hbm [shape: f32[1,128], index: 5, kind: input, shape index: {}]
  %s6 = inlined_call_operand.vmem [shape: f32[8,16], index: 6, kind: input, shape index: {}]
  %s7 = inlined_call_operand.vmem [shape: f32[16,384], index: 7, kind: input, shape index: {}]
  %s8 = inlined_call_operand.vmem [shape: f32[128,384], index: 8, kind: input, shape index: {}]
  %s9 = inlined_call_operand.vmem [shape: f32[1,384], index: 9, kind: input, shape index: {}]
  %s10 = inlined_call_operand.hbm [shape: f32[128,384], index: 10, kind: input, shape index: {}]
  %s11 = inlined_call_operand.vmem [shape: f32[1,384], index: 11, kind: input, shape index: {}]
  %s12 = inlined_call_operand.hbm [shape: f32[128,384], index: 12, kind: input, shape index: {}]
  %s13 = inlined_call_operand.vmem [shape: f32[1,384], index: 13, kind: input, shape index: {}]
  %s14 = inlined_call_operand.hbm [shape: f32[128,384], index: 14, kind: input, shape index: {}]
  %s15 = inlined_call_operand.vmem [shape: f32[1,384], index: 15, kind: input, shape index: {}]
  %s16 = inlined_call_operand.vmem [shape: f32[128,128], index: 16, kind: input, shape index: {}]
  %s17 = inlined_call_operand.vmem [shape: f32[1,128], index: 17, kind: input, shape index: {}]
  %s18 = inlined_call_operand.hbm [shape: f32[8,8,128], index: 18, kind: output, shape index: {}]
  %s19 = sld [smem:[#allocation0]]
  $region110: #{tpu_custom_call.1} parent=0
    _
  %s21 = ssub.s32 1, %s19
  %s22 = scalar_select 0, %s21, %s19
  $region1: #{tpu_custom_call.1} parent=0
    #allocation2 [shape = 'u8[20480]{0}', space=vmem, size = 0x5000, scoped, tag = 'input window, operand 1, single buffered']
    #allocation3 [shape = 's32[1]{0}', space=sflag, size = 0x4, scoped, tag = 'scoped memory for tpu_custom_call.1']
    #allocation4 [shape = 's32[1]{0}', space=sflag, size = 0x4, scoped, tag = 'scoped memory for tpu_custom_call.1']
    #allocation5 [shape = 'u8[512]{0}', space=vmem, size = 0x400, scoped, tag = 'input window, operand 2, single buffered']
    #allocation6 [shape = 's32[1]{0}', space=sflag, size = 0x4, scoped, tag = 'scoped memory for tpu_custom_call.1']
    #allocation7 [shape = 'u8[16384]{0}', space=vmem, size = 0x4000, scoped, tag = 'input window, operand 3, single buffered']
    #allocation8 [shape = 'u8[512]{0}', space=vmem, size = 0x400, scoped, tag = 'input window, operand 5, single buffered']
    #allocation9 [shape = 's32[1]{0}', space=sflag, size = 0x4, scoped, tag = 'scoped memory for tpu_custom_call.1']
    #allocation10 [shape = 'u8[196608]{0}', space=vmem, size = 0x30000, scoped, tag = 'input window, operand 10, single buffered']
    #allocation11 [shape = 'u8[196608]{0}', space=vmem, size = 0x30000, scoped, tag = 'input window, operand 12, single buffered']
    #allocation12 [shape = 's32[1]{0}', space=sflag, size = 0x4, scoped, tag = 'scoped memory for tpu_custom_call.1']
    #allocation13 [shape = 'u8[196608]{0}', space=vmem, size = 0x30000, scoped, tag = 'input window, operand 14, single buffered']
    #allocation14 [shape = 'u8[32768]{0}', space=vmem, size = 0x8000, scoped, tag = 'output window, operand 0, single buffered']
    %23 = vsyncpa [#allocation3], 0
    %24 = vsyncpa [#allocation6], 0
    %25 = vsyncpa [#allocation9], 0
    %26 = vsyncpa [#allocation12], 0
    %27 = vsyncpa [#allocation4], 0
    // Predicated region
    $region2: #{tpu_custom_call.1} parent=1 // pred_check
      _
    $region3: #{tpu_custom_call.1} parent=1 // pred_check_branch
      %29 = sbr.rel (0) target = $region5
    $region4: #{tpu_custom_call.1} parent=1 // pred_region
      _
    $region5: #{tpu_custom_call.1} parent=1 // pred_fallthru
      _
    // Predicated region
    $region6: #{tpu_custom_call.1} parent=1 // pred_check
      _
    $region7: #{tpu_custom_call.1} parent=1 // pred_check_branch
      %31 = sbr.rel (0) target = $region9
    $region8: #{tpu_custom_call.1} parent=1 // pred_region
      %s33 = ssub.s32 640, 640
      %34 = vsyncadd [#allocation3], %s33
      %s35 = sshll.u32 [#allocation2], 4
      %s36 = int_to_ptr.vmem [resolvable:$true] %s35
      %41 = dma.hbm_to_vmem [thread:$0]  %s1, 640, %s36, [#allocation3], 128, 128, 8
    $region9: #{tpu_custom_call.1} parent=1 // pred_fallthru
      _
    // Predicated region
    $region10: #{tpu_custom_call.1} parent=1 // pred_check
      _
    $region11: #{tpu_custom_call.1} parent=1 // pred_check_branch
      %43 = sbr.rel (0) target = $region13
    $region12: #{tpu_custom_call.1} parent=1 // pred_region
      %s45 = ssub.s32 16, 16
      %46 = vsyncadd [#allocation6], %s45
      %s48 = sshll.u32 [#allocation5], 4
      %s49 = int_to_ptr.vmem [resolvable:$true] %s48
      %51 = dma.hbm_to_vmem [thread:$0]  %s2, 16, %s49, [#allocation6]
    $region13: #{tpu_custom_call.1} parent=1 // pred_fallthru
      _
    // Predicated region
    $region14: #{tpu_custom_call.1} parent=1 // pred_check
      _
    $region15: #{tpu_custom_call.1} parent=1 // pred_check_branch
      %53 = sbr.rel (0) target = $region17
    $region16: #{tpu_custom_call.1} parent=1 // pred_region
      %s55 = ssub.s32 512, 512
      %56 = vsyncadd [#allocation6], %s55
      %s58 = sshll.u32 [#allocation7], 4
      %s59 = int_to_ptr.vmem [resolvable:$true] %s58
      %61 = dma.hbm_to_vmem [thread:$0]  %s3, 512, %s59, [#allocation6]
    $region17: #{tpu_custom_call.1} parent=1 // pred_fallthru
      _
    // Predicated region
    $region18: #{tpu_custom_call.1} parent=1 // pred_check
      _
    $region19: #{tpu_custom_call.1} parent=1 // pred_check_branch
      %63 = sbr.rel (0) target = $region21
    $region20: #{tpu_custom_call.1} parent=1 // pred_region
      _
    $region21: #{tpu_custom_call.1} parent=1 // pred_fallthru
      _
    // Predicated region
    $region22: #{tpu_custom_call.1} parent=1 // pred_check
      _
    $region23: #{tpu_custom_call.1} parent=1 // pred_check_branch
      %65 = sbr.rel (0) target = $region25
    $region24: #{tpu_custom_call.1} parent=1 // pred_region
      %s67 = ssub.s32 16, 16
      %68 = vsyncadd [#allocation9], %s67
      %s70 = sshll.u32 [#allocation8], 4
      %s71 = int_to_ptr.vmem [resolvable:$true] %s70
      %73 = dma.hbm_to_vmem [thread:$0]  %s5, 16, %s71, [#allocation9]
    $region25: #{tpu_custom_call.1} parent=1 // pred_fallthru
      _
    // Predicated region
    $region26: #{tpu_custom_call.1} parent=1 // pred_check
      _
    $region27: #{tpu_custom_call.1} parent=1 // pred_check_branch
      %75 = sbr.rel (0) target = $region29
    $region28: #{tpu_custom_call.1} parent=1 // pred_region
      _
    $region29: #{tpu_custom_call.1} parent=1 // pred_fallthru
      _
    // Predicated region
    $region30: #{tpu_custom_call.1} parent=1 // pred_check
      _
    $region31: #{tpu_custom_call.1} parent=1 // pred_check_branch
      %77 = sbr.rel (0) target = $region33
    $region32: #{tpu_custom_call.1} parent=1 // pred_region
      _
    $region33: #{tpu_custom_call.1} parent=1 // pred_fallthru
      _
    // Predicated region
    $region34: #{tpu_custom_call.1} parent=1 // pred_check
      _
    $region35: #{tpu_custom_call.1} parent=1 // pred_check_branch
      %79 = sbr.rel (0) target = $region37
    $region36: #{tpu_custom_call.1} parent=1 // pred_region
      _
    $region37: #{tpu_custom_call.1} parent=1 // pred_fallthru
      _
    // Predicated region
    $region38: #{tpu_custom_call.1} parent=1 // pred_check
      _
    $region39: #{tpu_custom_call.1} parent=1 // pred_check_branch
      %81 = sbr.rel (0) target = $region41
    $region40: #{tpu_custom_call.1} parent=1 // pred_region
      _
    $region41: #{tpu_custom_call.1} parent=1 // pred_fallthru
      _
    // Predicated region
    $region42: #{tpu_custom_call.1} parent=1 // pred_check
      _
    $region43: #{tpu_custom_call.1} parent=1 // pred_check_branch
      %83 = sbr.rel (0) target = $region45
    $region44: #{tpu_custom_call.1} parent=1 // pred_region
      %s85 = ssub.s32 6144, 6144
      %86 = vsyncadd [#allocation9], %s85
      %s87 = sshll.u32 [#allocation10], 4
      %s88 = int_to_ptr.vmem [resolvable:$true] %s87
      %93 = dma.hbm_to_vmem [thread:$0]  %s10, 6144, %s88, [#allocation9], 384, 384, 24
    $region45: #{tpu_custom_call.1} parent=1 // pred_fallthru
      _
    // Predicated region
    $region46: #{tpu_custom_call.1} parent=1 // pred_check
      _
    $region47: #{tpu_custom_call.1} parent=1 // pred_check_branch
      %95 = sbr.rel (0) target = $region49
    $region48: #{tpu_custom_call.1} parent=1 // pred_region
      _
    $region49: #{tpu_custom_call.1} parent=1 // pred_fallthru
      _
    // Predicated region
    $region50: #{tpu_custom_call.1} parent=1 // pred_check
      _
    $region51: #{tpu_custom_call.1} parent=1 // pred_check_branch
      %97 = sbr.rel (0) target = $region53
    $region52: #{tpu_custom_call.1} parent=1 // pred_region
      %s99 = ssub.s32 6144, 6144
      %100 = vsyncadd [#allocation12], %s99
      %s101 = sshll.u32 [#allocation11], 4
      %s102 = int_to_ptr.vmem [resolvable:$true] %s101
      %107 = dma.hbm_to_vmem [thread:$0]  %s12, 6144, %s102, [#allocation12], 384, 384, 24
    $region53: #{tpu_custom_call.1} parent=1 // pred_fallthru
      _
    // Predicated region
    $region54: #{tpu_custom_call.1} parent=1 // pred_check
      _
    $region55: #{tpu_custom_call.1} parent=1 // pred_check_branch
      %109 = sbr.rel (0) target = $region57
    $region56: #{tpu_custom_call.1} parent=1 // pred_region
      _
    $region57: #{tpu_custom_call.1} parent=1 // pred_fallthru
      _
    // Predicated region
    $region58: #{tpu_custom_call.1} parent=1 // pred_check
      _
    $region59: #{tpu_custom_call.1} parent=1 // pred_check_branch
      %111 = sbr.rel (0) target = $region61
    $region60: #{tpu_custom_call.1} parent=1 // pred_region
      %s113 = ssub.s32 6144, 6144
      %114 = vsyncadd [#allocation12], %s113
      %s115 = sshll.u32 [#allocation13], 4
      %s116 = int_to_ptr.vmem [resolvable:$true] %s115
      %121 = dma.hbm_to_vmem [thread:$0]  %s14, 6144, %s116, [#allocation12], 384, 384, 24
    $region61: #{tpu_custom_call.1} parent=1 // pred_fallthru
      _
    // Predicated region
    $region62: #{tpu_custom_call.1} parent=1 // pred_check
      _
    $region63: #{tpu_custom_call.1} parent=1 // pred_check_branch
      %123 = sbr.rel (0) target = $region65
    $region64: #{tpu_custom_call.1} parent=1 // pred_region
      _
    $region65: #{tpu_custom_call.1} parent=1 // pred_fallthru
      _
    // Predicated region
    $region66: #{tpu_custom_call.1} parent=1 // pred_check
      _
    $region67: #{tpu_custom_call.1} parent=1 // pred_check_branch
      %125 = sbr.rel (0) target = $region69
    $region68: #{tpu_custom_call.1} parent=1 // pred_region
      _
    $region69: #{tpu_custom_call.1} parent=1 // pred_fallthru
      _
    // Predicated region
    $region70: #{tpu_custom_call.1} parent=1 // pred_check
      _
    $region71: #{tpu_custom_call.1} parent=1 // pred_check_branch
      %127 = sbr.rel (0) target = $region73
    $region72: #{tpu_custom_call.1} parent=1 // pred_region
      _
    $region73: #{tpu_custom_call.1} parent=1 // pred_fallthru
      _
    // Predicated region
    $region74: #{tpu_custom_call.1} parent=1 // pred_check
      _
    $region75: #{tpu_custom_call.1} parent=1 // pred_check_branch
      %129 = sbr.rel (0) target = $region77
    $region76: #{tpu_custom_call.1} parent=1 // pred_region
      %130 = dma.done [#allocation3], 640
    $region77: #{tpu_custom_call.1} parent=1 // pred_fallthru
      _
    // Predicated region
    $region78: #{tpu_custom_call.1} parent=1 // pred_check
      _
    $region79: #{tpu_custom_call.1} parent=1 // pred_check_branch
      %132 = sbr.rel (0) target = $region81
    $region80: #{tpu_custom_call.1} parent=1 // pred_region
      %133 = dma.done [#allocation6], 16
    $region81: #{tpu_custom_call.1} parent=1 // pred_fallthru
      _
    // Predicated region
    $region82: #{tpu_custom_call.1} parent=1 // pred_check
      _
    $region83: #{tpu_custom_call.1} parent=1 // pred_check_branch
      %135 = sbr.rel (0) target = $region85
    $region84: #{tpu_custom_call.1} parent=1 // pred_region
      %136 = dma.done [#allocation6], 512
    $region85: #{tpu_custom_call.1} parent=1 // pred_fallthru
      _
    // Predicated region
    $region86: #{tpu_custom_call.1} parent=1 // pred_check
      _
    $region87: #{tpu_custom_call.1} parent=1 // pred_check_branch
      %138 = sbr.rel (0) target = $region89
    $region88: #{tpu_custom_call.1} parent=1 // pred_region
      %139 = dma.done [#allocation9], 16
    $region89: #{tpu_custom_call.1} parent=1 // pred_fallthru
      _
    // Predicated region
    $region90: #{tpu_custom_call.1} parent=1 // pred_check
      _
    $region91: #{tpu_custom_call.1} parent=1 // pred_check_branch
      %141 = sbr.rel (0) target = $region93
    $region92: #{tpu_custom_call.1} parent=1 // pred_region
      %142 = dma.done [#allocation9], 6144
    $region93: #{tpu_custom_call.1} parent=1 // pred_fallthru
      _
    // Predicated region
    $region94: #{tpu_custom_call.1} parent=1 // pred_check
      _
    $region95: #{tpu_custom_call.1} parent=1 // pred_check_branch
      %144 = sbr.rel (0) target = $region97
    $region96: #{tpu_custom_call.1} parent=1 // pred_region
      %145 = dma.done [#allocation12], 6144
    $region97: #{tpu_custom_call.1} parent=1 // pred_fallthru
      _
    // Predicated region
    $region98: #{tpu_custom_call.1} parent=1 // pred_check
      _
    $region99: #{tpu_custom_call.1} parent=1 // pred_check_branch
      %147 = sbr.rel (0) target = $region101
    $region100: #{tpu_custom_call.1} parent=1 // pred_region
      %148 = dma.done [#allocation12], 6144
    $region101: #{tpu_custom_call.1} parent=1 // pred_fallthru
      _
    %v149 = vld [vmem:[%s0] sm:$0xff]
    %v150 = vld [vmem:[%s0 + $0x8] sm:$0xff]
    %v151 = vld [vmem:[%s0 + $0x10] sm:$0xff]
    %v152 = vld [vmem:[%s0 + $0x18] sm:$0xff]
    %v153 = vld [vmem:[%s0 + $0x20] sm:$0xff]
    %v154 = vld [vmem:[%s0 + $0x28] sm:$0xff]
    %v155 = vld [vmem:[%s0 + $0x30] sm:$0xff]
    %v156 = vld [vmem:[%s0 + $0x38] sm:$0xff]
    %v157 = vld [vmem:[%s0 + $0x40] sm:$0xff]
    %v158 = vld [vmem:[%s0 + $0x48] sm:$0xff]
    %v159 = vld [vmem:[%s0 + $0x50] sm:$0xff]
    %v160 = vld [vmem:[%s0 + $0x58] sm:$0xff]
    %v161 = vld [vmem:[%s0 + $0x60] sm:$0xff]
    %v162 = vld [vmem:[%s0 + $0x68] sm:$0xff]
    %v163 = vld [vmem:[%s0 + $0x70] sm:$0xff]
    %v164 = vld [vmem:[%s0 + $0x78] sm:$0xff]
    %v165 = vld [vmem:[%s0 + $0x80] sm:$0xff]
    %v166 = vld [vmem:[%s0 + $0x88] sm:$0xff]
    %v167 = vld [vmem:[%s0 + $0x90] sm:$0xff]
    %v168 = vld [vmem:[%s0 + $0x98] sm:$0xff]
    %v169 = vld [vmem:[%s0 + $0xa0] sm:$0xff]
    %v170 = vld [vmem:[%s0 + $0xa8] sm:$0xff]
    %v171 = vld [vmem:[%s0 + $0xb0] sm:$0xff]
    %v172 = vld [vmem:[%s0 + $0xb8] sm:$0xff]
    %v173 = vld [vmem:[%s0 + $0xc0] sm:$0xff]
    %v174 = vld [vmem:[%s0 + $0xc8] sm:$0xff]
    %v175 = vld [vmem:[%s0 + $0xd0] sm:$0xff]
    %v176 = vld [vmem:[%s0 + $0xd8] sm:$0xff]
    %v177 = vld [vmem:[%s0 + $0xe0] sm:$0xff]
    %v178 = vld [vmem:[%s0 + $0xe8] sm:$0xff]
    %v179 = vld [vmem:[%s0 + $0xf0] sm:$0xff]
    %v180 = vld [vmem:[%s0 + $0xf8] sm:$0xff]
    %v181 = vld [vmem:[%s0 + $0x100] sm:$0xff]
    %v182 = vld [vmem:[%s0 + $0x108] sm:$0xff]
    %v183 = vld [vmem:[%s0 + $0x110] sm:$0xff]
    %v184 = vld [vmem:[%s0 + $0x118] sm:$0xff]
    %v185 = vld [vmem:[%s0 + $0x120] sm:$0xff]
    %v186 = vld [vmem:[%s0 + $0x128] sm:$0xff]
    %v187 = vld [vmem:[%s0 + $0x130] sm:$0xff]
    %v188 = vld [vmem:[%s0 + $0x138] sm:$0xff]
    %v189 = vld [vmem:[%s0 + $0x140] sm:$0xff]
    %v190 = vld [vmem:[%s0 + $0x148] sm:$0xff]
    %v191 = vld [vmem:[%s0 + $0x150] sm:$0xff]
    %v192 = vld [vmem:[%s0 + $0x158] sm:$0xff]
    %v193 = vld [vmem:[%s0 + $0x160] sm:$0xff]
    %v194 = vld [vmem:[%s0 + $0x168] sm:$0xff]
    %v195 = vld [vmem:[%s0 + $0x170] sm:$0xff]
    %v196 = vld [vmem:[%s0 + $0x178] sm:$0xff]
    %v197 = vld [vmem:[%s0 + $0x180] sm:$0xff]
    %v198 = vld [vmem:[%s0 + $0x188] sm:$0xff]
    %v199 = vld [vmem:[%s0 + $0x190] sm:$0xff]
    %v200 = vld [vmem:[%s0 + $0x198] sm:$0xff]
    %v201 = vld [vmem:[%s0 + $0x1a0] sm:$0xff]
    %v202 = vld [vmem:[%s0 + $0x1a8] sm:$0xff]
    %v203 = vld [vmem:[%s0 + $0x1b0] sm:$0xff]
    %v204 = vld [vmem:[%s0 + $0x1b8] sm:$0xff]
    %v205 = vld [vmem:[%s0 + $0x1c0] sm:$0xff]
    %v206 = vld [vmem:[%s0 + $0x1c8] sm:$0xff]
    %v207 = vld [vmem:[%s0 + $0x1d0] sm:$0xff]
    %v208 = vld [vmem:[%s0 + $0x1d8] sm:$0xff]
    %v209 = vld [vmem:[%s0 + $0x1e0] sm:$0xff]
    %v210 = vld [vmem:[%s0 + $0x1e8] sm:$0xff]
    %v211 = vld [vmem:[%s0 + $0x1f0] sm:$0xff]
    %v212 = vld [vmem:[%s0 + $0x1f8] sm:$0xff]
    %v213 = vld [vmem:[#allocation2] sm:$0xff]
    %v214 = vld [vmem:[#allocation2 + $0x8] sm:$0xff]
    %v215 = vld [vmem:[#allocation2 + $0x10] sm:$0xff]
    %v216 = vld [vmem:[#allocation2 + $0x18] sm:$0xff]
    %v217 = vld [vmem:[#allocation2 + $0x20] sm:$0xf]
    %v218 = vld [vmem:[#allocation5] sm:$0x1]
    %v220 = vlaneseq
    %v221 = vshrl.u32 %v220, 7
    %v222 = vsub.s32 0, %v221
    %v223 = vrot.slane %v218, %v222
    %vm225 = vcmask 293888
    %v227 = vsel %vm225, %v149, 0
    %v230 = vsel %vm225, %v150, 0
    %v233 = vsel %vm225, %v151, 0
    %v236 = vsel %vm225, %v152, 0
    %v239 = vsel %vm225, %v153, 0
    %v242 = vsel %vm225, %v154, 0
    %v245 = vsel %vm225, %v155, 0
    %v248 = vsel %vm225, %v156, 0
    %v251 = vsel %vm225, %v157, 0
    %v254 = vsel %vm225, %v158, 0
    %v257 = vsel %vm225, %v159, 0
    %v260 = vsel %vm225, %v160, 0
    %v263 = vsel %vm225, %v161, 0
    %v266 = vsel %vm225, %v162, 0
    %v269 = vsel %vm225, %v163, 0
    %v272 = vsel %vm225, %v164, 0
    %v275 = vsel %vm225, %v165, 0
    %v278 = vsel %vm225, %v166, 0
    %v281 = vsel %vm225, %v167, 0
    %v284 = vsel %vm225, %v168, 0
    %v287 = vsel %vm225, %v169, 0
    %v290 = vsel %vm225, %v170, 0
    %v293 = vsel %vm225, %v171, 0
    %v296 = vsel %vm225, %v172, 0
    %v299 = vsel %vm225, %v173, 0
    %v302 = vsel %vm225, %v174, 0
    %v305 = vsel %vm225, %v175, 0
    %v308 = vsel %vm225, %v176, 0
    %v311 = vsel %vm225, %v177, 0
    %v314 = vsel %vm225, %v178, 0
    %v317 = vsel %vm225, %v179, 0
    %v320 = vsel %vm225, %v180, 0
    %v323 = vsel %vm225, %v181, 0
    %v326 = vsel %vm225, %v182, 0
    %v329 = vsel %vm225, %v183, 0
    %v332 = vsel %vm225, %v184, 0
    %v335 = vsel %vm225, %v185, 0
    %v338 = vsel %vm225, %v186, 0
    %v341 = vsel %vm225, %v187, 0
    %v344 = vsel %vm225, %v188, 0
    %v347 = vsel %vm225, %v189, 0
    %v350 = vsel %vm225, %v190, 0
    %v353 = vsel %vm225, %v191, 0
    %v356 = vsel %vm225, %v192, 0
    %v359 = vsel %vm225, %v193, 0
    %v362 = vsel %vm225, %v194, 0
    %v365 = vsel %vm225, %v195, 0
    %v368 = vsel %vm225, %v196, 0
    %v371 = vsel %vm225, %v197, 0
    %v374 = vsel %vm225, %v198, 0
    %v377 = vsel %vm225, %v199, 0
    %v380 = vsel %vm225, %v200, 0
    %v383 = vsel %vm225, %v201, 0
    %v386 = vsel %vm225, %v202, 0
    %v389 = vsel %vm225, %v203, 0
    %v392 = vsel %vm225, %v204, 0
    %v395 = vsel %vm225, %v205, 0
    %v398 = vsel %vm225, %v206, 0
    %v401 = vsel %vm225, %v207, 0
    %v404 = vsel %vm225, %v208, 0
    %v407 = vsel %vm225, %v209, 0
    %v410 = vsel %vm225, %v210, 0
    %v413 = vsel %vm225, %v211, 0
    %v416 = vsel %vm225, %v212, 0
    %vm418 = vcmask 1043456
    %v420 = vsel %vm418, %v217, 0
    %422 = vmatprep.subr.mxu0 0.0
    %423 = vmatpush1.msra.mxu0 %v213
    %424 = vmatprep.subr.mxu0 0.0
    %425 = vmatpush1.msra.mxu0 %v214
    %426 = vmatprep.subr.mxu0 0.0
    %427 = vmatpush1.msra.mxu0 %v215
    %428 = vmatprep.subr.mxu0 0.0
    %429 = vmatpush1.msra.mxu0 %v216
    %430 = vmatprep.subr.mxu0 0.0
    %431 = vmatpush1.msra.mxu0 %v420
    %432 = vmatprep.subr.mxu0 0.0
    %433 = vmatpush1.msra.mxu0 0.0
    %434 = vmatprep.subr.mxu0 0.0
    %435 = vmatpush1.msra.mxu0 0.0
    %436 = vmatprep.subr.mxu0 0.0
    %437 = vmatpush1.msra.mxu0 0.0
    %438 = vmatprep.subr.mxu0 0.0
    %439 = vmatpush1.msra.mxu0 0.0
    %440 = vmatprep.subr.mxu0 0.0
    %441 = vmatpush1.msra.mxu0 0.0
    %442 = vmatprep.subr.mxu0 0.0
    %443 = vmatpush1.msra.mxu0 0.0
    %444 = vmatprep.subr.mxu0 0.0
    %445 = vmatpush1.msra.mxu0 0.0
    %446 = vmatprep.subr.mxu0 0.0
    %447 = vmatpush1.msra.mxu0 0.0
    %448 = vmatprep.subr.mxu0 0.0
    %449 = vmatpush1.msra.mxu0 0.0
    %450 = vmatprep.subr.mxu0 0.0
    %451 = vmatpush1.msra.mxu0 0.0
    %452 = vmatprep.subr.mxu0 0.0
    %453 = vmatpush1.msra.mxu0 0.0
    %454 = vmatprep.subr.mxu0 0.0
    %455 = vmatpush1.msra.mxu0 0.0
    %456 = vmatprep.subr.mxu0 0.0
    %457 = vmatpush1.msra.mxu0 0.0
    %458 = vmatprep.subr.mxu0 0.0
    %459 = vmatpush1.msra.mxu0 0.0
    %460 = vmatprep.subr.mxu0 0.0
    %461 = vmatpush1.msra.mxu0 0.0
    %462 = vmatprep.subr.mxu0 0.0
    %463 = vmatpush1.msra.mxu0 0.0
    %464 = vmatprep.subr.mxu0 0.0
    %465 = vmatpush1.msra.mxu0 0.0
    %466 = vmatprep.subr.mxu0 0.0
    %467 = vmatpush1.msra.mxu0 0.0
    %468 = vmatprep.subr.mxu0 0.0
    %469 = vmatpush1.msra.mxu0 0.0
    %470 = vmatprep.subr.mxu0 0.0
    %471 = vmatpush1.msra.mxu0 0.0
    %472 = vmatprep.subr.mxu0 0.0
    %473 = vmatpush1.msra.mxu0 0.0
    %474 = vmatprep.subr.mxu0 0.0
    %475 = vmatpush1.msra.mxu0 0.0
    %476 = vmatprep.subr.mxu0 0.0
    %477 = vmatpush1.msra.mxu0 0.0
    %478 = vmatprep.subr.mxu0 0.0
    %479 = vmatpush1.msra.mxu0 0.0
    %480 = vmatprep.subr.mxu0 0.0
    %481 = vmatpush1.msra.mxu0 0.0
    %482 = vmatprep.subr.mxu0 0.0
    %483 = vmatpush1.msra.mxu0 0.0
    %484 = vmatprep.subr.mxu0 0.0
    %485 = vmatpush1.msra.mxu0 0.0
    %486 = vmatprep.mubr.f32.mxu0 0.0
    %487 = vmatmul.mubr.f32.gmra.mrb[0].mxu0 %v227
    %v488 = vpop.f32.mrb[0].mxu0
    %v489 = vadd.f32 %v223, %v488
    %v490 = vpop.f32.mrb[0].mxu0
    %491 = vmatprep.mubr.f32.mxu0 0.0
    %492 = vmatmul.mubr.f32.gmra.mrb[0].mxu0 %v230
    %v493 = vpop.f32.mrb[0].mxu0
    %v494 = vadd.f32 %v223, %v493
    %v495 = vpop.f32.mrb[0].mxu0
    %496 = vmatprep.mubr.f32.mxu0 0.0
    %497 = vmatmul.mubr.f32.gmra.mrb[0].mxu0 %v233
    %v498 = vpop.f32.mrb[0].mxu0
    %v499 = vadd.f32 %v223, %v498
    %v500 = vpop.f32.mrb[0].mxu0
    %501 = vmatprep.mubr.f32.mxu0 0.0
    %502 = vmatmul.mubr.f32.gmra.mrb[0].mxu0 %v236
    %v503 = vpop.f32.mrb[0].mxu0
    %v504 = vadd.f32 %v223, %v503
    %v505 = vpop.f32.mrb[0].mxu0
    %506 = vmatprep.mubr.f32.mxu0 0.0
    %507 = vmatmul.mubr.f32.gmra.mrb[0].mxu0 %v239
    %v508 = vpop.f32.mrb[0].mxu0
    %v509 = vadd.f32 %v223, %v508
    %v510 = vpop.f32.mrb[0].mxu0
    %511 = vmatprep.mubr.f32.mxu0 0.0
    %512 = vmatmul.mubr.f32.gmra.mrb[0].mxu0 %v242
    %v513 = vpop.f32.mrb[0].mxu0
    %v514 = vadd.f32 %v223, %v513
    %v515 = vpop.f32.mrb[0].mxu0
    %516 = vmatprep.mubr.f32.mxu0 0.0
    %517 = vmatmul.mubr.f32.gmra.mrb[0].mxu0 %v245
    %v518 = vpop.f32.mrb[0].mxu0
    %v519 = vadd.f32 %v223, %v518
    %v520 = vpop.f32.mrb[0].mxu0
    %521 = vmatprep.mubr.f32.mxu0 0.0
    %522 = vmatmul.mubr.f32.gmra.mrb[0].mxu0 %v248
    %v523 = vpop.f32.mrb[0].mxu0
    %v524 = vadd.f32 %v223, %v523
    %v525 = vpop.f32.mrb[0].mxu0
    %526 = vmatprep.mubr.f32.mxu0 0.0
    %527 = vmatmul.mubr.f32.gmra.mrb[0].mxu0 %v251
    %v528 = vpop.f32.mrb[0].mxu0
    %v529 = vadd.f32 %v223, %v528
    %v530 = vpop.f32.mrb[0].mxu0
    %531 = vmatprep.mubr.f32.mxu0 0.0
    %532 = vmatmul.mubr.f32.gmra.mrb[0].mxu0 %v254
    %v533 = vpop.f32.mrb[0].mxu0
    %v534 = vadd.f32 %v223, %v533
    %v535 = vpop.f32.mrb[0].mxu0
    %536 = vmatprep.mubr.f32.mxu0 0.0
    %537 = vmatmul.mubr.f32.gmra.mrb[0].mxu0 %v257
    %v538 = vpop.f32.mrb[0].mxu0
    %v539 = vadd.f32 %v223, %v538
    %v540 = vpop.f32.mrb[0].mxu0
    %541 = vmatprep.mubr.f32.mxu0 0.0
    %542 = vmatmul.mubr.f32.gmra.mrb[0].mxu0 %v260
    %v543 = vpop.f32.mrb[0].mxu0
    %v544 = vadd.f32 %v223, %v543
    %v545 = vpop.f32.mrb[0].mxu0
    %546 = vmatprep.mubr.f32.mxu0 0.0
    %547 = vmatmul.mubr.f32.gmra.mrb[0].mxu0 %v263
    %v548 = vpop.f32.mrb[0].mxu0
    %v549 = vadd.f32 %v223, %v548
    %v550 = vpop.f32.mrb[0].mxu0
    %551 = vmatprep.mubr.f32.mxu0 0.0
    %552 = vmatmul.mubr.f32.gmra.mrb[0].mxu0 %v266
    %v553 = vpop.f32.mrb[0].mxu0
    %v554 = vadd.f32 %v223, %v553
    %v555 = vpop.f32.mrb[0].mxu0
    %556 = vmatprep.mubr.f32.mxu0 0.0
    %557 = vmatmul.mubr.f32.gmra.mrb[0].mxu0 %v269
    %v558 = vpop.f32.mrb[0].mxu0
    %v559 = vadd.f32 %v223, %v558
    %v560 = vpop.f32.mrb[0].mxu0
    %561 = vmatprep.mubr.f32.mxu0 0.0
    %562 = vmatmul.mubr.f32.gmra.mrb[0].mxu0 %v272
    %v563 = vpop.f32.mrb[0].mxu0
    %v564 = vadd.f32 %v223, %v563
    %v565 = vpop.f32.mrb[0].mxu0
    %566 = vmatprep.mubr.f32.mxu0 0.0
    %567 = vmatmul.mubr.f32.gmra.mrb[0].mxu0 %v275
    %v568 = vpop.f32.mrb[0].mxu0
    %v569 = vadd.f32 %v223, %v568
    %v570 = vpop.f32.mrb[0].mxu0
    %571 = vmatprep.mubr.f32.mxu0 0.0
    %572 = vmatmul.mubr.f32.gmra.mrb[0].mxu0 %v278
    %v573 = vpop.f32.mrb[0].mxu0
    %v574 = vadd.f32 %v223, %v573
    %v575 = vpop.f32.mrb[0].mxu0
    %576 = vmatprep.mubr.f32.mxu0 0.0
    %577 = vmatmul.mubr.f32.gmra.mrb[0].mxu0 %v281
    %v578 = vpop.f32.mrb[0].mxu0
    %v579 = vadd.f32 %v223, %v578
    %v580 = vpop.f32.mrb[0].mxu0
    %581 = vmatprep.mubr.f32.mxu0 0.0
    %582 = vmatmul.mubr.f32.gmra.mrb[0].mxu0 %v284
    %v583 = vpop.f32.mrb[0].mxu0
    %v584 = vadd.f32 %v223, %v583
    %v585 = vpop.f32.mrb[0].mxu0
    %586 = vmatprep.mubr.f32.mxu0 0.0
    %587 = vmatmul.mubr.f32.gmra.mrb[0].mxu0 %v287
    %v588 = vpop.f32.mrb[0].mxu0
    %v589 = vadd.f32 %v223, %v588
    %v590 = vpop.f32.mrb[0].mxu0
    %591 = vmatprep.mubr.f32.mxu0 0.0
    %592 = vmatmul.mubr.f32.gmra.mrb[0].mxu0 %v290
    %v593 = vpop.f32.mrb[0].mxu0
    %v594 = vadd.f32 %v223, %v593
    %v595 = vpop.f32.mrb[0].mxu0
    %596 = vmatprep.mubr.f32.mxu0 0.0
    %597 = vmatmul.mubr.f32.gmra.mrb[0].mxu0 %v293
    %v598 = vpop.f32.mrb[0].mxu0
    %v599 = vadd.f32 %v223, %v598
    %v600 = vpop.f32.mrb[0].mxu0
    %601 = vmatprep.mubr.f32.mxu0 0.0
    %602 = vmatmul.mubr.f32.gmra.mrb[0].mxu0 %v296
    %v603 = vpop.f32.mrb[0].mxu0
    %v604 = vadd.f32 %v223, %v603
    %v605 = vpop.f32.mrb[0].mxu0
    %606 = vmatprep.mubr.f32.mxu0 0.0
    %607 = vmatmul.mubr.f32.gmra.mrb[0].mxu0 %v299
    %v608 = vpop.f32.mrb[0].mxu0
    %v609 = vadd.f32 %v223, %v608
    %v610 = vpop.f32.mrb[0].mxu0
    %611 = vmatprep.mubr.f32.mxu0 0.0
    %612 = vmatmul.mubr.f32.gmra.mrb[0].mxu0 %v302
    %v613 = vpop.f32.mrb[0].mxu0
    %v614 = vadd.f32 %v223, %v613
    %v615 = vpop.f32.mrb[0].mxu0
    %616 = vmatprep.mubr.f32.mxu0 0.0
    %617 = vmatmul.mubr.f32.gmra.mrb[0].mxu0 %v305
    %v618 = vpop.f32.mrb[0].mxu0
    %v619 = vadd.f32 %v223, %v618
    %v620 = vpop.f32.mrb[0].mxu0
    %621 = vmatprep.mubr.f32.mxu0 0.0
    %622 = vmatmul.mubr.f32.gmra.mrb[0].mxu0 %v308
    %v623 = vpop.f32.mrb[0].mxu0
    %v624 = vadd.f32 %v223, %v623
    %v625 = vpop.f32.mrb[0].mxu0
    %626 = vmatprep.mubr.f32.mxu0 0.0
    %627 = vmatmul.mubr.f32.gmra.mrb[0].mxu0 %v311
    %v628 = vpop.f32.mrb[0].mxu0
    %v629 = vadd.f32 %v223, %v628
    %v630 = vpop.f32.mrb[0].mxu0
    %631 = vmatprep.mubr.f32.mxu0 0.0
    %632 = vmatmul.mubr.f32.gmra.mrb[0].mxu0 %v314
    %v633 = vpop.f32.mrb[0].mxu0
    %v634 = vadd.f32 %v223, %v633
    %v635 = vpop.f32.mrb[0].mxu0
    %636 = vmatprep.mubr.f32.mxu0 0.0
    %637 = vmatmul.mubr.f32.gmra.mrb[0].mxu0 %v317
    %v638 = vpop.f32.mrb[0].mxu0
    %v639 = vadd.f32 %v223, %v638
    %v640 = vpop.f32.mrb[0].mxu0
    %641 = vmatprep.mubr.f32.mxu0 0.0
    %642 = vmatmul.mubr.f32.gmra.mrb[0].mxu0 %v320
    %v643 = vpop.f32.mrb[0].mxu0
    %v644 = vadd.f32 %v223, %v643
    %v645 = vpop.f32.mrb[0].mxu0
    %646 = vmatprep.mubr.f32.mxu0 0.0
    %647 = vmatmul.mubr.f32.gmra.mrb[0].mxu0 %v323
    %v648 = vpop.f32.mrb[0].mxu0
    %v649 = vadd.f32 %v223, %v648
    %v650 = vpop.f32.mrb[0].mxu0
    %651 = vmatprep.mubr.f32.mxu0 0.0
    %652 = vmatmul.mubr.f32.gmra.mrb[0].mxu0 %v326
    %v653 = vpop.f32.mrb[0].mxu0
    %v654 = vadd.f32 %v223, %v653
    %v655 = vpop.f32.mrb[0].mxu0
    %656 = vmatprep.mubr.f32.mxu0 0.0
    %657 = vmatmul.mubr.f32.gmra.mrb[0].mxu0 %v329
    %v658 = vpop.f32.mrb[0].mxu0
    %v659 = vadd.f32 %v223, %v658
    %v660 = vpop.f32.mrb[0].mxu0
    %661 = vmatprep.mubr.f32.mxu0 0.0
    %662 = vmatmul.mubr.f32.gmra.mrb[0].mxu0 %v332
    %v663 = vpop.f32.mrb[0].mxu0
    %v664 = vadd.f32 %v223, %v663
    %v665 = vpop.f32.mrb[0].mxu0
    %666 = vmatprep.mubr.f32.mxu0 0.0
    %667 = vmatmul.mubr.f32.gmra.mrb[0].mxu0 %v335
    %v668 = vpop.f32.mrb[0].mxu0
    %v669 = vadd.f32 %v223, %v668
    %v670 = vpop.f32.mrb[0].mxu0
    %671 = vmatprep.mubr.f32.mxu0 0.0
    %672 = vmatmul.mubr.f32.gmra.mrb[0].mxu0 %v338
    %v673 = vpop.f32.mrb[0].mxu0
    %v674 = vadd.f32 %v223, %v673
    %v675 = vpop.f32.mrb[0].mxu0
    %676 = vmatprep.mubr.f32.mxu0 0.0
    %677 = vmatmul.mubr.f32.gmra.mrb[0].mxu0 %v341
    %v678 = vpop.f32.mrb[0].mxu0
    %v679 = vadd.f32 %v223, %v678
    %v680 = vpop.f32.mrb[0].mxu0
    %681 = vmatprep.mubr.f32.mxu0 0.0
    %682 = vmatmul.mubr.f32.gmra.mrb[0].mxu0 %v344
    %v683 = vpop.f32.mrb[0].mxu0
    %v684 = vadd.f32 %v223, %v683
    %v685 = vpop.f32.mrb[0].mxu0
    %686 = vmatprep.mubr.f32.mxu0 0.0
    %687 = vmatmul.mubr.f32.gmra.mrb[0].mxu0 %v347
    %v688 = vpop.f32.mrb[0].mxu0
    %v689 = vadd.f32 %v223, %v688
    %v690 = vpop.f32.mrb[0].mxu0
    %691 = vmatprep.mubr.f32.mxu0 0.0
    %692 = vmatmul.mubr.f32.gmra.mrb[0].mxu0 %v350
    %v693 = vpop.f32.mrb[0].mxu0
    %v694 = vadd.f32 %v223, %v693
    %v695 = vpop.f32.mrb[0].mxu0
    %696 = vmatprep.mubr.f32.mxu0 0.0
    %697 = vmatmul.mubr.f32.gmra.mrb[0].mxu0 %v353
    %v698 = vpop.f32.mrb[0].mxu0
    %v699 = vadd.f32 %v223, %v698
    %v700 = vpop.f32.mrb[0].mxu0
    %701 = vmatprep.mubr.f32.mxu0 0.0
    %702 = vmatmul.mubr.f32.gmra.mrb[0].mxu0 %v356
    %v703 = vpop.f32.mrb[0].mxu0
    %v704 = vadd.f32 %v223, %v703
    %v705 = vpop.f32.mrb[0].mxu0
    %706 = vmatprep.mubr.f32.mxu0 0.0
    %707 = vmatmul.mubr.f32.gmra.mrb[0].mxu0 %v359
    %v708 = vpop.f32.mrb[0].mxu0
    %v709 = vadd.f32 %v223, %v708
    %v710 = vpop.f32.mrb[0].mxu0
    %711 = vmatprep.mubr.f32.mxu0 0.0
    %712 = vmatmul.mubr.f32.gmra.mrb[0].mxu0 %v362
    %v713 = vpop.f32.mrb[0].mxu0
    %v714 = vadd.f32 %v223, %v713
    %v715 = vpop.f32.mrb[0].mxu0
    %716 = vmatprep.mubr.f32.mxu0 0.0
    %717 = vmatmul.mubr.f32.gmra.mrb[0].mxu0 %v365
    %v718 = vpop.f32.mrb[0].mxu0
    %v719 = vadd.f32 %v223, %v718
    %v720 = vpop.f32.mrb[0].mxu0
    %721 = vmatprep.mubr.f32.mxu0 0.0
    %722 = vmatmul.mubr.f32.gmra.mrb[0].mxu0 %v368
    %v723 = vpop.f32.mrb[0].mxu0
    %v724 = vadd.f32 %v223, %v723
    %v725 = vpop.f32.mrb[0].mxu0
    %726 = vmatprep.mubr.f32.mxu0 0.0
    %727 = vmatmul.mubr.f32.gmra.mrb[0].mxu0 %v371
    %v728 = vpop.f32.mrb[0].mxu0
    %v729 = vadd.f32 %v223, %v728
    %v730 = vpop.f32.mrb[0].mxu0
    %731 = vmatprep.mubr.f32.mxu0 0.0
    %732 = vmatmul.mubr.f32.gmra.mrb[0].mxu0 %v374
    %v733 = vpop.f32.mrb[0].mxu0
    %v734 = vadd.f32 %v223, %v733
    %v735 = vpop.f32.mrb[0].mxu0
    %736 = vmatprep.mubr.f32.mxu0 0.0
    %737 = vmatmul.mubr.f32.gmra.mrb[0].mxu0 %v377
    %v738 = vpop.f32.mrb[0].mxu0
    %v739 = vadd.f32 %v223, %v738
    %v740 = vpop.f32.mrb[0].mxu0
    %741 = vmatprep.mubr.f32.mxu0 0.0
    %742 = vmatmul.mubr.f32.gmra.mrb[0].mxu0 %v380
    %v743 = vpop.f32.mrb[0].mxu0
    %v744 = vadd.f32 %v223, %v743
    %v745 = vpop.f32.mrb[0].mxu0
    %746 = vmatprep.mubr.f32.mxu0 0.0
    %747 = vmatmul.mubr.f32.gmra.mrb[0].mxu0 %v383
    %v748 = vpop.f32.mrb[0].mxu0
    %v749 = vadd.f32 %v223, %v748
    %v750 = vpop.f32.mrb[0].mxu0
    %751 = vmatprep.mubr.f32.mxu0 0.0
    %752 = vmatmul.mubr.f32.gmra.mrb[0].mxu0 %v386
    %v753 = vpop.f32.mrb[0].mxu0
    %v754 = vadd.f32 %v223, %v753
    %v755 = vpop.f32.mrb[0].mxu0
    %756 = vmatprep.mubr.f32.mxu0 0.0
    %757 = vmatmul.mubr.f32.gmra.mrb[0].mxu0 %v389
    %v758 = vpop.f32.mrb[0].mxu0
    %v759 = vadd.f32 %v223, %v758
    %v760 = vpop.f32.mrb[0].mxu0
    %761 = vmatprep.mubr.f32.mxu0 0.0
    %762 = vmatmul.mubr.f32.gmra.mrb[0].mxu0 %v392
    %v763 = vpop.f32.mrb[0].mxu0
    %v764 = vadd.f32 %v223, %v763
    %v765 = vpop.f32.mrb[0].mxu0
    %766 = vmatprep.mubr.f32.mxu0 0.0
    %767 = vmatmul.mubr.f32.gmra.mrb[0].mxu0 %v395
    %v768 = vpop.f32.mrb[0].mxu0
    %v769 = vadd.f32 %v223, %v768
    %v770 = vpop.f32.mrb[0].mxu0
    %771 = vmatprep.mubr.f32.mxu0 0.0
    %772 = vmatmul.mubr.f32.gmra.mrb[0].mxu0 %v398
    %v773 = vpop.f32.mrb[0].mxu0
    %v774 = vadd.f32 %v223, %v773
    %v775 = vpop.f32.mrb[0].mxu0
    %776 = vmatprep.mubr.f32.mxu0 0.0
    %777 = vmatmul.mubr.f32.gmra.mrb[0].mxu0 %v401
    %v778 = vpop.f32.mrb[0].mxu0
    %v779 = vadd.f32 %v223, %v778
    %v780 = vpop.f32.mrb[0].mxu0
    %781 = vmatprep.mubr.f32.mxu0 0.0
    %782 = vmatmul.mubr.f32.gmra.mrb[0].mxu0 %v404
    %v783 = vpop.f32.mrb[0].mxu0
    %v784 = vadd.f32 %v223, %v783
    %v785 = vpop.f32.mrb[0].mxu0
    %786 = vmatprep.mubr.f32.mxu0 0.0
    %787 = vmatmul.mubr.f32.gmra.mrb[0].mxu0 %v407
    %v788 = vpop.f32.mrb[0].mxu0
    %v789 = vadd.f32 %v223, %v788
    %v790 = vpop.f32.mrb[0].mxu0
    %791 = vmatprep.mubr.f32.mxu0 0.0
    %792 = vmatmul.mubr.f32.gmra.mrb[0].mxu0 %v410
    %v793 = vpop.f32.mrb[0].mxu0
    %v794 = vadd.f32 %v223, %v793
    %v795 = vpop.f32.mrb[0].mxu0
    %796 = vmatprep.mubr.f32.mxu0 0.0
    %797 = vmatmul.mubr.f32.gmra.mrb[0].mxu0 %v413
    %v798 = vpop.f32.mrb[0].mxu0
    %v799 = vadd.f32 %v223, %v798
    %v800 = vpop.f32.mrb[0].mxu0
    %801 = vmatprep.mubr.f32.mxu0 0.0
    %802 = vmatmul.mubr.f32.gmra.mrb[0].mxu0 %v416
    %v803 = vpop.f32.mrb[0].mxu0
    %v804 = vadd.f32 %v223, %v803
    %v805 = vpop.f32.mrb[0].mxu0
    %806 = vdwg.mxu0
    %v807 = vmax.f32 %v489, 0.0
    %v808 = vmax.f32 %v494, 0.0
    %v809 = vmax.f32 %v499, 0.0
    %v810 = vmax.f32 %v504, 0.0
    %v811 = vmax.f32 %v509, 0.0
    %v812 = vmax.f32 %v514, 0.0
    %v813 = vmax.f32 %v519, 0.0
    %v814 = vmax.f32 %v524, 0.0
    %v815 = vmax.f32 %v529, 0.0
    %v816 = vmax.f32 %v534, 0.0
    %v817 = vmax.f32 %v539, 0.0
    %v818 = vmax.f32 %v544, 0.0
    %v819 = vmax.f32 %v549, 0.0
    %v820 = vmax.f32 %v554, 0.0
    %v821 = vmax.f32 %v559, 0.0
    %v822 = vmax.f32 %v564, 0.0
    %v823 = vmax.f32 %v569, 0.0
    %v824 = vmax.f32 %v574, 0.0
    %v825 = vmax.f32 %v579, 0.0
    %v826 = vmax.f32 %v584, 0.0
    %v827 = vmax.f32 %v589, 0.0
    %v828 = vmax.f32 %v594, 0.0
    %v829 = vmax.f32 %v599, 0.0
    %v830 = vmax.f32 %v604, 0.0
    %v831 = vmax.f32 %v609, 0.0
    %v832 = vmax.f32 %v614, 0.0
    %v833 = vmax.f32 %v619, 0.0
    %v834 = vmax.f32 %v624, 0.0
    %v835 = vmax.f32 %v629, 0.0
    %v836 = vmax.f32 %v634, 0.0
    %v837 = vmax.f32 %v639, 0.0
    %v838 = vmax.f32 %v644, 0.0
    %v839 = vmax.f32 %v649, 0.0
    %v840 = vmax.f32 %v654, 0.0
    %v841 = vmax.f32 %v659, 0.0
    %v842 = vmax.f32 %v664, 0.0
    %v843 = vmax.f32 %v669, 0.0
    %v844 = vmax.f32 %v674, 0.0
    %v845 = vmax.f32 %v679, 0.0
    %v846 = vmax.f32 %v684, 0.0
    %v847 = vmax.f32 %v689, 0.0
    %v848 = vmax.f32 %v694, 0.0
    %v849 = vmax.f32 %v699, 0.0
    %v850 = vmax.f32 %v704, 0.0
    %v851 = vmax.f32 %v709, 0.0
    %v852 = vmax.f32 %v714, 0.0
    %v853 = vmax.f32 %v719, 0.0
    %v854 = vmax.f32 %v724, 0.0
    %v855 = vmax.f32 %v729, 0.0
    %v856 = vmax.f32 %v734, 0.0
    %v857 = vmax.f32 %v739, 0.0
    %v858 = vmax.f32 %v744, 0.0
    %v859 = vmax.f32 %v749, 0.0
    %v860 = vmax.f32 %v754, 0.0
    %v861 = vmax.f32 %v759, 0.0
    %v862 = vmax.f32 %v764, 0.0
    %v863 = vmax.f32 %v769, 0.0
    %v864 = vmax.f32 %v774, 0.0
    %v865 = vmax.f32 %v779, 0.0
    %v866 = vmax.f32 %v784, 0.0
    %v867 = vmax.f32 %v789, 0.0
    %v868 = vmax.f32 %v794, 0.0
    %v869 = vmax.f32 %v799, 0.0
    %v870 = vmax.f32 %v804, 0.0
    %v871 = vld [vmem:[#allocation7] sm:$0xff]
    %v872 = vld [vmem:[#allocation7 + $0x8] sm:$0xff]
    %v873 = vld [vmem:[#allocation7 + $0x10] sm:$0xff]
    %v874 = vld [vmem:[#allocation7 + $0x18] sm:$0xff]
    %875 = vmatprep.subr.mxu0 0.0
    %876 = vmatpush1.msra.mxu0 %v807
    %877 = vmatprep.subr.mxu0 0.0
    %878 = vmatpush1.msra.mxu0 %v808
    %879 = vmatprep.subr.mxu0 0.0
    %880 = vmatpush1.msra.mxu0 %v809
    %881 = vmatprep.subr.mxu0 0.0
    %882 = vmatpush1.msra.mxu0 %v810
    %883 = vmatprep.subr.mxu0 0.0
    %884 = vmatpush1.msra.mxu0 %v811
    %885 = vmatprep.subr.mxu0 0.0
    %886 = vmatpush1.msra.mxu0 %v812
    %887 = vmatprep.subr.mxu0 0.0
    %888 = vmatpush1.msra.mxu0 %v813
    %889 = vmatprep.subr.mxu0 0.0
    %890 = vmatpush1.msra.mxu0 %v814
    %891 = vmatprep.subr.mxu0 0.0
    %892 = vmatpush1.msra.mxu0 %v815
    %893 = vmatprep.subr.mxu0 0.0
    %894 = vmatpush1.msra.mxu0 %v816
    %895 = vmatprep.subr.mxu0 0.0
    %896 = vmatpush1.msra.mxu0 %v817
    %897 = vmatprep.subr.mxu0 0.0
    %898 = vmatpush1.msra.mxu0 %v818
    %899 = vmatprep.subr.mxu0 0.0
    %900 = vmatpush1.msra.mxu0 %v819
    %901 = vmatprep.subr.mxu0 0.0
    %902 = vmatpush1.msra.mxu0 %v820
    %903 = vmatprep.subr.mxu0 0.0
    %904 = vmatpush1.msra.mxu0 %v821
    %905 = vmatprep.subr.mxu0 0.0
    %906 = vmatpush1.msra.mxu0 %v822
    %907 = vmatprep.subr.mxu0 0.0
    %908 = vmatpush1.msra.mxu0 %v823
    %909 = vmatprep.subr.mxu0 0.0
    %910 = vmatpush1.msra.mxu0 %v824
    %911 = vmatprep.subr.mxu0 0.0
    %912 = vmatpush1.msra.mxu0 %v825
    %913 = vmatprep.subr.mxu0 0.0
    %914 = vmatpush1.msra.mxu0 %v826
    %915 = vmatprep.subr.mxu0 0.0
    %916 = vmatpush1.msra.mxu0 %v827
    %917 = vmatprep.subr.mxu0 0.0
    %918 = vmatpush1.msra.mxu0 %v828
    %919 = vmatprep.subr.mxu0 0.0
    %920 = vmatpush1.msra.mxu0 %v829
    %921 = vmatprep.subr.mxu0 0.0
    %922 = vmatpush1.msra.mxu0 %v830
    %923 = vmatprep.subr.mxu0 0.0
    %924 = vmatpush1.msra.mxu0 %v831
    %925 = vmatprep.subr.mxu0 0.0
    %926 = vmatpush1.msra.mxu0 %v832
    %927 = vmatprep.subr.mxu0 0.0
    %928 = vmatpush1.msra.mxu0 %v833
    %929 = vmatprep.subr.mxu0 0.0
    %930 = vmatpush1.msra.mxu0 %v834
    %931 = vmatprep.subr.mxu0 0.0
    %932 = vmatpush1.msra.mxu0 %v835
    %933 = vmatprep.subr.mxu0 0.0
    %934 = vmatpush1.msra.mxu0 %v836
    %935 = vmatprep.subr.mxu0 0.0
    %936 = vmatpush1.msra.mxu0 %v837
    %937 = vmatprep.subr.mxu0 0.0
    %938 = vmatpush1.msra.mxu0 %v838
    %939 = vmatprep.mubr.f32.mxu0 %v872
    %940 = vmatmul.mubr.f32.gmra.mrb[0].mxu0 %v871
    %v941 = vpop.f32.mrb[0].mxu0
    %v942 = vadd.f32 0.0, %v941
    %v943 = vpop.f32.mrb[0].mxu0
    %944 = vdwg.mxu0
    %945 = vmatprep.subr.mxu0 0.0
    %946 = vmatpush1.msra.mxu0 %v839
    %947 = vmatprep.subr.mxu0 0.0
    %948 = vmatpush1.msra.mxu0 %v840
    %949 = vmatprep.subr.mxu0 0.0
    %950 = vmatpush1.msra.mxu0 %v841
    %951 = vmatprep.subr.mxu0 0.0
    %952 = vmatpush1.msra.mxu0 %v842
    %953 = vmatprep.subr.mxu0 0.0
    %954 = vmatpush1.msra.mxu0 %v843
    %955 = vmatprep.subr.mxu0 0.0
    %956 = vmatpush1.msra.mxu0 %v844
    %957 = vmatprep.subr.mxu0 0.0
    %958 = vmatpush1.msra.mxu0 %v845
    %959 = vmatprep.subr.mxu0 0.0
    %960 = vmatpush1.msra.mxu0 %v846
    %961 = vmatprep.subr.mxu0 0.0
    %962 = vmatpush1.msra.mxu0 %v847
    %963 = vmatprep.subr.mxu0 0.0
    %964 = vmatpush1.msra.mxu0 %v848
    %965 = vmatprep.subr.mxu0 0.0
    %966 = vmatpush1.msra.mxu0 %v849
    %967 = vmatprep.subr.mxu0 0.0
    %968 = vmatpush1.msra.mxu0 %v850
    %969 = vmatprep.subr.mxu0 0.0
    %970 = vmatpush1.msra.mxu0 %v851
    %971 = vmatprep.subr.mxu0 0.0
    %972 = vmatpush1.msra.mxu0 %v852
    %973 = vmatprep.subr.mxu0 0.0
    %974 = vmatpush1.msra.mxu0 %v853
    %975 = vmatprep.subr.mxu0 0.0
    %976 = vmatpush1.msra.mxu0 %v854
    %977 = vmatprep.subr.mxu0 0.0
    %978 = vmatpush1.msra.mxu0 %v855
    %979 = vmatprep.subr.mxu0 0.0
    %980 = vmatpush1.msra.mxu0 %v856
    %981 = vmatprep.subr.mxu0 0.0
    %982 = vmatpush1.msra.mxu0 %v857
    %983 = vmatprep.subr.mxu0 0.0
    %984 = vmatpush1.msra.mxu0 %v858
    %985 = vmatprep.subr.mxu0 0.0
    %986 = vmatpush1.msra.mxu0 %v859
    %987 = vmatprep.subr.mxu0 0.0
    %988 = vmatpush1.msra.mxu0 %v860
    %989 = vmatprep.subr.mxu0 0.0
    %990 = vmatpush1.msra.mxu0 %v861
    %991 = vmatprep.subr.mxu0 0.0
    %992 = vmatpush1.msra.mxu0 %v862
    %993 = vmatprep.subr.mxu0 0.0
    %994 = vmatpush1.msra.mxu0 %v863
    %995 = vmatprep.subr.mxu0 0.0
    %996 = vmatpush1.msra.mxu0 %v864
    %997 = vmatprep.subr.mxu0 0.0
    %998 = vmatpush1.msra.mxu0 %v865
    %999 = vmatprep.subr.mxu0 0.0
    %1000 = vmatpush1.msra.mxu0 %v866
    %1001 = vmatprep.subr.mxu0 0.0
    %1002 = vmatpush1.msra.mxu0 %v867
    %1003 = vmatprep.subr.mxu0 0.0
    %1004 = vmatpush1.msra.mxu0 %v868
    %1005 = vmatprep.subr.mxu0 0.0
    %1006 = vmatpush1.msra.mxu0 %v869
    %1007 = vmatprep.subr.mxu0 0.0
    %1008 = vmatpush1.msra.mxu0 %v870
    %1009 = vmatprep.mubr.f32.mxu0 %v874
    %1010 = vmatmul.mubr.f32.gmra.mrb[0].mxu0 %v873
    %v1011 = vpop.f32.mrb[0].mxu0
    %v1012 = vadd.f32 %v942, %v1011
    %v1013 = vpop.f32.mrb[0].mxu0
    %1014 = vdwg.mxu0
    %v1015 = vld [vmem:[%s4] sm:$0xff]
    %v1016 = vld [vmem:[%s4 + $0x8] sm:$0xff]
    %v1017 = vld [vmem:[%s4 + $0x10] sm:$0xff]
    %v1018 = vld [vmem:[%s4 + $0x18] sm:$0xff]
    %v1019 = vld [vmem:[%s4 + $0x20] sm:$0xff]
    %v1020 = vld [vmem:[%s4 + $0x28] sm:$0xff]
    %v1021 = vld [vmem:[%s4 + $0x30] sm:$0xff]
    %v1022 = vld [vmem:[%s4 + $0x38] sm:$0xff]
    %v1023 = vld [vmem:[%s4 + $0x40] sm:$0xff]
    %v1024 = vld [vmem:[%s4 + $0x48] sm:$0xff]
    %v1025 = vld [vmem:[%s4 + $0x50] sm:$0xff]
    %v1026 = vld [vmem:[%s4 + $0x58] sm:$0xff]
    %v1027 = vld [vmem:[%s4 + $0x60] sm:$0xff]
    %v1028 = vld [vmem:[%s4 + $0x68] sm:$0xff]
    %v1029 = vld [vmem:[%s4 + $0x70] sm:$0xff]
    %v1030 = vld [vmem:[%s4 + $0x78] sm:$0xff]
    %v1031 = vld [vmem:[#allocation8] sm:$0x1]
    %v1033 = vlaneseq
    %v1034 = vshrl.u32 %v1033, 7
    %v1035 = vsub.s32 0, %v1034
    %v1036 = vrot.slane %v1031, %v1035
    %1038 = vmatprep.subr.mxu0 0.0
    %1039 = vmatpush1.msra.mxu0 %v1015
    %1040 = vmatprep.subr.mxu0 0.0
    %1041 = vmatpush1.msra.mxu0 %v1016
    %1042 = vmatprep.subr.mxu0 0.0
    %1043 = vmatpush1.msra.mxu0 %v1017
    %1044 = vmatprep.subr.mxu0 0.0
    %1045 = vmatpush1.msra.mxu0 %v1018
    %1046 = vmatprep.subr.mxu0 0.0
    %1047 = vmatpush1.msra.mxu0 %v1019
    %1048 = vmatprep.subr.mxu0 0.0
    %1049 = vmatpush1.msra.mxu0 %v1020
    %1050 = vmatprep.subr.mxu0 0.0
    %1051 = vmatpush1.msra.mxu0 %v1021
    %1052 = vmatprep.subr.mxu0 0.0
    %1053 = vmatpush1.msra.mxu0 %v1022
    %1054 = vmatprep.subr.mxu0 0.0
    %1055 = vmatpush1.msra.mxu0 %v1023
    %1056 = vmatprep.subr.mxu0 0.0
    %1057 = vmatpush1.msra.mxu0 %v1024
    %1058 = vmatprep.subr.mxu0 0.0
    %1059 = vmatpush1.msra.mxu0 %v1025
    %1060 = vmatprep.subr.mxu0 0.0
    %1061 = vmatpush1.msra.mxu0 %v1026
    %1062 = vmatprep.subr.mxu0 0.0
    %1063 = vmatpush1.msra.mxu0 %v1027
    %1064 = vmatprep.subr.mxu0 0.0
    %1065 = vmatpush1.msra.mxu0 %v1028
    %1066 = vmatprep.subr.mxu0 0.0
    %1067 = vmatpush1.msra.mxu0 %v1029
    %1068 = vmatprep.subr.mxu0 0.0
    %1069 = vmatpush1.msra.mxu0 %v1030
    %1070 = vmatprep.subr.mxu0 0.0
    %1071 = vmatpush1.msra.mxu0 0.0
    %1072 = vmatprep.subr.mxu0 0.0
    %1073 = vmatpush1.msra.mxu0 0.0
    %1074 = vmatprep.subr.mxu0 0.0
    %1075 = vmatpush1.msra.mxu0 0.0
    %1076 = vmatprep.subr.mxu0 0.0
    %1077 = vmatpush1.msra.mxu0 0.0
    %1078 = vmatprep.subr.mxu0 0.0
    %1079 = vmatpush1.msra.mxu0 0.0
    %1080 = vmatprep.subr.mxu0 0.0
    %1081 = vmatpush1.msra.mxu0 0.0
    %1082 = vmatprep.subr.mxu0 0.0
    %1083 = vmatpush1.msra.mxu0 0.0
    %1084 = vmatprep.subr.mxu0 0.0
    %1085 = vmatpush1.msra.mxu0 0.0
    %1086 = vmatprep.subr.mxu0 0.0
    %1087 = vmatpush1.msra.mxu0 0.0
    %1088 = vmatprep.subr.mxu0 0.0
    %1089 = vmatpush1.msra.mxu0 0.0
    %1090 = vmatprep.subr.mxu0 0.0
    %1091 = vmatpush1.msra.mxu0 0.0
    %1092 = vmatprep.subr.mxu0 0.0
    %1093 = vmatpush1.msra.mxu0 0.0
    %1094 = vmatprep.subr.mxu0 0.0
    %1095 = vmatpush1.msra.mxu0 0.0
    %1096 = vmatprep.subr.mxu0 0.0
    %1097 = vmatpush1.msra.mxu0 0.0
    %1098 = vmatprep.subr.mxu0 0.0
    %1099 = vmatpush1.msra.mxu0 0.0
    %1100 = vmatprep.subr.mxu0 0.0
    %1101 = vmatpush1.msra.mxu0 0.0
    %1102 = vmatprep.mubr.f32.mxu0 0.0
    %1103 = vmatmul.mubr.f32.gmra.mrb[0].mxu0 %v1012
    %v1104 = vpop.f32.mrb[0].mxu0
    %v1105 = vadd.f32 %v1036, %v1104
    %v1106 = vpop.f32.mrb[0].mxu0
    %1107 = vdwg.mxu0
    %v1108 = vtanh.pop %v1105
    %v1109 = vld [vmem:[%s6] sm:$0xff]
    %v1110 = vld [vmem:[%s7] sm:$0xff]
    %v1111 = vld [vmem:[%s7 + $0x8] sm:$0xff]
    %v1112 = vld [vmem:[%s7 + $0x10] sm:$0xff]
    %v1113 = vld [vmem:[%s7 + $0x18] sm:$0xff]
    %v1114 = vld [vmem:[%s7 + $0x20] sm:$0xff]
    %v1115 = vld [vmem:[%s7 + $0x28] sm:$0xff]
    %v1116 = vld [vmem:[%s8] sm:$0xff]
    %v1117 = vld [vmem:[%s8 + $0x8] sm:$0xff]
    %v1118 = vld [vmem:[%s8 + $0x10] sm:$0xff]
    %v1119 = vld [vmem:[%s8 + $0x18] sm:$0xff]
    %v1120 = vld [vmem:[%s8 + $0x20] sm:$0xff]
    %v1121 = vld [vmem:[%s8 + $0x28] sm:$0xff]
    %v1122 = vld [vmem:[%s8 + $0x30] sm:$0xff]
    %v1123 = vld [vmem:[%s8 + $0x38] sm:$0xff]
    %v1124 = vld [vmem:[%s8 + $0x40] sm:$0xff]
    %v1125 = vld [vmem:[%s8 + $0x48] sm:$0xff]
    %v1126 = vld [vmem:[%s8 + $0x50] sm:$0xff]
    %v1127 = vld [vmem:[%s8 + $0x58] sm:$0xff]
    %v1128 = vld [vmem:[%s8 + $0x60] sm:$0xff]
    %v1129 = vld [vmem:[%s8 + $0x68] sm:$0xff]
    %v1130 = vld [vmem:[%s8 + $0x70] sm:$0xff]
    %v1131 = vld [vmem:[%s8 + $0x78] sm:$0xff]
    %v1132 = vld [vmem:[%s8 + $0x80] sm:$0xff]
    %v1133 = vld [vmem:[%s8 + $0x88] sm:$0xff]
    %v1134 = vld [vmem:[%s8 + $0x90] sm:$0xff]
    %v1135 = vld [vmem:[%s8 + $0x98] sm:$0xff]
    %v1136 = vld [vmem:[%s8 + $0xa0] sm:$0xff]
    %v1137 = vld [vmem:[%s8 + $0xa8] sm:$0xff]
    %v1138 = vld [vmem:[%s8 + $0xb0] sm:$0xff]
    %v1139 = vld [vmem:[%s8 + $0xb8] sm:$0xff]
    %v1140 = vld [vmem:[%s8 + $0xc0] sm:$0xff]
    %v1141 = vld [vmem:[%s8 + $0xc8] sm:$0xff]
    %v1142 = vld [vmem:[%s8 + $0xd0] sm:$0xff]
    %v1143 = vld [vmem:[%s8 + $0xd8] sm:$0xff]
    %v1144 = vld [vmem:[%s8 + $0xe0] sm:$0xff]
    %v1145 = vld [vmem:[%s8 + $0xe8] sm:$0xff]
    %v1146 = vld [vmem:[%s8 + $0xf0] sm:$0xff]
    %v1147 = vld [vmem:[%s8 + $0xf8] sm:$0xff]
    %v1148 = vld [vmem:[%s8 + $0x100] sm:$0xff]
    %v1149 = vld [vmem:[%s8 + $0x108] sm:$0xff]
    %v1150 = vld [vmem:[%s8 + $0x110] sm:$0xff]
    %v1151 = vld [vmem:[%s8 + $0x118] sm:$0xff]
    %v1152 = vld [vmem:[%s8 + $0x120] sm:$0xff]
    %v1153 = vld [vmem:[%s8 + $0x128] sm:$0xff]
    %v1154 = vld [vmem:[%s8 + $0x130] sm:$0xff]
    %v1155 = vld [vmem:[%s8 + $0x138] sm:$0xff]
    %v1156 = vld [vmem:[%s8 + $0x140] sm:$0xff]
    %v1157 = vld [vmem:[%s8 + $0x148] sm:$0xff]
    %v1158 = vld [vmem:[%s8 + $0x150] sm:$0xff]
    %v1159 = vld [vmem:[%s8 + $0x158] sm:$0xff]
    %v1160 = vld [vmem:[%s8 + $0x160] sm:$0xff]
    %v1161 = vld [vmem:[%s8 + $0x168] sm:$0xff]
    %v1162 = vld [vmem:[%s8 + $0x170] sm:$0xff]
    %v1163 = vld [vmem:[%s8 + $0x178] sm:$0xff]
    %1164 = vmatprep.subr.mxu0 %v1117
    %1165 = vmatpush1.msra.mxu0 %v1116
    %1166 = vmatprep.subr.mxu0 %v1120
    %1167 = vmatpush1.msra.mxu0 %v1119
    %1168 = vmatprep.subr.mxu0 %v1123
    %1169 = vmatpush1.msra.mxu0 %v1122
    %1170 = vmatprep.subr.mxu0 %v1126
    %1171 = vmatpush1.msra.mxu0 %v1125
    %1172 = vmatprep.subr.mxu0 %v1129
    %1173 = vmatpush1.msra.mxu0 %v1128
    %1174 = vmatprep.subr.mxu0 %v1132
    %1175 = vmatpush1.msra.mxu0 %v1131
    %1176 = vmatprep.subr.mxu0 %v1135
    %1177 = vmatpush1.msra.mxu0 %v1134
    %1178 = vmatprep.subr.mxu0 %v1138
    %1179 = vmatpush1.msra.mxu0 %v1137
    %1180 = vmatprep.subr.mxu0 %v1141
    %1181 = vmatpush1.msra.mxu0 %v1140
    %1182 = vmatprep.subr.mxu0 %v1144
    %1183 = vmatpush1.msra.mxu0 %v1143
    %1184 = vmatprep.subr.mxu0 %v1147
    %1185 = vmatpush1.msra.mxu0 %v1146
    %1186 = vmatprep.subr.mxu0 %v1150
    %1187 = vmatpush1.msra.mxu0 %v1149
    %1188 = vmatprep.subr.mxu0 %v1153
    %1189 = vmatpush1.msra.mxu0 %v1152
    %1190 = vmatprep.subr.mxu0 %v1156
    %1191 = vmatpush1.msra.mxu0 %v1155
    %1192 = vmatprep.subr.mxu0 %v1159
    %1193 = vmatpush1.msra.mxu0 %v1158
    %1194 = vmatprep.subr.mxu0 %v1162
    %1195 = vmatpush1.msra.mxu0 %v1161
    %1196 = vmatprep.subr.mxu0 0.0
    %1197 = vmatpush1.msra.mxu0 0.0
    %1198 = vmatprep.subr.mxu0 0.0
    %1199 = vmatpush1.msra.mxu0 0.0
    %1200 = vmatprep.subr.mxu0 0.0
    %1201 = vmatpush1.msra.mxu0 0.0
    %1202 = vmatprep.subr.mxu0 0.0
    %1203 = vmatpush1.msra.mxu0 0.0
    %1204 = vmatprep.subr.mxu0 0.0
    %1205 = vmatpush1.msra.mxu0 0.0
    %1206 = vmatprep.subr.mxu0 0.0
    %1207 = vmatpush1.msra.mxu0 0.0
    %1208 = vmatprep.subr.mxu0 0.0
    %1209 = vmatpush1.msra.mxu0 0.0
    %1210 = vmatprep.subr.mxu0 0.0
    %1211 = vmatpush1.msra.mxu0 0.0
    %1212 = vmatprep.subr.mxu0 0.0
    %1213 = vmatpush1.msra.mxu0 0.0
    %1214 = vmatprep.subr.mxu0 0.0
    %1215 = vmatpush1.msra.mxu0 0.0
    %1216 = vmatprep.subr.mxu0 0.0
    %1217 = vmatpush1.msra.mxu0 0.0
    %1218 = vmatprep.subr.mxu0 0.0
    %1219 = vmatpush1.msra.mxu0 0.0
    %1220 = vmatprep.subr.mxu0 0.0
    %1221 = vmatpush1.msra.mxu0 0.0
    %1222 = vmatprep.subr.mxu0 0.0
    %1223 = vmatpush1.msra.mxu0 0.0
    %1224 = vmatprep.subr.mxu0 0.0
    %1225 = vmatpush1.msra.mxu0 0.0
    %1226 = vmatprep.subr.mxu0 0.0
    %1227 = vmatpush1.msra.mxu0 0.0
    %1228 = vmatprep.mubr.f32.mxu0 0.0
    %1229 = vmatmul.mubr.f32.gmra.mrb[0].mxu0 %v1108
    %v1230 = vpop.f32.mrb[0].mxu0
    %v1231 = vadd.f32 0.0, %v1230
    %v1232 = vpop.f32.mrb[0].mxu0
    %v1233 = vadd.f32 0.0, %v1232
    %1234 = vdwg.mxu0
    %1235 = vmatprep.subr.mxu0 0.0
    %1236 = vmatpush1.msra.mxu0 %v1118
    %1237 = vmatprep.subr.mxu0 0.0
    %1238 = vmatpush1.msra.mxu0 %v1121
    %1239 = vmatprep.subr.mxu0 0.0
    %1240 = vmatpush1.msra.mxu0 %v1124
    %1241 = vmatprep.subr.mxu0 0.0
    %1242 = vmatpush1.msra.mxu0 %v1127
    %1243 = vmatprep.subr.mxu0 0.0
    %1244 = vmatpush1.msra.mxu0 %v1130
    %1245 = vmatprep.subr.mxu0 0.0
    %1246 = vmatpush1.msra.mxu0 %v1133
    %1247 = vmatprep.subr.mxu0 0.0
    %1248 = vmatpush1.msra.mxu0 %v1136
    %1249 = vmatprep.subr.mxu0 0.0
    %1250 = vmatpush1.msra.mxu0 %v1139
    %1251 = vmatprep.subr.mxu0 0.0
    %1252 = vmatpush1.msra.mxu0 %v1142
    %1253 = vmatprep.subr.mxu0 0.0
    %1254 = vmatpush1.msra.mxu0 %v1145
    %1255 = vmatprep.subr.mxu0 0.0
    %1256 = vmatpush1.msra.mxu0 %v1148
    %1257 = vmatprep.subr.mxu0 0.0
    %1258 = vmatpush1.msra.mxu0 %v1151
    %1259 = vmatprep.subr.mxu0 0.0
    %1260 = vmatpush1.msra.mxu0 %v1154
    %1261 = vmatprep.subr.mxu0 0.0
    %1262 = vmatpush1.msra.mxu0 %v1157
    %1263 = vmatprep.subr.mxu0 0.0
    %1264 = vmatpush1.msra.mxu0 %v1160
    %1265 = vmatprep.subr.mxu0 0.0
    %1266 = vmatpush1.msra.mxu0 %v1163
    %1267 = vmatprep.subr.mxu0 0.0
    %1268 = vmatpush1.msra.mxu0 0.0
    %1269 = vmatprep.subr.mxu0 0.0
    %1270 = vmatpush1.msra.mxu0 0.0
    %1271 = vmatprep.subr.mxu0 0.0
    %1272 = vmatpush1.msra.mxu0 0.0
    %1273 = vmatprep.subr.mxu0 0.0
    %1274 = vmatpush1.msra.mxu0 0.0
    %1275 = vmatprep.subr.mxu0 0.0
    %1276 = vmatpush1.msra.mxu0 0.0
    %1277 = vmatprep.subr.mxu0 0.0
    %1278 = vmatpush1.msra.mxu0 0.0
    %1279 = vmatprep.subr.mxu0 0.0
    %1280 = vmatpush1.msra.mxu0 0.0
    %1281 = vmatprep.subr.mxu0 0.0
    %1282 = vmatpush1.msra.mxu0 0.0
    %1283 = vmatprep.subr.mxu0 0.0
    %1284 = vmatpush1.msra.mxu0 0.0
    %1285 = vmatprep.subr.mxu0 0.0
    %1286 = vmatpush1.msra.mxu0 0.0
    %1287 = vmatprep.subr.mxu0 0.0
    %1288 = vmatpush1.msra.mxu0 0.0
    %1289 = vmatprep.subr.mxu0 0.0
    %1290 = vmatpush1.msra.mxu0 0.0
    %1291 = vmatprep.subr.mxu0 0.0
    %1292 = vmatpush1.msra.mxu0 0.0
    %1293 = vmatprep.subr.mxu0 0.0
    %1294 = vmatpush1.msra.mxu0 0.0
    %1295 = vmatprep.subr.mxu0 0.0
    %1296 = vmatpush1.msra.mxu0 0.0
    %1297 = vmatprep.subr.mxu0 0.0
    %1298 = vmatpush1.msra.mxu0 0.0
    %1299 = vmatprep.mubr.f32.mxu0 0.0
    %1300 = vmatmul.mubr.f32.gmra.mrb[0].mxu0 %v1108
    %v1301 = vpop.f32.mrb[0].mxu0
    %v1302 = vadd.f32 0.0, %v1301
    %v1303 = vpop.f32.mrb[0].mxu0
    %1304 = vdwg.mxu0
    %vm1305 = vcmask 130048
    %v1307 = vsel %vm1305, %v1109, 0
    %1309 = vmatprep.subr.mxu0 %v1111
    %1310 = vmatpush1.msra.mxu0 %v1110
    %1311 = vmatprep.subr.mxu0 %v1114
    %1312 = vmatpush1.msra.mxu0 %v1113
    %1313 = vmatprep.subr.mxu0 0.0
    %1314 = vmatpush1.msra.mxu0 0.0
    %1315 = vmatprep.subr.mxu0 0.0
    %1316 = vmatpush1.msra.mxu0 0.0
    %1317 = vmatprep.subr.mxu0 0.0
    %1318 = vmatpush1.msra.mxu0 0.0
    %1319 = vmatprep.subr.mxu0 0.0
    %1320 = vmatpush1.msra.mxu0 0.0
    %1321 = vmatprep.subr.mxu0 0.0
    %1322 = vmatpush1.msra.mxu0 0.0
    %1323 = vmatprep.subr.mxu0 0.0
    %1324 = vmatpush1.msra.mxu0 0.0
    %1325 = vmatprep.subr.mxu0 0.0
    %1326 = vmatpush1.msra.mxu0 0.0
    %1327 = vmatprep.subr.mxu0 0.0
    %1328 = vmatpush1.msra.mxu0 0.0
    %1329 = vmatprep.subr.mxu0 0.0
    %1330 = vmatpush1.msra.mxu0 0.0
    %1331 = vmatprep.subr.mxu0 0.0
    %1332 = vmatpush1.msra.mxu0 0.0
    %1333 = vmatprep.subr.mxu0 0.0
    %1334 = vmatpush1.msra.mxu0 0.0
    %1335 = vmatprep.subr.mxu0 0.0
    %1336 = vmatpush1.msra.mxu0 0.0
    %1337 = vmatprep.subr.mxu0 0.0
    %1338 = vmatpush1.msra.mxu0 0.0
    %1339 = vmatprep.subr.mxu0 0.0
    %1340 = vmatpush1.msra.mxu0 0.0
    %1341 = vmatprep.subr.mxu0 0.0
    %1342 = vmatpush1.msra.mxu0 0.0
    %1343 = vmatprep.subr.mxu0 0.0
    %1344 = vmatpush1.msra.mxu0 0.0
    %1345 = vmatprep.subr.mxu0 0.0
    %1346 = vmatpush1.msra.mxu0 0.0
    %1347 = vmatprep.subr.mxu0 0.0
    %1348 = vmatpush1.msra.mxu0 0.0
    %1349 = vmatprep.subr.mxu0 0.0
    %1350 = vmatpush1.msra.mxu0 0.0
    %1351 = vmatprep.subr.mxu0 0.0
    %1352 = vmatpush1.msra.mxu0 0.0
    %1353 = vmatprep.subr.mxu0 0.0
    %1354 = vmatpush1.msra.mxu0 0.0
    %1355 = vmatprep.subr.mxu0 0.0
    %1356 = vmatpush1.msra.mxu0 0.0
    %1357 = vmatprep.subr.mxu0 0.0
    %1358 = vmatpush1.msra.mxu0 0.0
    %1359 = vmatprep.subr.mxu0 0.0
    %1360 = vmatpush1.msra.mxu0 0.0
    %1361 = vmatprep.subr.mxu0 0.0
    %1362 = vmatpush1.msra.mxu0 0.0
    %1363 = vmatprep.subr.mxu0 0.0
    %1364 = vmatpush1.msra.mxu0 0.0
    %1365 = vmatprep.subr.mxu0 0.0
    %1366 = vmatpush1.msra.mxu0 0.0
    %1367 = vmatprep.subr.mxu0 0.0
    %1368 = vmatpush1.msra.mxu0 0.0
    %1369 = vmatprep.subr.mxu0 0.0
    %1370 = vmatpush1.msra.mxu0 0.0
    %1371 = vmatprep.subr.mxu0 0.0
    %1372 = vmatpush1.msra.mxu0 0.0
    %1373 = vmatprep.mubr.f32.mxu0 0.0
    %1374 = vmatmul.mubr.f32.gmra.mrb[0].mxu0 %v1307
    %v1375 = vpop.f32.mrb[0].mxu0
    %v1376 = vadd.f32 %v1231, %v1375
    %v1377 = vpop.f32.mrb[0].mxu0
    %v1378 = vadd.f32 %v1233, %v1377
    %1379 = vdwg.mxu0
    %1380 = vmatprep.subr.mxu0 0.0
    %1381 = vmatpush1.msra.mxu0 %v1112
    %1382 = vmatprep.subr.mxu0 0.0
    %1383 = vmatpush1.msra.mxu0 %v1115
    %1384 = vmatprep.subr.mxu0 0.0
    %1385 = vmatpush1.msra.mxu0 0.0
    %1386 = vmatprep.subr.mxu0 0.0
    %1387 = vmatpush1.msra.mxu0 0.0
    %1388 = vmatprep.subr.mxu0 0.0
    %1389 = vmatpush1.msra.mxu0 0.0
    %1390 = vmatprep.subr.mxu0 0.0
    %1391 = vmatpush1.msra.mxu0 0.0
    %1392 = vmatprep.subr.mxu0 0.0
    %1393 = vmatpush1.msra.mxu0 0.0
    %1394 = vmatprep.subr.mxu0 0.0
    %1395 = vmatpush1.msra.mxu0 0.0
    %1396 = vmatprep.subr.mxu0 0.0
    %1397 = vmatpush1.msra.mxu0 0.0
    %1398 = vmatprep.subr.mxu0 0.0
    %1399 = vmatpush1.msra.mxu0 0.0
    %1400 = vmatprep.subr.mxu0 0.0
    %1401 = vmatpush1.msra.mxu0 0.0
    %1402 = vmatprep.subr.mxu0 0.0
    %1403 = vmatpush1.msra.mxu0 0.0
    %1404 = vmatprep.subr.mxu0 0.0
    %1405 = vmatpush1.msra.mxu0 0.0
    %1406 = vmatprep.subr.mxu0 0.0
    %1407 = vmatpush1.msra.mxu0 0.0
    %1408 = vmatprep.subr.mxu0 0.0
    %1409 = vmatpush1.msra.mxu0 0.0
    %1410 = vmatprep.subr.mxu0 0.0
    %1411 = vmatpush1.msra.mxu0 0.0
    %1412 = vmatprep.subr.mxu0 0.0
    %1413 = vmatpush1.msra.mxu0 0.0
    %1414 = vmatprep.subr.mxu0 0.0
    %1415 = vmatpush1.msra.mxu0 0.0
    %1416 = vmatprep.subr.mxu0 0.0
    %1417 = vmatpush1.msra.mxu0 0.0
    %1418 = vmatprep.subr.mxu0 0.0
    %1419 = vmatpush1.msra.mxu0 0.0
    %1420 = vmatprep.subr.mxu0 0.0
    %1421 = vmatpush1.msra.mxu0 0.0
    %1422 = vmatprep.subr.mxu0 0.0
    %1423 = vmatpush1.msra.mxu0 0.0
    %1424 = vmatprep.subr.mxu0 0.0
    %1425 = vmatpush1.msra.mxu0 0.0
    %1426 = vmatprep.subr.mxu0 0.0
    %1427 = vmatpush1.msra.mxu0 0.0
    %1428 = vmatprep.subr.mxu0 0.0
    %1429 = vmatpush1.msra.mxu0 0.0
    %1430 = vmatprep.subr.mxu0 0.0
    %1431 = vmatpush1.msra.mxu0 0.0
    %1432 = vmatprep.subr.mxu0 0.0
    %1433 = vmatpush1.msra.mxu0 0.0
    %1434 = vmatprep.subr.mxu0 0.0
    %1435 = vmatpush1.msra.mxu0 0.0
    %1436 = vmatprep.subr.mxu0 0.0
    %1437 = vmatpush1.msra.mxu0 0.0
    %1438 = vmatprep.subr.mxu0 0.0
    %1439 = vmatpush1.msra.mxu0 0.0
    %1440 = vmatprep.subr.mxu0 0.0
    %1441 = vmatpush1.msra.mxu0 0.0
    %1442 = vmatprep.subr.mxu0 0.0
    %1443 = vmatpush1.msra.mxu0 0.0
    %1444 = vmatprep.mubr.f32.mxu0 0.0
    %1445 = vmatmul.mubr.f32.gmra.mrb[0].mxu0 %v1307
    %v1446 = vpop.f32.mrb[0].mxu0
    %v1447 = vadd.f32 %v1302, %v1446
    %v1448 = vpop.f32.mrb[0].mxu0
    %1449 = vdwg.mxu0
    %v1450 = vld [vmem:[%s9] sm:$0x7]
    %v1452 = vlaneseq
    %v1453 = vshrl.u32 %v1452, 7
    %v1454 = vsub.s32 0, %v1453
    %v1455 = vrot.slane %v1450, %v1454
    %v1456 = vlaneseq
    %v1457 = vshrl.u32 %v1456, 7
    %v1458 = vsub.s32 1, %v1457
    %v1459 = vrot.slane %v1450, %v1458
    %v1460 = vlaneseq
    %v1461 = vshrl.u32 %v1460, 7
    %v1462 = vsub.s32 2, %v1461
    %v1463 = vrot.slane %v1450, %v1462
    %v1467 = vadd.f32 %v1376, %v1455
    %v1468 = vadd.f32 %v1378, %v1459
    %v1469 = vadd.f32 %v1447, %v1463
    %v1470 = vld [vmem:[#allocation11] sm:$0xff]
    %v1471 = vld [vmem:[#allocation11 + $0x8] sm:$0xff]
    %v1472 = vld [vmem:[#allocation11 + $0x10] sm:$0xff]
    %v1473 = vld [vmem:[#allocation11 + $0x18] sm:$0xff]
    %v1474 = vld [vmem:[#allocation11 + $0x20] sm:$0xff]
    %v1475 = vld [vmem:[#allocation11 + $0x28] sm:$0xff]
    %v1476 = vld [vmem:[#allocation11 + $0x30] sm:$0xff]
    %v1477 = vld [vmem:[#allocation11 + $0x38] sm:$0xff]
    %v1478 = vld [vmem:[#allocation11 + $0x40] sm:$0xff]
    %v1479 = vld [vmem:[#allocation11 + $0x48] sm:$0xff]
    %v1480 = vld [vmem:[#allocation11 + $0x50] sm:$0xff]
    %v1481 = vld [vmem:[#allocation11 + $0x58] sm:$0xff]
    %v1482 = vld [vmem:[#allocation11 + $0x60] sm:$0xff]
    %v1483 = vld [vmem:[#allocation11 + $0x68] sm:$0xff]
    %v1484 = vld [vmem:[#allocation11 + $0x70] sm:$0xff]
    %v1485 = vld [vmem:[#allocation11 + $0x78] sm:$0xff]
    %v1486 = vld [vmem:[#allocation11 + $0x80] sm:$0xff]
    %v1487 = vld [vmem:[#allocation11 + $0x88] sm:$0xff]
    %v1488 = vld [vmem:[#allocation11 + $0x90] sm:$0xff]
    %v1489 = vld [vmem:[#allocation11 + $0x98] sm:$0xff]
    %v1490 = vld [vmem:[#allocation11 + $0xa0] sm:$0xff]
    %v1491 = vld [vmem:[#allocation11 + $0xa8] sm:$0xff]
    %v1492 = vld [vmem:[#allocation11 + $0xb0] sm:$0xff]
    %v1493 = vld [vmem:[#allocation11 + $0xb8] sm:$0xff]
    %v1494 = vld [vmem:[#allocation11 + $0xc0] sm:$0xff]
    %v1495 = vld [vmem:[#allocation11 + $0xc8] sm:$0xff]
    %v1496 = vld [vmem:[#allocation11 + $0xd0] sm:$0xff]
    %v1497 = vld [vmem:[#allocation11 + $0xd8] sm:$0xff]
    %v1498 = vld [vmem:[#allocation11 + $0xe0] sm:$0xff]
    %v1499 = vld [vmem:[#allocation11 + $0xe8] sm:$0xff]
    %v1500 = vld [vmem:[#allocation11 + $0xf0] sm:$0xff]
    %v1501 = vld [vmem:[#allocation11 + $0xf8] sm:$0xff]
    %v1502 = vld [vmem:[#allocation11 + $0x100] sm:$0xff]
    %v1503 = vld [vmem:[#allocation11 + $0x108] sm:$0xff]
    %v1504 = vld [vmem:[#allocation11 + $0x110] sm:$0xff]
    %v1505 = vld [vmem:[#allocation11 + $0x118] sm:$0xff]
    %v1506 = vld [vmem:[#allocation11 + $0x120] sm:$0xff]
    %v1507 = vld [vmem:[#allocation11 + $0x128] sm:$0xff]
    %v1508 = vld [vmem:[#allocation11 + $0x130] sm:$0xff]
    %v1509 = vld [vmem:[#allocation11 + $0x138] sm:$0xff]
    %v1510 = vld [vmem:[#allocation11 + $0x140] sm:$0xff]
    %v1511 = vld [vmem:[#allocation11 + $0x148] sm:$0xff]
    %v1512 = vld [vmem:[#allocation11 + $0x150] sm:$0xff]
    %v1513 = vld [vmem:[#allocation11 + $0x158] sm:$0xff]
    %v1514 = vld [vmem:[#allocation11 + $0x160] sm:$0xff]
    %v1515 = vld [vmem:[#allocation11 + $0x168] sm:$0xff]
    %v1516 = vld [vmem:[#allocation11 + $0x170] sm:$0xff]
    %v1517 = vld [vmem:[#allocation11 + $0x178] sm:$0xff]
    %v1518 = vld [vmem:[#allocation10] sm:$0xff]
    %v1519 = vld [vmem:[#allocation10 + $0x8] sm:$0xff]
    %v1520 = vld [vmem:[#allocation10 + $0x10] sm:$0xff]
    %v1521 = vld [vmem:[#allocation10 + $0x18] sm:$0xff]
    %v1522 = vld [vmem:[#allocation10 + $0x20] sm:$0xff]
    %v1523 = vld [vmem:[#allocation10 + $0x28] sm:$0xff]
    %v1524 = vld [vmem:[#allocation10 + $0x30] sm:$0xff]
    %v1525 = vld [vmem:[#allocation10 + $0x38] sm:$0xff]
    %v1526 = vld [vmem:[#allocation10 + $0x40] sm:$0xff]
    %v1527 = vld [vmem:[#allocation10 + $0x48] sm:$0xff]
    %v1528 = vld [vmem:[#allocation10 + $0x50] sm:$0xff]
    %v1529 = vld [vmem:[#allocation10 + $0x58] sm:$0xff]
    %v1530 = vld [vmem:[#allocation10 + $0x60] sm:$0xff]
    %v1531 = vld [vmem:[#allocation10 + $0x68] sm:$0xff]
    %v1532 = vld [vmem:[#allocation10 + $0x70] sm:$0xff]
    %v1533 = vld [vmem:[#allocation10 + $0x78] sm:$0xff]
    %v1534 = vld [vmem:[#allocation10 + $0x80] sm:$0xff]
    %v1535 = vld [vmem:[#allocation10 + $0x88] sm:$0xff]
    %v1536 = vld [vmem:[#allocation10 + $0x90] sm:$0xff]
    %v1537 = vld [vmem:[#allocation10 + $0x98] sm:$0xff]
    %v1538 = vld [vmem:[#allocation10 + $0xa0] sm:$0xff]
    %v1539 = vld [vmem:[#allocation10 + $0xa8] sm:$0xff]
    %v1540 = vld [vmem:[#allocation10 + $0xb0] sm:$0xff]
    %v1541 = vld [vmem:[#allocation10 + $0xb8] sm:$0xff]
    %v1542 = vld [vmem:[#allocation10 + $0xc0] sm:$0xff]
    %v1543 = vld [vmem:[#allocation10 + $0xc8] sm:$0xff]
    %v1544 = vld [vmem:[#allocation10 + $0xd0] sm:$0xff]
    %v1545 = vld [vmem:[#allocation10 + $0xd8] sm:$0xff]
    %v1546 = vld [vmem:[#allocation10 + $0xe0] sm:$0xff]
    %v1547 = vld [vmem:[#allocation10 + $0xe8] sm:$0xff]
    %v1548 = vld [vmem:[#allocation10 + $0xf0] sm:$0xff]
    %v1549 = vld [vmem:[#allocation10 + $0xf8] sm:$0xff]
    %v1550 = vld [vmem:[#allocation10 + $0x100] sm:$0xff]
    %v1551 = vld [vmem:[#allocation10 + $0x108] sm:$0xff]
    %v1552 = vld [vmem:[#allocation10 + $0x110] sm:$0xff]
    %v1553 = vld [vmem:[#allocation10 + $0x118] sm:$0xff]
    %v1554 = vld [vmem:[#allocation10 + $0x120] sm:$0xff]
    %v1555 = vld [vmem:[#allocation10 + $0x128] sm:$0xff]
    %v1556 = vld [vmem:[#allocation10 + $0x130] sm:$0xff]
    %v1557 = vld [vmem:[#allocation10 + $0x138] sm:$0xff]
    %v1558 = vld [vmem:[#allocation10 + $0x140] sm:$0xff]
    %v1559 = vld [vmem:[#allocation10 + $0x148] sm:$0xff]
    %v1560 = vld [vmem:[#allocation10 + $0x150] sm:$0xff]
    %v1561 = vld [vmem:[#allocation10 + $0x158] sm:$0xff]
    %v1562 = vld [vmem:[#allocation10 + $0x160] sm:$0xff]
    %v1563 = vld [vmem:[#allocation10 + $0x168] sm:$0xff]
    %v1564 = vld [vmem:[#allocation10 + $0x170] sm:$0xff]
    %v1565 = vld [vmem:[#allocation10 + $0x178] sm:$0xff]
    %v1566 = vld [vmem:[#allocation13] sm:$0xff]
    %v1567 = vld [vmem:[#allocation13 + $0x8] sm:$0xff]
    %v1568 = vld [vmem:[#allocation13 + $0x10] sm:$0xff]
    %v1569 = vld [vmem:[#allocation13 + $0x18] sm:$0xff]
    %v1570 = vld [vmem:[#allocation13 + $0x20] sm:$0xff]
    %v1571 = vld [vmem:[#allocation13 + $0x28] sm:$0xff]
    %v1572 = vld [vmem:[#allocation13 + $0x30] sm:$0xff]
    %v1573 = vld [vmem:[#allocation13 + $0x38] sm:$0xff]
    %v1574 = vld [vmem:[#allocation13 + $0x40] sm:$0xff]
    %v1575 = vld [vmem:[#allocation13 + $0x48] sm:$0xff]
    %v1576 = vld [vmem:[#allocation13 + $0x50] sm:$0xff]
    %v1577 = vld [vmem:[#allocation13 + $0x58] sm:$0xff]
    %v1578 = vld [vmem:[#allocation13 + $0x60] sm:$0xff]
    %v1579 = vld [vmem:[#allocation13 + $0x68] sm:$0xff]
    %v1580 = vld [vmem:[#allocation13 + $0x70] sm:$0xff]
    %v1581 = vld [vmem:[#allocation13 + $0x78] sm:$0xff]
    %v1582 = vld [vmem:[#allocation13 + $0x80] sm:$0xff]
    %v1583 = vld [vmem:[#allocation13 + $0x88] sm:$0xff]
    %v1584 = vld [vmem:[#allocation13 + $0x90] sm:$0xff]
    %v1585 = vld [vmem:[#allocation13 + $0x98] sm:$0xff]
    %v1586 = vld [vmem:[#allocation13 + $0xa0] sm:$0xff]
    %v1587 = vld [vmem:[#allocation13 + $0xa8] sm:$0xff]
    %v1588 = vld [vmem:[#allocation13 + $0xb0] sm:$0xff]
    %v1589 = vld [vmem:[#allocation13 + $0xb8] sm:$0xff]
    %v1590 = vld [vmem:[#allocation13 + $0xc0] sm:$0xff]
    %v1591 = vld [vmem:[#allocation13 + $0xc8] sm:$0xff]
    %v1592 = vld [vmem:[#allocation13 + $0xd0] sm:$0xff]
    %v1593 = vld [vmem:[#allocation13 + $0xd8] sm:$0xff]
    %v1594 = vld [vmem:[#allocation13 + $0xe0] sm:$0xff]
    %v1595 = vld [vmem:[#allocation13 + $0xe8] sm:$0xff]
    %v1596 = vld [vmem:[#allocation13 + $0xf0] sm:$0xff]
    %v1597 = vld [vmem:[#allocation13 + $0xf8] sm:$0xff]
    %v1598 = vld [vmem:[#allocation13 + $0x100] sm:$0xff]
    %v1599 = vld [vmem:[#allocation13 + $0x108] sm:$0xff]
    %v1600 = vld [vmem:[#allocation13 + $0x110] sm:$0xff]
    %v1601 = vld [vmem:[#allocation13 + $0x118] sm:$0xff]
    %v1602 = vld [vmem:[#allocation13 + $0x120] sm:$0xff]
    %v1603 = vld [vmem:[#allocation13 + $0x128] sm:$0xff]
    %v1604 = vld [vmem:[#allocation13 + $0x130] sm:$0xff]
    %v1605 = vld [vmem:[#allocation13 + $0x138] sm:$0xff]
    %v1606 = vld [vmem:[#allocation13 + $0x140] sm:$0xff]
    %v1607 = vld [vmem:[#allocation13 + $0x148] sm:$0xff]
    %v1608 = vld [vmem:[#allocation13 + $0x150] sm:$0xff]
    %v1609 = vld [vmem:[#allocation13 + $0x158] sm:$0xff]
    %v1610 = vld [vmem:[#allocation13 + $0x160] sm:$0xff]
    %v1611 = vld [vmem:[#allocation13 + $0x168] sm:$0xff]
    %v1612 = vld [vmem:[#allocation13 + $0x170] sm:$0xff]
    %v1613 = vld [vmem:[#allocation13 + $0x178] sm:$0xff]
    %v1614 = vld [vmem:[%s13] sm:$0x7]
    %v1616 = vlaneseq
    %v1617 = vshrl.u32 %v1616, 7
    %v1618 = vsub.s32 0, %v1617
    %v1619 = vrot.slane %v1614, %v1618
    %v1620 = vlaneseq
    %v1621 = vshrl.u32 %v1620, 7
    %v1622 = vsub.s32 1, %v1621
    %v1623 = vrot.slane %v1614, %v1622
    %v1624 = vlaneseq
    %v1625 = vshrl.u32 %v1624, 7
    %v1626 = vsub.s32 2, %v1625
    %v1627 = vrot.slane %v1614, %v1626
    %v1631 = vld [vmem:[%s11] sm:$0x7]
    %v1633 = vlaneseq
    %v1634 = vshrl.u32 %v1633, 7
    %v1635 = vsub.s32 0, %v1634
    %v1636 = vrot.slane %v1631, %v1635
    %v1637 = vlaneseq
    %v1638 = vshrl.u32 %v1637, 7
    %v1639 = vsub.s32 1, %v1638
    %v1640 = vrot.slane %v1631, %v1639
    %v1641 = vlaneseq
    %v1642 = vshrl.u32 %v1641, 7
    %v1643 = vsub.s32 2, %v1642
    %v1644 = vrot.slane %v1631, %v1643
    %v1648 = vld [vmem:[%s15] sm:$0x7]
    %v1650 = vlaneseq
    %v1651 = vshrl.u32 %v1650, 7
    %v1652 = vsub.s32 0, %v1651
    %v1653 = vrot.slane %v1648, %v1652
    %v1654 = vlaneseq
    %v1655 = vshrl.u32 %v1654, 7
    %v1656 = vsub.s32 1, %v1655
    %v1657 = vrot.slane %v1648, %v1656
    %v1658 = vlaneseq
    %v1659 = vshrl.u32 %v1658, 7
    %v1660 = vsub.s32 2, %v1659
    %v1661 = vrot.slane %v1648, %v1660
    %v1665 = vld [vmem:[%s16] sm:$0xff]
    %v1666 = vld [vmem:[%s16 + $0x8] sm:$0xff]
    %v1667 = vld [vmem:[%s16 + $0x10] sm:$0xff]
    %v1668 = vld [vmem:[%s16 + $0x18] sm:$0xff]
    %v1669 = vld [vmem:[%s16 + $0x20] sm:$0xff]
    %v1670 = vld [vmem:[%s16 + $0x28] sm:$0xff]
    %v1671 = vld [vmem:[%s16 + $0x30] sm:$0xff]
    %v1672 = vld [vmem:[%s16 + $0x38] sm:$0xff]
    %v1673 = vld [vmem:[%s16 + $0x40] sm:$0xff]
    %v1674 = vld [vmem:[%s16 + $0x48] sm:$0xff]
    %v1675 = vld [vmem:[%s16 + $0x50] sm:$0xff]
    %v1676 = vld [vmem:[%s16 + $0x58] sm:$0xff]
    %v1677 = vld [vmem:[%s16 + $0x60] sm:$0xff]
    %v1678 = vld [vmem:[%s16 + $0x68] sm:$0xff]
    %v1679 = vld [vmem:[%s16 + $0x70] sm:$0xff]
    %v1680 = vld [vmem:[%s16 + $0x78] sm:$0xff]
    %v1681 = vld [vmem:[%s17] sm:$0x1]
    %v1683 = vlaneseq
    %v1684 = vshrl.u32 %v1683, 7
    %v1685 = vsub.s32 0, %v1684
    %v1686 = vrot.slane %v1681, %v1685
    %1688 = vst [vmem:[#allocation14] sm:$0xff] 0.0
    %1689 = vmatprep.subr.mxu0 %v1519
    %1690 = vmatpush1.msra.mxu0 %v1518
    %1691 = vmatprep.subr.mxu0 %v1522
    %1692 = vmatpush1.msra.mxu0 %v1521
    %1693 = vmatprep.subr.mxu0 %v1525
    %1694 = vmatpush1.msra.mxu0 %v1524
    %1695 = vmatprep.subr.mxu0 %v1528
    %1696 = vmatpush1.msra.mxu0 %v1527
    %1697 = vmatprep.subr.mxu0 %v1531
    %1698 = vmatpush1.msra.mxu0 %v1530
    %1699 = vmatprep.subr.mxu0 %v1534
    %1700 = vmatpush1.msra.mxu0 %v1533
    %1701 = vmatprep.subr.mxu0 %v1537
    %1702 = vmatpush1.msra.mxu0 %v1536
    %1703 = vmatprep.subr.mxu0 %v1540
    %1704 = vmatpush1.msra.mxu0 %v1539
    %1705 = vmatprep.subr.mxu0 %v1543
    %1706 = vmatpush1.msra.mxu0 %v1542
    %1707 = vmatprep.subr.mxu0 %v1546
    %1708 = vmatpush1.msra.mxu0 %v1545
    %1709 = vmatprep.subr.mxu0 %v1549
    %1710 = vmatpush1.msra.mxu0 %v1548
    %1711 = vmatprep.subr.mxu0 %v1552
    %1712 = vmatpush1.msra.mxu0 %v1551
    %1713 = vmatprep.subr.mxu0 %v1555
    %1714 = vmatpush1.msra.mxu0 %v1554
    %1715 = vmatprep.subr.mxu0 %v1558
    %1716 = vmatpush1.msra.mxu0 %v1557
    %1717 = vmatprep.subr.mxu0 %v1561
    %1718 = vmatpush1.msra.mxu0 %v1560
    %1719 = vmatprep.subr.mxu0 %v1564
    %1720 = vmatpush1.msra.mxu0 %v1563
    %1721 = vmatprep.subr.mxu0 0.0
    %1722 = vmatpush1.msra.mxu0 0.0
    %1723 = vmatprep.subr.mxu0 0.0
    %1724 = vmatpush1.msra.mxu0 0.0
    %1725 = vmatprep.subr.mxu0 0.0
    %1726 = vmatpush1.msra.mxu0 0.0
    %1727 = vmatprep.subr.mxu0 0.0
    %1728 = vmatpush1.msra.mxu0 0.0
    %1729 = vmatprep.subr.mxu0 0.0
    %1730 = vmatpush1.msra.mxu0 0.0
    %1731 = vmatprep.subr.mxu0 0.0
    %1732 = vmatpush1.msra.mxu0 0.0
    %1733 = vmatprep.subr.mxu0 0.0
    %1734 = vmatpush1.msra.mxu0 0.0
    %1735 = vmatprep.subr.mxu0 0.0
    %1736 = vmatpush1.msra.mxu0 0.0
    %1737 = vmatprep.subr.mxu0 0.0
    %1738 = vmatpush1.msra.mxu0 0.0
    %1739 = vmatprep.subr.mxu0 0.0
    %1740 = vmatpush1.msra.mxu0 0.0
    %1741 = vmatprep.subr.mxu0 0.0
    %1742 = vmatpush1.msra.mxu0 0.0
    %1743 = vmatprep.subr.mxu0 0.0
    %1744 = vmatpush1.msra.mxu0 0.0
    %1745 = vmatprep.subr.mxu0 0.0
    %1746 = vmatpush1.msra.mxu0 0.0
    %1747 = vmatprep.subr.mxu0 0.0
    %1748 = vmatpush1.msra.mxu0 0.0
    %1749 = vmatprep.subr.mxu0 0.0
    %1750 = vmatpush1.msra.mxu0 0.0
    %1751 = vmatprep.subr.mxu0 0.0
    %1752 = vmatpush1.msra.mxu0 0.0
    %1753 = vmatprep.mubr.f32.mxu0 0.0
    %1754 = vmatmul.mubr.f32.gmra.mrb[0].mxu0 %v1108
    %v1755 = vpop.f32.mrb[0].mxu0
    %v1756 = vadd.f32 %v1636, %v1755
    %v1757 = vpop.f32.mrb[0].mxu0
    %v1758 = vadd.f32 %v1640, %v1757
    %1759 = vdwg.mxu0
    %1760 = vmatprep.subr.mxu0 0.0
    %1761 = vmatpush1.msra.mxu0 %v1520
    %1762 = vmatprep.subr.mxu0 0.0
    %1763 = vmatpush1.msra.mxu0 %v1523
    %1764 = vmatprep.subr.mxu0 0.0
    %1765 = vmatpush1.msra.mxu0 %v1526
    %1766 = vmatprep.subr.mxu0 0.0
    %1767 = vmatpush1.msra.mxu0 %v1529
    %1768 = vmatprep.subr.mxu0 0.0
    %1769 = vmatpush1.msra.mxu0 %v1532
    %1770 = vmatprep.subr.mxu0 0.0
    %1771 = vmatpush1.msra.mxu0 %v1535
    %1772 = vmatprep.subr.mxu0 0.0
    %1773 = vmatpush1.msra.mxu0 %v1538
    %1774 = vmatprep.subr.mxu0 0.0
    %1775 = vmatpush1.msra.mxu0 %v1541
    %1776 = vmatprep.subr.mxu0 0.0
    %1777 = vmatpush1.msra.mxu0 %v1544
    %1778 = vmatprep.subr.mxu0 0.0
    %1779 = vmatpush1.msra.mxu0 %v1547
    %1780 = vmatprep.subr.mxu0 0.0
    %1781 = vmatpush1.msra.mxu0 %v1550
    %1782 = vmatprep.subr.mxu0 0.0
    %1783 = vmatpush1.msra.mxu0 %v1553
    %1784 = vmatprep.subr.mxu0 0.0
    %1785 = vmatpush1.msra.mxu0 %v1556
    %1786 = vmatprep.subr.mxu0 0.0
    %1787 = vmatpush1.msra.mxu0 %v1559
    %1788 = vmatprep.subr.mxu0 0.0
    %1789 = vmatpush1.msra.mxu0 %v1562
    %1790 = vmatprep.subr.mxu0 0.0
    %1791 = vmatpush1.msra.mxu0 %v1565
    %1792 = vmatprep.subr.mxu0 0.0
    %1793 = vmatpush1.msra.mxu0 0.0
    %1794 = vmatprep.subr.mxu0 0.0
    %1795 = vmatpush1.msra.mxu0 0.0
    %1796 = vmatprep.subr.mxu0 0.0
    %1797 = vmatpush1.msra.mxu0 0.0
    %1798 = vmatprep.subr.mxu0 0.0
    %1799 = vmatpush1.msra.mxu0 0.0
    %1800 = vmatprep.subr.mxu0 0.0
    %1801 = vmatpush1.msra.mxu0 0.0
    %1802 = vmatprep.subr.mxu0 0.0
    %1803 = vmatpush1.msra.mxu0 0.0
    %1804 = vmatprep.subr.mxu0 0.0
    %1805 = vmatpush1.msra.mxu0 0.0
    %1806 = vmatprep.subr.mxu0 0.0
    %1807 = vmatpush1.msra.mxu0 0.0
    %1808 = vmatprep.subr.mxu0 0.0
    %1809 = vmatpush1.msra.mxu0 0.0
    %1810 = vmatprep.subr.mxu0 0.0
    %1811 = vmatpush1.msra.mxu0 0.0
    %1812 = vmatprep.subr.mxu0 0.0
    %1813 = vmatpush1.msra.mxu0 0.0
    %1814 = vmatprep.subr.mxu0 0.0
    %1815 = vmatpush1.msra.mxu0 0.0
    %1816 = vmatprep.subr.mxu0 0.0
    %1817 = vmatpush1.msra.mxu0 0.0
    %1818 = vmatprep.subr.mxu0 0.0
    %1819 = vmatpush1.msra.mxu0 0.0
    %1820 = vmatprep.subr.mxu0 0.0
    %1821 = vmatpush1.msra.mxu0 0.0
    %1822 = vmatprep.subr.mxu0 0.0
    %1823 = vmatpush1.msra.mxu0 0.0
    %1824 = vmatprep.mubr.f32.mxu0 0.0
    %1825 = vmatmul.mubr.f32.gmra.mrb[0].mxu0 %v1108
    %v1826 = vpop.f32.mrb[0].mxu0
    %v1827 = vadd.f32 %v1644, %v1826
    %v1828 = vpop.f32.mrb[0].mxu0
    %1829 = vdwg.mxu0
    %v1830 = vadd.f32 %v1467, %v1756
    %v1831 = vxor.u32 %v1830, 2147483648
    %v1832 = vmul.f32 %v1831, 1.442695
    %v1833 = vpow.pop %v1832
    %v1834 = vadd.f32 %v1833, 1.0
    %v1835 = vrcp.pop %v1834
    %v1836 = vmul.f32 1.0, %v1835
    %v1837 = vadd.f32 %v1468, %v1758
    %v1838 = vxor.u32 %v1837, 2147483648
    %v1839 = vmul.f32 %v1838, 1.442695
    %v1840 = vpow.pop %v1839
    %v1841 = vadd.f32 %v1840, 1.0
    %v1842 = vrcp.pop %v1841
    %v1843 = vmul.f32 1.0, %v1842
    %v1844 = vmul.f32 %v1836, %v1827
    %v1845 = vadd.f32 %v1469, %v1844
    %v1846 = vtanh.pop %v1845
    %v1847 = vsub.f32 1.0, %v1843
    %v1848 = vmul.f32 %v1847, %v1846
    %v1849 = vmul.f32 %v1843, %v1108
    %v1850 = vadd.f32 %v1848, %v1849
    %1851 = vmatprep.subr.mxu0 %v1471
    %1852 = vmatpush1.msra.mxu0 %v1470
    %1853 = vmatprep.subr.mxu0 %v1474
    %1854 = vmatpush1.msra.mxu0 %v1473
    %1855 = vmatprep.subr.mxu0 %v1477
    %1856 = vmatpush1.msra.mxu0 %v1476
    %1857 = vmatprep.subr.mxu0 %v1480
    %1858 = vmatpush1.msra.mxu0 %v1479
    %1859 = vmatprep.subr.mxu0 %v1483
    %1860 = vmatpush1.msra.mxu0 %v1482
    %1861 = vmatprep.subr.mxu0 %v1486
    %1862 = vmatpush1.msra.mxu0 %v1485
    %1863 = vmatprep.subr.mxu0 %v1489
    %1864 = vmatpush1.msra.mxu0 %v1488
    %1865 = vmatprep.subr.mxu0 %v1492
    %1866 = vmatpush1.msra.mxu0 %v1491
    %1867 = vmatprep.subr.mxu0 %v1495
    %1868 = vmatpush1.msra.mxu0 %v1494
    %1869 = vmatprep.subr.mxu0 %v1498
    %1870 = vmatpush1.msra.mxu0 %v1497
    %1871 = vmatprep.subr.mxu0 %v1501
    %1872 = vmatpush1.msra.mxu0 %v1500
    %1873 = vmatprep.subr.mxu0 %v1504
    %1874 = vmatpush1.msra.mxu0 %v1503
    %1875 = vmatprep.subr.mxu0 %v1507
    %1876 = vmatpush1.msra.mxu0 %v1506
    %1877 = vmatprep.subr.mxu0 %v1510
    %1878 = vmatpush1.msra.mxu0 %v1509
    %1879 = vmatprep.subr.mxu0 %v1513
    %1880 = vmatpush1.msra.mxu0 %v1512
    %1881 = vmatprep.subr.mxu0 %v1516
    %1882 = vmatpush1.msra.mxu0 %v1515
    %1883 = vmatprep.subr.mxu0 0.0
    %1884 = vmatpush1.msra.mxu0 0.0
    %1885 = vmatprep.subr.mxu0 0.0
    %1886 = vmatpush1.msra.mxu0 0.0
    %1887 = vmatprep.subr.mxu0 0.0
    %1888 = vmatpush1.msra.mxu0 0.0
    %1889 = vmatprep.subr.mxu0 0.0
    %1890 = vmatpush1.msra.mxu0 0.0
    %1891 = vmatprep.subr.mxu0 0.0
    %1892 = vmatpush1.msra.mxu0 0.0
    %1893 = vmatprep.subr.mxu0 0.0
    %1894 = vmatpush1.msra.mxu0 0.0
    %1895 = vmatprep.subr.mxu0 0.0
    %1896 = vmatpush1.msra.mxu0 0.0
    %1897 = vmatprep.subr.mxu0 0.0
    %1898 = vmatpush1.msra.mxu0 0.0
    %1899 = vmatprep.subr.mxu0 0.0
    %1900 = vmatpush1.msra.mxu0 0.0
    %1901 = vmatprep.subr.mxu0 0.0
    %1902 = vmatpush1.msra.mxu0 0.0
    %1903 = vmatprep.subr.mxu0 0.0
    %1904 = vmatpush1.msra.mxu0 0.0
    %1905 = vmatprep.subr.mxu0 0.0
    %1906 = vmatpush1.msra.mxu0 0.0
    %1907 = vmatprep.subr.mxu0 0.0
    %1908 = vmatpush1.msra.mxu0 0.0
    %1909 = vmatprep.subr.mxu0 0.0
    %1910 = vmatpush1.msra.mxu0 0.0
    %1911 = vmatprep.subr.mxu0 0.0
    %1912 = vmatpush1.msra.mxu0 0.0
    %1913 = vmatprep.subr.mxu0 0.0
    %1914 = vmatpush1.msra.mxu0 0.0
    %1915 = vmatprep.mubr.f32.mxu0 0.0
    %1916 = vmatmul.mubr.f32.gmra.mrb[0].mxu0 %v1850
    %v1917 = vpop.f32.mrb[0].mxu0
    %v1918 = vadd.f32 %v1619, %v1917
    %v1919 = vpop.f32.mrb[0].mxu0
    %v1920 = vadd.f32 %v1623, %v1919
    %1921 = vdwg.mxu0
    %1922 = vmatprep.subr.mxu0 0.0
    %1923 = vmatpush1.msra.mxu0 %v1472
    %1924 = vmatprep.subr.mxu0 0.0
    %1925 = vmatpush1.msra.mxu0 %v1475
    %1926 = vmatprep.subr.mxu0 0.0
    %1927 = vmatpush1.msra.mxu0 %v1478
    %1928 = vmatprep.subr.mxu0 0.0
    %1929 = vmatpush1.msra.mxu0 %v1481
    %1930 = vmatprep.subr.mxu0 0.0
    %1931 = vmatpush1.msra.mxu0 %v1484
    %1932 = vmatprep.subr.mxu0 0.0
    %1933 = vmatpush1.msra.mxu0 %v1487
    %1934 = vmatprep.subr.mxu0 0.0
    %1935 = vmatpush1.msra.mxu0 %v1490
    %1936 = vmatprep.subr.mxu0 0.0
    %1937 = vmatpush1.msra.mxu0 %v1493
    %1938 = vmatprep.subr.mxu0 0.0
    %1939 = vmatpush1.msra.mxu0 %v1496
    %1940 = vmatprep.subr.mxu0 0.0
    %1941 = vmatpush1.msra.mxu0 %v1499
    %1942 = vmatprep.subr.mxu0 0.0
    %1943 = vmatpush1.msra.mxu0 %v1502
    %1944 = vmatprep.subr.mxu0 0.0
    %1945 = vmatpush1.msra.mxu0 %v1505
    %1946 = vmatprep.subr.mxu0 0.0
    %1947 = vmatpush1.msra.mxu0 %v1508
    %1948 = vmatprep.subr.mxu0 0.0
    %1949 = vmatpush1.msra.mxu0 %v1511
    %1950 = vmatprep.subr.mxu0 0.0
    %1951 = vmatpush1.msra.mxu0 %v1514
    %1952 = vmatprep.subr.mxu0 0.0
    %1953 = vmatpush1.msra.mxu0 %v1517
    %1954 = vmatprep.subr.mxu0 0.0
    %1955 = vmatpush1.msra.mxu0 0.0
    %1956 = vmatprep.subr.mxu0 0.0
    %1957 = vmatpush1.msra.mxu0 0.0
    %1958 = vmatprep.subr.mxu0 0.0
    %1959 = vmatpush1.msra.mxu0 0.0
    %1960 = vmatprep.subr.mxu0 0.0
    %1961 = vmatpush1.msra.mxu0 0.0
    %1962 = vmatprep.subr.mxu0 0.0
    %1963 = vmatpush1.msra.mxu0 0.0
    %1964 = vmatprep.subr.mxu0 0.0
    %1965 = vmatpush1.msra.mxu0 0.0
    %1966 = vmatprep.subr.mxu0 0.0
    %1967 = vmatpush1.msra.mxu0 0.0
    %1968 = vmatprep.subr.mxu0 0.0
    %1969 = vmatpush1.msra.mxu0 0.0
    %1970 = vmatprep.subr.mxu0 0.0
    %1971 = vmatpush1.msra.mxu0 0.0
    %1972 = vmatprep.subr.mxu0 0.0
    %1973 = vmatpush1.msra.mxu0 0.0
    %1974 = vmatprep.subr.mxu0 0.0
    %1975 = vmatpush1.msra.mxu0 0.0
    %1976 = vmatprep.subr.mxu0 0.0
    %1977 = vmatpush1.msra.mxu0 0.0
    %1978 = vmatprep.subr.mxu0 0.0
    %1979 = vmatpush1.msra.mxu0 0.0
    %1980 = vmatprep.subr.mxu0 0.0
    %1981 = vmatpush1.msra.mxu0 0.0
    %1982 = vmatprep.subr.mxu0 0.0
    %1983 = vmatpush1.msra.mxu0 0.0
    %1984 = vmatprep.subr.mxu0 0.0
    %1985 = vmatpush1.msra.mxu0 0.0
    %1986 = vmatprep.mubr.f32.mxu0 0.0
    %1987 = vmatmul.mubr.f32.gmra.mrb[0].mxu0 %v1850
    %v1988 = vpop.f32.mrb[0].mxu0
    %v1989 = vadd.f32 %v1627, %v1988
    %v1990 = vpop.f32.mrb[0].mxu0
    %1991 = vdwg.mxu0
    %1992 = vmatprep.subr.mxu0 %v1567
    %1993 = vmatpush1.msra.mxu0 %v1566
    %1994 = vmatprep.subr.mxu0 %v1570
    %1995 = vmatpush1.msra.mxu0 %v1569
    %1996 = vmatprep.subr.mxu0 %v1573
    %1997 = vmatpush1.msra.mxu0 %v1572
    %1998 = vmatprep.subr.mxu0 %v1576
    %1999 = vmatpush1.msra.mxu0 %v1575
    %2000 = vmatprep.subr.mxu0 %v1579
    %2001 = vmatpush1.msra.mxu0 %v1578
    %2002 = vmatprep.subr.mxu0 %v1582
    %2003 = vmatpush1.msra.mxu0 %v1581
    %2004 = vmatprep.subr.mxu0 %v1585
    %2005 = vmatpush1.msra.mxu0 %v1584
    %2006 = vmatprep.subr.mxu0 %v1588
    %2007 = vmatpush1.msra.mxu0 %v1587
    %2008 = vmatprep.subr.mxu0 %v1591
    %2009 = vmatpush1.msra.mxu0 %v1590
    %2010 = vmatprep.subr.mxu0 %v1594
    %2011 = vmatpush1.msra.mxu0 %v1593
    %2012 = vmatprep.subr.mxu0 %v1597
    %2013 = vmatpush1.msra.mxu0 %v1596
    %2014 = vmatprep.subr.mxu0 %v1600
    %2015 = vmatpush1.msra.mxu0 %v1599
    %2016 = vmatprep.subr.mxu0 %v1603
    %2017 = vmatpush1.msra.mxu0 %v1602
    %2018 = vmatprep.subr.mxu0 %v1606
    %2019 = vmatpush1.msra.mxu0 %v1605
    %2020 = vmatprep.subr.mxu0 %v1609
    %2021 = vmatpush1.msra.mxu0 %v1608
    %2022 = vmatprep.subr.mxu0 %v1612
    %2023 = vmatpush1.msra.mxu0 %v1611
    %2024 = vmatprep.subr.mxu0 0.0
    %2025 = vmatpush1.msra.mxu0 0.0
    %2026 = vmatprep.subr.mxu0 0.0
    %2027 = vmatpush1.msra.mxu0 0.0
    %2028 = vmatprep.subr.mxu0 0.0
    %2029 = vmatpush1.msra.mxu0 0.0
    %2030 = vmatprep.subr.mxu0 0.0
    %2031 = vmatpush1.msra.mxu0 0.0
    %2032 = vmatprep.subr.mxu0 0.0
    %2033 = vmatpush1.msra.mxu0 0.0
    %2034 = vmatprep.subr.mxu0 0.0
    %2035 = vmatpush1.msra.mxu0 0.0
    %2036 = vmatprep.subr.mxu0 0.0
    %2037 = vmatpush1.msra.mxu0 0.0
    %2038 = vmatprep.subr.mxu0 0.0
    %2039 = vmatpush1.msra.mxu0 0.0
    %2040 = vmatprep.subr.mxu0 0.0
    %2041 = vmatpush1.msra.mxu0 0.0
    %2042 = vmatprep.subr.mxu0 0.0
    %2043 = vmatpush1.msra.mxu0 0.0
    %2044 = vmatprep.subr.mxu0 0.0
    %2045 = vmatpush1.msra.mxu0 0.0
    %2046 = vmatprep.subr.mxu0 0.0
    %2047 = vmatpush1.msra.mxu0 0.0
    %2048 = vmatprep.subr.mxu0 0.0
    %2049 = vmatpush1.msra.mxu0 0.0
    %2050 = vmatprep.subr.mxu0 0.0
    %2051 = vmatpush1.msra.mxu0 0.0
    %2052 = vmatprep.subr.mxu0 0.0
    %2053 = vmatpush1.msra.mxu0 0.0
    %2054 = vmatprep.subr.mxu0 0.0
    %2055 = vmatpush1.msra.mxu0 0.0
    %2056 = vmatprep.mubr.f32.mxu0 0.0
    %2057 = vmatmul.mubr.f32.gmra.mrb[0].mxu0 %v1108
    %v2058 = vpop.f32.mrb[0].mxu0
    %v2059 = vadd.f32 %v1653, %v2058
    %v2060 = vpop.f32.mrb[0].mxu0
    %v2061 = vadd.f32 %v1657, %v2060
    %2062 = vdwg.mxu0
    %2063 = vmatprep.subr.mxu0 0.0
    %2064 = vmatpush1.msra.mxu0 %v1568
    %2065 = vmatprep.subr.mxu0 0.0
    %2066 = vmatpush1.msra.mxu0 %v1571
    %2067 = vmatprep.subr.mxu0 0.0
    %2068 = vmatpush1.msra.mxu0 %v1574
    %2069 = vmatprep.subr.mxu0 0.0
    %2070 = vmatpush1.msra.mxu0 %v1577
    %2071 = vmatprep.subr.mxu0 0.0
    %2072 = vmatpush1.msra.mxu0 %v1580
    %2073 = vmatprep.subr.mxu0 0.0
    %2074 = vmatpush1.msra.mxu0 %v1583
    %2075 = vmatprep.subr.mxu0 0.0
    %2076 = vmatpush1.msra.mxu0 %v1586
    %2077 = vmatprep.subr.mxu0 0.0
    %2078 = vmatpush1.msra.mxu0 %v1589
    %2079 = vmatprep.subr.mxu0 0.0
    %2080 = vmatpush1.msra.mxu0 %v1592
    %2081 = vmatprep.subr.mxu0 0.0
    %2082 = vmatpush1.msra.mxu0 %v1595
    %2083 = vmatprep.subr.mxu0 0.0
    %2084 = vmatpush1.msra.mxu0 %v1598
    %2085 = vmatprep.subr.mxu0 0.0
    %2086 = vmatpush1.msra.mxu0 %v1601
    %2087 = vmatprep.subr.mxu0 0.0
    %2088 = vmatpush1.msra.mxu0 %v1604
    %2089 = vmatprep.subr.mxu0 0.0
    %2090 = vmatpush1.msra.mxu0 %v1607
    %2091 = vmatprep.subr.mxu0 0.0
    %2092 = vmatpush1.msra.mxu0 %v1610
    %2093 = vmatprep.subr.mxu0 0.0
    %2094 = vmatpush1.msra.mxu0 %v1613
    %2095 = vmatprep.subr.mxu0 0.0
    %2096 = vmatpush1.msra.mxu0 0.0
    %2097 = vmatprep.subr.mxu0 0.0
    %2098 = vmatpush1.msra.mxu0 0.0
    %2099 = vmatprep.subr.mxu0 0.0
    %2100 = vmatpush1.msra.mxu0 0.0
    %2101 = vmatprep.subr.mxu0 0.0
    %2102 = vmatpush1.msra.mxu0 0.0
    %2103 = vmatprep.subr.mxu0 0.0
    %2104 = vmatpush1.msra.mxu0 0.0
    %2105 = vmatprep.subr.mxu0 0.0
    %2106 = vmatpush1.msra.mxu0 0.0
    %2107 = vmatprep.subr.mxu0 0.0
    %2108 = vmatpush1.msra.mxu0 0.0
    %2109 = vmatprep.subr.mxu0 0.0
    %2110 = vmatpush1.msra.mxu0 0.0
    %2111 = vmatprep.subr.mxu0 0.0
    %2112 = vmatpush1.msra.mxu0 0.0
    %2113 = vmatprep.subr.mxu0 0.0
    %2114 = vmatpush1.msra.mxu0 0.0
    %2115 = vmatprep.subr.mxu0 0.0
    %2116 = vmatpush1.msra.mxu0 0.0
    %2117 = vmatprep.subr.mxu0 0.0
    %2118 = vmatpush1.msra.mxu0 0.0
    %2119 = vmatprep.subr.mxu0 0.0
    %2120 = vmatpush1.msra.mxu0 0.0
    %2121 = vmatprep.subr.mxu0 0.0
    %2122 = vmatpush1.msra.mxu0 0.0
    %2123 = vmatprep.subr.mxu0 0.0
    %2124 = vmatpush1.msra.mxu0 0.0
    %2125 = vmatprep.subr.mxu0 0.0
    %2126 = vmatpush1.msra.mxu0 0.0
    %2127 = vmatprep.mubr.f32.mxu0 0.0
    %2128 = vmatmul.mubr.f32.gmra.mrb[0].mxu0 %v1108
    %v2129 = vpop.f32.mrb[0].mxu0
    %v2130 = vadd.f32 %v1661, %v2129
    %v2131 = vpop.f32.mrb[0].mxu0
    %2132 = vdwg.mxu0
    %v2133 = vadd.f32 %v1918, %v2059
    %v2134 = vxor.u32 %v2133, 2147483648
    %v2135 = vmul.f32 %v2134, 1.442695
    %v2136 = vpow.pop %v2135
    %v2137 = vadd.f32 %v2136, 1.0
    %v2138 = vrcp.pop %v2137
    %v2139 = vmul.f32 1.0, %v2138
    %v2140 = vadd.f32 %v1920, %v2061
    %v2141 = vxor.u32 %v2140, 2147483648
    %v2142 = vmul.f32 %v2141, 1.442695
    %v2143 = vpow.pop %v2142
    %v2144 = vadd.f32 %v2143, 1.0
    %v2145 = vrcp.pop %v2144
    %v2146 = vmul.f32 1.0, %v2145
    %v2147 = vmul.f32 %v2139, %v2130
    %v2148 = vadd.f32 %v1989, %v2147
    %v2149 = vtanh.pop %v2148
    %v2150 = vsub.f32 1.0, %v2146
    %v2151 = vmul.f32 %v2150, %v2149
    %v2152 = vmul.f32 %v2146, %v1108
    %v2153 = vadd.f32 %v2151, %v2152
    %2154 = vmatprep.subr.mxu0 0.0
    %2155 = vmatpush1.msra.mxu0 %v1665
    %2156 = vmatprep.subr.mxu0 0.0
    %2157 = vmatpush1.msra.mxu0 %v1666
    %2158 = vmatprep.subr.mxu0 0.0
    %2159 = vmatpush1.msra.mxu0 %v1667
    %2160 = vmatprep.subr.mxu0 0.0
    %2161 = vmatpush1.msra.mxu0 %v1668
    %2162 = vmatprep.subr.mxu0 0.0
    %2163 = vmatpush1.msra.mxu0 %v1669
    %2164 = vmatprep.subr.mxu0 0.0
    %2165 = vmatpush1.msra.mxu0 %v1670
    %2166 = vmatprep.subr.mxu0 0.0
    %2167 = vmatpush1.msra.mxu0 %v1671
    %2168 = vmatprep.subr.mxu0 0.0
    %2169 = vmatpush1.msra.mxu0 %v1672
    %2170 = vmatprep.subr.mxu0 0.0
    %2171 = vmatpush1.msra.mxu0 %v1673
    %2172 = vmatprep.subr.mxu0 0.0
    %2173 = vmatpush1.msra.mxu0 %v1674
    %2174 = vmatprep.subr.mxu0 0.0
    %2175 = vmatpush1.msra.mxu0 %v1675
    %2176 = vmatprep.subr.mxu0 0.0
    %2177 = vmatpush1.msra.mxu0 %v1676
    %2178 = vmatprep.subr.mxu0 0.0
    %2179 = vmatpush1.msra.mxu0 %v1677
    %2180 = vmatprep.subr.mxu0 0.0
    %2181 = vmatpush1.msra.mxu0 %v1678
    %2182 = vmatprep.subr.mxu0 0.0
    %2183 = vmatpush1.msra.mxu0 %v1679
    %2184 = vmatprep.subr.mxu0 0.0
    %2185 = vmatpush1.msra.mxu0 %v1680
    %2186 = vmatprep.subr.mxu0 0.0
    %2187 = vmatpush1.msra.mxu0 0.0
    %2188 = vmatprep.subr.mxu0 0.0
    %2189 = vmatpush1.msra.mxu0 0.0
    %2190 = vmatprep.subr.mxu0 0.0
    %2191 = vmatpush1.msra.mxu0 0.0
    %2192 = vmatprep.subr.mxu0 0.0
    %2193 = vmatpush1.msra.mxu0 0.0
    %2194 = vmatprep.subr.mxu0 0.0
    %2195 = vmatpush1.msra.mxu0 0.0
    %2196 = vmatprep.subr.mxu0 0.0
    %2197 = vmatpush1.msra.mxu0 0.0
    %2198 = vmatprep.subr.mxu0 0.0
    %2199 = vmatpush1.msra.mxu0 0.0
    %2200 = vmatprep.subr.mxu0 0.0
    %2201 = vmatpush1.msra.mxu0 0.0
    %2202 = vmatprep.subr.mxu0 0.0
    %2203 = vmatpush1.msra.mxu0 0.0
    %2204 = vmatprep.subr.mxu0 0.0
    %2205 = vmatpush1.msra.mxu0 0.0
    %2206 = vmatprep.subr.mxu0 0.0
    %2207 = vmatpush1.msra.mxu0 0.0
    %2208 = vmatprep.subr.mxu0 0.0
    %2209 = vmatpush1.msra.mxu0 0.0
    %2210 = vmatprep.subr.mxu0 0.0
    %2211 = vmatpush1.msra.mxu0 0.0
    %2212 = vmatprep.subr.mxu0 0.0
    %2213 = vmatpush1.msra.mxu0 0.0
    %2214 = vmatprep.subr.mxu0 0.0
    %2215 = vmatpush1.msra.mxu0 0.0
    %2216 = vmatprep.subr.mxu0 0.0
    %2217 = vmatpush1.msra.mxu0 0.0
    %2218 = vmatprep.mubr.f32.mxu0 0.0
    %2219 = vmatmul.mubr.f32.gmra.mrb[0].mxu0 %v2153
    %v2220 = vpop.f32.mrb[0].mxu0
    %v2221 = vadd.f32 %v1686, %v2220
    %v2222 = vpop.f32.mrb[0].mxu0
    %2223 = vdwg.mxu0
    %s2224 = scalar_lea.vmem [#allocation14], 8
    %2225 = vst [vmem:[%s2224] sm:$0xff] %v2221
    %2226 = vmatprep.subr.mxu0 %v1519
    %2227 = vmatpush1.msra.mxu0 %v1518
    %2228 = vmatprep.subr.mxu0 %v1522
    %2229 = vmatpush1.msra.mxu0 %v1521
    %2230 = vmatprep.subr.mxu0 %v1525
    %2231 = vmatpush1.msra.mxu0 %v1524
    %2232 = vmatprep.subr.mxu0 %v1528
    %2233 = vmatpush1.msra.mxu0 %v1527
    %2234 = vmatprep.subr.mxu0 %v1531
    %2235 = vmatpush1.msra.mxu0 %v1530
    %2236 = vmatprep.subr.mxu0 %v1534
    %2237 = vmatpush1.msra.mxu0 %v1533
    %2238 = vmatprep.subr.mxu0 %v1537
    %2239 = vmatpush1.msra.mxu0 %v1536
    %2240 = vmatprep.subr.mxu0 %v1540
    %2241 = vmatpush1.msra.mxu0 %v1539
    %2242 = vmatprep.subr.mxu0 %v1543
    %2243 = vmatpush1.msra.mxu0 %v1542
    %2244 = vmatprep.subr.mxu0 %v1546
    %2245 = vmatpush1.msra.mxu0 %v1545
    %2246 = vmatprep.subr.mxu0 %v1549
    %2247 = vmatpush1.msra.mxu0 %v1548
    %2248 = vmatprep.subr.mxu0 %v1552
    %2249 = vmatpush1.msra.mxu0 %v1551
    %2250 = vmatprep.subr.mxu0 %v1555
    %2251 = vmatpush1.msra.mxu0 %v1554
    %2252 = vmatprep.subr.mxu0 %v1558
    %2253 = vmatpush1.msra.mxu0 %v1557
    %2254 = vmatprep.subr.mxu0 %v1561
    %2255 = vmatpush1.msra.mxu0 %v1560
    %2256 = vmatprep.subr.mxu0 %v1564
    %2257 = vmatpush1.msra.mxu0 %v1563
    %2258 = vmatprep.subr.mxu0 0.0
    %2259 = vmatpush1.msra.mxu0 0.0
    %2260 = vmatprep.subr.mxu0 0.0
    %2261 = vmatpush1.msra.mxu0 0.0
    %2262 = vmatprep.subr.mxu0 0.0
    %2263 = vmatpush1.msra.mxu0 0.0
    %2264 = vmatprep.subr.mxu0 0.0
    %2265 = vmatpush1.msra.mxu0 0.0
    %2266 = vmatprep.subr.mxu0 0.0
    %2267 = vmatpush1.msra.mxu0 0.0
    %2268 = vmatprep.subr.mxu0 0.0
    %2269 = vmatpush1.msra.mxu0 0.0
    %2270 = vmatprep.subr.mxu0 0.0
    %2271 = vmatpush1.msra.mxu0 0.0
    %2272 = vmatprep.subr.mxu0 0.0
    %2273 = vmatpush1.msra.mxu0 0.0
    %2274 = vmatprep.subr.mxu0 0.0
    %2275 = vmatpush1.msra.mxu0 0.0
    %2276 = vmatprep.subr.mxu0 0.0
    %2277 = vmatpush1.msra.mxu0 0.0
    %2278 = vmatprep.subr.mxu0 0.0
    %2279 = vmatpush1.msra.mxu0 0.0
    %2280 = vmatprep.subr.mxu0 0.0
    %2281 = vmatpush1.msra.mxu0 0.0
    %2282 = vmatprep.subr.mxu0 0.0
    %2283 = vmatpush1.msra.mxu0 0.0
    %2284 = vmatprep.subr.mxu0 0.0
    %2285 = vmatpush1.msra.mxu0 0.0
    %2286 = vmatprep.subr.mxu0 0.0
    %2287 = vmatpush1.msra.mxu0 0.0
    %2288 = vmatprep.subr.mxu0 0.0
    %2289 = vmatpush1.msra.mxu0 0.0
    %2290 = vmatprep.mubr.f32.mxu0 0.0
    %2291 = vmatmul.mubr.f32.gmra.mrb[0].mxu0 %v1850
    %v2292 = vpop.f32.mrb[0].mxu0
    %v2293 = vadd.f32 %v1636, %v2292
    %v2294 = vpop.f32.mrb[0].mxu0
    %v2295 = vadd.f32 %v1640, %v2294
    %2296 = vdwg.mxu0
    %2297 = vmatprep.subr.mxu0 0.0
    %2298 = vmatpush1.msra.mxu0 %v1520
    %2299 = vmatprep.subr.mxu0 0.0
    %2300 = vmatpush1.msra.mxu0 %v1523
    %2301 = vmatprep.subr.mxu0 0.0
    %2302 = vmatpush1.msra.mxu0 %v1526
    %2303 = vmatprep.subr.mxu0 0.0
    %2304 = vmatpush1.msra.mxu0 %v1529
    %2305 = vmatprep.subr.mxu0 0.0
    %2306 = vmatpush1.msra.mxu0 %v1532
    %2307 = vmatprep.subr.mxu0 0.0
    %2308 = vmatpush1.msra.mxu0 %v1535
    %2309 = vmatprep.subr.mxu0 0.0
    %2310 = vmatpush1.msra.mxu0 %v1538
    %2311 = vmatprep.subr.mxu0 0.0
    %2312 = vmatpush1.msra.mxu0 %v1541
    %2313 = vmatprep.subr.mxu0 0.0
    %2314 = vmatpush1.msra.mxu0 %v1544
    %2315 = vmatprep.subr.mxu0 0.0
    %2316 = vmatpush1.msra.mxu0 %v1547
    %2317 = vmatprep.subr.mxu0 0.0
    %2318 = vmatpush1.msra.mxu0 %v1550
    %2319 = vmatprep.subr.mxu0 0.0
    %2320 = vmatpush1.msra.mxu0 %v1553
    %2321 = vmatprep.subr.mxu0 0.0
    %2322 = vmatpush1.msra.mxu0 %v1556
    %2323 = vmatprep.subr.mxu0 0.0
    %2324 = vmatpush1.msra.mxu0 %v1559
    %2325 = vmatprep.subr.mxu0 0.0
    %2326 = vmatpush1.msra.mxu0 %v1562
    %2327 = vmatprep.subr.mxu0 0.0
    %2328 = vmatpush1.msra.mxu0 %v1565
    %2329 = vmatprep.subr.mxu0 0.0
    %2330 = vmatpush1.msra.mxu0 0.0
    %2331 = vmatprep.subr.mxu0 0.0
    %2332 = vmatpush1.msra.mxu0 0.0
    %2333 = vmatprep.subr.mxu0 0.0
    %2334 = vmatpush1.msra.mxu0 0.0
    %2335 = vmatprep.subr.mxu0 0.0
    %2336 = vmatpush1.msra.mxu0 0.0
    %2337 = vmatprep.subr.mxu0 0.0
    %2338 = vmatpush1.msra.mxu0 0.0
    %2339 = vmatprep.subr.mxu0 0.0
    %2340 = vmatpush1.msra.mxu0 0.0
    %2341 = vmatprep.subr.mxu0 0.0
    %2342 = vmatpush1.msra.mxu0 0.0
    %2343 = vmatprep.subr.mxu0 0.0
    %2344 = vmatpush1.msra.mxu0 0.0
    %2345 = vmatprep.subr.mxu0 0.0
    %2346 = vmatpush1.msra.mxu0 0.0
    %2347 = vmatprep.subr.mxu0 0.0
    %2348 = vmatpush1.msra.mxu0 0.0
    %2349 = vmatprep.subr.mxu0 0.0
    %2350 = vmatpush1.msra.mxu0 0.0
    %2351 = vmatprep.subr.mxu0 0.0
    %2352 = vmatpush1.msra.mxu0 0.0
    %2353 = vmatprep.subr.mxu0 0.0
    %2354 = vmatpush1.msra.mxu0 0.0
    %2355 = vmatprep.subr.mxu0 0.0
    %2356 = vmatpush1.msra.mxu0 0.0
    %2357 = vmatprep.subr.mxu0 0.0
    %2358 = vmatpush1.msra.mxu0 0.0
    %2359 = vmatprep.subr.mxu0 0.0
    %2360 = vmatpush1.msra.mxu0 0.0
    %2361 = vmatprep.mubr.f32.mxu0 0.0
    %2362 = vmatmul.mubr.f32.gmra.mrb[0].mxu0 %v1850
    %v2363 = vpop.f32.mrb[0].mxu0
    %v2364 = vadd.f32 %v1644, %v2363
    %v2365 = vpop.f32.mrb[0].mxu0
    %2366 = vdwg.mxu0
    %v2367 = vadd.f32 %v1467, %v2293
    %v2368 = vxor.u32 %v2367, 2147483648
    %v2369 = vmul.f32 %v2368, 1.442695
    %v2370 = vpow.pop %v2369
    %v2371 = vadd.f32 %v2370, 1.0
    %v2372 = vrcp.pop %v2371
    %v2373 = vmul.f32 1.0, %v2372
    %v2374 = vadd.f32 %v1468, %v2295
    %v2375 = vxor.u32 %v2374, 2147483648
    %v2376 = vmul.f32 %v2375, 1.442695
    %v2377 = vpow.pop %v2376
    %v2378 = vadd.f32 %v2377, 1.0
    %v2379 = vrcp.pop %v2378
    %v2380 = vmul.f32 1.0, %v2379
    %v2381 = vmul.f32 %v2373, %v2364
    %v2382 = vadd.f32 %v1469, %v2381
    %v2383 = vtanh.pop %v2382
    %v2384 = vsub.f32 1.0, %v2380
    %v2385 = vmul.f32 %v2384, %v2383
    %v2386 = vmul.f32 %v2380, %v1850
    %v2387 = vadd.f32 %v2385, %v2386
    %2388 = vmatprep.subr.mxu0 %v1471
    %2389 = vmatpush1.msra.mxu0 %v1470
    %2390 = vmatprep.subr.mxu0 %v1474
    %2391 = vmatpush1.msra.mxu0 %v1473
    %2392 = vmatprep.subr.mxu0 %v1477
    %2393 = vmatpush1.msra.mxu0 %v1476
    %2394 = vmatprep.subr.mxu0 %v1480
    %2395 = vmatpush1.msra.mxu0 %v1479
    %2396 = vmatprep.subr.mxu0 %v1483
    %2397 = vmatpush1.msra.mxu0 %v1482
    %2398 = vmatprep.subr.mxu0 %v1486
    %2399 = vmatpush1.msra.mxu0 %v1485
    %2400 = vmatprep.subr.mxu0 %v1489
    %2401 = vmatpush1.msra.mxu0 %v1488
    %2402 = vmatprep.subr.mxu0 %v1492
    %2403 = vmatpush1.msra.mxu0 %v1491
    %2404 = vmatprep.subr.mxu0 %v1495
    %2405 = vmatpush1.msra.mxu0 %v1494
    %2406 = vmatprep.subr.mxu0 %v1498
    %2407 = vmatpush1.msra.mxu0 %v1497
    %2408 = vmatprep.subr.mxu0 %v1501
    %2409 = vmatpush1.msra.mxu0 %v1500
    %2410 = vmatprep.subr.mxu0 %v1504
    %2411 = vmatpush1.msra.mxu0 %v1503
    %2412 = vmatprep.subr.mxu0 %v1507
    %2413 = vmatpush1.msra.mxu0 %v1506
    %2414 = vmatprep.subr.mxu0 %v1510
    %2415 = vmatpush1.msra.mxu0 %v1509
    %2416 = vmatprep.subr.mxu0 %v1513
    %2417 = vmatpush1.msra.mxu0 %v1512
    %2418 = vmatprep.subr.mxu0 %v1516
    %2419 = vmatpush1.msra.mxu0 %v1515
    %2420 = vmatprep.subr.mxu0 0.0
    %2421 = vmatpush1.msra.mxu0 0.0
    %2422 = vmatprep.subr.mxu0 0.0
    %2423 = vmatpush1.msra.mxu0 0.0
    %2424 = vmatprep.subr.mxu0 0.0
    %2425 = vmatpush1.msra.mxu0 0.0
    %2426 = vmatprep.subr.mxu0 0.0
    %2427 = vmatpush1.msra.mxu0 0.0
    %2428 = vmatprep.subr.mxu0 0.0
    %2429 = vmatpush1.msra.mxu0 0.0
    %2430 = vmatprep.subr.mxu0 0.0
    %2431 = vmatpush1.msra.mxu0 0.0
    %2432 = vmatprep.subr.mxu0 0.0
    %2433 = vmatpush1.msra.mxu0 0.0
    %2434 = vmatprep.subr.mxu0 0.0
    %2435 = vmatpush1.msra.mxu0 0.0
    %2436 = vmatprep.subr.mxu0 0.0
    %2437 = vmatpush1.msra.mxu0 0.0
    %2438 = vmatprep.subr.mxu0 0.0
    %2439 = vmatpush1.msra.mxu0 0.0
    %2440 = vmatprep.subr.mxu0 0.0
    %2441 = vmatpush1.msra.mxu0 0.0
    %2442 = vmatprep.subr.mxu0 0.0
    %2443 = vmatpush1.msra.mxu0 0.0
    %2444 = vmatprep.subr.mxu0 0.0
    %2445 = vmatpush1.msra.mxu0 0.0
    %2446 = vmatprep.subr.mxu0 0.0
    %2447 = vmatpush1.msra.mxu0 0.0
    %2448 = vmatprep.subr.mxu0 0.0
    %2449 = vmatpush1.msra.mxu0 0.0
    %2450 = vmatprep.subr.mxu0 0.0
    %2451 = vmatpush1.msra.mxu0 0.0
    %2452 = vmatprep.mubr.f32.mxu0 0.0
    %2453 = vmatmul.mubr.f32.gmra.mrb[0].mxu0 %v2387
    %v2454 = vpop.f32.mrb[0].mxu0
    %v2455 = vadd.f32 %v1619, %v2454
    %v2456 = vpop.f32.mrb[0].mxu0
    %v2457 = vadd.f32 %v1623, %v2456
    %2458 = vdwg.mxu0
    %2459 = vmatprep.subr.mxu0 0.0
    %2460 = vmatpush1.msra.mxu0 %v1472
    %2461 = vmatprep.subr.mxu0 0.0
    %2462 = vmatpush1.msra.mxu0 %v1475
    %2463 = vmatprep.subr.mxu0 0.0
    %2464 = vmatpush1.msra.mxu0 %v1478
    %2465 = vmatprep.subr.mxu0 0.0
    %2466 = vmatpush1.msra.mxu0 %v1481
    %2467 = vmatprep.subr.mxu0 0.0
    %2468 = vmatpush1.msra.mxu0 %v1484
    %2469 = vmatprep.subr.mxu0 0.0
    %2470 = vmatpush1.msra.mxu0 %v1487
    %2471 = vmatprep.subr.mxu0 0.0
    %2472 = vmatpush1.msra.mxu0 %v1490
    %2473 = vmatprep.subr.mxu0 0.0
    %2474 = vmatpush1.msra.mxu0 %v1493
    %2475 = vmatprep.subr.mxu0 0.0
    %2476 = vmatpush1.msra.mxu0 %v1496
    %2477 = vmatprep.subr.mxu0 0.0
    %2478 = vmatpush1.msra.mxu0 %v1499
    %2479 = vmatprep.subr.mxu0 0.0
    %2480 = vmatpush1.msra.mxu0 %v1502
    %2481 = vmatprep.subr.mxu0 0.0
    %2482 = vmatpush1.msra.mxu0 %v1505
    %2483 = vmatprep.subr.mxu0 0.0
    %2484 = vmatpush1.msra.mxu0 %v1508
    %2485 = vmatprep.subr.mxu0 0.0
    %2486 = vmatpush1.msra.mxu0 %v1511
    %2487 = vmatprep.subr.mxu0 0.0
    %2488 = vmatpush1.msra.mxu0 %v1514
    %2489 = vmatprep.subr.mxu0 0.0
    %2490 = vmatpush1.msra.mxu0 %v1517
    %2491 = vmatprep.subr.mxu0 0.0
    %2492 = vmatpush1.msra.mxu0 0.0
    %2493 = vmatprep.subr.mxu0 0.0
    %2494 = vmatpush1.msra.mxu0 0.0
    %2495 = vmatprep.subr.mxu0 0.0
    %2496 = vmatpush1.msra.mxu0 0.0
    %2497 = vmatprep.subr.mxu0 0.0
    %2498 = vmatpush1.msra.mxu0 0.0
    %2499 = vmatprep.subr.mxu0 0.0
    %2500 = vmatpush1.msra.mxu0 0.0
    %2501 = vmatprep.subr.mxu0 0.0
    %2502 = vmatpush1.msra.mxu0 0.0
    %2503 = vmatprep.subr.mxu0 0.0
    %2504 = vmatpush1.msra.mxu0 0.0
    %2505 = vmatprep.subr.mxu0 0.0
    %2506 = vmatpush1.msra.mxu0 0.0
    %2507 = vmatprep.subr.mxu0 0.0
    %2508 = vmatpush1.msra.mxu0 0.0
    %2509 = vmatprep.subr.mxu0 0.0
    %2510 = vmatpush1.msra.mxu0 0.0
    %2511 = vmatprep.subr.mxu0 0.0
    %2512 = vmatpush1.msra.mxu0 0.0
    %2513 = vmatprep.subr.mxu0 0.0
    %2514 = vmatpush1.msra.mxu0 0.0
    %2515 = vmatprep.subr.mxu0 0.0
    %2516 = vmatpush1.msra.mxu0 0.0
    %2517 = vmatprep.subr.mxu0 0.0
    %2518 = vmatpush1.msra.mxu0 0.0
    %2519 = vmatprep.subr.mxu0 0.0
    %2520 = vmatpush1.msra.mxu0 0.0
    %2521 = vmatprep.subr.mxu0 0.0
    %2522 = vmatpush1.msra.mxu0 0.0
    %2523 = vmatprep.mubr.f32.mxu0 0.0
    %2524 = vmatmul.mubr.f32.gmra.mrb[0].mxu0 %v2387
    %v2525 = vpop.f32.mrb[0].mxu0
    %v2526 = vadd.f32 %v1627, %v2525
    %v2527 = vpop.f32.mrb[0].mxu0
    %2528 = vdwg.mxu0
    %2529 = vmatprep.subr.mxu0 %v1567
    %2530 = vmatpush1.msra.mxu0 %v1566
    %2531 = vmatprep.subr.mxu0 %v1570
    %2532 = vmatpush1.msra.mxu0 %v1569
    %2533 = vmatprep.subr.mxu0 %v1573
    %2534 = vmatpush1.msra.mxu0 %v1572
    %2535 = vmatprep.subr.mxu0 %v1576
    %2536 = vmatpush1.msra.mxu0 %v1575
    %2537 = vmatprep.subr.mxu0 %v1579
    %2538 = vmatpush1.msra.mxu0 %v1578
    %2539 = vmatprep.subr.mxu0 %v1582
    %2540 = vmatpush1.msra.mxu0 %v1581
    %2541 = vmatprep.subr.mxu0 %v1585
    %2542 = vmatpush1.msra.mxu0 %v1584
    %2543 = vmatprep.subr.mxu0 %v1588
    %2544 = vmatpush1.msra.mxu0 %v1587
    %2545 = vmatprep.subr.mxu0 %v1591
    %2546 = vmatpush1.msra.mxu0 %v1590
    %2547 = vmatprep.subr.mxu0 %v1594
    %2548 = vmatpush1.msra.mxu0 %v1593
    %2549 = vmatprep.subr.mxu0 %v1597
    %2550 = vmatpush1.msra.mxu0 %v1596
    %2551 = vmatprep.subr.mxu0 %v1600
    %2552 = vmatpush1.msra.mxu0 %v1599
    %2553 = vmatprep.subr.mxu0 %v1603
    %2554 = vmatpush1.msra.mxu0 %v1602
    %2555 = vmatprep.subr.mxu0 %v1606
    %2556 = vmatpush1.msra.mxu0 %v1605
    %2557 = vmatprep.subr.mxu0 %v1609
    %2558 = vmatpush1.msra.mxu0 %v1608
    %2559 = vmatprep.subr.mxu0 %v1612
    %2560 = vmatpush1.msra.mxu0 %v1611
    %2561 = vmatprep.subr.mxu0 0.0
    %2562 = vmatpush1.msra.mxu0 0.0
    %2563 = vmatprep.subr.mxu0 0.0
    %2564 = vmatpush1.msra.mxu0 0.0
    %2565 = vmatprep.subr.mxu0 0.0
    %2566 = vmatpush1.msra.mxu0 0.0
    %2567 = vmatprep.subr.mxu0 0.0
    %2568 = vmatpush1.msra.mxu0 0.0
    %2569 = vmatprep.subr.mxu0 0.0
    %2570 = vmatpush1.msra.mxu0 0.0
    %2571 = vmatprep.subr.mxu0 0.0
    %2572 = vmatpush1.msra.mxu0 0.0
    %2573 = vmatprep.subr.mxu0 0.0
    %2574 = vmatpush1.msra.mxu0 0.0
    %2575 = vmatprep.subr.mxu0 0.0
    %2576 = vmatpush1.msra.mxu0 0.0
    %2577 = vmatprep.subr.mxu0 0.0
    %2578 = vmatpush1.msra.mxu0 0.0
    %2579 = vmatprep.subr.mxu0 0.0
    %2580 = vmatpush1.msra.mxu0 0.0
    %2581 = vmatprep.subr.mxu0 0.0
    %2582 = vmatpush1.msra.mxu0 0.0
    %2583 = vmatprep.subr.mxu0 0.0
    %2584 = vmatpush1.msra.mxu0 0.0
    %2585 = vmatprep.subr.mxu0 0.0
    %2586 = vmatpush1.msra.mxu0 0.0
    %2587 = vmatprep.subr.mxu0 0.0
    %2588 = vmatpush1.msra.mxu0 0.0
    %2589 = vmatprep.subr.mxu0 0.0
    %2590 = vmatpush1.msra.mxu0 0.0
    %2591 = vmatprep.subr.mxu0 0.0
    %2592 = vmatpush1.msra.mxu0 0.0
    %2593 = vmatprep.mubr.f32.mxu0 0.0
    %2594 = vmatmul.mubr.f32.gmra.mrb[0].mxu0 %v2153
    %v2595 = vpop.f32.mrb[0].mxu0
    %v2596 = vadd.f32 %v1653, %v2595
    %v2597 = vpop.f32.mrb[0].mxu0
    %v2598 = vadd.f32 %v1657, %v2597
    %2599 = vdwg.mxu0
    %2600 = vmatprep.subr.mxu0 0.0
    %2601 = vmatpush1.msra.mxu0 %v1568
    %2602 = vmatprep.subr.mxu0 0.0
    %2603 = vmatpush1.msra.mxu0 %v1571
    %2604 = vmatprep.subr.mxu0 0.0
    %2605 = vmatpush1.msra.mxu0 %v1574
    %2606 = vmatprep.subr.mxu0 0.0
    %2607 = vmatpush1.msra.mxu0 %v1577
    %2608 = vmatprep.subr.mxu0 0.0
    %2609 = vmatpush1.msra.mxu0 %v1580
    %2610 = vmatprep.subr.mxu0 0.0
    %2611 = vmatpush1.msra.mxu0 %v1583
    %2612 = vmatprep.subr.mxu0 0.0
    %2613 = vmatpush1.msra.mxu0 %v1586
    %2614 = vmatprep.subr.mxu0 0.0
    %2615 = vmatpush1.msra.mxu0 %v1589
    %2616 = vmatprep.subr.mxu0 0.0
    %2617 = vmatpush1.msra.mxu0 %v1592
    %2618 = vmatprep.subr.mxu0 0.0
    %2619 = vmatpush1.msra.mxu0 %v1595
    %2620 = vmatprep.subr.mxu0 0.0
    %2621 = vmatpush1.msra.mxu0 %v1598
    %2622 = vmatprep.subr.mxu0 0.0
    %2623 = vmatpush1.msra.mxu0 %v1601
    %2624 = vmatprep.subr.mxu0 0.0
    %2625 = vmatpush1.msra.mxu0 %v1604
    %2626 = vmatprep.subr.mxu0 0.0
    %2627 = vmatpush1.msra.mxu0 %v1607
    %2628 = vmatprep.subr.mxu0 0.0
    %2629 = vmatpush1.msra.mxu0 %v1610
    %2630 = vmatprep.subr.mxu0 0.0
    %2631 = vmatpush1.msra.mxu0 %v1613
    %2632 = vmatprep.subr.mxu0 0.0
    %2633 = vmatpush1.msra.mxu0 0.0
    %2634 = vmatprep.subr.mxu0 0.0
    %2635 = vmatpush1.msra.mxu0 0.0
    %2636 = vmatprep.subr.mxu0 0.0
    %2637 = vmatpush1.msra.mxu0 0.0
    %2638 = vmatprep.subr.mxu0 0.0
    %2639 = vmatpush1.msra.mxu0 0.0
    %2640 = vmatprep.subr.mxu0 0.0
    %2641 = vmatpush1.msra.mxu0 0.0
    %2642 = vmatprep.subr.mxu0 0.0
    %2643 = vmatpush1.msra.mxu0 0.0
    %2644 = vmatprep.subr.mxu0 0.0
    %2645 = vmatpush1.msra.mxu0 0.0
    %2646 = vmatprep.subr.mxu0 0.0
    %2647 = vmatpush1.msra.mxu0 0.0
    %2648 = vmatprep.subr.mxu0 0.0
    %2649 = vmatpush1.msra.mxu0 0.0
    %2650 = vmatprep.subr.mxu0 0.0
    %2651 = vmatpush1.msra.mxu0 0.0
    %2652 = vmatprep.subr.mxu0 0.0
    %2653 = vmatpush1.msra.mxu0 0.0
    %2654 = vmatprep.subr.mxu0 0.0
    %2655 = vmatpush1.msra.mxu0 0.0
    %2656 = vmatprep.subr.mxu0 0.0
    %2657 = vmatpush1.msra.mxu0 0.0
    %2658 = vmatprep.subr.mxu0 0.0
    %2659 = vmatpush1.msra.mxu0 0.0
    %2660 = vmatprep.subr.mxu0 0.0
    %2661 = vmatpush1.msra.mxu0 0.0
    %2662 = vmatprep.subr.mxu0 0.0
    %2663 = vmatpush1.msra.mxu0 0.0
    %2664 = vmatprep.mubr.f32.mxu0 0.0
    %2665 = vmatmul.mubr.f32.gmra.mrb[0].mxu0 %v2153
    %v2666 = vpop.f32.mrb[0].mxu0
    %v2667 = vadd.f32 %v1661, %v2666
    %v2668 = vpop.f32.mrb[0].mxu0
    %2669 = vdwg.mxu0
    %v2670 = vadd.f32 %v2455, %v2596
    %v2671 = vxor.u32 %v2670, 2147483648
    %v2672 = vmul.f32 %v2671, 1.442695
    %v2673 = vpow.pop %v2672
    %v2674 = vadd.f32 %v2673, 1.0
    %v2675 = vrcp.pop %v2674
    %v2676 = vmul.f32 1.0, %v2675
    %v2677 = vadd.f32 %v2457, %v2598
    %v2678 = vxor.u32 %v2677, 2147483648
    %v2679 = vmul.f32 %v2678, 1.442695
    %v2680 = vpow.pop %v2679
    %v2681 = vadd.f32 %v2680, 1.0
    %v2682 = vrcp.pop %v2681
    %v2683 = vmul.f32 1.0, %v2682
    %v2684 = vmul.f32 %v2676, %v2667
    %v2685 = vadd.f32 %v2526, %v2684
    %v2686 = vtanh.pop %v2685
    %v2687 = vsub.f32 1.0, %v2683
    %v2688 = vmul.f32 %v2687, %v2686
    %v2689 = vmul.f32 %v2683, %v2153
    %v2690 = vadd.f32 %v2688, %v2689
    %2691 = vmatprep.subr.mxu0 0.0
    %2692 = vmatpush1.msra.mxu0 %v1665
    %2693 = vmatprep.subr.mxu0 0.0
    %2694 = vmatpush1.msra.mxu0 %v1666
    %2695 = vmatprep.subr.mxu0 0.0
    %2696 = vmatpush1.msra.mxu0 %v1667
    %2697 = vmatprep.subr.mxu0 0.0
    %2698 = vmatpush1.msra.mxu0 %v1668
    %2699 = vmatprep.subr.mxu0 0.0
    %2700 = vmatpush1.msra.mxu0 %v1669
    %2701 = vmatprep.subr.mxu0 0.0
    %2702 = vmatpush1.msra.mxu0 %v1670
    %2703 = vmatprep.subr.mxu0 0.0
    %2704 = vmatpush1.msra.mxu0 %v1671
    %2705 = vmatprep.subr.mxu0 0.0
    %2706 = vmatpush1.msra.mxu0 %v1672
    %2707 = vmatprep.subr.mxu0 0.0
    %2708 = vmatpush1.msra.mxu0 %v1673
    %2709 = vmatprep.subr.mxu0 0.0
    %2710 = vmatpush1.msra.mxu0 %v1674
    %2711 = vmatprep.subr.mxu0 0.0
    %2712 = vmatpush1.msra.mxu0 %v1675
    %2713 = vmatprep.subr.mxu0 0.0
    %2714 = vmatpush1.msra.mxu0 %v1676
    %2715 = vmatprep.subr.mxu0 0.0
    %2716 = vmatpush1.msra.mxu0 %v1677
    %2717 = vmatprep.subr.mxu0 0.0
    %2718 = vmatpush1.msra.mxu0 %v1678
    %2719 = vmatprep.subr.mxu0 0.0
    %2720 = vmatpush1.msra.mxu0 %v1679
    %2721 = vmatprep.subr.mxu0 0.0
    %2722 = vmatpush1.msra.mxu0 %v1680
    %2723 = vmatprep.subr.mxu0 0.0
    %2724 = vmatpush1.msra.mxu0 0.0
    %2725 = vmatprep.subr.mxu0 0.0
    %2726 = vmatpush1.msra.mxu0 0.0
    %2727 = vmatprep.subr.mxu0 0.0
    %2728 = vmatpush1.msra.mxu0 0.0
    %2729 = vmatprep.subr.mxu0 0.0
    %2730 = vmatpush1.msra.mxu0 0.0
    %2731 = vmatprep.subr.mxu0 0.0
    %2732 = vmatpush1.msra.mxu0 0.0
    %2733 = vmatprep.subr.mxu0 0.0
    %2734 = vmatpush1.msra.mxu0 0.0
    %2735 = vmatprep.subr.mxu0 0.0
    %2736 = vmatpush1.msra.mxu0 0.0
    %2737 = vmatprep.subr.mxu0 0.0
    %2738 = vmatpush1.msra.mxu0 0.0
    %2739 = vmatprep.subr.mxu0 0.0
    %2740 = vmatpush1.msra.mxu0 0.0
    %2741 = vmatprep.subr.mxu0 0.0
    %2742 = vmatpush1.msra.mxu0 0.0
    %2743 = vmatprep.subr.mxu0 0.0
    %2744 = vmatpush1.msra.mxu0 0.0
    %2745 = vmatprep.subr.mxu0 0.0
    %2746 = vmatpush1.msra.mxu0 0.0
    %2747 = vmatprep.subr.mxu0 0.0
    %2748 = vmatpush1.msra.mxu0 0.0
    %2749 = vmatprep.subr.mxu0 0.0
    %2750 = vmatpush1.msra.mxu0 0.0
    %2751 = vmatprep.subr.mxu0 0.0
    %2752 = vmatpush1.msra.mxu0 0.0
    %2753 = vmatprep.subr.mxu0 0.0
    %2754 = vmatpush1.msra.mxu0 0.0
    %2755 = vmatprep.mubr.f32.mxu0 0.0
    %2756 = vmatmul.mubr.f32.gmra.mrb[0].mxu0 %v2690
    %v2757 = vpop.f32.mrb[0].mxu0
    %v2758 = vadd.f32 %v1686, %v2757
    %v2759 = vpop.f32.mrb[0].mxu0
    %2760 = vdwg.mxu0
    %s2761 = scalar_lea.vmem [#allocation14], 16
    %2762 = vst [vmem:[%s2761] sm:$0xff] %v2758
    %2763 = vmatprep.subr.mxu0 %v1519
    %2764 = vmatpush1.msra.mxu0 %v1518
    %2765 = vmatprep.subr.mxu0 %v1522
    %2766 = vmatpush1.msra.mxu0 %v1521
    %2767 = vmatprep.subr.mxu0 %v1525
    %2768 = vmatpush1.msra.mxu0 %v1524
    %2769 = vmatprep.subr.mxu0 %v1528
    %2770 = vmatpush1.msra.mxu0 %v1527
    %2771 = vmatprep.subr.mxu0 %v1531
    %2772 = vmatpush1.msra.mxu0 %v1530
    %2773 = vmatprep.subr.mxu0 %v1534
    %2774 = vmatpush1.msra.mxu0 %v1533
    %2775 = vmatprep.subr.mxu0 %v1537
    %2776 = vmatpush1.msra.mxu0 %v1536
    %2777 = vmatprep.subr.mxu0 %v1540
    %2778 = vmatpush1.msra.mxu0 %v1539
    %2779 = vmatprep.subr.mxu0 %v1543
    %2780 = vmatpush1.msra.mxu0 %v1542
    %2781 = vmatprep.subr.mxu0 %v1546
    %2782 = vmatpush1.msra.mxu0 %v1545
    %2783 = vmatprep.subr.mxu0 %v1549
    %2784 = vmatpush1.msra.mxu0 %v1548
    %2785 = vmatprep.subr.mxu0 %v1552
    %2786 = vmatpush1.msra.mxu0 %v1551
    %2787 = vmatprep.subr.mxu0 %v1555
    %2788 = vmatpush1.msra.mxu0 %v1554
    %2789 = vmatprep.subr.mxu0 %v1558
    %2790 = vmatpush1.msra.mxu0 %v1557
    %2791 = vmatprep.subr.mxu0 %v1561
    %2792 = vmatpush1.msra.mxu0 %v1560
    %2793 = vmatprep.subr.mxu0 %v1564
    %2794 = vmatpush1.msra.mxu0 %v1563
    %2795 = vmatprep.subr.mxu0 0.0
    %2796 = vmatpush1.msra.mxu0 0.0
    %2797 = vmatprep.subr.mxu0 0.0
    %2798 = vmatpush1.msra.mxu0 0.0
    %2799 = vmatprep.subr.mxu0 0.0
    %2800 = vmatpush1.msra.mxu0 0.0
    %2801 = vmatprep.subr.mxu0 0.0
    %2802 = vmatpush1.msra.mxu0 0.0
    %2803 = vmatprep.subr.mxu0 0.0
    %2804 = vmatpush1.msra.mxu0 0.0
    %2805 = vmatprep.subr.mxu0 0.0
    %2806 = vmatpush1.msra.mxu0 0.0
    %2807 = vmatprep.subr.mxu0 0.0
    %2808 = vmatpush1.msra.mxu0 0.0
    %2809 = vmatprep.subr.mxu0 0.0
    %2810 = vmatpush1.msra.mxu0 0.0
    %2811 = vmatprep.subr.mxu0 0.0
    %2812 = vmatpush1.msra.mxu0 0.0
    %2813 = vmatprep.subr.mxu0 0.0
    %2814 = vmatpush1.msra.mxu0 0.0
    %2815 = vmatprep.subr.mxu0 0.0
    %2816 = vmatpush1.msra.mxu0 0.0
    %2817 = vmatprep.subr.mxu0 0.0
    %2818 = vmatpush1.msra.mxu0 0.0
    %2819 = vmatprep.subr.mxu0 0.0
    %2820 = vmatpush1.msra.mxu0 0.0
    %2821 = vmatprep.subr.mxu0 0.0
    %2822 = vmatpush1.msra.mxu0 0.0
    %2823 = vmatprep.subr.mxu0 0.0
    %2824 = vmatpush1.msra.mxu0 0.0
    %2825 = vmatprep.subr.mxu0 0.0
    %2826 = vmatpush1.msra.mxu0 0.0
    %2827 = vmatprep.mubr.f32.mxu0 0.0
    %2828 = vmatmul.mubr.f32.gmra.mrb[0].mxu0 %v2387
    %v2829 = vpop.f32.mrb[0].mxu0
    %v2830 = vadd.f32 %v1636, %v2829
    %v2831 = vpop.f32.mrb[0].mxu0
    %v2832 = vadd.f32 %v1640, %v2831
    %2833 = vdwg.mxu0
    %2834 = vmatprep.subr.mxu0 0.0
    %2835 = vmatpush1.msra.mxu0 %v1520
    %2836 = vmatprep.subr.mxu0 0.0
    %2837 = vmatpush1.msra.mxu0 %v1523
    %2838 = vmatprep.subr.mxu0 0.0
    %2839 = vmatpush1.msra.mxu0 %v1526
    %2840 = vmatprep.subr.mxu0 0.0
    %2841 = vmatpush1.msra.mxu0 %v1529
    %2842 = vmatprep.subr.mxu0 0.0
    %2843 = vmatpush1.msra.mxu0 %v1532
    %2844 = vmatprep.subr.mxu0 0.0
    %2845 = vmatpush1.msra.mxu0 %v1535
    %2846 = vmatprep.subr.mxu0 0.0
    %2847 = vmatpush1.msra.mxu0 %v1538
    %2848 = vmatprep.subr.mxu0 0.0
    %2849 = vmatpush1.msra.mxu0 %v1541
    %2850 = vmatprep.subr.mxu0 0.0
    %2851 = vmatpush1.msra.mxu0 %v1544
    %2852 = vmatprep.subr.mxu0 0.0
    %2853 = vmatpush1.msra.mxu0 %v1547
    %2854 = vmatprep.subr.mxu0 0.0
    %2855 = vmatpush1.msra.mxu0 %v1550
    %2856 = vmatprep.subr.mxu0 0.0
    %2857 = vmatpush1.msra.mxu0 %v1553
    %2858 = vmatprep.subr.mxu0 0.0
    %2859 = vmatpush1.msra.mxu0 %v1556
    %2860 = vmatprep.subr.mxu0 0.0
    %2861 = vmatpush1.msra.mxu0 %v1559
    %2862 = vmatprep.subr.mxu0 0.0
    %2863 = vmatpush1.msra.mxu0 %v1562
    %2864 = vmatprep.subr.mxu0 0.0
    %2865 = vmatpush1.msra.mxu0 %v1565
    %2866 = vmatprep.subr.mxu0 0.0
    %2867 = vmatpush1.msra.mxu0 0.0
    %2868 = vmatprep.subr.mxu0 0.0
    %2869 = vmatpush1.msra.mxu0 0.0
    %2870 = vmatprep.subr.mxu0 0.0
    %2871 = vmatpush1.msra.mxu0 0.0
    %2872 = vmatprep.subr.mxu0 0.0
    %2873 = vmatpush1.msra.mxu0 0.0
    %2874 = vmatprep.subr.mxu0 0.0
    %2875 = vmatpush1.msra.mxu0 0.0
    %2876 = vmatprep.subr.mxu0 0.0
    %2877 = vmatpush1.msra.mxu0 0.0
    %2878 = vmatprep.subr.mxu0 0.0
    %2879 = vmatpush1.msra.mxu0 0.0
    %2880 = vmatprep.subr.mxu0 0.0
    %2881 = vmatpush1.msra.mxu0 0.0
    %2882 = vmatprep.subr.mxu0 0.0
    %2883 = vmatpush1.msra.mxu0 0.0
    %2884 = vmatprep.subr.mxu0 0.0
    %2885 = vmatpush1.msra.mxu0 0.0
    %2886 = vmatprep.subr.mxu0 0.0
    %2887 = vmatpush1.msra.mxu0 0.0
    %2888 = vmatprep.subr.mxu0 0.0
    %2889 = vmatpush1.msra.mxu0 0.0
    %2890 = vmatprep.subr.mxu0 0.0
    %2891 = vmatpush1.msra.mxu0 0.0
    %2892 = vmatprep.subr.mxu0 0.0
    %2893 = vmatpush1.msra.mxu0 0.0
    %2894 = vmatprep.subr.mxu0 0.0
    %2895 = vmatpush1.msra.mxu0 0.0
    %2896 = vmatprep.subr.mxu0 0.0
    %2897 = vmatpush1.msra.mxu0 0.0
    %2898 = vmatprep.mubr.f32.mxu0 0.0
    %2899 = vmatmul.mubr.f32.gmra.mrb[0].mxu0 %v2387
    %v2900 = vpop.f32.mrb[0].mxu0
    %v2901 = vadd.f32 %v1644, %v2900
    %v2902 = vpop.f32.mrb[0].mxu0
    %2903 = vdwg.mxu0
    %v2904 = vadd.f32 %v1467, %v2830
    %v2905 = vxor.u32 %v2904, 2147483648
    %v2906 = vmul.f32 %v2905, 1.442695
    %v2907 = vpow.pop %v2906
    %v2908 = vadd.f32 %v2907, 1.0
    %v2909 = vrcp.pop %v2908
    %v2910 = vmul.f32 1.0, %v2909
    %v2911 = vadd.f32 %v1468, %v2832
    %v2912 = vxor.u32 %v2911, 2147483648
    %v2913 = vmul.f32 %v2912, 1.442695
    %v2914 = vpow.pop %v2913
    %v2915 = vadd.f32 %v2914, 1.0
    %v2916 = vrcp.pop %v2915
    %v2917 = vmul.f32 1.0, %v2916
    %v2918 = vmul.f32 %v2910, %v2901
    %v2919 = vadd.f32 %v1469, %v2918
    %v2920 = vtanh.pop %v2919
    %v2921 = vsub.f32 1.0, %v2917
    %v2922 = vmul.f32 %v2921, %v2920
    %v2923 = vmul.f32 %v2917, %v2387
    %v2924 = vadd.f32 %v2922, %v2923
    %2925 = vmatprep.subr.mxu0 %v1471
    %2926 = vmatpush1.msra.mxu0 %v1470
    %2927 = vmatprep.subr.mxu0 %v1474
    %2928 = vmatpush1.msra.mxu0 %v1473
    %2929 = vmatprep.subr.mxu0 %v1477
    %2930 = vmatpush1.msra.mxu0 %v1476
    %2931 = vmatprep.subr.mxu0 %v1480
    %2932 = vmatpush1.msra.mxu0 %v1479
    %2933 = vmatprep.subr.mxu0 %v1483
    %2934 = vmatpush1.msra.mxu0 %v1482
    %2935 = vmatprep.subr.mxu0 %v1486
    %2936 = vmatpush1.msra.mxu0 %v1485
    %2937 = vmatprep.subr.mxu0 %v1489
    %2938 = vmatpush1.msra.mxu0 %v1488
    %2939 = vmatprep.subr.mxu0 %v1492
    %2940 = vmatpush1.msra.mxu0 %v1491
    %2941 = vmatprep.subr.mxu0 %v1495
    %2942 = vmatpush1.msra.mxu0 %v1494
    %2943 = vmatprep.subr.mxu0 %v1498
    %2944 = vmatpush1.msra.mxu0 %v1497
    %2945 = vmatprep.subr.mxu0 %v1501
    %2946 = vmatpush1.msra.mxu0 %v1500
    %2947 = vmatprep.subr.mxu0 %v1504
    %2948 = vmatpush1.msra.mxu0 %v1503
    %2949 = vmatprep.subr.mxu0 %v1507
    %2950 = vmatpush1.msra.mxu0 %v1506
    %2951 = vmatprep.subr.mxu0 %v1510
    %2952 = vmatpush1.msra.mxu0 %v1509
    %2953 = vmatprep.subr.mxu0 %v1513
    %2954 = vmatpush1.msra.mxu0 %v1512
    %2955 = vmatprep.subr.mxu0 %v1516
    %2956 = vmatpush1.msra.mxu0 %v1515
    %2957 = vmatprep.subr.mxu0 0.0
    %2958 = vmatpush1.msra.mxu0 0.0
    %2959 = vmatprep.subr.mxu0 0.0
    %2960 = vmatpush1.msra.mxu0 0.0
    %2961 = vmatprep.subr.mxu0 0.0
    %2962 = vmatpush1.msra.mxu0 0.0
    %2963 = vmatprep.subr.mxu0 0.0
    %2964 = vmatpush1.msra.mxu0 0.0
    %2965 = vmatprep.subr.mxu0 0.0
    %2966 = vmatpush1.msra.mxu0 0.0
    %2967 = vmatprep.subr.mxu0 0.0
    %2968 = vmatpush1.msra.mxu0 0.0
    %2969 = vmatprep.subr.mxu0 0.0
    %2970 = vmatpush1.msra.mxu0 0.0
    %2971 = vmatprep.subr.mxu0 0.0
    %2972 = vmatpush1.msra.mxu0 0.0
    %2973 = vmatprep.subr.mxu0 0.0
    %2974 = vmatpush1.msra.mxu0 0.0
    %2975 = vmatprep.subr.mxu0 0.0
    %2976 = vmatpush1.msra.mxu0 0.0
    %2977 = vmatprep.subr.mxu0 0.0
    %2978 = vmatpush1.msra.mxu0 0.0
    %2979 = vmatprep.subr.mxu0 0.0
    %2980 = vmatpush1.msra.mxu0 0.0
    %2981 = vmatprep.subr.mxu0 0.0
    %2982 = vmatpush1.msra.mxu0 0.0
    %2983 = vmatprep.subr.mxu0 0.0
    %2984 = vmatpush1.msra.mxu0 0.0
    %2985 = vmatprep.subr.mxu0 0.0
    %2986 = vmatpush1.msra.mxu0 0.0
    %2987 = vmatprep.subr.mxu0 0.0
    %2988 = vmatpush1.msra.mxu0 0.0
    %2989 = vmatprep.mubr.f32.mxu0 0.0
    %2990 = vmatmul.mubr.f32.gmra.mrb[0].mxu0 %v2924
    %v2991 = vpop.f32.mrb[0].mxu0
    %v2992 = vadd.f32 %v1619, %v2991
    %v2993 = vpop.f32.mrb[0].mxu0
    %v2994 = vadd.f32 %v1623, %v2993
    %2995 = vdwg.mxu0
    %2996 = vmatprep.subr.mxu0 0.0
    %2997 = vmatpush1.msra.mxu0 %v1472
    %2998 = vmatprep.subr.mxu0 0.0
    %2999 = vmatpush1.msra.mxu0 %v1475
    %3000 = vmatprep.subr.mxu0 0.0
    %3001 = vmatpush1.msra.mxu0 %v1478
    %3002 = vmatprep.subr.mxu0 0.0
    %3003 = vmatpush1.msra.mxu0 %v1481
    %3004 = vmatprep.subr.mxu0 0.0
    %3005 = vmatpush1.msra.mxu0 %v1484
    %3006 = vmatprep.subr.mxu0 0.0
    %3007 = vmatpush1.msra.mxu0 %v1487
    %3008 = vmatprep.subr.mxu0 0.0
    %3009 = vmatpush1.msra.mxu0 %v1490
    %3010 = vmatprep.subr.mxu0 0.0
    %3011 = vmatpush1.msra.mxu0 %v1493
    %3012 = vmatprep.subr.mxu0 0.0
    %3013 = vmatpush1.msra.mxu0 %v1496
    %3014 = vmatprep.subr.mxu0 0.0
    %3015 = vmatpush1.msra.mxu0 %v1499
    %3016 = vmatprep.subr.mxu0 0.0
    %3017 = vmatpush1.msra.mxu0 %v1502
    %3018 = vmatprep.subr.mxu0 0.0
    %3019 = vmatpush1.msra.mxu0 %v1505
    %3020 = vmatprep.subr.mxu0 0.0
    %3021 = vmatpush1.msra.mxu0 %v1508
    %3022 = vmatprep.subr.mxu0 0.0
    %3023 = vmatpush1.msra.mxu0 %v1511
    %3024 = vmatprep.subr.mxu0 0.0
    %3025 = vmatpush1.msra.mxu0 %v1514
    %3026 = vmatprep.subr.mxu0 0.0
    %3027 = vmatpush1.msra.mxu0 %v1517
    %3028 = vmatprep.subr.mxu0 0.0
    %3029 = vmatpush1.msra.mxu0 0.0
    %3030 = vmatprep.subr.mxu0 0.0
    %3031 = vmatpush1.msra.mxu0 0.0
    %3032 = vmatprep.subr.mxu0 0.0
    %3033 = vmatpush1.msra.mxu0 0.0
    %3034 = vmatprep.subr.mxu0 0.0
    %3035 = vmatpush1.msra.mxu0 0.0
    %3036 = vmatprep.subr.mxu0 0.0
    %3037 = vmatpush1.msra.mxu0 0.0
    %3038 = vmatprep.subr.mxu0 0.0
    %3039 = vmatpush1.msra.mxu0 0.0
    %3040 = vmatprep.subr.mxu0 0.0
    %3041 = vmatpush1.msra.mxu0 0.0
    %3042 = vmatprep.subr.mxu0 0.0
    %3043 = vmatpush1.msra.mxu0 0.0
    %3044 = vmatprep.subr.mxu0 0.0
    %3045 = vmatpush1.msra.mxu0 0.0
    %3046 = vmatprep.subr.mxu0 0.0
    %3047 = vmatpush1.msra.mxu0 0.0
    %3048 = vmatprep.subr.mxu0 0.0
    %3049 = vmatpush1.msra.mxu0 0.0
    %3050 = vmatprep.subr.mxu0 0.0
    %3051 = vmatpush1.msra.mxu0 0.0
    %3052 = vmatprep.subr.mxu0 0.0
    %3053 = vmatpush1.msra.mxu0 0.0
    %3054 = vmatprep.subr.mxu0 0.0
    %3055 = vmatpush1.msra.mxu0 0.0
    %3056 = vmatprep.subr.mxu0 0.0
    %3057 = vmatpush1.msra.mxu0 0.0
    %3058 = vmatprep.subr.mxu0 0.0
    %3059 = vmatpush1.msra.mxu0 0.0
    %3060 = vmatprep.mubr.f32.mxu0 0.0
    %3061 = vmatmul.mubr.f32.gmra.mrb[0].mxu0 %v2924
    %v3062 = vpop.f32.mrb[0].mxu0
    %v3063 = vadd.f32 %v1627, %v3062
    %v3064 = vpop.f32.mrb[0].mxu0
    %3065 = vdwg.mxu0
    %3066 = vmatprep.subr.mxu0 %v1567
    %3067 = vmatpush1.msra.mxu0 %v1566
    %3068 = vmatprep.subr.mxu0 %v1570
    %3069 = vmatpush1.msra.mxu0 %v1569
    %3070 = vmatprep.subr.mxu0 %v1573
    %3071 = vmatpush1.msra.mxu0 %v1572
    %3072 = vmatprep.subr.mxu0 %v1576
    %3073 = vmatpush1.msra.mxu0 %v1575
    %3074 = vmatprep.subr.mxu0 %v1579
    %3075 = vmatpush1.msra.mxu0 %v1578
    %3076 = vmatprep.subr.mxu0 %v1582
    %3077 = vmatpush1.msra.mxu0 %v1581
    %3078 = vmatprep.subr.mxu0 %v1585
    %3079 = vmatpush1.msra.mxu0 %v1584
    %3080 = vmatprep.subr.mxu0 %v1588
    %3081 = vmatpush1.msra.mxu0 %v1587
    %3082 = vmatprep.subr.mxu0 %v1591
    %3083 = vmatpush1.msra.mxu0 %v1590
    %3084 = vmatprep.subr.mxu0 %v1594
    %3085 = vmatpush1.msra.mxu0 %v1593
    %3086 = vmatprep.subr.mxu0 %v1597
    %3087 = vmatpush1.msra.mxu0 %v1596
    %3088 = vmatprep.subr.mxu0 %v1600
    %3089 = vmatpush1.msra.mxu0 %v1599
    %3090 = vmatprep.subr.mxu0 %v1603
    %3091 = vmatpush1.msra.mxu0 %v1602
    %3092 = vmatprep.subr.mxu0 %v1606
    %3093 = vmatpush1.msra.mxu0 %v1605
    %3094 = vmatprep.subr.mxu0 %v1609
    %3095 = vmatpush1.msra.mxu0 %v1608
    %3096 = vmatprep.subr.mxu0 %v1612
    %3097 = vmatpush1.msra.mxu0 %v1611
    %3098 = vmatprep.subr.mxu0 0.0
    %3099 = vmatpush1.msra.mxu0 0.0
    %3100 = vmatprep.subr.mxu0 0.0
    %3101 = vmatpush1.msra.mxu0 0.0
    %3102 = vmatprep.subr.mxu0 0.0
    %3103 = vmatpush1.msra.mxu0 0.0
    %3104 = vmatprep.subr.mxu0 0.0
    %3105 = vmatpush1.msra.mxu0 0.0
    %3106 = vmatprep.subr.mxu0 0.0
    %3107 = vmatpush1.msra.mxu0 0.0
    %3108 = vmatprep.subr.mxu0 0.0
    %3109 = vmatpush1.msra.mxu0 0.0
    %3110 = vmatprep.subr.mxu0 0.0
    %3111 = vmatpush1.msra.mxu0 0.0
    %3112 = vmatprep.subr.mxu0 0.0
    %3113 = vmatpush1.msra.mxu0 0.0
    %3114 = vmatprep.subr.mxu0 0.0
    %3115 = vmatpush1.msra.mxu0 0.0
    %3116 = vmatprep.subr.mxu0 0.0
    %3117 = vmatpush1.msra.mxu0 0.0
    %3118 = vmatprep.subr.mxu0 0.0
    %3119 = vmatpush1.msra.mxu0 0.0
    %3120 = vmatprep.subr.mxu0 0.0
    %3121 = vmatpush1.msra.mxu0 0.0
    %3122 = vmatprep.subr.mxu0 0.0
    %3123 = vmatpush1.msra.mxu0 0.0
    %3124 = vmatprep.subr.mxu0 0.0
    %3125 = vmatpush1.msra.mxu0 0.0
    %3126 = vmatprep.subr.mxu0 0.0
    %3127 = vmatpush1.msra.mxu0 0.0
    %3128 = vmatprep.subr.mxu0 0.0
    %3129 = vmatpush1.msra.mxu0 0.0
    %3130 = vmatprep.mubr.f32.mxu0 0.0
    %3131 = vmatmul.mubr.f32.gmra.mrb[0].mxu0 %v2690
    %v3132 = vpop.f32.mrb[0].mxu0
    %v3133 = vadd.f32 %v1653, %v3132
    %v3134 = vpop.f32.mrb[0].mxu0
    %v3135 = vadd.f32 %v1657, %v3134
    %3136 = vdwg.mxu0
    %3137 = vmatprep.subr.mxu0 0.0
    %3138 = vmatpush1.msra.mxu0 %v1568
    %3139 = vmatprep.subr.mxu0 0.0
    %3140 = vmatpush1.msra.mxu0 %v1571
    %3141 = vmatprep.subr.mxu0 0.0
    %3142 = vmatpush1.msra.mxu0 %v1574
    %3143 = vmatprep.subr.mxu0 0.0
    %3144 = vmatpush1.msra.mxu0 %v1577
    %3145 = vmatprep.subr.mxu0 0.0
    %3146 = vmatpush1.msra.mxu0 %v1580
    %3147 = vmatprep.subr.mxu0 0.0
    %3148 = vmatpush1.msra.mxu0 %v1583
    %3149 = vmatprep.subr.mxu0 0.0
    %3150 = vmatpush1.msra.mxu0 %v1586
    %3151 = vmatprep.subr.mxu0 0.0
    %3152 = vmatpush1.msra.mxu0 %v1589
    %3153 = vmatprep.subr.mxu0 0.0
    %3154 = vmatpush1.msra.mxu0 %v1592
    %3155 = vmatprep.subr.mxu0 0.0
    %3156 = vmatpush1.msra.mxu0 %v1595
    %3157 = vmatprep.subr.mxu0 0.0
    %3158 = vmatpush1.msra.mxu0 %v1598
    %3159 = vmatprep.subr.mxu0 0.0
    %3160 = vmatpush1.msra.mxu0 %v1601
    %3161 = vmatprep.subr.mxu0 0.0
    %3162 = vmatpush1.msra.mxu0 %v1604
    %3163 = vmatprep.subr.mxu0 0.0
    %3164 = vmatpush1.msra.mxu0 %v1607
    %3165 = vmatprep.subr.mxu0 0.0
    %3166 = vmatpush1.msra.mxu0 %v1610
    %3167 = vmatprep.subr.mxu0 0.0
    %3168 = vmatpush1.msra.mxu0 %v1613
    %3169 = vmatprep.subr.mxu0 0.0
    %3170 = vmatpush1.msra.mxu0 0.0
    %3171 = vmatprep.subr.mxu0 0.0
    %3172 = vmatpush1.msra.mxu0 0.0
    %3173 = vmatprep.subr.mxu0 0.0
    %3174 = vmatpush1.msra.mxu0 0.0
    %3175 = vmatprep.subr.mxu0 0.0
    %3176 = vmatpush1.msra.mxu0 0.0
    %3177 = vmatprep.subr.mxu0 0.0
    %3178 = vmatpush1.msra.mxu0 0.0
    %3179 = vmatprep.subr.mxu0 0.0
    %3180 = vmatpush1.msra.mxu0 0.0
    %3181 = vmatprep.subr.mxu0 0.0
    %3182 = vmatpush1.msra.mxu0 0.0
    %3183 = vmatprep.subr.mxu0 0.0
    %3184 = vmatpush1.msra.mxu0 0.0
    %3185 = vmatprep.subr.mxu0 0.0
    %3186 = vmatpush1.msra.mxu0 0.0
    %3187 = vmatprep.subr.mxu0 0.0
    %3188 = vmatpush1.msra.mxu0 0.0
    %3189 = vmatprep.subr.mxu0 0.0
    %3190 = vmatpush1.msra.mxu0 0.0
    %3191 = vmatprep.subr.mxu0 0.0
    %3192 = vmatpush1.msra.mxu0 0.0
    %3193 = vmatprep.subr.mxu0 0.0
    %3194 = vmatpush1.msra.mxu0 0.0
    %3195 = vmatprep.subr.mxu0 0.0
    %3196 = vmatpush1.msra.mxu0 0.0
    %3197 = vmatprep.subr.mxu0 0.0
    %3198 = vmatpush1.msra.mxu0 0.0
    %3199 = vmatprep.subr.mxu0 0.0
    %3200 = vmatpush1.msra.mxu0 0.0
    %3201 = vmatprep.mubr.f32.mxu0 0.0
    %3202 = vmatmul.mubr.f32.gmra.mrb[0].mxu0 %v2690
    %v3203 = vpop.f32.mrb[0].mxu0
    %v3204 = vadd.f32 %v1661, %v3203
    %v3205 = vpop.f32.mrb[0].mxu0
    %3206 = vdwg.mxu0
    %v3207 = vadd.f32 %v2992, %v3133
    %v3208 = vxor.u32 %v3207, 2147483648
    %v3209 = vmul.f32 %v3208, 1.442695
    %v3210 = vpow.pop %v3209
    %v3211 = vadd.f32 %v3210, 1.0
    %v3212 = vrcp.pop %v3211
    %v3213 = vmul.f32 1.0, %v3212
    %v3214 = vadd.f32 %v2994, %v3135
    %v3215 = vxor.u32 %v3214, 2147483648
    %v3216 = vmul.f32 %v3215, 1.442695
    %v3217 = vpow.pop %v3216
    %v3218 = vadd.f32 %v3217, 1.0
    %v3219 = vrcp.pop %v3218
    %v3220 = vmul.f32 1.0, %v3219
    %v3221 = vmul.f32 %v3213, %v3204
    %v3222 = vadd.f32 %v3063, %v3221
    %v3223 = vtanh.pop %v3222
    %v3224 = vsub.f32 1.0, %v3220
    %v3225 = vmul.f32 %v3224, %v3223
    %v3226 = vmul.f32 %v3220, %v2690
    %v3227 = vadd.f32 %v3225, %v3226
    %3228 = vmatprep.subr.mxu0 0.0
    %3229 = vmatpush1.msra.mxu0 %v1665
    %3230 = vmatprep.subr.mxu0 0.0
    %3231 = vmatpush1.msra.mxu0 %v1666
    %3232 = vmatprep.subr.mxu0 0.0
    %3233 = vmatpush1.msra.mxu0 %v1667
    %3234 = vmatprep.subr.mxu0 0.0
    %3235 = vmatpush1.msra.mxu0 %v1668
    %3236 = vmatprep.subr.mxu0 0.0
    %3237 = vmatpush1.msra.mxu0 %v1669
    %3238 = vmatprep.subr.mxu0 0.0
    %3239 = vmatpush1.msra.mxu0 %v1670
    %3240 = vmatprep.subr.mxu0 0.0
    %3241 = vmatpush1.msra.mxu0 %v1671
    %3242 = vmatprep.subr.mxu0 0.0
    %3243 = vmatpush1.msra.mxu0 %v1672
    %3244 = vmatprep.subr.mxu0 0.0
    %3245 = vmatpush1.msra.mxu0 %v1673
    %3246 = vmatprep.subr.mxu0 0.0
    %3247 = vmatpush1.msra.mxu0 %v1674
    %3248 = vmatprep.subr.mxu0 0.0
    %3249 = vmatpush1.msra.mxu0 %v1675
    %3250 = vmatprep.subr.mxu0 0.0
    %3251 = vmatpush1.msra.mxu0 %v1676
    %3252 = vmatprep.subr.mxu0 0.0
    %3253 = vmatpush1.msra.mxu0 %v1677
    %3254 = vmatprep.subr.mxu0 0.0
    %3255 = vmatpush1.msra.mxu0 %v1678
    %3256 = vmatprep.subr.mxu0 0.0
    %3257 = vmatpush1.msra.mxu0 %v1679
    %3258 = vmatprep.subr.mxu0 0.0
    %3259 = vmatpush1.msra.mxu0 %v1680
    %3260 = vmatprep.subr.mxu0 0.0
    %3261 = vmatpush1.msra.mxu0 0.0
    %3262 = vmatprep.subr.mxu0 0.0
    %3263 = vmatpush1.msra.mxu0 0.0
    %3264 = vmatprep.subr.mxu0 0.0
    %3265 = vmatpush1.msra.mxu0 0.0
    %3266 = vmatprep.subr.mxu0 0.0
    %3267 = vmatpush1.msra.mxu0 0.0
    %3268 = vmatprep.subr.mxu0 0.0
    %3269 = vmatpush1.msra.mxu0 0.0
    %3270 = vmatprep.subr.mxu0 0.0
    %3271 = vmatpush1.msra.mxu0 0.0
    %3272 = vmatprep.subr.mxu0 0.0
    %3273 = vmatpush1.msra.mxu0 0.0
    %3274 = vmatprep.subr.mxu0 0.0
    %3275 = vmatpush1.msra.mxu0 0.0
    %3276 = vmatprep.subr.mxu0 0.0
    %3277 = vmatpush1.msra.mxu0 0.0
    %3278 = vmatprep.subr.mxu0 0.0
    %3279 = vmatpush1.msra.mxu0 0.0
    %3280 = vmatprep.subr.mxu0 0.0
    %3281 = vmatpush1.msra.mxu0 0.0
    %3282 = vmatprep.subr.mxu0 0.0
    %3283 = vmatpush1.msra.mxu0 0.0
    %3284 = vmatprep.subr.mxu0 0.0
    %3285 = vmatpush1.msra.mxu0 0.0
    %3286 = vmatprep.subr.mxu0 0.0
    %3287 = vmatpush1.msra.mxu0 0.0
    %3288 = vmatprep.subr.mxu0 0.0
    %3289 = vmatpush1.msra.mxu0 0.0
    %3290 = vmatprep.subr.mxu0 0.0
    %3291 = vmatpush1.msra.mxu0 0.0
    %3292 = vmatprep.mubr.f32.mxu0 0.0
    %3293 = vmatmul.mubr.f32.gmra.mrb[0].mxu0 %v3227
    %v3294 = vpop.f32.mrb[0].mxu0
    %v3295 = vadd.f32 %v1686, %v3294
    %v3296 = vpop.f32.mrb[0].mxu0
    %3297 = vdwg.mxu0
    %s3298 = scalar_lea.vmem [#allocation14], 24
    %3299 = vst [vmem:[%s3298] sm:$0xff] %v3295
    %3300 = vmatprep.subr.mxu0 %v1519
    %3301 = vmatpush1.msra.mxu0 %v1518
    %3302 = vmatprep.subr.mxu0 %v1522
    %3303 = vmatpush1.msra.mxu0 %v1521
    %3304 = vmatprep.subr.mxu0 %v1525
    %3305 = vmatpush1.msra.mxu0 %v1524
    %3306 = vmatprep.subr.mxu0 %v1528
    %3307 = vmatpush1.msra.mxu0 %v1527
    %3308 = vmatprep.subr.mxu0 %v1531
    %3309 = vmatpush1.msra.mxu0 %v1530
    %3310 = vmatprep.subr.mxu0 %v1534
    %3311 = vmatpush1.msra.mxu0 %v1533
    %3312 = vmatprep.subr.mxu0 %v1537
    %3313 = vmatpush1.msra.mxu0 %v1536
    %3314 = vmatprep.subr.mxu0 %v1540
    %3315 = vmatpush1.msra.mxu0 %v1539
    %3316 = vmatprep.subr.mxu0 %v1543
    %3317 = vmatpush1.msra.mxu0 %v1542
    %3318 = vmatprep.subr.mxu0 %v1546
    %3319 = vmatpush1.msra.mxu0 %v1545
    %3320 = vmatprep.subr.mxu0 %v1549
    %3321 = vmatpush1.msra.mxu0 %v1548
    %3322 = vmatprep.subr.mxu0 %v1552
    %3323 = vmatpush1.msra.mxu0 %v1551
    %3324 = vmatprep.subr.mxu0 %v1555
    %3325 = vmatpush1.msra.mxu0 %v1554
    %3326 = vmatprep.subr.mxu0 %v1558
    %3327 = vmatpush1.msra.mxu0 %v1557
    %3328 = vmatprep.subr.mxu0 %v1561
    %3329 = vmatpush1.msra.mxu0 %v1560
    %3330 = vmatprep.subr.mxu0 %v1564
    %3331 = vmatpush1.msra.mxu0 %v1563
    %3332 = vmatprep.subr.mxu0 0.0
    %3333 = vmatpush1.msra.mxu0 0.0
    %3334 = vmatprep.subr.mxu0 0.0
    %3335 = vmatpush1.msra.mxu0 0.0
    %3336 = vmatprep.subr.mxu0 0.0
    %3337 = vmatpush1.msra.mxu0 0.0
    %3338 = vmatprep.subr.mxu0 0.0
    %3339 = vmatpush1.msra.mxu0 0.0
    %3340 = vmatprep.subr.mxu0 0.0
    %3341 = vmatpush1.msra.mxu0 0.0
    %3342 = vmatprep.subr.mxu0 0.0
    %3343 = vmatpush1.msra.mxu0 0.0
    %3344 = vmatprep.subr.mxu0 0.0
    %3345 = vmatpush1.msra.mxu0 0.0
    %3346 = vmatprep.subr.mxu0 0.0
    %3347 = vmatpush1.msra.mxu0 0.0
    %3348 = vmatprep.subr.mxu0 0.0
    %3349 = vmatpush1.msra.mxu0 0.0
    %3350 = vmatprep.subr.mxu0 0.0
    %3351 = vmatpush1.msra.mxu0 0.0
    %3352 = vmatprep.subr.mxu0 0.0
    %3353 = vmatpush1.msra.mxu0 0.0
    %3354 = vmatprep.subr.mxu0 0.0
    %3355 = vmatpush1.msra.mxu0 0.0
    %3356 = vmatprep.subr.mxu0 0.0
    %3357 = vmatpush1.msra.mxu0 0.0
    %3358 = vmatprep.subr.mxu0 0.0
    %3359 = vmatpush1.msra.mxu0 0.0
    %3360 = vmatprep.subr.mxu0 0.0
    %3361 = vmatpush1.msra.mxu0 0.0
    %3362 = vmatprep.subr.mxu0 0.0
    %3363 = vmatpush1.msra.mxu0 0.0
    %3364 = vmatprep.mubr.f32.mxu0 0.0
    %3365 = vmatmul.mubr.f32.gmra.mrb[0].mxu0 %v2924
    %v3366 = vpop.f32.mrb[0].mxu0
    %v3367 = vadd.f32 %v1636, %v3366
    %v3368 = vpop.f32.mrb[0].mxu0
    %v3369 = vadd.f32 %v1640, %v3368
    %3370 = vdwg.mxu0
    %3371 = vmatprep.subr.mxu0 0.0
    %3372 = vmatpush1.msra.mxu0 %v1520
    %3373 = vmatprep.subr.mxu0 0.0
    %3374 = vmatpush1.msra.mxu0 %v1523
    %3375 = vmatprep.subr.mxu0 0.0
    %3376 = vmatpush1.msra.mxu0 %v1526
    %3377 = vmatprep.subr.mxu0 0.0
    %3378 = vmatpush1.msra.mxu0 %v1529
    %3379 = vmatprep.subr.mxu0 0.0
    %3380 = vmatpush1.msra.mxu0 %v1532
    %3381 = vmatprep.subr.mxu0 0.0
    %3382 = vmatpush1.msra.mxu0 %v1535
    %3383 = vmatprep.subr.mxu0 0.0
    %3384 = vmatpush1.msra.mxu0 %v1538
    %3385 = vmatprep.subr.mxu0 0.0
    %3386 = vmatpush1.msra.mxu0 %v1541
    %3387 = vmatprep.subr.mxu0 0.0
    %3388 = vmatpush1.msra.mxu0 %v1544
    %3389 = vmatprep.subr.mxu0 0.0
    %3390 = vmatpush1.msra.mxu0 %v1547
    %3391 = vmatprep.subr.mxu0 0.0
    %3392 = vmatpush1.msra.mxu0 %v1550
    %3393 = vmatprep.subr.mxu0 0.0
    %3394 = vmatpush1.msra.mxu0 %v1553
    %3395 = vmatprep.subr.mxu0 0.0
    %3396 = vmatpush1.msra.mxu0 %v1556
    %3397 = vmatprep.subr.mxu0 0.0
    %3398 = vmatpush1.msra.mxu0 %v1559
    %3399 = vmatprep.subr.mxu0 0.0
    %3400 = vmatpush1.msra.mxu0 %v1562
    %3401 = vmatprep.subr.mxu0 0.0
    %3402 = vmatpush1.msra.mxu0 %v1565
    %3403 = vmatprep.subr.mxu0 0.0
    %3404 = vmatpush1.msra.mxu0 0.0
    %3405 = vmatprep.subr.mxu0 0.0
    %3406 = vmatpush1.msra.mxu0 0.0
    %3407 = vmatprep.subr.mxu0 0.0
    %3408 = vmatpush1.msra.mxu0 0.0
    %3409 = vmatprep.subr.mxu0 0.0
    %3410 = vmatpush1.msra.mxu0 0.0
    %3411 = vmatprep.subr.mxu0 0.0
    %3412 = vmatpush1.msra.mxu0 0.0
    %3413 = vmatprep.subr.mxu0 0.0
    %3414 = vmatpush1.msra.mxu0 0.0
    %3415 = vmatprep.subr.mxu0 0.0
    %3416 = vmatpush1.msra.mxu0 0.0
    %3417 = vmatprep.subr.mxu0 0.0
    %3418 = vmatpush1.msra.mxu0 0.0
    %3419 = vmatprep.subr.mxu0 0.0
    %3420 = vmatpush1.msra.mxu0 0.0
    %3421 = vmatprep.subr.mxu0 0.0
    %3422 = vmatpush1.msra.mxu0 0.0
    %3423 = vmatprep.subr.mxu0 0.0
    %3424 = vmatpush1.msra.mxu0 0.0
    %3425 = vmatprep.subr.mxu0 0.0
    %3426 = vmatpush1.msra.mxu0 0.0
    %3427 = vmatprep.subr.mxu0 0.0
    %3428 = vmatpush1.msra.mxu0 0.0
    %3429 = vmatprep.subr.mxu0 0.0
    %3430 = vmatpush1.msra.mxu0 0.0
    %3431 = vmatprep.subr.mxu0 0.0
    %3432 = vmatpush1.msra.mxu0 0.0
    %3433 = vmatprep.subr.mxu0 0.0
    %3434 = vmatpush1.msra.mxu0 0.0
    %3435 = vmatprep.mubr.f32.mxu0 0.0
    %3436 = vmatmul.mubr.f32.gmra.mrb[0].mxu0 %v2924
    %v3437 = vpop.f32.mrb[0].mxu0
    %v3438 = vadd.f32 %v1644, %v3437
    %v3439 = vpop.f32.mrb[0].mxu0
    %3440 = vdwg.mxu0
    %v3441 = vadd.f32 %v1467, %v3367
    %v3442 = vxor.u32 %v3441, 2147483648
    %v3443 = vmul.f32 %v3442, 1.442695
    %v3444 = vpow.pop %v3443
    %v3445 = vadd.f32 %v3444, 1.0
    %v3446 = vrcp.pop %v3445
    %v3447 = vmul.f32 1.0, %v3446
    %v3448 = vadd.f32 %v1468, %v3369
    %v3449 = vxor.u32 %v3448, 2147483648
    %v3450 = vmul.f32 %v3449, 1.442695
    %v3451 = vpow.pop %v3450
    %v3452 = vadd.f32 %v3451, 1.0
    %v3453 = vrcp.pop %v3452
    %v3454 = vmul.f32 1.0, %v3453
    %v3455 = vmul.f32 %v3447, %v3438
    %v3456 = vadd.f32 %v1469, %v3455
    %v3457 = vtanh.pop %v3456
    %v3458 = vsub.f32 1.0, %v3454
    %v3459 = vmul.f32 %v3458, %v3457
    %v3460 = vmul.f32 %v3454, %v2924
    %v3461 = vadd.f32 %v3459, %v3460
    %3462 = vmatprep.subr.mxu0 %v1471
    %3463 = vmatpush1.msra.mxu0 %v1470
    %3464 = vmatprep.subr.mxu0 %v1474
    %3465 = vmatpush1.msra.mxu0 %v1473
    %3466 = vmatprep.subr.mxu0 %v1477
    %3467 = vmatpush1.msra.mxu0 %v1476
    %3468 = vmatprep.subr.mxu0 %v1480
    %3469 = vmatpush1.msra.mxu0 %v1479
    %3470 = vmatprep.subr.mxu0 %v1483
    %3471 = vmatpush1.msra.mxu0 %v1482
    %3472 = vmatprep.subr.mxu0 %v1486
    %3473 = vmatpush1.msra.mxu0 %v1485
    %3474 = vmatprep.subr.mxu0 %v1489
    %3475 = vmatpush1.msra.mxu0 %v1488
    %3476 = vmatprep.subr.mxu0 %v1492
    %3477 = vmatpush1.msra.mxu0 %v1491
    %3478 = vmatprep.subr.mxu0 %v1495
    %3479 = vmatpush1.msra.mxu0 %v1494
    %3480 = vmatprep.subr.mxu0 %v1498
    %3481 = vmatpush1.msra.mxu0 %v1497
    %3482 = vmatprep.subr.mxu0 %v1501
    %3483 = vmatpush1.msra.mxu0 %v1500
    %3484 = vmatprep.subr.mxu0 %v1504
    %3485 = vmatpush1.msra.mxu0 %v1503
    %3486 = vmatprep.subr.mxu0 %v1507
    %3487 = vmatpush1.msra.mxu0 %v1506
    %3488 = vmatprep.subr.mxu0 %v1510
    %3489 = vmatpush1.msra.mxu0 %v1509
    %3490 = vmatprep.subr.mxu0 %v1513
    %3491 = vmatpush1.msra.mxu0 %v1512
    %3492 = vmatprep.subr.mxu0 %v1516
    %3493 = vmatpush1.msra.mxu0 %v1515
    %3494 = vmatprep.subr.mxu0 0.0
    %3495 = vmatpush1.msra.mxu0 0.0
    %3496 = vmatprep.subr.mxu0 0.0
    %3497 = vmatpush1.msra.mxu0 0.0
    %3498 = vmatprep.subr.mxu0 0.0
    %3499 = vmatpush1.msra.mxu0 0.0
    %3500 = vmatprep.subr.mxu0 0.0
    %3501 = vmatpush1.msra.mxu0 0.0
    %3502 = vmatprep.subr.mxu0 0.0
    %3503 = vmatpush1.msra.mxu0 0.0
    %3504 = vmatprep.subr.mxu0 0.0
    %3505 = vmatpush1.msra.mxu0 0.0
    %3506 = vmatprep.subr.mxu0 0.0
    %3507 = vmatpush1.msra.mxu0 0.0
    %3508 = vmatprep.subr.mxu0 0.0
    %3509 = vmatpush1.msra.mxu0 0.0
    %3510 = vmatprep.subr.mxu0 0.0
    %3511 = vmatpush1.msra.mxu0 0.0
    %3512 = vmatprep.subr.mxu0 0.0
    %3513 = vmatpush1.msra.mxu0 0.0
    %3514 = vmatprep.subr.mxu0 0.0
    %3515 = vmatpush1.msra.mxu0 0.0
    %3516 = vmatprep.subr.mxu0 0.0
    %3517 = vmatpush1.msra.mxu0 0.0
    %3518 = vmatprep.subr.mxu0 0.0
    %3519 = vmatpush1.msra.mxu0 0.0
    %3520 = vmatprep.subr.mxu0 0.0
    %3521 = vmatpush1.msra.mxu0 0.0
    %3522 = vmatprep.subr.mxu0 0.0
    %3523 = vmatpush1.msra.mxu0 0.0
    %3524 = vmatprep.subr.mxu0 0.0
    %3525 = vmatpush1.msra.mxu0 0.0
    %3526 = vmatprep.mubr.f32.mxu0 0.0
    %3527 = vmatmul.mubr.f32.gmra.mrb[0].mxu0 %v3461
    %v3528 = vpop.f32.mrb[0].mxu0
    %v3529 = vadd.f32 %v1619, %v3528
    %v3530 = vpop.f32.mrb[0].mxu0
    %v3531 = vadd.f32 %v1623, %v3530
    %3532 = vdwg.mxu0
    %3533 = vmatprep.subr.mxu0 0.0
    %3534 = vmatpush1.msra.mxu0 %v1472
    %3535 = vmatprep.subr.mxu0 0.0
    %3536 = vmatpush1.msra.mxu0 %v1475
    %3537 = vmatprep.subr.mxu0 0.0
    %3538 = vmatpush1.msra.mxu0 %v1478
    %3539 = vmatprep.subr.mxu0 0.0
    %3540 = vmatpush1.msra.mxu0 %v1481
    %3541 = vmatprep.subr.mxu0 0.0
    %3542 = vmatpush1.msra.mxu0 %v1484
    %3543 = vmatprep.subr.mxu0 0.0
    %3544 = vmatpush1.msra.mxu0 %v1487
    %3545 = vmatprep.subr.mxu0 0.0
    %3546 = vmatpush1.msra.mxu0 %v1490
    %3547 = vmatprep.subr.mxu0 0.0
    %3548 = vmatpush1.msra.mxu0 %v1493
    %3549 = vmatprep.subr.mxu0 0.0
    %3550 = vmatpush1.msra.mxu0 %v1496
    %3551 = vmatprep.subr.mxu0 0.0
    %3552 = vmatpush1.msra.mxu0 %v1499
    %3553 = vmatprep.subr.mxu0 0.0
    %3554 = vmatpush1.msra.mxu0 %v1502
    %3555 = vmatprep.subr.mxu0 0.0
    %3556 = vmatpush1.msra.mxu0 %v1505
    %3557 = vmatprep.subr.mxu0 0.0
    %3558 = vmatpush1.msra.mxu0 %v1508
    %3559 = vmatprep.subr.mxu0 0.0
    %3560 = vmatpush1.msra.mxu0 %v1511
    %3561 = vmatprep.subr.mxu0 0.0
    %3562 = vmatpush1.msra.mxu0 %v1514
    %3563 = vmatprep.subr.mxu0 0.0
    %3564 = vmatpush1.msra.mxu0 %v1517
    %3565 = vmatprep.subr.mxu0 0.0
    %3566 = vmatpush1.msra.mxu0 0.0
    %3567 = vmatprep.subr.mxu0 0.0
    %3568 = vmatpush1.msra.mxu0 0.0
    %3569 = vmatprep.subr.mxu0 0.0
    %3570 = vmatpush1.msra.mxu0 0.0
    %3571 = vmatprep.subr.mxu0 0.0
    %3572 = vmatpush1.msra.mxu0 0.0
    %3573 = vmatprep.subr.mxu0 0.0
    %3574 = vmatpush1.msra.mxu0 0.0
    %3575 = vmatprep.subr.mxu0 0.0
    %3576 = vmatpush1.msra.mxu0 0.0
    %3577 = vmatprep.subr.mxu0 0.0
    %3578 = vmatpush1.msra.mxu0 0.0
    %3579 = vmatprep.subr.mxu0 0.0
    %3580 = vmatpush1.msra.mxu0 0.0
    %3581 = vmatprep.subr.mxu0 0.0
    %3582 = vmatpush1.msra.mxu0 0.0
    %3583 = vmatprep.subr.mxu0 0.0
    %3584 = vmatpush1.msra.mxu0 0.0
    %3585 = vmatprep.subr.mxu0 0.0
    %3586 = vmatpush1.msra.mxu0 0.0
    %3587 = vmatprep.subr.mxu0 0.0
    %3588 = vmatpush1.msra.mxu0 0.0
    %3589 = vmatprep.subr.mxu0 0.0
    %3590 = vmatpush1.msra.mxu0 0.0
    %3591 = vmatprep.subr.mxu0 0.0
    %3592 = vmatpush1.msra.mxu0 0.0
    %3593 = vmatprep.subr.mxu0 0.0
    %3594 = vmatpush1.msra.mxu0 0.0
    %3595 = vmatprep.subr.mxu0 0.0
    %3596 = vmatpush1.msra.mxu0 0.0
    %3597 = vmatprep.mubr.f32.mxu0 0.0
    %3598 = vmatmul.mubr.f32.gmra.mrb[0].mxu0 %v3461
    %v3599 = vpop.f32.mrb[0].mxu0
    %v3600 = vadd.f32 %v1627, %v3599
    %v3601 = vpop.f32.mrb[0].mxu0
    %3602 = vdwg.mxu0
    %3603 = vmatprep.subr.mxu0 %v1567
    %3604 = vmatpush1.msra.mxu0 %v1566
    %3605 = vmatprep.subr.mxu0 %v1570
    %3606 = vmatpush1.msra.mxu0 %v1569
    %3607 = vmatprep.subr.mxu0 %v1573
    %3608 = vmatpush1.msra.mxu0 %v1572
    %3609 = vmatprep.subr.mxu0 %v1576
    %3610 = vmatpush1.msra.mxu0 %v1575
    %3611 = vmatprep.subr.mxu0 %v1579
    %3612 = vmatpush1.msra.mxu0 %v1578
    %3613 = vmatprep.subr.mxu0 %v1582
    %3614 = vmatpush1.msra.mxu0 %v1581
    %3615 = vmatprep.subr.mxu0 %v1585
    %3616 = vmatpush1.msra.mxu0 %v1584
    %3617 = vmatprep.subr.mxu0 %v1588
    %3618 = vmatpush1.msra.mxu0 %v1587
    %3619 = vmatprep.subr.mxu0 %v1591
    %3620 = vmatpush1.msra.mxu0 %v1590
    %3621 = vmatprep.subr.mxu0 %v1594
    %3622 = vmatpush1.msra.mxu0 %v1593
    %3623 = vmatprep.subr.mxu0 %v1597
    %3624 = vmatpush1.msra.mxu0 %v1596
    %3625 = vmatprep.subr.mxu0 %v1600
    %3626 = vmatpush1.msra.mxu0 %v1599
    %3627 = vmatprep.subr.mxu0 %v1603
    %3628 = vmatpush1.msra.mxu0 %v1602
    %3629 = vmatprep.subr.mxu0 %v1606
    %3630 = vmatpush1.msra.mxu0 %v1605
    %3631 = vmatprep.subr.mxu0 %v1609
    %3632 = vmatpush1.msra.mxu0 %v1608
    %3633 = vmatprep.subr.mxu0 %v1612
    %3634 = vmatpush1.msra.mxu0 %v1611
    %3635 = vmatprep.subr.mxu0 0.0
    %3636 = vmatpush1.msra.mxu0 0.0
    %3637 = vmatprep.subr.mxu0 0.0
    %3638 = vmatpush1.msra.mxu0 0.0
    %3639 = vmatprep.subr.mxu0 0.0
    %3640 = vmatpush1.msra.mxu0 0.0
    %3641 = vmatprep.subr.mxu0 0.0
    %3642 = vmatpush1.msra.mxu0 0.0
    %3643 = vmatprep.subr.mxu0 0.0
    %3644 = vmatpush1.msra.mxu0 0.0
    %3645 = vmatprep.subr.mxu0 0.0
    %3646 = vmatpush1.msra.mxu0 0.0
    %3647 = vmatprep.subr.mxu0 0.0
    %3648 = vmatpush1.msra.mxu0 0.0
    %3649 = vmatprep.subr.mxu0 0.0
    %3650 = vmatpush1.msra.mxu0 0.0
    %3651 = vmatprep.subr.mxu0 0.0
    %3652 = vmatpush1.msra.mxu0 0.0
    %3653 = vmatprep.subr.mxu0 0.0
    %3654 = vmatpush1.msra.mxu0 0.0
    %3655 = vmatprep.subr.mxu0 0.0
    %3656 = vmatpush1.msra.mxu0 0.0
    %3657 = vmatprep.subr.mxu0 0.0
    %3658 = vmatpush1.msra.mxu0 0.0
    %3659 = vmatprep.subr.mxu0 0.0
    %3660 = vmatpush1.msra.mxu0 0.0
    %3661 = vmatprep.subr.mxu0 0.0
    %3662 = vmatpush1.msra.mxu0 0.0
    %3663 = vmatprep.subr.mxu0 0.0
    %3664 = vmatpush1.msra.mxu0 0.0
    %3665 = vmatprep.subr.mxu0 0.0
    %3666 = vmatpush1.msra.mxu0 0.0
    %3667 = vmatprep.mubr.f32.mxu0 0.0
    %3668 = vmatmul.mubr.f32.gmra.mrb[0].mxu0 %v3227
    %v3669 = vpop.f32.mrb[0].mxu0
    %v3670 = vadd.f32 %v1653, %v3669
    %v3671 = vpop.f32.mrb[0].mxu0
    %v3672 = vadd.f32 %v1657, %v3671
    %3673 = vdwg.mxu0
    %3674 = vmatprep.subr.mxu0 0.0
    %3675 = vmatpush1.msra.mxu0 %v1568
    %3676 = vmatprep.subr.mxu0 0.0
    %3677 = vmatpush1.msra.mxu0 %v1571
    %3678 = vmatprep.subr.mxu0 0.0
    %3679 = vmatpush1.msra.mxu0 %v1574
    %3680 = vmatprep.subr.mxu0 0.0
    %3681 = vmatpush1.msra.mxu0 %v1577
    %3682 = vmatprep.subr.mxu0 0.0
    %3683 = vmatpush1.msra.mxu0 %v1580
    %3684 = vmatprep.subr.mxu0 0.0
    %3685 = vmatpush1.msra.mxu0 %v1583
    %3686 = vmatprep.subr.mxu0 0.0
    %3687 = vmatpush1.msra.mxu0 %v1586
    %3688 = vmatprep.subr.mxu0 0.0
    %3689 = vmatpush1.msra.mxu0 %v1589
    %3690 = vmatprep.subr.mxu0 0.0
    %3691 = vmatpush1.msra.mxu0 %v1592
    %3692 = vmatprep.subr.mxu0 0.0
    %3693 = vmatpush1.msra.mxu0 %v1595
    %3694 = vmatprep.subr.mxu0 0.0
    %3695 = vmatpush1.msra.mxu0 %v1598
    %3696 = vmatprep.subr.mxu0 0.0
    %3697 = vmatpush1.msra.mxu0 %v1601
    %3698 = vmatprep.subr.mxu0 0.0
    %3699 = vmatpush1.msra.mxu0 %v1604
    %3700 = vmatprep.subr.mxu0 0.0
    %3701 = vmatpush1.msra.mxu0 %v1607
    %3702 = vmatprep.subr.mxu0 0.0
    %3703 = vmatpush1.msra.mxu0 %v1610
    %3704 = vmatprep.subr.mxu0 0.0
    %3705 = vmatpush1.msra.mxu0 %v1613
    %3706 = vmatprep.subr.mxu0 0.0
    %3707 = vmatpush1.msra.mxu0 0.0
    %3708 = vmatprep.subr.mxu0 0.0
    %3709 = vmatpush1.msra.mxu0 0.0
    %3710 = vmatprep.subr.mxu0 0.0
    %3711 = vmatpush1.msra.mxu0 0.0
    %3712 = vmatprep.subr.mxu0 0.0
    %3713 = vmatpush1.msra.mxu0 0.0
    %3714 = vmatprep.subr.mxu0 0.0
    %3715 = vmatpush1.msra.mxu0 0.0
    %3716 = vmatprep.subr.mxu0 0.0
    %3717 = vmatpush1.msra.mxu0 0.0
    %3718 = vmatprep.subr.mxu0 0.0
    %3719 = vmatpush1.msra.mxu0 0.0
    %3720 = vmatprep.subr.mxu0 0.0
    %3721 = vmatpush1.msra.mxu0 0.0
    %3722 = vmatprep.subr.mxu0 0.0
    %3723 = vmatpush1.msra.mxu0 0.0
    %3724 = vmatprep.subr.mxu0 0.0
    %3725 = vmatpush1.msra.mxu0 0.0
    %3726 = vmatprep.subr.mxu0 0.0
    %3727 = vmatpush1.msra.mxu0 0.0
    %3728 = vmatprep.subr.mxu0 0.0
    %3729 = vmatpush1.msra.mxu0 0.0
    %3730 = vmatprep.subr.mxu0 0.0
    %3731 = vmatpush1.msra.mxu0 0.0
    %3732 = vmatprep.subr.mxu0 0.0
    %3733 = vmatpush1.msra.mxu0 0.0
    %3734 = vmatprep.subr.mxu0 0.0
    %3735 = vmatpush1.msra.mxu0 0.0
    %3736 = vmatprep.subr.mxu0 0.0
    %3737 = vmatpush1.msra.mxu0 0.0
    %3738 = vmatprep.mubr.f32.mxu0 0.0
    %3739 = vmatmul.mubr.f32.gmra.mrb[0].mxu0 %v3227
    %v3740 = vpop.f32.mrb[0].mxu0
    %v3741 = vadd.f32 %v1661, %v3740
    %v3742 = vpop.f32.mrb[0].mxu0
    %3743 = vdwg.mxu0
    %v3744 = vadd.f32 %v3529, %v3670
    %v3745 = vxor.u32 %v3744, 2147483648
    %v3746 = vmul.f32 %v3745, 1.442695
    %v3747 = vpow.pop %v3746
    %v3748 = vadd.f32 %v3747, 1.0
    %v3749 = vrcp.pop %v3748
    %v3750 = vmul.f32 1.0, %v3749
    %v3751 = vadd.f32 %v3531, %v3672
    %v3752 = vxor.u32 %v3751, 2147483648
    %v3753 = vmul.f32 %v3752, 1.442695
    %v3754 = vpow.pop %v3753
    %v3755 = vadd.f32 %v3754, 1.0
    %v3756 = vrcp.pop %v3755
    %v3757 = vmul.f32 1.0, %v3756
    %v3758 = vmul.f32 %v3750, %v3741
    %v3759 = vadd.f32 %v3600, %v3758
    %v3760 = vtanh.pop %v3759
    %v3761 = vsub.f32 1.0, %v3757
    %v3762 = vmul.f32 %v3761, %v3760
    %v3763 = vmul.f32 %v3757, %v3227
    %v3764 = vadd.f32 %v3762, %v3763
    %3765 = vmatprep.subr.mxu0 0.0
    %3766 = vmatpush1.msra.mxu0 %v1665
    %3767 = vmatprep.subr.mxu0 0.0
    %3768 = vmatpush1.msra.mxu0 %v1666
    %3769 = vmatprep.subr.mxu0 0.0
    %3770 = vmatpush1.msra.mxu0 %v1667
    %3771 = vmatprep.subr.mxu0 0.0
    %3772 = vmatpush1.msra.mxu0 %v1668
    %3773 = vmatprep.subr.mxu0 0.0
    %3774 = vmatpush1.msra.mxu0 %v1669
    %3775 = vmatprep.subr.mxu0 0.0
    %3776 = vmatpush1.msra.mxu0 %v1670
    %3777 = vmatprep.subr.mxu0 0.0
    %3778 = vmatpush1.msra.mxu0 %v1671
    %3779 = vmatprep.subr.mxu0 0.0
    %3780 = vmatpush1.msra.mxu0 %v1672
    %3781 = vmatprep.subr.mxu0 0.0
    %3782 = vmatpush1.msra.mxu0 %v1673
    %3783 = vmatprep.subr.mxu0 0.0
    %3784 = vmatpush1.msra.mxu0 %v1674
    %3785 = vmatprep.subr.mxu0 0.0
    %3786 = vmatpush1.msra.mxu0 %v1675
    %3787 = vmatprep.subr.mxu0 0.0
    %3788 = vmatpush1.msra.mxu0 %v1676
    %3789 = vmatprep.subr.mxu0 0.0
    %3790 = vmatpush1.msra.mxu0 %v1677
    %3791 = vmatprep.subr.mxu0 0.0
    %3792 = vmatpush1.msra.mxu0 %v1678
    %3793 = vmatprep.subr.mxu0 0.0
    %3794 = vmatpush1.msra.mxu0 %v1679
    %3795 = vmatprep.subr.mxu0 0.0
    %3796 = vmatpush1.msra.mxu0 %v1680
    %3797 = vmatprep.subr.mxu0 0.0
    %3798 = vmatpush1.msra.mxu0 0.0
    %3799 = vmatprep.subr.mxu0 0.0
    %3800 = vmatpush1.msra.mxu0 0.0
    %3801 = vmatprep.subr.mxu0 0.0
    %3802 = vmatpush1.msra.mxu0 0.0
    %3803 = vmatprep.subr.mxu0 0.0
    %3804 = vmatpush1.msra.mxu0 0.0
    %3805 = vmatprep.subr.mxu0 0.0
    %3806 = vmatpush1.msra.mxu0 0.0
    %3807 = vmatprep.subr.mxu0 0.0
    %3808 = vmatpush1.msra.mxu0 0.0
    %3809 = vmatprep.subr.mxu0 0.0
    %3810 = vmatpush1.msra.mxu0 0.0
    %3811 = vmatprep.subr.mxu0 0.0
    %3812 = vmatpush1.msra.mxu0 0.0
    %3813 = vmatprep.subr.mxu0 0.0
    %3814 = vmatpush1.msra.mxu0 0.0
    %3815 = vmatprep.subr.mxu0 0.0
    %3816 = vmatpush1.msra.mxu0 0.0
    %3817 = vmatprep.subr.mxu0 0.0
    %3818 = vmatpush1.msra.mxu0 0.0
    %3819 = vmatprep.subr.mxu0 0.0
    %3820 = vmatpush1.msra.mxu0 0.0
    %3821 = vmatprep.subr.mxu0 0.0
    %3822 = vmatpush1.msra.mxu0 0.0
    %3823 = vmatprep.subr.mxu0 0.0
    %3824 = vmatpush1.msra.mxu0 0.0
    %3825 = vmatprep.subr.mxu0 0.0
    %3826 = vmatpush1.msra.mxu0 0.0
    %3827 = vmatprep.subr.mxu0 0.0
    %3828 = vmatpush1.msra.mxu0 0.0
    %3829 = vmatprep.mubr.f32.mxu0 0.0
    %3830 = vmatmul.mubr.f32.gmra.mrb[0].mxu0 %v3764
    %v3831 = vpop.f32.mrb[0].mxu0
    %v3832 = vadd.f32 %v1686, %v3831
    %v3833 = vpop.f32.mrb[0].mxu0
    %3834 = vdwg.mxu0
    %s3835 = scalar_lea.vmem [#allocation14], 32
    %3836 = vst [vmem:[%s3835] sm:$0xff] %v3832
    %3837 = vmatprep.subr.mxu0 %v1519
    %3838 = vmatpush1.msra.mxu0 %v1518
    %3839 = vmatprep.subr.mxu0 %v1522
    %3840 = vmatpush1.msra.mxu0 %v1521
    %3841 = vmatprep.subr.mxu0 %v1525
    %3842 = vmatpush1.msra.mxu0 %v1524
    %3843 = vmatprep.subr.mxu0 %v1528
    %3844 = vmatpush1.msra.mxu0 %v1527
    %3845 = vmatprep.subr.mxu0 %v1531
    %3846 = vmatpush1.msra.mxu0 %v1530
    %3847 = vmatprep.subr.mxu0 %v1534
    %3848 = vmatpush1.msra.mxu0 %v1533
    %3849 = vmatprep.subr.mxu0 %v1537
    %3850 = vmatpush1.msra.mxu0 %v1536
    %3851 = vmatprep.subr.mxu0 %v1540
    %3852 = vmatpush1.msra.mxu0 %v1539
    %3853 = vmatprep.subr.mxu0 %v1543
    %3854 = vmatpush1.msra.mxu0 %v1542
    %3855 = vmatprep.subr.mxu0 %v1546
    %3856 = vmatpush1.msra.mxu0 %v1545
    %3857 = vmatprep.subr.mxu0 %v1549
    %3858 = vmatpush1.msra.mxu0 %v1548
    %3859 = vmatprep.subr.mxu0 %v1552
    %3860 = vmatpush1.msra.mxu0 %v1551
    %3861 = vmatprep.subr.mxu0 %v1555
    %3862 = vmatpush1.msra.mxu0 %v1554
    %3863 = vmatprep.subr.mxu0 %v1558
    %3864 = vmatpush1.msra.mxu0 %v1557
    %3865 = vmatprep.subr.mxu0 %v1561
    %3866 = vmatpush1.msra.mxu0 %v1560
    %3867 = vmatprep.subr.mxu0 %v1564
    %3868 = vmatpush1.msra.mxu0 %v1563
    %3869 = vmatprep.subr.mxu0 0.0
    %3870 = vmatpush1.msra.mxu0 0.0
    %3871 = vmatprep.subr.mxu0 0.0
    %3872 = vmatpush1.msra.mxu0 0.0
    %3873 = vmatprep.subr.mxu0 0.0
    %3874 = vmatpush1.msra.mxu0 0.0
    %3875 = vmatprep.subr.mxu0 0.0
    %3876 = vmatpush1.msra.mxu0 0.0
    %3877 = vmatprep.subr.mxu0 0.0
    %3878 = vmatpush1.msra.mxu0 0.0
    %3879 = vmatprep.subr.mxu0 0.0
    %3880 = vmatpush1.msra.mxu0 0.0
    %3881 = vmatprep.subr.mxu0 0.0
    %3882 = vmatpush1.msra.mxu0 0.0
    %3883 = vmatprep.subr.mxu0 0.0
    %3884 = vmatpush1.msra.mxu0 0.0
    %3885 = vmatprep.subr.mxu0 0.0
    %3886 = vmatpush1.msra.mxu0 0.0
    %3887 = vmatprep.subr.mxu0 0.0
    %3888 = vmatpush1.msra.mxu0 0.0
    %3889 = vmatprep.subr.mxu0 0.0
    %3890 = vmatpush1.msra.mxu0 0.0
    %3891 = vmatprep.subr.mxu0 0.0
    %3892 = vmatpush1.msra.mxu0 0.0
    %3893 = vmatprep.subr.mxu0 0.0
    %3894 = vmatpush1.msra.mxu0 0.0
    %3895 = vmatprep.subr.mxu0 0.0
    %3896 = vmatpush1.msra.mxu0 0.0
    %3897 = vmatprep.subr.mxu0 0.0
    %3898 = vmatpush1.msra.mxu0 0.0
    %3899 = vmatprep.subr.mxu0 0.0
    %3900 = vmatpush1.msra.mxu0 0.0
    %3901 = vmatprep.mubr.f32.mxu0 0.0
    %3902 = vmatmul.mubr.f32.gmra.mrb[0].mxu0 %v3461
    %v3903 = vpop.f32.mrb[0].mxu0
    %v3904 = vadd.f32 %v1636, %v3903
    %v3905 = vpop.f32.mrb[0].mxu0
    %v3906 = vadd.f32 %v1640, %v3905
    %3907 = vdwg.mxu0
    %3908 = vmatprep.subr.mxu0 0.0
    %3909 = vmatpush1.msra.mxu0 %v1520
    %3910 = vmatprep.subr.mxu0 0.0
    %3911 = vmatpush1.msra.mxu0 %v1523
    %3912 = vmatprep.subr.mxu0 0.0
    %3913 = vmatpush1.msra.mxu0 %v1526
    %3914 = vmatprep.subr.mxu0 0.0
    %3915 = vmatpush1.msra.mxu0 %v1529
    %3916 = vmatprep.subr.mxu0 0.0
    %3917 = vmatpush1.msra.mxu0 %v1532
    %3918 = vmatprep.subr.mxu0 0.0
    %3919 = vmatpush1.msra.mxu0 %v1535
    %3920 = vmatprep.subr.mxu0 0.0
    %3921 = vmatpush1.msra.mxu0 %v1538
    %3922 = vmatprep.subr.mxu0 0.0
    %3923 = vmatpush1.msra.mxu0 %v1541
    %3924 = vmatprep.subr.mxu0 0.0
    %3925 = vmatpush1.msra.mxu0 %v1544
    %3926 = vmatprep.subr.mxu0 0.0
    %3927 = vmatpush1.msra.mxu0 %v1547
    %3928 = vmatprep.subr.mxu0 0.0
    %3929 = vmatpush1.msra.mxu0 %v1550
    %3930 = vmatprep.subr.mxu0 0.0
    %3931 = vmatpush1.msra.mxu0 %v1553
    %3932 = vmatprep.subr.mxu0 0.0
    %3933 = vmatpush1.msra.mxu0 %v1556
    %3934 = vmatprep.subr.mxu0 0.0
    %3935 = vmatpush1.msra.mxu0 %v1559
    %3936 = vmatprep.subr.mxu0 0.0
    %3937 = vmatpush1.msra.mxu0 %v1562
    %3938 = vmatprep.subr.mxu0 0.0
    %3939 = vmatpush1.msra.mxu0 %v1565
    %3940 = vmatprep.subr.mxu0 0.0
    %3941 = vmatpush1.msra.mxu0 0.0
    %3942 = vmatprep.subr.mxu0 0.0
    %3943 = vmatpush1.msra.mxu0 0.0
    %3944 = vmatprep.subr.mxu0 0.0
    %3945 = vmatpush1.msra.mxu0 0.0
    %3946 = vmatprep.subr.mxu0 0.0
    %3947 = vmatpush1.msra.mxu0 0.0
    %3948 = vmatprep.subr.mxu0 0.0
    %3949 = vmatpush1.msra.mxu0 0.0
    %3950 = vmatprep.subr.mxu0 0.0
    %3951 = vmatpush1.msra.mxu0 0.0
    %3952 = vmatprep.subr.mxu0 0.0
    %3953 = vmatpush1.msra.mxu0 0.0
    %3954 = vmatprep.subr.mxu0 0.0
    %3955 = vmatpush1.msra.mxu0 0.0
    %3956 = vmatprep.subr.mxu0 0.0
    %3957 = vmatpush1.msra.mxu0 0.0
    %3958 = vmatprep.subr.mxu0 0.0
    %3959 = vmatpush1.msra.mxu0 0.0
    %3960 = vmatprep.subr.mxu0 0.0
    %3961 = vmatpush1.msra.mxu0 0.0
    %3962 = vmatprep.subr.mxu0 0.0
    %3963 = vmatpush1.msra.mxu0 0.0
    %3964 = vmatprep.subr.mxu0 0.0
    %3965 = vmatpush1.msra.mxu0 0.0
    %3966 = vmatprep.subr.mxu0 0.0
    %3967 = vmatpush1.msra.mxu0 0.0
    %3968 = vmatprep.subr.mxu0 0.0
    %3969 = vmatpush1.msra.mxu0 0.0
    %3970 = vmatprep.subr.mxu0 0.0
    %3971 = vmatpush1.msra.mxu0 0.0
    %3972 = vmatprep.mubr.f32.mxu0 0.0
    %3973 = vmatmul.mubr.f32.gmra.mrb[0].mxu0 %v3461
    %v3974 = vpop.f32.mrb[0].mxu0
    %v3975 = vadd.f32 %v1644, %v3974
    %v3976 = vpop.f32.mrb[0].mxu0
    %3977 = vdwg.mxu0
    %v3978 = vadd.f32 %v1467, %v3904
    %v3979 = vxor.u32 %v3978, 2147483648
    %v3980 = vmul.f32 %v3979, 1.442695
    %v3981 = vpow.pop %v3980
    %v3982 = vadd.f32 %v3981, 1.0
    %v3983 = vrcp.pop %v3982
    %v3984 = vmul.f32 1.0, %v3983
    %v3985 = vadd.f32 %v1468, %v3906
    %v3986 = vxor.u32 %v3985, 2147483648
    %v3987 = vmul.f32 %v3986, 1.442695
    %v3988 = vpow.pop %v3987
    %v3989 = vadd.f32 %v3988, 1.0
    %v3990 = vrcp.pop %v3989
    %v3991 = vmul.f32 1.0, %v3990
    %v3992 = vmul.f32 %v3984, %v3975
    %v3993 = vadd.f32 %v1469, %v3992
    %v3994 = vtanh.pop %v3993
    %v3995 = vsub.f32 1.0, %v3991
    %v3996 = vmul.f32 %v3995, %v3994
    %v3997 = vmul.f32 %v3991, %v3461
    %v3998 = vadd.f32 %v3996, %v3997
    %3999 = vmatprep.subr.mxu0 %v1471
    %4000 = vmatpush1.msra.mxu0 %v1470
    %4001 = vmatprep.subr.mxu0 %v1474
    %4002 = vmatpush1.msra.mxu0 %v1473
    %4003 = vmatprep.subr.mxu0 %v1477
    %4004 = vmatpush1.msra.mxu0 %v1476
    %4005 = vmatprep.subr.mxu0 %v1480
    %4006 = vmatpush1.msra.mxu0 %v1479
    %4007 = vmatprep.subr.mxu0 %v1483
    %4008 = vmatpush1.msra.mxu0 %v1482
    %4009 = vmatprep.subr.mxu0 %v1486
    %4010 = vmatpush1.msra.mxu0 %v1485
    %4011 = vmatprep.subr.mxu0 %v1489
    %4012 = vmatpush1.msra.mxu0 %v1488
    %4013 = vmatprep.subr.mxu0 %v1492
    %4014 = vmatpush1.msra.mxu0 %v1491
    %4015 = vmatprep.subr.mxu0 %v1495
    %4016 = vmatpush1.msra.mxu0 %v1494
    %4017 = vmatprep.subr.mxu0 %v1498
    %4018 = vmatpush1.msra.mxu0 %v1497
    %4019 = vmatprep.subr.mxu0 %v1501
    %4020 = vmatpush1.msra.mxu0 %v1500
    %4021 = vmatprep.subr.mxu0 %v1504
    %4022 = vmatpush1.msra.mxu0 %v1503
    %4023 = vmatprep.subr.mxu0 %v1507
    %4024 = vmatpush1.msra.mxu0 %v1506
    %4025 = vmatprep.subr.mxu0 %v1510
    %4026 = vmatpush1.msra.mxu0 %v1509
    %4027 = vmatprep.subr.mxu0 %v1513
    %4028 = vmatpush1.msra.mxu0 %v1512
    %4029 = vmatprep.subr.mxu0 %v1516
    %4030 = vmatpush1.msra.mxu0 %v1515
    %4031 = vmatprep.subr.mxu0 0.0
    %4032 = vmatpush1.msra.mxu0 0.0
    %4033 = vmatprep.subr.mxu0 0.0
    %4034 = vmatpush1.msra.mxu0 0.0
    %4035 = vmatprep.subr.mxu0 0.0
    %4036 = vmatpush1.msra.mxu0 0.0
    %4037 = vmatprep.subr.mxu0 0.0
    %4038 = vmatpush1.msra.mxu0 0.0
    %4039 = vmatprep.subr.mxu0 0.0
    %4040 = vmatpush1.msra.mxu0 0.0
    %4041 = vmatprep.subr.mxu0 0.0
    %4042 = vmatpush1.msra.mxu0 0.0
    %4043 = vmatprep.subr.mxu0 0.0
    %4044 = vmatpush1.msra.mxu0 0.0
    %4045 = vmatprep.subr.mxu0 0.0
    %4046 = vmatpush1.msra.mxu0 0.0
    %4047 = vmatprep.subr.mxu0 0.0
    %4048 = vmatpush1.msra.mxu0 0.0
    %4049 = vmatprep.subr.mxu0 0.0
    %4050 = vmatpush1.msra.mxu0 0.0
    %4051 = vmatprep.subr.mxu0 0.0
    %4052 = vmatpush1.msra.mxu0 0.0
    %4053 = vmatprep.subr.mxu0 0.0
    %4054 = vmatpush1.msra.mxu0 0.0
    %4055 = vmatprep.subr.mxu0 0.0
    %4056 = vmatpush1.msra.mxu0 0.0
    %4057 = vmatprep.subr.mxu0 0.0
    %4058 = vmatpush1.msra.mxu0 0.0
    %4059 = vmatprep.subr.mxu0 0.0
    %4060 = vmatpush1.msra.mxu0 0.0
    %4061 = vmatprep.subr.mxu0 0.0
    %4062 = vmatpush1.msra.mxu0 0.0
    %4063 = vmatprep.mubr.f32.mxu0 0.0
    %4064 = vmatmul.mubr.f32.gmra.mrb[0].mxu0 %v3998
    %v4065 = vpop.f32.mrb[0].mxu0
    %v4066 = vadd.f32 %v1619, %v4065
    %v4067 = vpop.f32.mrb[0].mxu0
    %v4068 = vadd.f32 %v1623, %v4067
    %4069 = vdwg.mxu0
    %4070 = vmatprep.subr.mxu0 0.0
    %4071 = vmatpush1.msra.mxu0 %v1472
    %4072 = vmatprep.subr.mxu0 0.0
    %4073 = vmatpush1.msra.mxu0 %v1475
    %4074 = vmatprep.subr.mxu0 0.0
    %4075 = vmatpush1.msra.mxu0 %v1478
    %4076 = vmatprep.subr.mxu0 0.0
    %4077 = vmatpush1.msra.mxu0 %v1481
    %4078 = vmatprep.subr.mxu0 0.0
    %4079 = vmatpush1.msra.mxu0 %v1484
    %4080 = vmatprep.subr.mxu0 0.0
    %4081 = vmatpush1.msra.mxu0 %v1487
    %4082 = vmatprep.subr.mxu0 0.0
    %4083 = vmatpush1.msra.mxu0 %v1490
    %4084 = vmatprep.subr.mxu0 0.0
    %4085 = vmatpush1.msra.mxu0 %v1493
    %4086 = vmatprep.subr.mxu0 0.0
    %4087 = vmatpush1.msra.mxu0 %v1496
    %4088 = vmatprep.subr.mxu0 0.0
    %4089 = vmatpush1.msra.mxu0 %v1499
    %4090 = vmatprep.subr.mxu0 0.0
    %4091 = vmatpush1.msra.mxu0 %v1502
    %4092 = vmatprep.subr.mxu0 0.0
    %4093 = vmatpush1.msra.mxu0 %v1505
    %4094 = vmatprep.subr.mxu0 0.0
    %4095 = vmatpush1.msra.mxu0 %v1508
    %4096 = vmatprep.subr.mxu0 0.0
    %4097 = vmatpush1.msra.mxu0 %v1511
    %4098 = vmatprep.subr.mxu0 0.0
    %4099 = vmatpush1.msra.mxu0 %v1514
    %4100 = vmatprep.subr.mxu0 0.0
    %4101 = vmatpush1.msra.mxu0 %v1517
    %4102 = vmatprep.subr.mxu0 0.0
    %4103 = vmatpush1.msra.mxu0 0.0
    %4104 = vmatprep.subr.mxu0 0.0
    %4105 = vmatpush1.msra.mxu0 0.0
    %4106 = vmatprep.subr.mxu0 0.0
    %4107 = vmatpush1.msra.mxu0 0.0
    %4108 = vmatprep.subr.mxu0 0.0
    %4109 = vmatpush1.msra.mxu0 0.0
    %4110 = vmatprep.subr.mxu0 0.0
    %4111 = vmatpush1.msra.mxu0 0.0
    %4112 = vmatprep.subr.mxu0 0.0
    %4113 = vmatpush1.msra.mxu0 0.0
    %4114 = vmatprep.subr.mxu0 0.0
    %4115 = vmatpush1.msra.mxu0 0.0
    %4116 = vmatprep.subr.mxu0 0.0
    %4117 = vmatpush1.msra.mxu0 0.0
    %4118 = vmatprep.subr.mxu0 0.0
    %4119 = vmatpush1.msra.mxu0 0.0
    %4120 = vmatprep.subr.mxu0 0.0
    %4121 = vmatpush1.msra.mxu0 0.0
    %4122 = vmatprep.subr.mxu0 0.0
    %4123 = vmatpush1.msra.mxu0 0.0
    %4124 = vmatprep.subr.mxu0 0.0
    %4125 = vmatpush1.msra.mxu0 0.0
    %4126 = vmatprep.subr.mxu0 0.0
    %4127 = vmatpush1.msra.mxu0 0.0
    %4128 = vmatprep.subr.mxu0 0.0
    %4129 = vmatpush1.msra.mxu0 0.0
    %4130 = vmatprep.subr.mxu0 0.0
    %4131 = vmatpush1.msra.mxu0 0.0
    %4132 = vmatprep.subr.mxu0 0.0
    %4133 = vmatpush1.msra.mxu0 0.0
    %4134 = vmatprep.mubr.f32.mxu0 0.0
    %4135 = vmatmul.mubr.f32.gmra.mrb[0].mxu0 %v3998
    %v4136 = vpop.f32.mrb[0].mxu0
    %v4137 = vadd.f32 %v1627, %v4136
    %v4138 = vpop.f32.mrb[0].mxu0
    %4139 = vdwg.mxu0
    %4140 = vmatprep.subr.mxu0 %v1567
    %4141 = vmatpush1.msra.mxu0 %v1566
    %4142 = vmatprep.subr.mxu0 %v1570
    %4143 = vmatpush1.msra.mxu0 %v1569
    %4144 = vmatprep.subr.mxu0 %v1573
    %4145 = vmatpush1.msra.mxu0 %v1572
    %4146 = vmatprep.subr.mxu0 %v1576
    %4147 = vmatpush1.msra.mxu0 %v1575
    %4148 = vmatprep.subr.mxu0 %v1579
    %4149 = vmatpush1.msra.mxu0 %v1578
    %4150 = vmatprep.subr.mxu0 %v1582
    %4151 = vmatpush1.msra.mxu0 %v1581
    %4152 = vmatprep.subr.mxu0 %v1585
    %4153 = vmatpush1.msra.mxu0 %v1584
    %4154 = vmatprep.subr.mxu0 %v1588
    %4155 = vmatpush1.msra.mxu0 %v1587
    %4156 = vmatprep.subr.mxu0 %v1591
    %4157 = vmatpush1.msra.mxu0 %v1590
    %4158 = vmatprep.subr.mxu0 %v1594
    %4159 = vmatpush1.msra.mxu0 %v1593
    %4160 = vmatprep.subr.mxu0 %v1597
    %4161 = vmatpush1.msra.mxu0 %v1596
    %4162 = vmatprep.subr.mxu0 %v1600
    %4163 = vmatpush1.msra.mxu0 %v1599
    %4164 = vmatprep.subr.mxu0 %v1603
    %4165 = vmatpush1.msra.mxu0 %v1602
    %4166 = vmatprep.subr.mxu0 %v1606
    %4167 = vmatpush1.msra.mxu0 %v1605
    %4168 = vmatprep.subr.mxu0 %v1609
    %4169 = vmatpush1.msra.mxu0 %v1608
    %4170 = vmatprep.subr.mxu0 %v1612
    %4171 = vmatpush1.msra.mxu0 %v1611
    %4172 = vmatprep.subr.mxu0 0.0
    %4173 = vmatpush1.msra.mxu0 0.0
    %4174 = vmatprep.subr.mxu0 0.0
    %4175 = vmatpush1.msra.mxu0 0.0
    %4176 = vmatprep.subr.mxu0 0.0
    %4177 = vmatpush1.msra.mxu0 0.0
    %4178 = vmatprep.subr.mxu0 0.0
    %4179 = vmatpush1.msra.mxu0 0.0
    %4180 = vmatprep.subr.mxu0 0.0
    %4181 = vmatpush1.msra.mxu0 0.0
    %4182 = vmatprep.subr.mxu0 0.0
    %4183 = vmatpush1.msra.mxu0 0.0
    %4184 = vmatprep.subr.mxu0 0.0
    %4185 = vmatpush1.msra.mxu0 0.0
    %4186 = vmatprep.subr.mxu0 0.0
    %4187 = vmatpush1.msra.mxu0 0.0
    %4188 = vmatprep.subr.mxu0 0.0
    %4189 = vmatpush1.msra.mxu0 0.0
    %4190 = vmatprep.subr.mxu0 0.0
    %4191 = vmatpush1.msra.mxu0 0.0
    %4192 = vmatprep.subr.mxu0 0.0
    %4193 = vmatpush1.msra.mxu0 0.0
    %4194 = vmatprep.subr.mxu0 0.0
    %4195 = vmatpush1.msra.mxu0 0.0
    %4196 = vmatprep.subr.mxu0 0.0
    %4197 = vmatpush1.msra.mxu0 0.0
    %4198 = vmatprep.subr.mxu0 0.0
    %4199 = vmatpush1.msra.mxu0 0.0
    %4200 = vmatprep.subr.mxu0 0.0
    %4201 = vmatpush1.msra.mxu0 0.0
    %4202 = vmatprep.subr.mxu0 0.0
    %4203 = vmatpush1.msra.mxu0 0.0
    %4204 = vmatprep.mubr.f32.mxu0 0.0
    %4205 = vmatmul.mubr.f32.gmra.mrb[0].mxu0 %v3764
    %v4206 = vpop.f32.mrb[0].mxu0
    %v4207 = vadd.f32 %v1653, %v4206
    %v4208 = vpop.f32.mrb[0].mxu0
    %v4209 = vadd.f32 %v1657, %v4208
    %4210 = vdwg.mxu0
    %4211 = vmatprep.subr.mxu0 0.0
    %4212 = vmatpush1.msra.mxu0 %v1568
    %4213 = vmatprep.subr.mxu0 0.0
    %4214 = vmatpush1.msra.mxu0 %v1571
    %4215 = vmatprep.subr.mxu0 0.0
    %4216 = vmatpush1.msra.mxu0 %v1574
    %4217 = vmatprep.subr.mxu0 0.0
    %4218 = vmatpush1.msra.mxu0 %v1577
    %4219 = vmatprep.subr.mxu0 0.0
    %4220 = vmatpush1.msra.mxu0 %v1580
    %4221 = vmatprep.subr.mxu0 0.0
    %4222 = vmatpush1.msra.mxu0 %v1583
    %4223 = vmatprep.subr.mxu0 0.0
    %4224 = vmatpush1.msra.mxu0 %v1586
    %4225 = vmatprep.subr.mxu0 0.0
    %4226 = vmatpush1.msra.mxu0 %v1589
    %4227 = vmatprep.subr.mxu0 0.0
    %4228 = vmatpush1.msra.mxu0 %v1592
    %4229 = vmatprep.subr.mxu0 0.0
    %4230 = vmatpush1.msra.mxu0 %v1595
    %4231 = vmatprep.subr.mxu0 0.0
    %4232 = vmatpush1.msra.mxu0 %v1598
    %4233 = vmatprep.subr.mxu0 0.0
    %4234 = vmatpush1.msra.mxu0 %v1601
    %4235 = vmatprep.subr.mxu0 0.0
    %4236 = vmatpush1.msra.mxu0 %v1604
    %4237 = vmatprep.subr.mxu0 0.0
    %4238 = vmatpush1.msra.mxu0 %v1607
    %4239 = vmatprep.subr.mxu0 0.0
    %4240 = vmatpush1.msra.mxu0 %v1610
    %4241 = vmatprep.subr.mxu0 0.0
    %4242 = vmatpush1.msra.mxu0 %v1613
    %4243 = vmatprep.subr.mxu0 0.0
    %4244 = vmatpush1.msra.mxu0 0.0
    %4245 = vmatprep.subr.mxu0 0.0
    %4246 = vmatpush1.msra.mxu0 0.0
    %4247 = vmatprep.subr.mxu0 0.0
    %4248 = vmatpush1.msra.mxu0 0.0
    %4249 = vmatprep.subr.mxu0 0.0
    %4250 = vmatpush1.msra.mxu0 0.0
    %4251 = vmatprep.subr.mxu0 0.0
    %4252 = vmatpush1.msra.mxu0 0.0
    %4253 = vmatprep.subr.mxu0 0.0
    %4254 = vmatpush1.msra.mxu0 0.0
    %4255 = vmatprep.subr.mxu0 0.0
    %4256 = vmatpush1.msra.mxu0 0.0
    %4257 = vmatprep.subr.mxu0 0.0
    %4258 = vmatpush1.msra.mxu0 0.0
    %4259 = vmatprep.subr.mxu0 0.0
    %4260 = vmatpush1.msra.mxu0 0.0
    %4261 = vmatprep.subr.mxu0 0.0
    %4262 = vmatpush1.msra.mxu0 0.0
    %4263 = vmatprep.subr.mxu0 0.0
    %4264 = vmatpush1.msra.mxu0 0.0
    %4265 = vmatprep.subr.mxu0 0.0
    %4266 = vmatpush1.msra.mxu0 0.0
    %4267 = vmatprep.subr.mxu0 0.0
    %4268 = vmatpush1.msra.mxu0 0.0
    %4269 = vmatprep.subr.mxu0 0.0
    %4270 = vmatpush1.msra.mxu0 0.0
    %4271 = vmatprep.subr.mxu0 0.0
    %4272 = vmatpush1.msra.mxu0 0.0
    %4273 = vmatprep.subr.mxu0 0.0
    %4274 = vmatpush1.msra.mxu0 0.0
    %4275 = vmatprep.mubr.f32.mxu0 0.0
    %4276 = vmatmul.mubr.f32.gmra.mrb[0].mxu0 %v3764
    %v4277 = vpop.f32.mrb[0].mxu0
    %v4278 = vadd.f32 %v1661, %v4277
    %v4279 = vpop.f32.mrb[0].mxu0
    %4280 = vdwg.mxu0
    %v4281 = vadd.f32 %v4066, %v4207
    %v4282 = vxor.u32 %v4281, 2147483648
    %v4283 = vmul.f32 %v4282, 1.442695
    %v4284 = vpow.pop %v4283
    %v4285 = vadd.f32 %v4284, 1.0
    %v4286 = vrcp.pop %v4285
    %v4287 = vmul.f32 1.0, %v4286
    %v4288 = vadd.f32 %v4068, %v4209
    %v4289 = vxor.u32 %v4288, 2147483648
    %v4290 = vmul.f32 %v4289, 1.442695
    %v4291 = vpow.pop %v4290
    %v4292 = vadd.f32 %v4291, 1.0
    %v4293 = vrcp.pop %v4292
    %v4294 = vmul.f32 1.0, %v4293
    %v4295 = vmul.f32 %v4287, %v4278
    %v4296 = vadd.f32 %v4137, %v4295
    %v4297 = vtanh.pop %v4296
    %v4298 = vsub.f32 1.0, %v4294
    %v4299 = vmul.f32 %v4298, %v4297
    %v4300 = vmul.f32 %v4294, %v3764
    %v4301 = vadd.f32 %v4299, %v4300
    %4302 = vmatprep.subr.mxu0 0.0
    %4303 = vmatpush1.msra.mxu0 %v1665
    %4304 = vmatprep.subr.mxu0 0.0
    %4305 = vmatpush1.msra.mxu0 %v1666
    %4306 = vmatprep.subr.mxu0 0.0
    %4307 = vmatpush1.msra.mxu0 %v1667
    %4308 = vmatprep.subr.mxu0 0.0
    %4309 = vmatpush1.msra.mxu0 %v1668
    %4310 = vmatprep.subr.mxu0 0.0
    %4311 = vmatpush1.msra.mxu0 %v1669
    %4312 = vmatprep.subr.mxu0 0.0
    %4313 = vmatpush1.msra.mxu0 %v1670
    %4314 = vmatprep.subr.mxu0 0.0
    %4315 = vmatpush1.msra.mxu0 %v1671
    %4316 = vmatprep.subr.mxu0 0.0
    %4317 = vmatpush1.msra.mxu0 %v1672
    %4318 = vmatprep.subr.mxu0 0.0
    %4319 = vmatpush1.msra.mxu0 %v1673
    %4320 = vmatprep.subr.mxu0 0.0
    %4321 = vmatpush1.msra.mxu0 %v1674
    %4322 = vmatprep.subr.mxu0 0.0
    %4323 = vmatpush1.msra.mxu0 %v1675
    %4324 = vmatprep.subr.mxu0 0.0
    %4325 = vmatpush1.msra.mxu0 %v1676
    %4326 = vmatprep.subr.mxu0 0.0
    %4327 = vmatpush1.msra.mxu0 %v1677
    %4328 = vmatprep.subr.mxu0 0.0
    %4329 = vmatpush1.msra.mxu0 %v1678
    %4330 = vmatprep.subr.mxu0 0.0
    %4331 = vmatpush1.msra.mxu0 %v1679
    %4332 = vmatprep.subr.mxu0 0.0
    %4333 = vmatpush1.msra.mxu0 %v1680
    %4334 = vmatprep.subr.mxu0 0.0
    %4335 = vmatpush1.msra.mxu0 0.0
    %4336 = vmatprep.subr.mxu0 0.0
    %4337 = vmatpush1.msra.mxu0 0.0
    %4338 = vmatprep.subr.mxu0 0.0
    %4339 = vmatpush1.msra.mxu0 0.0
    %4340 = vmatprep.subr.mxu0 0.0
    %4341 = vmatpush1.msra.mxu0 0.0
    %4342 = vmatprep.subr.mxu0 0.0
    %4343 = vmatpush1.msra.mxu0 0.0
    %4344 = vmatprep.subr.mxu0 0.0
    %4345 = vmatpush1.msra.mxu0 0.0
    %4346 = vmatprep.subr.mxu0 0.0
    %4347 = vmatpush1.msra.mxu0 0.0
    %4348 = vmatprep.subr.mxu0 0.0
    %4349 = vmatpush1.msra.mxu0 0.0
    %4350 = vmatprep.subr.mxu0 0.0
    %4351 = vmatpush1.msra.mxu0 0.0
    %4352 = vmatprep.subr.mxu0 0.0
    %4353 = vmatpush1.msra.mxu0 0.0
    %4354 = vmatprep.subr.mxu0 0.0
    %4355 = vmatpush1.msra.mxu0 0.0
    %4356 = vmatprep.subr.mxu0 0.0
    %4357 = vmatpush1.msra.mxu0 0.0
    %4358 = vmatprep.subr.mxu0 0.0
    %4359 = vmatpush1.msra.mxu0 0.0
    %4360 = vmatprep.subr.mxu0 0.0
    %4361 = vmatpush1.msra.mxu0 0.0
    %4362 = vmatprep.subr.mxu0 0.0
    %4363 = vmatpush1.msra.mxu0 0.0
    %4364 = vmatprep.subr.mxu0 0.0
    %4365 = vmatpush1.msra.mxu0 0.0
    %4366 = vmatprep.mubr.f32.mxu0 0.0
    %4367 = vmatmul.mubr.f32.gmra.mrb[0].mxu0 %v4301
    %v4368 = vpop.f32.mrb[0].mxu0
    %v4369 = vadd.f32 %v1686, %v4368
    %v4370 = vpop.f32.mrb[0].mxu0
    %4371 = vdwg.mxu0
    %s4372 = scalar_lea.vmem [#allocation14], 40
    %4373 = vst [vmem:[%s4372] sm:$0xff] %v4369
    %4374 = vmatprep.subr.mxu0 %v1519
    %4375 = vmatpush1.msra.mxu0 %v1518
    %4376 = vmatprep.subr.mxu0 %v1522
    %4377 = vmatpush1.msra.mxu0 %v1521
    %4378 = vmatprep.subr.mxu0 %v1525
    %4379 = vmatpush1.msra.mxu0 %v1524
    %4380 = vmatprep.subr.mxu0 %v1528
    %4381 = vmatpush1.msra.mxu0 %v1527
    %4382 = vmatprep.subr.mxu0 %v1531
    %4383 = vmatpush1.msra.mxu0 %v1530
    %4384 = vmatprep.subr.mxu0 %v1534
    %4385 = vmatpush1.msra.mxu0 %v1533
    %4386 = vmatprep.subr.mxu0 %v1537
    %4387 = vmatpush1.msra.mxu0 %v1536
    %4388 = vmatprep.subr.mxu0 %v1540
    %4389 = vmatpush1.msra.mxu0 %v1539
    %4390 = vmatprep.subr.mxu0 %v1543
    %4391 = vmatpush1.msra.mxu0 %v1542
    %4392 = vmatprep.subr.mxu0 %v1546
    %4393 = vmatpush1.msra.mxu0 %v1545
    %4394 = vmatprep.subr.mxu0 %v1549
    %4395 = vmatpush1.msra.mxu0 %v1548
    %4396 = vmatprep.subr.mxu0 %v1552
    %4397 = vmatpush1.msra.mxu0 %v1551
    %4398 = vmatprep.subr.mxu0 %v1555
    %4399 = vmatpush1.msra.mxu0 %v1554
    %4400 = vmatprep.subr.mxu0 %v1558
    %4401 = vmatpush1.msra.mxu0 %v1557
    %4402 = vmatprep.subr.mxu0 %v1561
    %4403 = vmatpush1.msra.mxu0 %v1560
    %4404 = vmatprep.subr.mxu0 %v1564
    %4405 = vmatpush1.msra.mxu0 %v1563
    %4406 = vmatprep.subr.mxu0 0.0
    %4407 = vmatpush1.msra.mxu0 0.0
    %4408 = vmatprep.subr.mxu0 0.0
    %4409 = vmatpush1.msra.mxu0 0.0
    %4410 = vmatprep.subr.mxu0 0.0
    %4411 = vmatpush1.msra.mxu0 0.0
    %4412 = vmatprep.subr.mxu0 0.0
    %4413 = vmatpush1.msra.mxu0 0.0
    %4414 = vmatprep.subr.mxu0 0.0
    %4415 = vmatpush1.msra.mxu0 0.0
    %4416 = vmatprep.subr.mxu0 0.0
    %4417 = vmatpush1.msra.mxu0 0.0
    %4418 = vmatprep.subr.mxu0 0.0
    %4419 = vmatpush1.msra.mxu0 0.0
    %4420 = vmatprep.subr.mxu0 0.0
    %4421 = vmatpush1.msra.mxu0 0.0
    %4422 = vmatprep.subr.mxu0 0.0
    %4423 = vmatpush1.msra.mxu0 0.0
    %4424 = vmatprep.subr.mxu0 0.0
    %4425 = vmatpush1.msra.mxu0 0.0
    %4426 = vmatprep.subr.mxu0 0.0
    %4427 = vmatpush1.msra.mxu0 0.0
    %4428 = vmatprep.subr.mxu0 0.0
    %4429 = vmatpush1.msra.mxu0 0.0
    %4430 = vmatprep.subr.mxu0 0.0
    %4431 = vmatpush1.msra.mxu0 0.0
    %4432 = vmatprep.subr.mxu0 0.0
    %4433 = vmatpush1.msra.mxu0 0.0
    %4434 = vmatprep.subr.mxu0 0.0
    %4435 = vmatpush1.msra.mxu0 0.0
    %4436 = vmatprep.subr.mxu0 0.0
    %4437 = vmatpush1.msra.mxu0 0.0
    %4438 = vmatprep.mubr.f32.mxu0 0.0
    %4439 = vmatmul.mubr.f32.gmra.mrb[0].mxu0 %v3998
    %v4440 = vpop.f32.mrb[0].mxu0
    %v4441 = vadd.f32 %v1636, %v4440
    %v4442 = vpop.f32.mrb[0].mxu0
    %v4443 = vadd.f32 %v1640, %v4442
    %4444 = vdwg.mxu0
    %4445 = vmatprep.subr.mxu0 0.0
    %4446 = vmatpush1.msra.mxu0 %v1520
    %4447 = vmatprep.subr.mxu0 0.0
    %4448 = vmatpush1.msra.mxu0 %v1523
    %4449 = vmatprep.subr.mxu0 0.0
    %4450 = vmatpush1.msra.mxu0 %v1526
    %4451 = vmatprep.subr.mxu0 0.0
    %4452 = vmatpush1.msra.mxu0 %v1529
    %4453 = vmatprep.subr.mxu0 0.0
    %4454 = vmatpush1.msra.mxu0 %v1532
    %4455 = vmatprep.subr.mxu0 0.0
    %4456 = vmatpush1.msra.mxu0 %v1535
    %4457 = vmatprep.subr.mxu0 0.0
    %4458 = vmatpush1.msra.mxu0 %v1538
    %4459 = vmatprep.subr.mxu0 0.0
    %4460 = vmatpush1.msra.mxu0 %v1541
    %4461 = vmatprep.subr.mxu0 0.0
    %4462 = vmatpush1.msra.mxu0 %v1544
    %4463 = vmatprep.subr.mxu0 0.0
    %4464 = vmatpush1.msra.mxu0 %v1547
    %4465 = vmatprep.subr.mxu0 0.0
    %4466 = vmatpush1.msra.mxu0 %v1550
    %4467 = vmatprep.subr.mxu0 0.0
    %4468 = vmatpush1.msra.mxu0 %v1553
    %4469 = vmatprep.subr.mxu0 0.0
    %4470 = vmatpush1.msra.mxu0 %v1556
    %4471 = vmatprep.subr.mxu0 0.0
    %4472 = vmatpush1.msra.mxu0 %v1559
    %4473 = vmatprep.subr.mxu0 0.0
    %4474 = vmatpush1.msra.mxu0 %v1562
    %4475 = vmatprep.subr.mxu0 0.0
    %4476 = vmatpush1.msra.mxu0 %v1565
    %4477 = vmatprep.subr.mxu0 0.0
    %4478 = vmatpush1.msra.mxu0 0.0
    %4479 = vmatprep.subr.mxu0 0.0
    %4480 = vmatpush1.msra.mxu0 0.0
    %4481 = vmatprep.subr.mxu0 0.0
    %4482 = vmatpush1.msra.mxu0 0.0
    %4483 = vmatprep.subr.mxu0 0.0
    %4484 = vmatpush1.msra.mxu0 0.0
    %4485 = vmatprep.subr.mxu0 0.0
    %4486 = vmatpush1.msra.mxu0 0.0
    %4487 = vmatprep.subr.mxu0 0.0
    %4488 = vmatpush1.msra.mxu0 0.0
    %4489 = vmatprep.subr.mxu0 0.0
    %4490 = vmatpush1.msra.mxu0 0.0
    %4491 = vmatprep.subr.mxu0 0.0
    %4492 = vmatpush1.msra.mxu0 0.0
    %4493 = vmatprep.subr.mxu0 0.0
    %4494 = vmatpush1.msra.mxu0 0.0
    %4495 = vmatprep.subr.mxu0 0.0
    %4496 = vmatpush1.msra.mxu0 0.0
    %4497 = vmatprep.subr.mxu0 0.0
    %4498 = vmatpush1.msra.mxu0 0.0
    %4499 = vmatprep.subr.mxu0 0.0
    %4500 = vmatpush1.msra.mxu0 0.0
    %4501 = vmatprep.subr.mxu0 0.0
    %4502 = vmatpush1.msra.mxu0 0.0
    %4503 = vmatprep.subr.mxu0 0.0
    %4504 = vmatpush1.msra.mxu0 0.0
    %4505 = vmatprep.subr.mxu0 0.0
    %4506 = vmatpush1.msra.mxu0 0.0
    %4507 = vmatprep.subr.mxu0 0.0
    %4508 = vmatpush1.msra.mxu0 0.0
    %4509 = vmatprep.mubr.f32.mxu0 0.0
    %4510 = vmatmul.mubr.f32.gmra.mrb[0].mxu0 %v3998
    %v4511 = vpop.f32.mrb[0].mxu0
    %v4512 = vadd.f32 %v1644, %v4511
    %v4513 = vpop.f32.mrb[0].mxu0
    %4514 = vdwg.mxu0
    %v4515 = vadd.f32 %v1467, %v4441
    %v4516 = vxor.u32 %v4515, 2147483648
    %v4517 = vmul.f32 %v4516, 1.442695
    %v4518 = vpow.pop %v4517
    %v4519 = vadd.f32 %v4518, 1.0
    %v4520 = vrcp.pop %v4519
    %v4521 = vmul.f32 1.0, %v4520
    %v4522 = vadd.f32 %v1468, %v4443
    %v4523 = vxor.u32 %v4522, 2147483648
    %v4524 = vmul.f32 %v4523, 1.442695
    %v4525 = vpow.pop %v4524
    %v4526 = vadd.f32 %v4525, 1.0
    %v4527 = vrcp.pop %v4526
    %v4528 = vmul.f32 1.0, %v4527
    %v4529 = vmul.f32 %v4521, %v4512
    %v4530 = vadd.f32 %v1469, %v4529
    %v4531 = vtanh.pop %v4530
    %v4532 = vsub.f32 1.0, %v4528
    %v4533 = vmul.f32 %v4532, %v4531
    %v4534 = vmul.f32 %v4528, %v3998
    %v4535 = vadd.f32 %v4533, %v4534
    %4536 = vmatprep.subr.mxu0 %v1471
    %4537 = vmatpush1.msra.mxu0 %v1470
    %4538 = vmatprep.subr.mxu0 %v1474
    %4539 = vmatpush1.msra.mxu0 %v1473
    %4540 = vmatprep.subr.mxu0 %v1477
    %4541 = vmatpush1.msra.mxu0 %v1476
    %4542 = vmatprep.subr.mxu0 %v1480
    %4543 = vmatpush1.msra.mxu0 %v1479
    %4544 = vmatprep.subr.mxu0 %v1483
    %4545 = vmatpush1.msra.mxu0 %v1482
    %4546 = vmatprep.subr.mxu0 %v1486
    %4547 = vmatpush1.msra.mxu0 %v1485
    %4548 = vmatprep.subr.mxu0 %v1489
    %4549 = vmatpush1.msra.mxu0 %v1488
    %4550 = vmatprep.subr.mxu0 %v1492
    %4551 = vmatpush1.msra.mxu0 %v1491
    %4552 = vmatprep.subr.mxu0 %v1495
    %4553 = vmatpush1.msra.mxu0 %v1494
    %4554 = vmatprep.subr.mxu0 %v1498
    %4555 = vmatpush1.msra.mxu0 %v1497
    %4556 = vmatprep.subr.mxu0 %v1501
    %4557 = vmatpush1.msra.mxu0 %v1500
    %4558 = vmatprep.subr.mxu0 %v1504
    %4559 = vmatpush1.msra.mxu0 %v1503
    %4560 = vmatprep.subr.mxu0 %v1507
    %4561 = vmatpush1.msra.mxu0 %v1506
    %4562 = vmatprep.subr.mxu0 %v1510
    %4563 = vmatpush1.msra.mxu0 %v1509
    %4564 = vmatprep.subr.mxu0 %v1513
    %4565 = vmatpush1.msra.mxu0 %v1512
    %4566 = vmatprep.subr.mxu0 %v1516
    %4567 = vmatpush1.msra.mxu0 %v1515
    %4568 = vmatprep.subr.mxu0 0.0
    %4569 = vmatpush1.msra.mxu0 0.0
    %4570 = vmatprep.subr.mxu0 0.0
    %4571 = vmatpush1.msra.mxu0 0.0
    %4572 = vmatprep.subr.mxu0 0.0
    %4573 = vmatpush1.msra.mxu0 0.0
    %4574 = vmatprep.subr.mxu0 0.0
    %4575 = vmatpush1.msra.mxu0 0.0
    %4576 = vmatprep.subr.mxu0 0.0
    %4577 = vmatpush1.msra.mxu0 0.0
    %4578 = vmatprep.subr.mxu0 0.0
    %4579 = vmatpush1.msra.mxu0 0.0
    %4580 = vmatprep.subr.mxu0 0.0
    %4581 = vmatpush1.msra.mxu0 0.0
    %4582 = vmatprep.subr.mxu0 0.0
    %4583 = vmatpush1.msra.mxu0 0.0
    %4584 = vmatprep.subr.mxu0 0.0
    %4585 = vmatpush1.msra.mxu0 0.0
    %4586 = vmatprep.subr.mxu0 0.0
    %4587 = vmatpush1.msra.mxu0 0.0
    %4588 = vmatprep.subr.mxu0 0.0
    %4589 = vmatpush1.msra.mxu0 0.0
    %4590 = vmatprep.subr.mxu0 0.0
    %4591 = vmatpush1.msra.mxu0 0.0
    %4592 = vmatprep.subr.mxu0 0.0
    %4593 = vmatpush1.msra.mxu0 0.0
    %4594 = vmatprep.subr.mxu0 0.0
    %4595 = vmatpush1.msra.mxu0 0.0
    %4596 = vmatprep.subr.mxu0 0.0
    %4597 = vmatpush1.msra.mxu0 0.0
    %4598 = vmatprep.subr.mxu0 0.0
    %4599 = vmatpush1.msra.mxu0 0.0
    %4600 = vmatprep.mubr.f32.mxu0 0.0
    %4601 = vmatmul.mubr.f32.gmra.mrb[0].mxu0 %v4535
    %v4602 = vpop.f32.mrb[0].mxu0
    %v4603 = vadd.f32 %v1619, %v4602
    %v4604 = vpop.f32.mrb[0].mxu0
    %v4605 = vadd.f32 %v1623, %v4604
    %4606 = vdwg.mxu0
    %4607 = vmatprep.subr.mxu0 0.0
    %4608 = vmatpush1.msra.mxu0 %v1472
    %4609 = vmatprep.subr.mxu0 0.0
    %4610 = vmatpush1.msra.mxu0 %v1475
    %4611 = vmatprep.subr.mxu0 0.0
    %4612 = vmatpush1.msra.mxu0 %v1478
    %4613 = vmatprep.subr.mxu0 0.0
    %4614 = vmatpush1.msra.mxu0 %v1481
    %4615 = vmatprep.subr.mxu0 0.0
    %4616 = vmatpush1.msra.mxu0 %v1484
    %4617 = vmatprep.subr.mxu0 0.0
    %4618 = vmatpush1.msra.mxu0 %v1487
    %4619 = vmatprep.subr.mxu0 0.0
    %4620 = vmatpush1.msra.mxu0 %v1490
    %4621 = vmatprep.subr.mxu0 0.0
    %4622 = vmatpush1.msra.mxu0 %v1493
    %4623 = vmatprep.subr.mxu0 0.0
    %4624 = vmatpush1.msra.mxu0 %v1496
    %4625 = vmatprep.subr.mxu0 0.0
    %4626 = vmatpush1.msra.mxu0 %v1499
    %4627 = vmatprep.subr.mxu0 0.0
    %4628 = vmatpush1.msra.mxu0 %v1502
    %4629 = vmatprep.subr.mxu0 0.0
    %4630 = vmatpush1.msra.mxu0 %v1505
    %4631 = vmatprep.subr.mxu0 0.0
    %4632 = vmatpush1.msra.mxu0 %v1508
    %4633 = vmatprep.subr.mxu0 0.0
    %4634 = vmatpush1.msra.mxu0 %v1511
    %4635 = vmatprep.subr.mxu0 0.0
    %4636 = vmatpush1.msra.mxu0 %v1514
    %4637 = vmatprep.subr.mxu0 0.0
    %4638 = vmatpush1.msra.mxu0 %v1517
    %4639 = vmatprep.subr.mxu0 0.0
    %4640 = vmatpush1.msra.mxu0 0.0
    %4641 = vmatprep.subr.mxu0 0.0
    %4642 = vmatpush1.msra.mxu0 0.0
    %4643 = vmatprep.subr.mxu0 0.0
    %4644 = vmatpush1.msra.mxu0 0.0
    %4645 = vmatprep.subr.mxu0 0.0
    %4646 = vmatpush1.msra.mxu0 0.0
    %4647 = vmatprep.subr.mxu0 0.0
    %4648 = vmatpush1.msra.mxu0 0.0
    %4649 = vmatprep.subr.mxu0 0.0
    %4650 = vmatpush1.msra.mxu0 0.0
    %4651 = vmatprep.subr.mxu0 0.0
    %4652 = vmatpush1.msra.mxu0 0.0
    %4653 = vmatprep.subr.mxu0 0.0
    %4654 = vmatpush1.msra.mxu0 0.0
    %4655 = vmatprep.subr.mxu0 0.0
    %4656 = vmatpush1.msra.mxu0 0.0
    %4657 = vmatprep.subr.mxu0 0.0
    %4658 = vmatpush1.msra.mxu0 0.0
    %4659 = vmatprep.subr.mxu0 0.0
    %4660 = vmatpush1.msra.mxu0 0.0
    %4661 = vmatprep.subr.mxu0 0.0
    %4662 = vmatpush1.msra.mxu0 0.0
    %4663 = vmatprep.subr.mxu0 0.0
    %4664 = vmatpush1.msra.mxu0 0.0
    %4665 = vmatprep.subr.mxu0 0.0
    %4666 = vmatpush1.msra.mxu0 0.0
    %4667 = vmatprep.subr.mxu0 0.0
    %4668 = vmatpush1.msra.mxu0 0.0
    %4669 = vmatprep.subr.mxu0 0.0
    %4670 = vmatpush1.msra.mxu0 0.0
    %4671 = vmatprep.mubr.f32.mxu0 0.0
    %4672 = vmatmul.mubr.f32.gmra.mrb[0].mxu0 %v4535
    %v4673 = vpop.f32.mrb[0].mxu0
    %v4674 = vadd.f32 %v1627, %v4673
    %v4675 = vpop.f32.mrb[0].mxu0
    %4676 = vdwg.mxu0
    %4677 = vmatprep.subr.mxu0 %v1567
    %4678 = vmatpush1.msra.mxu0 %v1566
    %4679 = vmatprep.subr.mxu0 %v1570
    %4680 = vmatpush1.msra.mxu0 %v1569
    %4681 = vmatprep.subr.mxu0 %v1573
    %4682 = vmatpush1.msra.mxu0 %v1572
    %4683 = vmatprep.subr.mxu0 %v1576
    %4684 = vmatpush1.msra.mxu0 %v1575
    %4685 = vmatprep.subr.mxu0 %v1579
    %4686 = vmatpush1.msra.mxu0 %v1578
    %4687 = vmatprep.subr.mxu0 %v1582
    %4688 = vmatpush1.msra.mxu0 %v1581
    %4689 = vmatprep.subr.mxu0 %v1585
    %4690 = vmatpush1.msra.mxu0 %v1584
    %4691 = vmatprep.subr.mxu0 %v1588
    %4692 = vmatpush1.msra.mxu0 %v1587
    %4693 = vmatprep.subr.mxu0 %v1591
    %4694 = vmatpush1.msra.mxu0 %v1590
    %4695 = vmatprep.subr.mxu0 %v1594
    %4696 = vmatpush1.msra.mxu0 %v1593
    %4697 = vmatprep.subr.mxu0 %v1597
    %4698 = vmatpush1.msra.mxu0 %v1596
    %4699 = vmatprep.subr.mxu0 %v1600
    %4700 = vmatpush1.msra.mxu0 %v1599
    %4701 = vmatprep.subr.mxu0 %v1603
    %4702 = vmatpush1.msra.mxu0 %v1602
    %4703 = vmatprep.subr.mxu0 %v1606
    %4704 = vmatpush1.msra.mxu0 %v1605
    %4705 = vmatprep.subr.mxu0 %v1609
    %4706 = vmatpush1.msra.mxu0 %v1608
    %4707 = vmatprep.subr.mxu0 %v1612
    %4708 = vmatpush1.msra.mxu0 %v1611
    %4709 = vmatprep.subr.mxu0 0.0
    %4710 = vmatpush1.msra.mxu0 0.0
    %4711 = vmatprep.subr.mxu0 0.0
    %4712 = vmatpush1.msra.mxu0 0.0
    %4713 = vmatprep.subr.mxu0 0.0
    %4714 = vmatpush1.msra.mxu0 0.0
    %4715 = vmatprep.subr.mxu0 0.0
    %4716 = vmatpush1.msra.mxu0 0.0
    %4717 = vmatprep.subr.mxu0 0.0
    %4718 = vmatpush1.msra.mxu0 0.0
    %4719 = vmatprep.subr.mxu0 0.0
    %4720 = vmatpush1.msra.mxu0 0.0
    %4721 = vmatprep.subr.mxu0 0.0
    %4722 = vmatpush1.msra.mxu0 0.0
    %4723 = vmatprep.subr.mxu0 0.0
    %4724 = vmatpush1.msra.mxu0 0.0
    %4725 = vmatprep.subr.mxu0 0.0
    %4726 = vmatpush1.msra.mxu0 0.0
    %4727 = vmatprep.subr.mxu0 0.0
    %4728 = vmatpush1.msra.mxu0 0.0
    %4729 = vmatprep.subr.mxu0 0.0
    %4730 = vmatpush1.msra.mxu0 0.0
    %4731 = vmatprep.subr.mxu0 0.0
    %4732 = vmatpush1.msra.mxu0 0.0
    %4733 = vmatprep.subr.mxu0 0.0
    %4734 = vmatpush1.msra.mxu0 0.0
    %4735 = vmatprep.subr.mxu0 0.0
    %4736 = vmatpush1.msra.mxu0 0.0
    %4737 = vmatprep.subr.mxu0 0.0
    %4738 = vmatpush1.msra.mxu0 0.0
    %4739 = vmatprep.subr.mxu0 0.0
    %4740 = vmatpush1.msra.mxu0 0.0
    %4741 = vmatprep.mubr.f32.mxu0 0.0
    %4742 = vmatmul.mubr.f32.gmra.mrb[0].mxu0 %v4301
    %v4743 = vpop.f32.mrb[0].mxu0
    %v4744 = vadd.f32 %v1653, %v4743
    %v4745 = vpop.f32.mrb[0].mxu0
    %v4746 = vadd.f32 %v1657, %v4745
    %4747 = vdwg.mxu0
    %4748 = vmatprep.subr.mxu0 0.0
    %4749 = vmatpush1.msra.mxu0 %v1568
    %4750 = vmatprep.subr.mxu0 0.0
    %4751 = vmatpush1.msra.mxu0 %v1571
    %4752 = vmatprep.subr.mxu0 0.0
    %4753 = vmatpush1.msra.mxu0 %v1574
    %4754 = vmatprep.subr.mxu0 0.0
    %4755 = vmatpush1.msra.mxu0 %v1577
    %4756 = vmatprep.subr.mxu0 0.0
    %4757 = vmatpush1.msra.mxu0 %v1580
    %4758 = vmatprep.subr.mxu0 0.0
    %4759 = vmatpush1.msra.mxu0 %v1583
    %4760 = vmatprep.subr.mxu0 0.0
    %4761 = vmatpush1.msra.mxu0 %v1586
    %4762 = vmatprep.subr.mxu0 0.0
    %4763 = vmatpush1.msra.mxu0 %v1589
    %4764 = vmatprep.subr.mxu0 0.0
    %4765 = vmatpush1.msra.mxu0 %v1592
    %4766 = vmatprep.subr.mxu0 0.0
    %4767 = vmatpush1.msra.mxu0 %v1595
    %4768 = vmatprep.subr.mxu0 0.0
    %4769 = vmatpush1.msra.mxu0 %v1598
    %4770 = vmatprep.subr.mxu0 0.0
    %4771 = vmatpush1.msra.mxu0 %v1601
    %4772 = vmatprep.subr.mxu0 0.0
    %4773 = vmatpush1.msra.mxu0 %v1604
    %4774 = vmatprep.subr.mxu0 0.0
    %4775 = vmatpush1.msra.mxu0 %v1607
    %4776 = vmatprep.subr.mxu0 0.0
    %4777 = vmatpush1.msra.mxu0 %v1610
    %4778 = vmatprep.subr.mxu0 0.0
    %4779 = vmatpush1.msra.mxu0 %v1613
    %4780 = vmatprep.subr.mxu0 0.0
    %4781 = vmatpush1.msra.mxu0 0.0
    %4782 = vmatprep.subr.mxu0 0.0
    %4783 = vmatpush1.msra.mxu0 0.0
    %4784 = vmatprep.subr.mxu0 0.0
    %4785 = vmatpush1.msra.mxu0 0.0
    %4786 = vmatprep.subr.mxu0 0.0
    %4787 = vmatpush1.msra.mxu0 0.0
    %4788 = vmatprep.subr.mxu0 0.0
    %4789 = vmatpush1.msra.mxu0 0.0
    %4790 = vmatprep.subr.mxu0 0.0
    %4791 = vmatpush1.msra.mxu0 0.0
    %4792 = vmatprep.subr.mxu0 0.0
    %4793 = vmatpush1.msra.mxu0 0.0
    %4794 = vmatprep.subr.mxu0 0.0
    %4795 = vmatpush1.msra.mxu0 0.0
    %4796 = vmatprep.subr.mxu0 0.0
    %4797 = vmatpush1.msra.mxu0 0.0
    %4798 = vmatprep.subr.mxu0 0.0
    %4799 = vmatpush1.msra.mxu0 0.0
    %4800 = vmatprep.subr.mxu0 0.0
    %4801 = vmatpush1.msra.mxu0 0.0
    %4802 = vmatprep.subr.mxu0 0.0
    %4803 = vmatpush1.msra.mxu0 0.0
    %4804 = vmatprep.subr.mxu0 0.0
    %4805 = vmatpush1.msra.mxu0 0.0
    %4806 = vmatprep.subr.mxu0 0.0
    %4807 = vmatpush1.msra.mxu0 0.0
    %4808 = vmatprep.subr.mxu0 0.0
    %4809 = vmatpush1.msra.mxu0 0.0
    %4810 = vmatprep.subr.mxu0 0.0
    %4811 = vmatpush1.msra.mxu0 0.0
    %4812 = vmatprep.mubr.f32.mxu0 0.0
    %4813 = vmatmul.mubr.f32.gmra.mrb[0].mxu0 %v4301
    %v4814 = vpop.f32.mrb[0].mxu0
    %v4815 = vadd.f32 %v1661, %v4814
    %v4816 = vpop.f32.mrb[0].mxu0
    %4817 = vdwg.mxu0
    %v4818 = vadd.f32 %v4603, %v4744
    %v4819 = vxor.u32 %v4818, 2147483648
    %v4820 = vmul.f32 %v4819, 1.442695
    %v4821 = vpow.pop %v4820
    %v4822 = vadd.f32 %v4821, 1.0
    %v4823 = vrcp.pop %v4822
    %v4824 = vmul.f32 1.0, %v4823
    %v4825 = vadd.f32 %v4605, %v4746
    %v4826 = vxor.u32 %v4825, 2147483648
    %v4827 = vmul.f32 %v4826, 1.442695
    %v4828 = vpow.pop %v4827
    %v4829 = vadd.f32 %v4828, 1.0
    %v4830 = vrcp.pop %v4829
    %v4831 = vmul.f32 1.0, %v4830
    %v4832 = vmul.f32 %v4824, %v4815
    %v4833 = vadd.f32 %v4674, %v4832
    %v4834 = vtanh.pop %v4833
    %v4835 = vsub.f32 1.0, %v4831
    %v4836 = vmul.f32 %v4835, %v4834
    %v4837 = vmul.f32 %v4831, %v4301
    %v4838 = vadd.f32 %v4836, %v4837
    %4839 = vmatprep.subr.mxu0 0.0
    %4840 = vmatpush1.msra.mxu0 %v1665
    %4841 = vmatprep.subr.mxu0 0.0
    %4842 = vmatpush1.msra.mxu0 %v1666
    %4843 = vmatprep.subr.mxu0 0.0
    %4844 = vmatpush1.msra.mxu0 %v1667
    %4845 = vmatprep.subr.mxu0 0.0
    %4846 = vmatpush1.msra.mxu0 %v1668
    %4847 = vmatprep.subr.mxu0 0.0
    %4848 = vmatpush1.msra.mxu0 %v1669
    %4849 = vmatprep.subr.mxu0 0.0
    %4850 = vmatpush1.msra.mxu0 %v1670
    %4851 = vmatprep.subr.mxu0 0.0
    %4852 = vmatpush1.msra.mxu0 %v1671
    %4853 = vmatprep.subr.mxu0 0.0
    %4854 = vmatpush1.msra.mxu0 %v1672
    %4855 = vmatprep.subr.mxu0 0.0
    %4856 = vmatpush1.msra.mxu0 %v1673
    %4857 = vmatprep.subr.mxu0 0.0
    %4858 = vmatpush1.msra.mxu0 %v1674
    %4859 = vmatprep.subr.mxu0 0.0
    %4860 = vmatpush1.msra.mxu0 %v1675
    %4861 = vmatprep.subr.mxu0 0.0
    %4862 = vmatpush1.msra.mxu0 %v1676
    %4863 = vmatprep.subr.mxu0 0.0
    %4864 = vmatpush1.msra.mxu0 %v1677
    %4865 = vmatprep.subr.mxu0 0.0
    %4866 = vmatpush1.msra.mxu0 %v1678
    %4867 = vmatprep.subr.mxu0 0.0
    %4868 = vmatpush1.msra.mxu0 %v1679
    %4869 = vmatprep.subr.mxu0 0.0
    %4870 = vmatpush1.msra.mxu0 %v1680
    %4871 = vmatprep.subr.mxu0 0.0
    %4872 = vmatpush1.msra.mxu0 0.0
    %4873 = vmatprep.subr.mxu0 0.0
    %4874 = vmatpush1.msra.mxu0 0.0
    %4875 = vmatprep.subr.mxu0 0.0
    %4876 = vmatpush1.msra.mxu0 0.0
    %4877 = vmatprep.subr.mxu0 0.0
    %4878 = vmatpush1.msra.mxu0 0.0
    %4879 = vmatprep.subr.mxu0 0.0
    %4880 = vmatpush1.msra.mxu0 0.0
    %4881 = vmatprep.subr.mxu0 0.0
    %4882 = vmatpush1.msra.mxu0 0.0
    %4883 = vmatprep.subr.mxu0 0.0
    %4884 = vmatpush1.msra.mxu0 0.0
    %4885 = vmatprep.subr.mxu0 0.0
    %4886 = vmatpush1.msra.mxu0 0.0
    %4887 = vmatprep.subr.mxu0 0.0
    %4888 = vmatpush1.msra.mxu0 0.0
    %4889 = vmatprep.subr.mxu0 0.0
    %4890 = vmatpush1.msra.mxu0 0.0
    %4891 = vmatprep.subr.mxu0 0.0
    %4892 = vmatpush1.msra.mxu0 0.0
    %4893 = vmatprep.subr.mxu0 0.0
    %4894 = vmatpush1.msra.mxu0 0.0
    %4895 = vmatprep.subr.mxu0 0.0
    %4896 = vmatpush1.msra.mxu0 0.0
    %4897 = vmatprep.subr.mxu0 0.0
    %4898 = vmatpush1.msra.mxu0 0.0
    %4899 = vmatprep.subr.mxu0 0.0
    %4900 = vmatpush1.msra.mxu0 0.0
    %4901 = vmatprep.subr.mxu0 0.0
    %4902 = vmatpush1.msra.mxu0 0.0
    %4903 = vmatprep.mubr.f32.mxu0 0.0
    %4904 = vmatmul.mubr.f32.gmra.mrb[0].mxu0 %v4838
    %v4905 = vpop.f32.mrb[0].mxu0
    %v4906 = vadd.f32 %v1686, %v4905
    %v4907 = vpop.f32.mrb[0].mxu0
    %4908 = vdwg.mxu0
    %s4909 = scalar_lea.vmem [#allocation14], 48
    %4910 = vst [vmem:[%s4909] sm:$0xff] %v4906
    %4911 = vmatprep.subr.mxu0 %v1519
    %4912 = vmatpush1.msra.mxu0 %v1518
    %4913 = vmatprep.subr.mxu0 %v1522
    %4914 = vmatpush1.msra.mxu0 %v1521
    %4915 = vmatprep.subr.mxu0 %v1525
    %4916 = vmatpush1.msra.mxu0 %v1524
    %4917 = vmatprep.subr.mxu0 %v1528
    %4918 = vmatpush1.msra.mxu0 %v1527
    %4919 = vmatprep.subr.mxu0 %v1531
    %4920 = vmatpush1.msra.mxu0 %v1530
    %4921 = vmatprep.subr.mxu0 %v1534
    %4922 = vmatpush1.msra.mxu0 %v1533
    %4923 = vmatprep.subr.mxu0 %v1537
    %4924 = vmatpush1.msra.mxu0 %v1536
    %4925 = vmatprep.subr.mxu0 %v1540
    %4926 = vmatpush1.msra.mxu0 %v1539
    %4927 = vmatprep.subr.mxu0 %v1543
    %4928 = vmatpush1.msra.mxu0 %v1542
    %4929 = vmatprep.subr.mxu0 %v1546
    %4930 = vmatpush1.msra.mxu0 %v1545
    %4931 = vmatprep.subr.mxu0 %v1549
    %4932 = vmatpush1.msra.mxu0 %v1548
    %4933 = vmatprep.subr.mxu0 %v1552
    %4934 = vmatpush1.msra.mxu0 %v1551
    %4935 = vmatprep.subr.mxu0 %v1555
    %4936 = vmatpush1.msra.mxu0 %v1554
    %4937 = vmatprep.subr.mxu0 %v1558
    %4938 = vmatpush1.msra.mxu0 %v1557
    %4939 = vmatprep.subr.mxu0 %v1561
    %4940 = vmatpush1.msra.mxu0 %v1560
    %4941 = vmatprep.subr.mxu0 %v1564
    %4942 = vmatpush1.msra.mxu0 %v1563
    %4943 = vmatprep.subr.mxu0 0.0
    %4944 = vmatpush1.msra.mxu0 0.0
    %4945 = vmatprep.subr.mxu0 0.0
    %4946 = vmatpush1.msra.mxu0 0.0
    %4947 = vmatprep.subr.mxu0 0.0
    %4948 = vmatpush1.msra.mxu0 0.0
    %4949 = vmatprep.subr.mxu0 0.0
    %4950 = vmatpush1.msra.mxu0 0.0
    %4951 = vmatprep.subr.mxu0 0.0
    %4952 = vmatpush1.msra.mxu0 0.0
    %4953 = vmatprep.subr.mxu0 0.0
    %4954 = vmatpush1.msra.mxu0 0.0
    %4955 = vmatprep.subr.mxu0 0.0
    %4956 = vmatpush1.msra.mxu0 0.0
    %4957 = vmatprep.subr.mxu0 0.0
    %4958 = vmatpush1.msra.mxu0 0.0
    %4959 = vmatprep.subr.mxu0 0.0
    %4960 = vmatpush1.msra.mxu0 0.0
    %4961 = vmatprep.subr.mxu0 0.0
    %4962 = vmatpush1.msra.mxu0 0.0
    %4963 = vmatprep.subr.mxu0 0.0
    %4964 = vmatpush1.msra.mxu0 0.0
    %4965 = vmatprep.subr.mxu0 0.0
    %4966 = vmatpush1.msra.mxu0 0.0
    %4967 = vmatprep.subr.mxu0 0.0
    %4968 = vmatpush1.msra.mxu0 0.0
    %4969 = vmatprep.subr.mxu0 0.0
    %4970 = vmatpush1.msra.mxu0 0.0
    %4971 = vmatprep.subr.mxu0 0.0
    %4972 = vmatpush1.msra.mxu0 0.0
    %4973 = vmatprep.subr.mxu0 0.0
    %4974 = vmatpush1.msra.mxu0 0.0
    %4975 = vmatprep.mubr.f32.mxu0 0.0
    %4976 = vmatmul.mubr.f32.gmra.mrb[0].mxu0 %v4535
    %v4977 = vpop.f32.mrb[0].mxu0
    %v4978 = vadd.f32 %v1636, %v4977
    %v4979 = vpop.f32.mrb[0].mxu0
    %v4980 = vadd.f32 %v1640, %v4979
    %4981 = vdwg.mxu0
    %4982 = vmatprep.subr.mxu0 0.0
    %4983 = vmatpush1.msra.mxu0 %v1520
    %4984 = vmatprep.subr.mxu0 0.0
    %4985 = vmatpush1.msra.mxu0 %v1523
    %4986 = vmatprep.subr.mxu0 0.0
    %4987 = vmatpush1.msra.mxu0 %v1526
    %4988 = vmatprep.subr.mxu0 0.0
    %4989 = vmatpush1.msra.mxu0 %v1529
    %4990 = vmatprep.subr.mxu0 0.0
    %4991 = vmatpush1.msra.mxu0 %v1532
    %4992 = vmatprep.subr.mxu0 0.0
    %4993 = vmatpush1.msra.mxu0 %v1535
    %4994 = vmatprep.subr.mxu0 0.0
    %4995 = vmatpush1.msra.mxu0 %v1538
    %4996 = vmatprep.subr.mxu0 0.0
    %4997 = vmatpush1.msra.mxu0 %v1541
    %4998 = vmatprep.subr.mxu0 0.0
    %4999 = vmatpush1.msra.mxu0 %v1544
    %5000 = vmatprep.subr.mxu0 0.0
    %5001 = vmatpush1.msra.mxu0 %v1547
    %5002 = vmatprep.subr.mxu0 0.0
    %5003 = vmatpush1.msra.mxu0 %v1550
    %5004 = vmatprep.subr.mxu0 0.0
    %5005 = vmatpush1.msra.mxu0 %v1553
    %5006 = vmatprep.subr.mxu0 0.0
    %5007 = vmatpush1.msra.mxu0 %v1556
    %5008 = vmatprep.subr.mxu0 0.0
    %5009 = vmatpush1.msra.mxu0 %v1559
    %5010 = vmatprep.subr.mxu0 0.0
    %5011 = vmatpush1.msra.mxu0 %v1562
    %5012 = vmatprep.subr.mxu0 0.0
    %5013 = vmatpush1.msra.mxu0 %v1565
    %5014 = vmatprep.subr.mxu0 0.0
    %5015 = vmatpush1.msra.mxu0 0.0
    %5016 = vmatprep.subr.mxu0 0.0
    %5017 = vmatpush1.msra.mxu0 0.0
    %5018 = vmatprep.subr.mxu0 0.0
    %5019 = vmatpush1.msra.mxu0 0.0
    %5020 = vmatprep.subr.mxu0 0.0
    %5021 = vmatpush1.msra.mxu0 0.0
    %5022 = vmatprep.subr.mxu0 0.0
    %5023 = vmatpush1.msra.mxu0 0.0
    %5024 = vmatprep.subr.mxu0 0.0
    %5025 = vmatpush1.msra.mxu0 0.0
    %5026 = vmatprep.subr.mxu0 0.0
    %5027 = vmatpush1.msra.mxu0 0.0
    %5028 = vmatprep.subr.mxu0 0.0
    %5029 = vmatpush1.msra.mxu0 0.0
    %5030 = vmatprep.subr.mxu0 0.0
    %5031 = vmatpush1.msra.mxu0 0.0
    %5032 = vmatprep.subr.mxu0 0.0
    %5033 = vmatpush1.msra.mxu0 0.0
    %5034 = vmatprep.subr.mxu0 0.0
    %5035 = vmatpush1.msra.mxu0 0.0
    %5036 = vmatprep.subr.mxu0 0.0
    %5037 = vmatpush1.msra.mxu0 0.0
    %5038 = vmatprep.subr.mxu0 0.0
    %5039 = vmatpush1.msra.mxu0 0.0
    %5040 = vmatprep.subr.mxu0 0.0
    %5041 = vmatpush1.msra.mxu0 0.0
    %5042 = vmatprep.subr.mxu0 0.0
    %5043 = vmatpush1.msra.mxu0 0.0
    %5044 = vmatprep.subr.mxu0 0.0
    %5045 = vmatpush1.msra.mxu0 0.0
    %5046 = vmatprep.mubr.f32.mxu0 0.0
    %5047 = vmatmul.mubr.f32.gmra.mrb[0].mxu0 %v4535
    %v5048 = vpop.f32.mrb[0].mxu0
    %v5049 = vadd.f32 %v1644, %v5048
    %v5050 = vpop.f32.mrb[0].mxu0
    %5051 = vdwg.mxu0
    %v5052 = vadd.f32 %v1467, %v4978
    %v5053 = vxor.u32 %v5052, 2147483648
    %v5054 = vmul.f32 %v5053, 1.442695
    %v5055 = vpow.pop %v5054
    %v5056 = vadd.f32 %v5055, 1.0
    %v5057 = vrcp.pop %v5056
    %v5058 = vmul.f32 1.0, %v5057
    %v5059 = vadd.f32 %v1468, %v4980
    %v5060 = vxor.u32 %v5059, 2147483648
    %v5061 = vmul.f32 %v5060, 1.442695
    %v5062 = vpow.pop %v5061
    %v5063 = vadd.f32 %v5062, 1.0
    %v5064 = vrcp.pop %v5063
    %v5065 = vmul.f32 1.0, %v5064
    %v5066 = vmul.f32 %v5058, %v5049
    %v5067 = vadd.f32 %v1469, %v5066
    %v5068 = vtanh.pop %v5067
    %v5069 = vsub.f32 1.0, %v5065
    %v5070 = vmul.f32 %v5069, %v5068
    %v5071 = vmul.f32 %v5065, %v4535
    %v5072 = vadd.f32 %v5070, %v5071
    %5073 = vmatprep.subr.mxu0 %v1471
    %5074 = vmatpush1.msra.mxu0 %v1470
    %5075 = vmatprep.subr.mxu0 %v1474
    %5076 = vmatpush1.msra.mxu0 %v1473
    %5077 = vmatprep.subr.mxu0 %v1477
    %5078 = vmatpush1.msra.mxu0 %v1476
    %5079 = vmatprep.subr.mxu0 %v1480
    %5080 = vmatpush1.msra.mxu0 %v1479
    %5081 = vmatprep.subr.mxu0 %v1483
    %5082 = vmatpush1.msra.mxu0 %v1482
    %5083 = vmatprep.subr.mxu0 %v1486
    %5084 = vmatpush1.msra.mxu0 %v1485
    %5085 = vmatprep.subr.mxu0 %v1489
    %5086 = vmatpush1.msra.mxu0 %v1488
    %5087 = vmatprep.subr.mxu0 %v1492
    %5088 = vmatpush1.msra.mxu0 %v1491
    %5089 = vmatprep.subr.mxu0 %v1495
    %5090 = vmatpush1.msra.mxu0 %v1494
    %5091 = vmatprep.subr.mxu0 %v1498
    %5092 = vmatpush1.msra.mxu0 %v1497
    %5093 = vmatprep.subr.mxu0 %v1501
    %5094 = vmatpush1.msra.mxu0 %v1500
    %5095 = vmatprep.subr.mxu0 %v1504
    %5096 = vmatpush1.msra.mxu0 %v1503
    %5097 = vmatprep.subr.mxu0 %v1507
    %5098 = vmatpush1.msra.mxu0 %v1506
    %5099 = vmatprep.subr.mxu0 %v1510
    %5100 = vmatpush1.msra.mxu0 %v1509
    %5101 = vmatprep.subr.mxu0 %v1513
    %5102 = vmatpush1.msra.mxu0 %v1512
    %5103 = vmatprep.subr.mxu0 %v1516
    %5104 = vmatpush1.msra.mxu0 %v1515
    %5105 = vmatprep.subr.mxu0 0.0
    %5106 = vmatpush1.msra.mxu0 0.0
    %5107 = vmatprep.subr.mxu0 0.0
    %5108 = vmatpush1.msra.mxu0 0.0
    %5109 = vmatprep.subr.mxu0 0.0
    %5110 = vmatpush1.msra.mxu0 0.0
    %5111 = vmatprep.subr.mxu0 0.0
    %5112 = vmatpush1.msra.mxu0 0.0
    %5113 = vmatprep.subr.mxu0 0.0
    %5114 = vmatpush1.msra.mxu0 0.0
    %5115 = vmatprep.subr.mxu0 0.0
    %5116 = vmatpush1.msra.mxu0 0.0
    %5117 = vmatprep.subr.mxu0 0.0
    %5118 = vmatpush1.msra.mxu0 0.0
    %5119 = vmatprep.subr.mxu0 0.0
    %5120 = vmatpush1.msra.mxu0 0.0
    %5121 = vmatprep.subr.mxu0 0.0
    %5122 = vmatpush1.msra.mxu0 0.0
    %5123 = vmatprep.subr.mxu0 0.0
    %5124 = vmatpush1.msra.mxu0 0.0
    %5125 = vmatprep.subr.mxu0 0.0
    %5126 = vmatpush1.msra.mxu0 0.0
    %5127 = vmatprep.subr.mxu0 0.0
    %5128 = vmatpush1.msra.mxu0 0.0
    %5129 = vmatprep.subr.mxu0 0.0
    %5130 = vmatpush1.msra.mxu0 0.0
    %5131 = vmatprep.subr.mxu0 0.0
    %5132 = vmatpush1.msra.mxu0 0.0
    %5133 = vmatprep.subr.mxu0 0.0
    %5134 = vmatpush1.msra.mxu0 0.0
    %5135 = vmatprep.subr.mxu0 0.0
    %5136 = vmatpush1.msra.mxu0 0.0
    %5137 = vmatprep.mubr.f32.mxu0 0.0
    %5138 = vmatmul.mubr.f32.gmra.mrb[0].mxu0 %v5072
    %v5139 = vpop.f32.mrb[0].mxu0
    %v5140 = vadd.f32 %v1619, %v5139
    %v5141 = vpop.f32.mrb[0].mxu0
    %v5142 = vadd.f32 %v1623, %v5141
    %5143 = vdwg.mxu0
    %5144 = vmatprep.subr.mxu0 0.0
    %5145 = vmatpush1.msra.mxu0 %v1472
    %5146 = vmatprep.subr.mxu0 0.0
    %5147 = vmatpush1.msra.mxu0 %v1475
    %5148 = vmatprep.subr.mxu0 0.0
    %5149 = vmatpush1.msra.mxu0 %v1478
    %5150 = vmatprep.subr.mxu0 0.0
    %5151 = vmatpush1.msra.mxu0 %v1481
    %5152 = vmatprep.subr.mxu0 0.0
    %5153 = vmatpush1.msra.mxu0 %v1484
    %5154 = vmatprep.subr.mxu0 0.0
    %5155 = vmatpush1.msra.mxu0 %v1487
    %5156 = vmatprep.subr.mxu0 0.0
    %5157 = vmatpush1.msra.mxu0 %v1490
    %5158 = vmatprep.subr.mxu0 0.0
    %5159 = vmatpush1.msra.mxu0 %v1493
    %5160 = vmatprep.subr.mxu0 0.0
    %5161 = vmatpush1.msra.mxu0 %v1496
    %5162 = vmatprep.subr.mxu0 0.0
    %5163 = vmatpush1.msra.mxu0 %v1499
    %5164 = vmatprep.subr.mxu0 0.0
    %5165 = vmatpush1.msra.mxu0 %v1502
    %5166 = vmatprep.subr.mxu0 0.0
    %5167 = vmatpush1.msra.mxu0 %v1505
    %5168 = vmatprep.subr.mxu0 0.0
    %5169 = vmatpush1.msra.mxu0 %v1508
    %5170 = vmatprep.subr.mxu0 0.0
    %5171 = vmatpush1.msra.mxu0 %v1511
    %5172 = vmatprep.subr.mxu0 0.0
    %5173 = vmatpush1.msra.mxu0 %v1514
    %5174 = vmatprep.subr.mxu0 0.0
    %5175 = vmatpush1.msra.mxu0 %v1517
    %5176 = vmatprep.subr.mxu0 0.0
    %5177 = vmatpush1.msra.mxu0 0.0
    %5178 = vmatprep.subr.mxu0 0.0
    %5179 = vmatpush1.msra.mxu0 0.0
    %5180 = vmatprep.subr.mxu0 0.0
    %5181 = vmatpush1.msra.mxu0 0.0
    %5182 = vmatprep.subr.mxu0 0.0
    %5183 = vmatpush1.msra.mxu0 0.0
    %5184 = vmatprep.subr.mxu0 0.0
    %5185 = vmatpush1.msra.mxu0 0.0
    %5186 = vmatprep.subr.mxu0 0.0
    %5187 = vmatpush1.msra.mxu0 0.0
    %5188 = vmatprep.subr.mxu0 0.0
    %5189 = vmatpush1.msra.mxu0 0.0
    %5190 = vmatprep.subr.mxu0 0.0
    %5191 = vmatpush1.msra.mxu0 0.0
    %5192 = vmatprep.subr.mxu0 0.0
    %5193 = vmatpush1.msra.mxu0 0.0
    %5194 = vmatprep.subr.mxu0 0.0
    %5195 = vmatpush1.msra.mxu0 0.0
    %5196 = vmatprep.subr.mxu0 0.0
    %5197 = vmatpush1.msra.mxu0 0.0
    %5198 = vmatprep.subr.mxu0 0.0
    %5199 = vmatpush1.msra.mxu0 0.0
    %5200 = vmatprep.subr.mxu0 0.0
    %5201 = vmatpush1.msra.mxu0 0.0
    %5202 = vmatprep.subr.mxu0 0.0
    %5203 = vmatpush1.msra.mxu0 0.0
    %5204 = vmatprep.subr.mxu0 0.0
    %5205 = vmatpush1.msra.mxu0 0.0
    %5206 = vmatprep.subr.mxu0 0.0
    %5207 = vmatpush1.msra.mxu0 0.0
    %5208 = vmatprep.mubr.f32.mxu0 0.0
    %5209 = vmatmul.mubr.f32.gmra.mrb[0].mxu0 %v5072
    %v5210 = vpop.f32.mrb[0].mxu0
    %v5211 = vadd.f32 %v1627, %v5210
    %v5212 = vpop.f32.mrb[0].mxu0
    %5213 = vdwg.mxu0
    %5214 = vmatprep.subr.mxu0 %v1567
    %5215 = vmatpush1.msra.mxu0 %v1566
    %5216 = vmatprep.subr.mxu0 %v1570
    %5217 = vmatpush1.msra.mxu0 %v1569
    %5218 = vmatprep.subr.mxu0 %v1573
    %5219 = vmatpush1.msra.mxu0 %v1572
    %5220 = vmatprep.subr.mxu0 %v1576
    %5221 = vmatpush1.msra.mxu0 %v1575
    %5222 = vmatprep.subr.mxu0 %v1579
    %5223 = vmatpush1.msra.mxu0 %v1578
    %5224 = vmatprep.subr.mxu0 %v1582
    %5225 = vmatpush1.msra.mxu0 %v1581
    %5226 = vmatprep.subr.mxu0 %v1585
    %5227 = vmatpush1.msra.mxu0 %v1584
    %5228 = vmatprep.subr.mxu0 %v1588
    %5229 = vmatpush1.msra.mxu0 %v1587
    %5230 = vmatprep.subr.mxu0 %v1591
    %5231 = vmatpush1.msra.mxu0 %v1590
    %5232 = vmatprep.subr.mxu0 %v1594
    %5233 = vmatpush1.msra.mxu0 %v1593
    %5234 = vmatprep.subr.mxu0 %v1597
    %5235 = vmatpush1.msra.mxu0 %v1596
    %5236 = vmatprep.subr.mxu0 %v1600
    %5237 = vmatpush1.msra.mxu0 %v1599
    %5238 = vmatprep.subr.mxu0 %v1603
    %5239 = vmatpush1.msra.mxu0 %v1602
    %5240 = vmatprep.subr.mxu0 %v1606
    %5241 = vmatpush1.msra.mxu0 %v1605
    %5242 = vmatprep.subr.mxu0 %v1609
    %5243 = vmatpush1.msra.mxu0 %v1608
    %5244 = vmatprep.subr.mxu0 %v1612
    %5245 = vmatpush1.msra.mxu0 %v1611
    %5246 = vmatprep.subr.mxu0 0.0
    %5247 = vmatpush1.msra.mxu0 0.0
    %5248 = vmatprep.subr.mxu0 0.0
    %5249 = vmatpush1.msra.mxu0 0.0
    %5250 = vmatprep.subr.mxu0 0.0
    %5251 = vmatpush1.msra.mxu0 0.0
    %5252 = vmatprep.subr.mxu0 0.0
    %5253 = vmatpush1.msra.mxu0 0.0
    %5254 = vmatprep.subr.mxu0 0.0
    %5255 = vmatpush1.msra.mxu0 0.0
    %5256 = vmatprep.subr.mxu0 0.0
    %5257 = vmatpush1.msra.mxu0 0.0
    %5258 = vmatprep.subr.mxu0 0.0
    %5259 = vmatpush1.msra.mxu0 0.0
    %5260 = vmatprep.subr.mxu0 0.0
    %5261 = vmatpush1.msra.mxu0 0.0
    %5262 = vmatprep.subr.mxu0 0.0
    %5263 = vmatpush1.msra.mxu0 0.0
    %5264 = vmatprep.subr.mxu0 0.0
    %5265 = vmatpush1.msra.mxu0 0.0
    %5266 = vmatprep.subr.mxu0 0.0
    %5267 = vmatpush1.msra.mxu0 0.0
    %5268 = vmatprep.subr.mxu0 0.0
    %5269 = vmatpush1.msra.mxu0 0.0
    %5270 = vmatprep.subr.mxu0 0.0
    %5271 = vmatpush1.msra.mxu0 0.0
    %5272 = vmatprep.subr.mxu0 0.0
    %5273 = vmatpush1.msra.mxu0 0.0
    %5274 = vmatprep.subr.mxu0 0.0
    %5275 = vmatpush1.msra.mxu0 0.0
    %5276 = vmatprep.subr.mxu0 0.0
    %5277 = vmatpush1.msra.mxu0 0.0
    %5278 = vmatprep.mubr.f32.mxu0 0.0
    %5279 = vmatmul.mubr.f32.gmra.mrb[0].mxu0 %v4838
    %v5280 = vpop.f32.mrb[0].mxu0
    %v5281 = vadd.f32 %v1653, %v5280
    %v5282 = vpop.f32.mrb[0].mxu0
    %v5283 = vadd.f32 %v1657, %v5282
    %5284 = vdwg.mxu0
    %5285 = vmatprep.subr.mxu0 0.0
    %5286 = vmatpush1.msra.mxu0 %v1568
    %5287 = vmatprep.subr.mxu0 0.0
    %5288 = vmatpush1.msra.mxu0 %v1571
    %5289 = vmatprep.subr.mxu0 0.0
    %5290 = vmatpush1.msra.mxu0 %v1574
    %5291 = vmatprep.subr.mxu0 0.0
    %5292 = vmatpush1.msra.mxu0 %v1577
    %5293 = vmatprep.subr.mxu0 0.0
    %5294 = vmatpush1.msra.mxu0 %v1580
    %5295 = vmatprep.subr.mxu0 0.0
    %5296 = vmatpush1.msra.mxu0 %v1583
    %5297 = vmatprep.subr.mxu0 0.0
    %5298 = vmatpush1.msra.mxu0 %v1586
    %5299 = vmatprep.subr.mxu0 0.0
    %5300 = vmatpush1.msra.mxu0 %v1589
    %5301 = vmatprep.subr.mxu0 0.0
    %5302 = vmatpush1.msra.mxu0 %v1592
    %5303 = vmatprep.subr.mxu0 0.0
    %5304 = vmatpush1.msra.mxu0 %v1595
    %5305 = vmatprep.subr.mxu0 0.0
    %5306 = vmatpush1.msra.mxu0 %v1598
    %5307 = vmatprep.subr.mxu0 0.0
    %5308 = vmatpush1.msra.mxu0 %v1601
    %5309 = vmatprep.subr.mxu0 0.0
    %5310 = vmatpush1.msra.mxu0 %v1604
    %5311 = vmatprep.subr.mxu0 0.0
    %5312 = vmatpush1.msra.mxu0 %v1607
    %5313 = vmatprep.subr.mxu0 0.0
    %5314 = vmatpush1.msra.mxu0 %v1610
    %5315 = vmatprep.subr.mxu0 0.0
    %5316 = vmatpush1.msra.mxu0 %v1613
    %5317 = vmatprep.subr.mxu0 0.0
    %5318 = vmatpush1.msra.mxu0 0.0
    %5319 = vmatprep.subr.mxu0 0.0
    %5320 = vmatpush1.msra.mxu0 0.0
    %5321 = vmatprep.subr.mxu0 0.0
    %5322 = vmatpush1.msra.mxu0 0.0
    %5323 = vmatprep.subr.mxu0 0.0
    %5324 = vmatpush1.msra.mxu0 0.0
    %5325 = vmatprep.subr.mxu0 0.0
    %5326 = vmatpush1.msra.mxu0 0.0
    %5327 = vmatprep.subr.mxu0 0.0
    %5328 = vmatpush1.msra.mxu0 0.0
    %5329 = vmatprep.subr.mxu0 0.0
    %5330 = vmatpush1.msra.mxu0 0.0
    %5331 = vmatprep.subr.mxu0 0.0
    %5332 = vmatpush1.msra.mxu0 0.0
    %5333 = vmatprep.subr.mxu0 0.0
    %5334 = vmatpush1.msra.mxu0 0.0
    %5335 = vmatprep.subr.mxu0 0.0
    %5336 = vmatpush1.msra.mxu0 0.0
    %5337 = vmatprep.subr.mxu0 0.0
    %5338 = vmatpush1.msra.mxu0 0.0
    %5339 = vmatprep.subr.mxu0 0.0
    %5340 = vmatpush1.msra.mxu0 0.0
    %5341 = vmatprep.subr.mxu0 0.0
    %5342 = vmatpush1.msra.mxu0 0.0
    %5343 = vmatprep.subr.mxu0 0.0
    %5344 = vmatpush1.msra.mxu0 0.0
    %5345 = vmatprep.subr.mxu0 0.0
    %5346 = vmatpush1.msra.mxu0 0.0
    %5347 = vmatprep.subr.mxu0 0.0
    %5348 = vmatpush1.msra.mxu0 0.0
    %5349 = vmatprep.mubr.f32.mxu0 0.0
    %5350 = vmatmul.mubr.f32.gmra.mrb[0].mxu0 %v4838
    %v5351 = vpop.f32.mrb[0].mxu0
    %v5352 = vadd.f32 %v1661, %v5351
    %v5353 = vpop.f32.mrb[0].mxu0
    %5354 = vdwg.mxu0
    %v5355 = vadd.f32 %v5140, %v5281
    %v5356 = vxor.u32 %v5355, 2147483648
    %v5357 = vmul.f32 %v5356, 1.442695
    %v5358 = vpow.pop %v5357
    %v5359 = vadd.f32 %v5358, 1.0
    %v5360 = vrcp.pop %v5359
    %v5361 = vmul.f32 1.0, %v5360
    %v5362 = vadd.f32 %v5142, %v5283
    %v5363 = vxor.u32 %v5362, 2147483648
    %v5364 = vmul.f32 %v5363, 1.442695
    %v5365 = vpow.pop %v5364
    %v5366 = vadd.f32 %v5365, 1.0
    %v5367 = vrcp.pop %v5366
    %v5368 = vmul.f32 1.0, %v5367
    %v5369 = vmul.f32 %v5361, %v5352
    %v5370 = vadd.f32 %v5211, %v5369
    %v5371 = vtanh.pop %v5370
    %v5372 = vsub.f32 1.0, %v5368
    %v5373 = vmul.f32 %v5372, %v5371
    %v5374 = vmul.f32 %v5368, %v4838
    %v5375 = vadd.f32 %v5373, %v5374
    %5376 = vmatprep.subr.mxu0 0.0
    %5377 = vmatpush1.msra.mxu0 %v1665
    %5378 = vmatprep.subr.mxu0 0.0
    %5379 = vmatpush1.msra.mxu0 %v1666
    %5380 = vmatprep.subr.mxu0 0.0
    %5381 = vmatpush1.msra.mxu0 %v1667
    %5382 = vmatprep.subr.mxu0 0.0
    %5383 = vmatpush1.msra.mxu0 %v1668
    %5384 = vmatprep.subr.mxu0 0.0
    %5385 = vmatpush1.msra.mxu0 %v1669
    %5386 = vmatprep.subr.mxu0 0.0
    %5387 = vmatpush1.msra.mxu0 %v1670
    %5388 = vmatprep.subr.mxu0 0.0
    %5389 = vmatpush1.msra.mxu0 %v1671
    %5390 = vmatprep.subr.mxu0 0.0
    %5391 = vmatpush1.msra.mxu0 %v1672
    %5392 = vmatprep.subr.mxu0 0.0
    %5393 = vmatpush1.msra.mxu0 %v1673
    %5394 = vmatprep.subr.mxu0 0.0
    %5395 = vmatpush1.msra.mxu0 %v1674
    %5396 = vmatprep.subr.mxu0 0.0
    %5397 = vmatpush1.msra.mxu0 %v1675
    %5398 = vmatprep.subr.mxu0 0.0
    %5399 = vmatpush1.msra.mxu0 %v1676
    %5400 = vmatprep.subr.mxu0 0.0
    %5401 = vmatpush1.msra.mxu0 %v1677
    %5402 = vmatprep.subr.mxu0 0.0
    %5403 = vmatpush1.msra.mxu0 %v1678
    %5404 = vmatprep.subr.mxu0 0.0
    %5405 = vmatpush1.msra.mxu0 %v1679
    %5406 = vmatprep.subr.mxu0 0.0
    %5407 = vmatpush1.msra.mxu0 %v1680
    %5408 = vmatprep.subr.mxu0 0.0
    %5409 = vmatpush1.msra.mxu0 0.0
    %5410 = vmatprep.subr.mxu0 0.0
    %5411 = vmatpush1.msra.mxu0 0.0
    %5412 = vmatprep.subr.mxu0 0.0
    %5413 = vmatpush1.msra.mxu0 0.0
    %5414 = vmatprep.subr.mxu0 0.0
    %5415 = vmatpush1.msra.mxu0 0.0
    %5416 = vmatprep.subr.mxu0 0.0
    %5417 = vmatpush1.msra.mxu0 0.0
    %5418 = vmatprep.subr.mxu0 0.0
    %5419 = vmatpush1.msra.mxu0 0.0
    %5420 = vmatprep.subr.mxu0 0.0
    %5421 = vmatpush1.msra.mxu0 0.0
    %5422 = vmatprep.subr.mxu0 0.0
    %5423 = vmatpush1.msra.mxu0 0.0
    %5424 = vmatprep.subr.mxu0 0.0
    %5425 = vmatpush1.msra.mxu0 0.0
    %5426 = vmatprep.subr.mxu0 0.0
    %5427 = vmatpush1.msra.mxu0 0.0
    %5428 = vmatprep.subr.mxu0 0.0
    %5429 = vmatpush1.msra.mxu0 0.0
    %5430 = vmatprep.subr.mxu0 0.0
    %5431 = vmatpush1.msra.mxu0 0.0
    %5432 = vmatprep.subr.mxu0 0.0
    %5433 = vmatpush1.msra.mxu0 0.0
    %5434 = vmatprep.subr.mxu0 0.0
    %5435 = vmatpush1.msra.mxu0 0.0
    %5436 = vmatprep.subr.mxu0 0.0
    %5437 = vmatpush1.msra.mxu0 0.0
    %5438 = vmatprep.subr.mxu0 0.0
    %5439 = vmatpush1.msra.mxu0 0.0
    %5440 = vmatprep.mubr.f32.mxu0 0.0
    %5441 = vmatmul.mubr.f32.gmra.mrb[0].mxu0 %v5375
    %v5442 = vpop.f32.mrb[0].mxu0
    %v5443 = vadd.f32 %v1686, %v5442
    %v5444 = vpop.f32.mrb[0].mxu0
    %5445 = vdwg.mxu0
    %s5446 = scalar_lea.vmem [#allocation14], 56
    %5447 = vst [vmem:[%s5446] sm:$0xff] %v5443
    // Predicated region
    $region102: #{tpu_custom_call.1} parent=1 // pred_check
      _
    $region103: #{tpu_custom_call.1} parent=1 // pred_check_branch
      %5449 = sbr.rel (0) target = $region105
    $region104: #{tpu_custom_call.1} parent=1 // pred_region
      %s5451 = ssub.s32 1024, 1024
      %5452 = vsyncadd [#allocation4], %s5451
      %s5453 = sshll.u32 [#allocation14], 4
      %s5454 = int_to_ptr.vmem [resolvable:$true] %s5453
      %5459 = dma.vmem_to_hbm [thread:$0]  %s5454, 1024, %s18, [#allocation4], 128, 128, 8
    $region105: #{tpu_custom_call.1} parent=1 // pred_fallthru
      _
    // Predicated region
    $region106: #{tpu_custom_call.1} parent=1 // pred_check
      _
    $region107: #{tpu_custom_call.1} parent=1 // pred_check_branch
      %5461 = sbr.rel (0) target = $region109
    $region108: #{tpu_custom_call.1} parent=1 // pred_region
      %5462 = dma.done [#allocation4], 1024
    $region109: #{tpu_custom_call.1} parent=1 // pred_fallthru
      _
    %5463 = vsyncpa [#allocation3], 1
    %5464 = vsyncpa [#allocation6], 1
    %5465 = vsyncpa [#allocation9], 1
    %5466 = vsyncpa [#allocation12], 1
    %5467 = vsyncpa [#allocation4], 1

</llo_original>
